<compile_context>
chip_gen: v6e
topology: v6e:2x2x1
jax: 0.10.0
libtpu: 0.0.40
codegen_flags: <defaults>
</compile_context>

<pallas_src>
import math

import jax
import jax.numpy as jnp
from jax import lax
from jax.experimental import pallas as pl
from jax.experimental.pallas import tpu as pltpu

D_MODEL = 512
N_HEADS = 8
D_HEAD = D_MODEL // N_HEADS          # 64
N_GROUPS = 4
N_KV_HEADS = N_HEADS // N_GROUPS     # 2
GROUP_SIZE = N_HEADS // N_KV_HEADS   # 4 query heads per kv head
D_Q = N_HEADS * D_HEAD               # 512
D_KV = N_KV_HEADS * D_HEAD           # 128
D_QKV = D_Q + 2 * D_KV               # 768


# --------------------- chip-dependent knobs (trace-time) --------------------
_VMEM_LIMIT = None


def _vmem_limit_bytes():
    """64 MiB scoped VMEM on 128-MiB parts (v5e/v6e); 32 MiB on v7x/unknown."""
    global _VMEM_LIMIT
    if _VMEM_LIMIT is None:
        cap = 0
        try:
            cap = int(getattr(pltpu.get_tpu_info(), "vmem_capacity_bytes", 0) or 0)
        except Exception:
            cap = 0
        _VMEM_LIMIT = (64 if cap >= 128 * 1024 * 1024 else 32) * 1024 * 1024
    return _VMEM_LIMIT


_BF16_EXP = None


def _use_bf16_exp():
    """bf16 EUP exp on v6e/v7x; keep f32 exp on v5e and older (no bf16 EUP)."""
    global _BF16_EXP
    if _BF16_EXP is None:
        try:
            kind = jax.devices()[0].device_kind.lower()
            _BF16_EXP = not any(t in kind for t in ("v2", "v3", "v4", "v5"))
        except Exception:
            _BF16_EXP = False
    return _BF16_EXP


def _tile_m(m):
    """Largest M tile <= 512 dividing m (whole array if m <= 512)."""
    if m <= 512:
        return m
    for t in (512, 256, 128, 64, 32, 16, 8):
        if m % t == 0:
            return t
    return m


def _tile_q(s):
    """Query tile (<= 256) so the (GROUP_SIZE*TQ, S) f32 scores stay small."""
    for t in (256, 128, 64, 32, 16, 8):
        if s % t == 0:
            return t
    return s


# ---------------------------------------------------------------------------
# Kernel 1: fused QKV projection   [q|k|v] = x @ [Wq|Wk|Wv] + [bq|bk|bv]
#   (Wq / bq arrive pre-scaled by 1/sqrt(D_HEAD).)
# ---------------------------------------------------------------------------
def qkv_proj_kernel(x_ref, w_ref, b_ref, q_ref, k_ref, v_ref):
    x = x_ref[...].astype(jnp.bfloat16)                       # cast in VMEM
    acc = jnp.dot(x, w_ref[...], preferred_element_type=jnp.float32)
    acc = acc + b_ref[...]
    q_ref[...] = acc[:, :D_Q].astype(q_ref.dtype)             # 128-aligned slices
    k_ref[...] = acc[:, D_Q:D_Q + D_KV].astype(k_ref.dtype)
    v_ref[...] = acc[:, D_Q + D_KV:].astype(v_ref.dtype)


def qkv_projection(x2d, w_qkv, b_qkv):
    """x2d: (M, D_MODEL) f32; w_qkv: (D_MODEL, D_QKV) bf16; b_qkv: (D_QKV,) f32."""
    M, K = x2d.shape
    tm = _tile_m(M)
    flops = 2 * M * K * D_QKV
    bytes_accessed = M * K * 4 + K * D_QKV * 2 + M * D_QKV * 2
    return pl.pallas_call(
        qkv_proj_kernel,
        out_shape=(
            jax.ShapeDtypeStruct((M, D_Q), jnp.bfloat16),
            jax.ShapeDtypeStruct((M, D_KV), jnp.bfloat16),
            jax.ShapeDtypeStruct((M, D_KV), jnp.bfloat16),
        ),
        grid=(M // tm,),
        in_specs=[
            pl.BlockSpec((tm, K), lambda m: (m, 0)),
            pl.BlockSpec((K, D_QKV), lambda m: (0, 0)),        # resident weight
            pl.BlockSpec((1, D_QKV), lambda m: (0, 0)),
        ],
        out_specs=(
            pl.BlockSpec((tm, D_Q), lambda m: (m, 0)),
            pl.BlockSpec((tm, D_KV), lambda m: (m, 0)),
            pl.BlockSpec((tm, D_KV), lambda m: (m, 0)),
        ),
        compiler_params=pltpu.CompilerParams(
            dimension_semantics=("parallel",),
            vmem_limit_bytes=_vmem_limit_bytes()),
        cost_estimate=pl.CostEstimate(flops=int(flops), transcendentals=0,
                                      bytes_accessed=int(bytes_accessed)),
    )(x2d, w_qkv, b_qkv.reshape(1, D_QKV))


# ---------------------------------------------------------------------------
# Kernel 2: generic tiled linear  y = x @ W + b   (used for the out-projection)
# ---------------------------------------------------------------------------
def linear_kernel(x_ref, w_ref, b_ref, o_ref):
    acc = jnp.dot(x_ref[...].astype(jnp.bfloat16), w_ref[...],
                  preferred_element_type=jnp.float32)
    o_ref[...] = (acc + b_ref[...]).astype(o_ref.dtype)


def linear(x2d, w_bf16, b, out_dtype=jnp.float32):
    M, K = x2d.shape
    _, N = w_bf16.shape
    tm = _tile_m(M)
    flops = 2 * M * K * N
    bytes_accessed = (M * K * x2d.dtype.itemsize + K * N * 2
                      + M * N * jnp.dtype(out_dtype).itemsize)
    return pl.pallas_call(
        linear_kernel,
        out_shape=jax.ShapeDtypeStruct((M, N), out_dtype),
        grid=(M // tm,),
        in_specs=[
            pl.BlockSpec((tm, K), lambda m: (m, 0)),
            pl.BlockSpec((K, N), lambda m: (0, 0)),
            pl.BlockSpec((1, N), lambda m: (0, 0)),
        ],
        out_specs=pl.BlockSpec((tm, N), lambda m: (m, 0)),
        compiler_params=pltpu.CompilerParams(
            dimension_semantics=("parallel",),
            vmem_limit_bytes=_vmem_limit_bytes()),
        cost_estimate=pl.CostEstimate(flops=int(flops), transcendentals=0,
                                      bytes_accessed=int(bytes_accessed)),
    )(x2d, w_bf16, b.reshape(1, N))


# ---------------------------------------------------------------------------
# Kernel 3: grouped attention, one (batch, kv-group, query-tile) per grid step
#   q: (B, N_HEADS, S, D_HEAD)  k,v: (B, N_KV_HEADS, S, D_HEAD)
#   o: (B, S, N_HEADS*D_HEAD)   (all bf16; q pre-scaled by 1/sqrt(D_HEAD))
# ---------------------------------------------------------------------------
def gqa_attn_kernel(q_ref, k_ref, v_ref, o_ref):
    tq = q_ref.shape[2]
    # Stack the group's 4 query heads along rows: (GROUP_SIZE*TQ, D_HEAD).
    q = q_ref[0].reshape(GROUP_SIZE * tq, D_HEAD)              # bf16
    k = k_ref[0, 0]                                            # (S, D_HEAD) bf16
    v = v_ref[0, 0]                                            # (S, D_HEAD) bf16

    # One stacked score matmul: q @ k^T without materializing the transpose.
    s = lax.dot_general(q, k, (((1,), (1,)), ((), ())),
                        preferred_element_type=jnp.float32)    # (G*TQ, S) f32

    # Single softmax stats pass over all heads in the group (exact, full row).
    m = jnp.max(s, axis=-1, keepdims=True)                     # (G*TQ, 1) f32
    if _use_bf16_exp():
        p = jnp.exp((s - m).astype(jnp.bfloat16))              # bf16 EUP exp (v6e/v7x)
    else:
        p = jnp.exp(s - m).astype(jnp.bfloat16)                # f32 exp (v5e path)
    l = jnp.sum(p.astype(jnp.float32), axis=-1, keepdims=True)  # (G*TQ, 1) f32
    inv_l = pl.reciprocal(l, approx=True)                      # EUP divide

    # Per-head PV (S-deep contraction is already MXU-efficient); normalize after.
    outs = []
    for j in range(GROUP_SIZE):
        p_j = p[j * tq:(j + 1) * tq, :]                        # sublane slice, aligned
        o_j = jnp.dot(p_j, v, preferred_element_type=jnp.float32)   # (TQ, D_HEAD) f32
        o_j = o_j * inv_l[j * tq:(j + 1) * tq, :]
        outs.append(o_j.astype(jnp.bfloat16))

    # Assemble in bf16 once and do a single lane-dense (TQ, 256) store.
    o_ref[0] = jnp.concatenate(outs, axis=-1)


def gqa_attention(q, k, v):
    """q: (B, H, S, D) bf16 pre-scaled; k, v: (B, Hkv, S, D) bf16.
    Returns (B, S, H*D) bf16 in PyTorch's transpose(1,2).view lane order."""
    B, _, S, _ = q.shape
    tq = _tile_q(S)
    nq = S // tq
    flops = 2 * B * N_HEADS * S * S * D_HEAD * 2
    transcendentals = B * N_HEADS * S * S
    bytes_accessed = 2 * (q.size + k.size + v.size) + 2 * B * S * D_Q
    return pl.pallas_call(
        gqa_attn_kernel,
        out_shape=jax.ShapeDtypeStruct((B, S, D_Q), jnp.bfloat16),
        grid=(B, N_KV_HEADS, nq),
        in_specs=[
            # Heads [g*GROUP_SIZE, (g+1)*GROUP_SIZE) selected by BlockSpec.
            pl.BlockSpec((1, GROUP_SIZE, tq, D_HEAD), lambda b, g, qi: (b, g, qi, 0)),
            # K/V index independent of the innermost qi axis -> block reuse, no re-DMA.
            pl.BlockSpec((1, 1, S, D_HEAD), lambda b, g, qi: (b, g, 0, 0)),
            pl.BlockSpec((1, 1, S, D_HEAD), lambda b, g, qi: (b, g, 0, 0)),
        ],
        out_specs=pl.BlockSpec((1, tq, GROUP_SIZE * D_HEAD),
                               lambda b, g, qi: (b, qi, g)),
        compiler_params=pltpu.CompilerParams(
            dimension_semantics=("parallel", "parallel", "parallel"),
            vmem_limit_bytes=_vmem_limit_bytes()),
        cost_estimate=pl.CostEstimate(flops=int(flops),
                                      transcendentals=int(transcendentals),
                                      bytes_accessed=int(bytes_accessed)),
    )(q, k, v)


# ---------------------------------------------------------------------------
# Full GQA forward (step=None path of the PyTorch module)
# ---------------------------------------------------------------------------
def gqa_forward(x, params):
    B, S, _ = x.shape
    x2d = x.reshape(B * S, D_MODEL)
    scale = 1.0 / math.sqrt(D_HEAD)                    # 0.125 — exact power of two

    # One-time weight prep: fold softmax scale into Wq/bq, concat Q|K|V, cast bf16.
    w_qkv = jnp.concatenate(
        [params["wq"] * scale, params["wk"], params["wv"]], axis=1).astype(jnp.bfloat16)
    b_qkv = jnp.concatenate([params["bq"] * scale, params["bk"], params["bv"]])
    wo = params["wo"].astype(jnp.bfloat16)

    q, k, v = qkv_projection(x2d, w_qkv, b_qkv)        # bf16: (M,512),(M,128),(M,128)

    # Head-major layouts so the attention BlockSpec selects heads (tiny XLA transposes).
    q = q.reshape(B, S, N_HEADS, D_HEAD).transpose(0, 2, 1, 3)      # (B, H, S, D)
    k = k.reshape(B, S, N_KV_HEADS, D_HEAD).transpose(0, 2, 1, 3)   # (B, Hkv, S, D)
    v = v.reshape(B, S, N_KV_HEADS, D_HEAD).transpose(0, 2, 1, 3)

    o = gqa_attention(q, k, v)                         # (B, S, H*D) bf16, lane-dense
    out = linear(o.reshape(B * S, D_Q), wo, params["bo"], out_dtype=x.dtype)
    return out.reshape(B, S, D_MODEL)


# Plain-JAX f32 reference (sanity check only).
def gqa_reference(x, params):
    B, S, _ = x.shape
    q = (x @ params["wq"] + params["bq"]).reshape(B, S, N_HEADS, D_HEAD).transpose(0, 2, 1, 3)
    k = (x @ params["wk"] + params["bk"]).reshape(B, S, N_KV_HEADS, D_HEAD).transpose(0, 2, 1, 3)
    v = (x @ params["wv"] + params["bv"]).reshape(B, S, N_KV_HEADS, D_HEAD).transpose(0, 2, 1, 3)
    k = jnp.repeat(k, GROUP_SIZE, axis=1)
    v = jnp.repeat(v, GROUP_SIZE, axis=1)
    scores = jnp.einsum("bhqd,bhkd->bhqk", q, k) / math.sqrt(D_HEAD)
    attn = jax.nn.softmax(scores, axis=-1)
    o = jnp.einsum("bhqk,bhkd->bhqd", attn, v)
    o = o.transpose(0, 2, 1, 3).reshape(B, S, N_HEADS * D_HEAD)
    return o @ params["wo"] + params["bo"]


def init_params(key):
    """Deterministic init mimicking nn.Linear's U(-1/sqrt(fan_in), 1/sqrt(fan_in))."""
    def lin(k, d_in, d_out):
        kw, kb = jax.random.split(k)
        bound = 1.0 / math.sqrt(d_in)
        w = jax.random.uniform(kw, (d_in, d_out), jnp.float32, -bound, bound)
        b = jax.random.uniform(kb, (d_out,), jnp.float32, -bound, bound)
        return w, b

    kq, kk, kv, ko = jax.random.split(key, 4)
    wq, bq = lin(kq, D_MODEL, N_HEADS * D_HEAD)
    wk, bk = lin(kk, D_MODEL, N_KV_HEADS * D_HEAD)
    wv, bv = lin(kv, D_MODEL, N_KV_HEADS * D_HEAD)
    wo, bo = lin(ko, N_HEADS * D_HEAD, D_MODEL)
    return dict(wq=wq, bq=bq, wk=wk, bk=bk, wv=wv, bv=bv, wo=wo, bo=bo)


if __name__ == "__main__":
    B, S = 2, 128   # small seq (module default seq_len=1024 also supported)
    key = jax.random.PRNGKey(0)
    kx, kp = jax.random.split(key)
    x = jax.random.normal(kx, (B, S, D_MODEL), jnp.float32)
    params = init_params(kp)

    fwd = jax.jit(gqa_forward)
    out = jax.block_until_ready(fwd(x, params))
    ref = jax.block_until_ready(gqa_reference(x, params))

    assert out.shape == (B, S, D_MODEL), out.shape
    assert jnp.allclose(out, ref, rtol=2e-2, atol=2e-2), (
        "mismatch vs reference, max abs err = %e" % float(jnp.max(jnp.abs(out - ref))))
    print("KERNEL_OK")
</pallas_src>

<mosaic_0001>
module attributes {stable_mosaic.version = 11 : i64} {
  func.func @qkv_proj_kernel(%arg0: i32, %arg1: memref<256x512xf32, #tpu.memory_space<vmem>>, %arg2: memref<512x768xbf16, #tpu.memory_space<vmem>>, %arg3: memref<1x768xf32, #tpu.memory_space<vmem>>, %arg4: memref<256x512xbf16, #tpu.memory_space<vmem>>, %arg5: memref<256x128xbf16, #tpu.memory_space<vmem>>, %arg6: memref<256x128xbf16, #tpu.memory_space<vmem>>) attributes {dimension_semantics = [#tpu.dimension_semantics<parallel>], iteration_bounds = array<i64: 1>, scalar_prefetch = 0 : i64, scratch_operands = 0 : i64, tpu.core_type = #tpu.core_type<tc>, window_params = [{transform_indices = @transform_0, window_bounds = array<i64: 256, 512>}, {pipeline_mode = #tpu.pipeline_mode<synchronous>, transform_indices = @transform_1, window_bounds = array<i64: 512, 768>}, {pipeline_mode = #tpu.pipeline_mode<synchronous>, transform_indices = @transform_2, window_bounds = array<i64: 1, 768>}, {transform_indices = @transform_3, window_bounds = array<i64: 256, 512>}, {transform_indices = @transform_4, window_bounds = array<i64: 256, 128>}, {transform_indices = @transform_5, window_bounds = array<i64: 256, 128>}]} {
    %c0 = arith.constant 0 : index
    %c0_0 = arith.constant 0 : index
    %0 = vector.load %arg1[%c0, %c0_0] : memref<256x512xf32, #tpu.memory_space<vmem>>, vector<256x512xf32>
    %1 = arith.truncf %0 : vector<256x512xf32> to vector<256x512xbf16>
    %c0_1 = arith.constant 0 : index
    %c0_2 = arith.constant 0 : index
    %2 = vector.load %arg2[%c0_1, %c0_2] : memref<512x768xbf16, #tpu.memory_space<vmem>>, vector<512x768xbf16>
    %cst = arith.constant dense<0.000000e+00> : vector<256x768xf32>
    %3 = tpu.matmul %1, %2, %cst {dimension_numbers = #tpu.dot_dimension_numbers<[1], [0], [0], [1], [0, 0, 1, 1], [], []>} : vector<256x512xbf16>, vector<512x768xbf16>, vector<256x768xf32> -> vector<256x768xf32>
    %c0_3 = arith.constant 0 : index
    %c0_4 = arith.constant 0 : index
    %4 = vector.load %arg3[%c0_3, %c0_4] : memref<1x768xf32, #tpu.memory_space<vmem>>, vector<1x768xf32>
    %5 = vector.broadcast %4 : vector<1x768xf32> to vector<256x768xf32>
    %6 = arith.addf %3, %5 : vector<256x768xf32>
    %7 = vector.extract_strided_slice %6 {offsets = [0, 0], sizes = [256, 512], strides = [1, 1]} : vector<256x768xf32> to vector<256x512xf32>
    %8 = arith.truncf %7 : vector<256x512xf32> to vector<256x512xbf16>
    %c0_5 = arith.constant 0 : index
    %c0_6 = arith.constant 0 : index
    %9 = vector.load %arg4[%c0_5, %c0_6] : memref<256x512xbf16, #tpu.memory_space<vmem>>, vector<256x512xbf16>
    tpu.vector_store %arg4[%c0_5, %c0_6], %8 {strides = array<i32>} : memref<256x512xbf16, #tpu.memory_space<vmem>>, vector<256x512xbf16>,
    %10 = vector.extract_strided_slice %6 {offsets = [0, 512], sizes = [256, 128], strides = [1, 1]} : vector<256x768xf32> to vector<256x128xf32>
    %11 = arith.truncf %10 : vector<256x128xf32> to vector<256x128xbf16>
    %c0_7 = arith.constant 0 : index
    %c0_8 = arith.constant 0 : index
    %12 = vector.load %arg5[%c0_7, %c0_8] : memref<256x128xbf16, #tpu.memory_space<vmem>>, vector<256x128xbf16>
    tpu.vector_store %arg5[%c0_7, %c0_8], %11 {strides = array<i32>} : memref<256x128xbf16, #tpu.memory_space<vmem>>, vector<256x128xbf16>,
    %13 = vector.extract_strided_slice %6 {offsets = [0, 640], sizes = [256, 128], strides = [1, 1]} : vector<256x768xf32> to vector<256x128xf32>
    %14 = arith.truncf %13 : vector<256x128xf32> to vector<256x128xbf16>
    %c0_9 = arith.constant 0 : index
    %c0_10 = arith.constant 0 : index
    %15 = vector.load %arg6[%c0_9, %c0_10] : memref<256x128xbf16, #tpu.memory_space<vmem>>, vector<256x128xbf16>
    tpu.vector_store %arg6[%c0_9, %c0_10], %14 {strides = array<i32>} : memref<256x128xbf16, #tpu.memory_space<vmem>>, vector<256x128xbf16>,
    return
  }
  func.func @transform_0(%arg0: i32) -> (i32, i32) {
    %c0_i32 = arith.constant 0 : i32
    %c0_i32_0 = arith.constant 0 : i32
    return %arg0, %c0_i32 : i32, i32
  }
  func.func @transform_1(%arg0: i32) -> (i32, i32) {
    %c0_i32 = arith.constant 0 : i32
    %c0_i32_0 = arith.constant 0 : i32
    %c0_i32_1 = arith.constant 0 : i32
    return %c0_i32, %c0_i32_0 : i32, i32
  }
  func.func @transform_2(%arg0: i32) -> (i32, i32) {
    %c0_i32 = arith.constant 0 : i32
    %c0_i32_0 = arith.constant 0 : i32
    %c0_i32_1 = arith.constant 0 : i32
    return %c0_i32, %c0_i32_0 : i32, i32
  }
  func.func @transform_3(%arg0: i32) -> (i32, i32) {
    %c0_i32 = arith.constant 0 : i32
    %c0_i32_0 = arith.constant 0 : i32
    return %arg0, %c0_i32 : i32, i32
  }
  func.func @transform_4(%arg0: i32) -> (i32, i32) {
    %c0_i32 = arith.constant 0 : i32
    %c0_i32_0 = arith.constant 0 : i32
    return %arg0, %c0_i32 : i32, i32
  }
  func.func @transform_5(%arg0: i32) -> (i32, i32) {
    %c0_i32 = arith.constant 0 : i32
    %c0_i32_0 = arith.constant 0 : i32
    return %arg0, %c0_i32 : i32, i32
  }
}

module attributes {stable_mosaic.version = 11 : i64} {
  func.func @gqa_attn_kernel(%arg0: i32, %arg1: i32, %arg2: i32, %arg3: memref<1x4x128x64xbf16, #tpu.memory_space<vmem>>, %arg4: memref<1x1x128x64xbf16, #tpu.memory_space<vmem>>, %arg5: memref<1x1x128x64xbf16, #tpu.memory_space<vmem>>, %arg6: memref<1x128x256xbf16, #tpu.memory_space<vmem>>) attributes {dimension_semantics = [#tpu.dimension_semantics<parallel>, #tpu.dimension_semantics<parallel>, #tpu.dimension_semantics<parallel>], iteration_bounds = array<i64: 2, 2, 1>, scalar_prefetch = 0 : i64, scratch_operands = 0 : i64, tpu.core_type = #tpu.core_type<tc>, window_params = [{transform_indices = @transform_0, window_bounds = array<i64: 1, 4, 128, 64>}, {transform_indices = @transform_1, window_bounds = array<i64: 1, 1, 128, 64>}, {transform_indices = @transform_2, window_bounds = array<i64: 1, 1, 128, 64>}, {transform_indices = @transform_3, window_bounds = array<i64: 1, 128, 256>}]} {
    %c0 = arith.constant 0 : index
    %c0_0 = arith.constant 0 : index
    %c0_1 = arith.constant 0 : index
    %c0_2 = arith.constant 0 : index
    %0 = vector.load %arg3[%c0, %c0_0, %c0_1, %c0_2] : memref<1x4x128x64xbf16, #tpu.memory_space<vmem>>, vector<1x4x128x64xbf16>
    %1 = vector.shape_cast %0 : vector<1x4x128x64xbf16> to vector<4x128x64xbf16>
    %2 = vector.shape_cast %1 : vector<4x128x64xbf16> to vector<512x64xbf16>
    %c0_3 = arith.constant 0 : index
    %c0_4 = arith.constant 0 : index
    %c0_5 = arith.constant 0 : index
    %c0_6 = arith.constant 0 : index
    %3 = vector.load %arg4[%c0_3, %c0_4, %c0_5, %c0_6] : memref<1x1x128x64xbf16, #tpu.memory_space<vmem>>, vector<1x1x128x64xbf16>
    %4 = vector.shape_cast %3 : vector<1x1x128x64xbf16> to vector<128x64xbf16>
    %c0_7 = arith.constant 0 : index
    %c0_8 = arith.constant 0 : index
    %c0_9 = arith.constant 0 : index
    %c0_10 = arith.constant 0 : index
    %5 = vector.load %arg5[%c0_7, %c0_8, %c0_9, %c0_10] : memref<1x1x128x64xbf16, #tpu.memory_space<vmem>>, vector<1x1x128x64xbf16>
    %6 = vector.shape_cast %5 : vector<1x1x128x64xbf16> to vector<128x64xbf16>
    %cst = arith.constant dense<0.000000e+00> : vector<512x128xf32>
    %7 = tpu.matmul %2, %4, %cst {dimension_numbers = #tpu.dot_dimension_numbers<[1], [1], [0], [0], [0, 0, 1, 0], [], []>} : vector<512x64xbf16>, vector<128x64xbf16>, vector<512x128xf32> -> vector<512x128xf32>
    %cst_11 = arith.constant dense<0xFF800000> : vector<512xf32>
    %8 = vector.multi_reduction <maximumf>, %7, %cst_11 [1] : vector<512x128xf32> to vector<512xf32>
    %9 = vector.shape_cast %8 : vector<512xf32> to vector<512x1xf32>
    %10 = vector.broadcast %9 : vector<512x1xf32> to vector<512x128xf32>
    %11 = arith.subf %7, %10 : vector<512x128xf32>
    %12 = arith.truncf %11 : vector<512x128xf32> to vector<512x128xbf16>
    %13 = math.exp %12 : vector<512x128xbf16>
    %14 = arith.extf %13 : vector<512x128xbf16> to vector<512x128xf32>
    %cst_12 = arith.constant dense<0.000000e+00> : vector<512xf32>
    %15 = vector.multi_reduction <add>, %14, %cst_12 [1] : vector<512x128xf32> to vector<512xf32>
    %16 = vector.shape_cast %15 : vector<512xf32> to vector<512x1xf32>
    %17 = tpu.reciprocal %16 {approx = true} : vector<512x1xf32> -> vector<512x1xf32>
    %18 = vector.extract_strided_slice %13 {offsets = [0, 0], sizes = [128, 128], strides = [1, 1]} : vector<512x128xbf16> to vector<128x128xbf16>
    %cst_13 = arith.constant dense<0.000000e+00> : vector<128x64xf32>
    %19 = tpu.matmul %18, %6, %cst_13 {dimension_numbers = #tpu.dot_dimension_numbers<[1], [0], [0], [1], [0, 0, 1, 1], [], []>} : vector<128x128xbf16>, vector<128x64xbf16>, vector<128x64xf32> -> vector<128x64xf32>
    %20 = vector.extract_strided_slice %17 {offsets = [0, 0], sizes = [128, 1], strides = [1, 1]} : vector<512x1xf32> to vector<128x1xf32>
    %21 = vector.broadcast %20 : vector<128x1xf32> to vector<128x64xf32>
    %22 = arith.mulf %19, %21 : vector<128x64xf32>
    %23 = arith.truncf %22 : vector<128x64xf32> to vector<128x64xbf16>
    %24 = vector.extract_strided_slice %13 {offsets = [128, 0], sizes = [128, 128], strides = [1, 1]} : vector<512x128xbf16> to vector<128x128xbf16>
    %cst_14 = arith.constant dense<0.000000e+00> : vector<128x64xf32>
    %25 = tpu.matmul %24, %6, %cst_14 {dimension_numbers = #tpu.dot_dimension_numbers<[1], [0], [0], [1], [0, 0, 1, 1], [], []>} : vector<128x128xbf16>, vector<128x64xbf16>, vector<128x64xf32> -> vector<128x64xf32>
    %26 = vector.extract_strided_slice %17 {offsets = [128, 0], sizes = [128, 1], strides = [1, 1]} : vector<512x1xf32> to vector<128x1xf32>
    %27 = vector.broadcast %26 : vector<128x1xf32> to vector<128x64xf32>
    %28 = arith.mulf %25, %27 : vector<128x64xf32>
    %29 = arith.truncf %28 : vector<128x64xf32> to vector<128x64xbf16>
    %30 = vector.extract_strided_slice %13 {offsets = [256, 0], sizes = [128, 128], strides = [1, 1]} : vector<512x128xbf16> to vector<128x128xbf16>
    %cst_15 = arith.constant dense<0.000000e+00> : vector<128x64xf32>
    %31 = tpu.matmul %30, %6, %cst_15 {dimension_numbers = #tpu.dot_dimension_numbers<[1], [0], [0], [1], [0, 0, 1, 1], [], []>} : vector<128x128xbf16>, vector<128x64xbf16>, vector<128x64xf32> -> vector<128x64xf32>
    %32 = vector.extract_strided_slice %17 {offsets = [256, 0], sizes = [128, 1], strides = [1, 1]} : vector<512x1xf32> to vector<128x1xf32>
    %33 = vector.broadcast %32 : vector<128x1xf32> to vector<128x64xf32>
    %34 = arith.mulf %31, %33 : vector<128x64xf32>
    %35 = arith.truncf %34 : vector<128x64xf32> to vector<128x64xbf16>
    %36 = vector.extract_strided_slice %13 {offsets = [384, 0], sizes = [128, 128], strides = [1, 1]} : vector<512x128xbf16> to vector<128x128xbf16>
    %cst_16 = arith.constant dense<0.000000e+00> : vector<128x64xf32>
    %37 = tpu.matmul %36, %6, %cst_16 {dimension_numbers = #tpu.dot_dimension_numbers<[1], [0], [0], [1], [0, 0, 1, 1], [], []>} : vector<128x128xbf16>, vector<128x64xbf16>, vector<128x64xf32> -> vector<128x64xf32>
    %38 = vector.extract_strided_slice %17 {offsets = [384, 0], sizes = [128, 1], strides = [1, 1]} : vector<512x1xf32> to vector<128x1xf32>
    %39 = vector.broadcast %38 : vector<128x1xf32> to vector<128x64xf32>
    %40 = arith.mulf %37, %39 : vector<128x64xf32>
    %41 = arith.truncf %40 : vector<128x64xf32> to vector<128x64xbf16>
    %42 = tpu.concatenate %23, %29, %35, %41 in 1 : vector<128x64xbf16>, vector<128x64xbf16>, vector<128x64xbf16>, vector<128x64xbf16> -> vector<128x256xbf16>
    %c0_17 = arith.constant 0 : index
    %c0_18 = arith.constant 0 : index
    %c0_19 = arith.constant 0 : index
    %43 = vector.load %arg6[%c0_17, %c0_18, %c0_19] : memref<1x128x256xbf16, #tpu.memory_space<vmem>>, vector<1x128x256xbf16>
    %44 = vector.shape_cast %43 : vector<1x128x256xbf16> to vector<128x256xbf16>
    %45 = vector.shape_cast %42 : vector<128x256xbf16> to vector<1x128x256xbf16>
    tpu.vector_store %arg6[%c0_17, %c0_18, %c0_19], %45 {strides = array<i32>} : memref<1x128x256xbf16, #tpu.memory_space<vmem>>, vector<1x128x256xbf16>,
    return
  }
  func.func @transform_0(%arg0: i32, %arg1: i32, %arg2: i32) -> (i32, i32, i32, i32) {
    %c0_i32 = arith.constant 0 : i32
    %c0_i32_0 = arith.constant 0 : i32
    return %arg0, %arg1, %arg2, %c0_i32 : i32, i32, i32, i32
  }
  func.func @transform_1(%arg0: i32, %arg1: i32, %arg2: i32) -> (i32, i32, i32, i32) {
    %c0_i32 = arith.constant 0 : i32
    %c0_i32_0 = arith.constant 0 : i32
    %c0_i32_1 = arith.constant 0 : i32
    return %arg0, %arg1, %c0_i32, %c0_i32_0 : i32, i32, i32, i32
  }
  func.func @transform_2(%arg0: i32, %arg1: i32, %arg2: i32) -> (i32, i32, i32, i32) {
    %c0_i32 = arith.constant 0 : i32
    %c0_i32_0 = arith.constant 0 : i32
    %c0_i32_1 = arith.constant 0 : i32
    return %arg0, %arg1, %c0_i32, %c0_i32_0 : i32, i32, i32, i32
  }
  func.func @transform_3(%arg0: i32, %arg1: i32, %arg2: i32) -> (i32, i32, i32) {
    %c0_i32 = arith.constant 0 : i32
    return %arg0, %arg2, %arg1 : i32, i32, i32
  }
}

module attributes {stable_mosaic.version = 11 : i64} {
  func.func @linear_kernel(%arg0: i32, %arg1: memref<256x512xbf16, #tpu.memory_space<vmem>>, %arg2: memref<512x512xbf16, #tpu.memory_space<vmem>>, %arg3: memref<1x512xf32, #tpu.memory_space<vmem>>, %arg4: memref<256x512xf32, #tpu.memory_space<vmem>>) attributes {dimension_semantics = [#tpu.dimension_semantics<parallel>], iteration_bounds = array<i64: 1>, scalar_prefetch = 0 : i64, scratch_operands = 0 : i64, tpu.core_type = #tpu.core_type<tc>, window_params = [{transform_indices = @transform_0, window_bounds = array<i64: 256, 512>}, {pipeline_mode = #tpu.pipeline_mode<synchronous>, transform_indices = @transform_1, window_bounds = array<i64: 512, 512>}, {pipeline_mode = #tpu.pipeline_mode<synchronous>, transform_indices = @transform_2, window_bounds = array<i64: 1, 512>}, {transform_indices = @transform_3, window_bounds = array<i64: 256, 512>}]} {
    %c0 = arith.constant 0 : index
    %c0_0 = arith.constant 0 : index
    %0 = vector.load %arg1[%c0, %c0_0] : memref<256x512xbf16, #tpu.memory_space<vmem>>, vector<256x512xbf16>
    %c0_1 = arith.constant 0 : index
    %c0_2 = arith.constant 0 : index
    %1 = vector.load %arg2[%c0_1, %c0_2] : memref<512x512xbf16, #tpu.memory_space<vmem>>, vector<512x512xbf16>
    %cst = arith.constant dense<0.000000e+00> : vector<256x512xf32>
    %2 = tpu.matmul %0, %1, %cst {dimension_numbers = #tpu.dot_dimension_numbers<[1], [0], [0], [1], [0, 0, 1, 1], [], []>} : vector<256x512xbf16>, vector<512x512xbf16>, vector<256x512xf32> -> vector<256x512xf32>
    %c0_3 = arith.constant 0 : index
    %c0_4 = arith.constant 0 : index
    %3 = vector.load %arg3[%c0_3, %c0_4] : memref<1x512xf32, #tpu.memory_space<vmem>>, vector<1x512xf32>
    %4 = vector.broadcast %3 : vector<1x512xf32> to vector<256x512xf32>
    %5 = arith.addf %2, %4 : vector<256x512xf32>
    %c0_5 = arith.constant 0 : index
    %c0_6 = arith.constant 0 : index
    %6 = vector.load %arg4[%c0_5, %c0_6] : memref<256x512xf32, #tpu.memory_space<vmem>>, vector<256x512xf32>
    tpu.vector_store %arg4[%c0_5, %c0_6], %5 {strides = array<i32>} : memref<256x512xf32, #tpu.memory_space<vmem>>, vector<256x512xf32>,
    return
  }
  func.func @transform_0(%arg0: i32) -> (i32, i32) {
    %c0_i32 = arith.constant 0 : i32
    %c0_i32_0 = arith.constant 0 : i32
    return %arg0, %c0_i32 : i32, i32
  }
  func.func @transform_1(%arg0: i32) -> (i32, i32) {
    %c0_i32 = arith.constant 0 : i32
    %c0_i32_0 = arith.constant 0 : i32
    %c0_i32_1 = arith.constant 0 : i32
    return %c0_i32, %c0_i32_0 : i32, i32
  }
  func.func @transform_2(%arg0: i32) -> (i32, i32) {
    %c0_i32 = arith.constant 0 : i32
    %c0_i32_0 = arith.constant 0 : i32
    %c0_i32_1 = arith.constant 0 : i32
    return %c0_i32, %c0_i32_0 : i32, i32
  }
  func.func @transform_3(%arg0: i32) -> (i32, i32) {
    %c0_i32 = arith.constant 0 : i32
    %c0_i32_0 = arith.constant 0 : i32
    return %arg0, %c0_i32 : i32, i32
  }
}

</mosaic_0001>

<llo_original>
// kernel: gqa_forward.4
$region0: #{gqa_forward.4}
  #allocation0 [shape = 'u32[]', space=smem, size = 0x4, offset = 0x4, fixed_abs, tag = 'smem constant byte address 0x4 - core index']
  #allocation1 [shape = 'u32[144,128]{1,0:T(1,128)}', space=vmem, size = 0x12000, scoped, tag = 'internal scratch']
  %s0 = inlined_call_operand.vmem [shape: bf16[2,8,128,64], index: 0, kind: input, shape index: {}]
  %s1 = inlined_call_operand.vmem [shape: bf16[2,2,128,64], index: 1, kind: input, shape index: {}]
  %s2 = inlined_call_operand.vmem [shape: bf16[2,2,128,64], index: 2, kind: input, shape index: {}]
  %s3 = inlined_call_operand.vmem [shape: bf16[2,128,512], index: 3, kind: output, shape index: {}]
  %s4 = sld [smem:[#allocation0]]
  $region79: #{gqa_forward.4} parent=0
    _
  %s6 = ssub.s32 1, %s4
  %s7 = scalar_select 0, %s6, %s4
  $region1: #{gqa_forward.4} parent=0
    #allocation2 [shape = 'u8[131072]{0}', space=vmem, size = 0x20000, scoped, tag = 'output window, operand 0']
    loop: start=0, step=1, limit=6
    $region2: #{gqa_forward.4} parent=1 // loop_pre_header
      _
    $region3: #{gqa_forward.4} parent=1 // loop_header
      %s9 = sphi 0, %s13
      %p10 = scmp.ge.s32.totalorder %s9, 6
      %s16 = sphi 0, %s35
      %s17 = sphi 0, %s31
      %s18 = sphi 0, %s27
      %s19 = sphi 0, %s16
      %s20 = sphi 0, %s17
      %s21 = sphi 0, %s18
      %s22 = sphi 0, %s19
      %s23 = sphi 0, %s20
      %s24 = sphi 0, %s21
      %s42 = sphi 0, %s44
      %s45 = sphi 0, %s42
      %s46 = sphi 0, %s45
      %s62 = sphi 0, %s46
      %s70 = sphi 0, %s72
      %s73 = sphi 0, %s70
      %s74 = sphi 0, %s73
      %s90 = sphi 0, %s74
      %s98 = sphi 0, %s100
      %s101 = sphi 0, %s98
      %s102 = sphi 0, %s101
      %s118 = sphi 0, %s102
      %s128 = sphi 0, %s130
      %s131 = sphi 0, %s128
      %s132 = sphi 0, %s131
      %s148 = sphi 0, %s132
    $region4: #{gqa_forward.4} parent=1 // loop_header_branch
      %12 = sbr.rel (%p10) target = $region8
    $region5: #{gqa_forward.4} parent=1 // loop_body
      %s14 = ssub.s32 %s9, 1
      %s15 = ssub.s32 %s9, 2
      %s25 = sadd.s32 1, %s18
      %p26 = scmp.ge.s32.totalorder %s25, 1
      %s27 = scalar_select %p26, 0, %s25
      %s28 = sadd.s32 1, %s17
      %s29 = scalar_select %p26, %s28, %s17
      %p30 = scmp.ge.s32.totalorder %s29, 2
      %s31 = scalar_select %p30, 0, %s29
      %s32 = sadd.s32 1, %s16
      %s33 = scalar_select %p30, %s32, %s16
      %p34 = scmp.ge.s32.totalorder %s33, 2
      %s35 = scalar_select %p34, 0, %s33
      %s36 = ssub.s32 %s16, %s35
      %s37 = ssub.s32 %s17, %s31
      %s38 = sor.u32 %s36, %s37
      %s39 = ssub.s32 %s18, %s27
      %s40 = sor.u32 %s38, %s39
      %p41 = scmp.eq.s32.totalorder %s40, 0
      %s43 = sadd.s32 %s42, 1
      %s44 = scalar_select %p41, %s42, %s43
      %p47 = pneg %p41
      %p48 = scmp.eq.s32.totalorder %s9, 3
      %p49 = por %p47, %p48
      %p50 = scmp.ne.s32.totalorder %s42, %s45
      %p51 = scmp.eq.s32.totalorder %s9, 0
      %p52 = por %p50, %p51
      %p53 = scmp.ne.s32.totalorder %s42, %s45
      %p54 = scmp.eq.s32.totalorder %s14, 3
      %p55 = por %p53, %p54
      %p56 = scmp.ne.s32.totalorder %s45, %s46
      %p57 = scmp.eq.s32.totalorder %s14, 0
      %p58 = por %p56, %p57
      %p59 = scmp.ne.s32.totalorder %s45, %s46
      %p60 = scmp.eq.s32.totalorder %s15, 3
      %p61 = por %p59, %p60
      %p63 = scmp.ne.s32.totalorder %s46, %s62
      %p64 = scmp.eq.s32.totalorder %s15, 0
      %p65 = por %p63, %p64
      %s66 = ssub.s32 %s16, %s35
      %s67 = ssub.s32 %s17, %s31
      %s68 = sor.u32 %s66, %s67
      %p69 = scmp.eq.s32.totalorder %s68, 0
      %s71 = sadd.s32 %s70, 1
      %s72 = scalar_select %p69, %s70, %s71
      %p75 = pneg %p69
      %p76 = scmp.eq.s32.totalorder %s9, 3
      %p77 = por %p75, %p76
      %p78 = scmp.ne.s32.totalorder %s70, %s73
      %p79 = scmp.eq.s32.totalorder %s9, 0
      %p80 = por %p78, %p79
      %p81 = scmp.ne.s32.totalorder %s70, %s73
      %p82 = scmp.eq.s32.totalorder %s14, 3
      %p83 = por %p81, %p82
      %p84 = scmp.ne.s32.totalorder %s73, %s74
      %p85 = scmp.eq.s32.totalorder %s14, 0
      %p86 = por %p84, %p85
      %p87 = scmp.ne.s32.totalorder %s73, %s74
      %p88 = scmp.eq.s32.totalorder %s15, 3
      %p89 = por %p87, %p88
      %p91 = scmp.ne.s32.totalorder %s74, %s90
      %p92 = scmp.eq.s32.totalorder %s15, 0
      %p93 = por %p91, %p92
      %s94 = ssub.s32 %s16, %s35
      %s95 = ssub.s32 %s17, %s31
      %s96 = sor.u32 %s94, %s95
      %p97 = scmp.eq.s32.totalorder %s96, 0
      %s99 = sadd.s32 %s98, 1
      %s100 = scalar_select %p97, %s98, %s99
      %p103 = pneg %p97
      %p104 = scmp.eq.s32.totalorder %s9, 3
      %p105 = por %p103, %p104
      %p106 = scmp.ne.s32.totalorder %s98, %s101
      %p107 = scmp.eq.s32.totalorder %s9, 0
      %p108 = por %p106, %p107
      %p109 = scmp.ne.s32.totalorder %s98, %s101
      %p110 = scmp.eq.s32.totalorder %s14, 3
      %p111 = por %p109, %p110
      %p112 = scmp.ne.s32.totalorder %s101, %s102
      %p113 = scmp.eq.s32.totalorder %s14, 0
      %p114 = por %p112, %p113
      %p115 = scmp.ne.s32.totalorder %s101, %s102
      %p116 = scmp.eq.s32.totalorder %s15, 3
      %p117 = por %p115, %p116
      %p119 = scmp.ne.s32.totalorder %s102, %s118
      %p120 = scmp.eq.s32.totalorder %s15, 0
      %p121 = por %p119, %p120
      %s122 = ssub.s32 %s16, %s35
      %s123 = ssub.s32 %s18, %s27
      %s124 = sor.u32 %s122, %s123
      %s125 = ssub.s32 %s17, %s31
      %s126 = sor.u32 %s124, %s125
      %p127 = scmp.eq.s32.totalorder %s126, 0
      %s129 = sadd.s32 %s128, 1
      %s130 = scalar_select %p127, %s128, %s129
      %p133 = pneg %p127
      %p134 = scmp.eq.s32.totalorder %s9, 3
      %p135 = por %p133, %p134
      %p136 = scmp.ne.s32.totalorder %s128, %s131
      %p137 = scmp.eq.s32.totalorder %s9, 0
      %p138 = por %p136, %p137
      %p139 = scmp.ne.s32.totalorder %s128, %s131
      %p140 = scmp.eq.s32.totalorder %s14, 3
      %p141 = por %p139, %p140
      %p142 = scmp.ne.s32.totalorder %s131, %s132
      %p143 = scmp.eq.s32.totalorder %s14, 0
      %p144 = por %p142, %p143
      %p145 = scmp.ne.s32.totalorder %s131, %s132
      %p146 = scmp.eq.s32.totalorder %s15, 3
      %p147 = por %p145, %p146
      %p149 = scmp.ne.s32.totalorder %s132, %s148
      %p150 = scmp.eq.s32.totalorder %s15, 0
      %p151 = por %p149, %p150
      %p152 = scmp.le.s32.totalorder 1, %s9
      %p153 = scmp.lt.s32.totalorder %s9, 5
      %p154 = pnand %p152, %p153
      %p155 = pneg %p154
      // Predicated region
      $region9: #{gqa_forward.4} parent=5 // pred_check
        _
      $region10: #{gqa_forward.4} parent=5 // pred_check_branch
        %157 = sbr.rel (%p154) target = $region12
      $region11: #{gqa_forward.4} parent=5 // pred_region
        %s158 = ssub.s32 %s9, 1
      $region12: #{gqa_forward.4} parent=5 // pred_fallthru
        _
      %p159 = scmp.lt.s32.totalorder %s9, 4
      // Predicated region
      $region13: #{gqa_forward.4} parent=5 // pred_check
        %p160 = pneg %p159
      $region14: #{gqa_forward.4} parent=5 // pred_check_branch
        %162 = sbr.rel (%p160) target = $region16
      $region15: #{gqa_forward.4} parent=5 // pred_region
        // Predicated region
        $region17: #{gqa_forward.4} parent=15 // pred_check
          %p163 = pneg %p52
        $region18: #{gqa_forward.4} parent=15 // pred_check_branch
          %165 = sbr.rel (%p163) target = $region20
        $region19: #{gqa_forward.4} parent=15 // pred_region
          %s166 = smul.u32 4, %s17
          %s167 = smul.u32 16, %s18
          %p168 = scmp.lt.s32.totalorder %s16, 1
          %s169 = scalar_select %p168, %s16, 1
          %p170 = scmp.lt.s32.totalorder %s166, 7
          %s171 = scalar_select %p170, %s166, 7
          %p172 = scmp.lt.s32.totalorder %s167, 15
          %s173 = scalar_select %p172, %s167, 15
          %s174 = smul.addr %s171, 16
          %s175 = sadd.s32 %s173, %s174
          %s176 = smul.addr %s169, 128
          %s177 = sadd.s32 %s175, %s176
          %s178 = smul.addr %s177, 4
          %s179 = scalar_lea.vmem %s0, %s178
          %s180 = smul.u32 4, %s17
          %s181 = smul.u32 16, %s18
        $region20: #{gqa_forward.4} parent=15 // pred_fallthru
          _
        // Predicated region
        $region21: #{gqa_forward.4} parent=15 // pred_check
          %p182 = pneg %p80
        $region22: #{gqa_forward.4} parent=15 // pred_check_branch
          %184 = sbr.rel (%p182) target = $region24
        $region23: #{gqa_forward.4} parent=15 // pred_region
          %p185 = scmp.lt.s32.totalorder %s16, 1
          %s186 = scalar_select %p185, %s16, 1
          %p187 = scmp.lt.s32.totalorder %s17, 1
          %s188 = scalar_select %p187, %s17, 1
          %s189 = smul.addr %s188, 16
          %s190 = smul.addr %s186, 32
          %s191 = sadd.s32 %s189, %s190
          %s192 = smul.addr %s191, 4
          %s193 = scalar_lea.vmem %s1, %s192
        $region24: #{gqa_forward.4} parent=15 // pred_fallthru
          _
        // Predicated region
        $region25: #{gqa_forward.4} parent=15 // pred_check
          %p194 = pneg %p108
        $region26: #{gqa_forward.4} parent=15 // pred_check_branch
          %196 = sbr.rel (%p194) target = $region28
        $region27: #{gqa_forward.4} parent=15 // pred_region
          %p197 = scmp.lt.s32.totalorder %s16, 1
          %s198 = scalar_select %p197, %s16, 1
          %p199 = scmp.lt.s32.totalorder %s17, 1
          %s200 = scalar_select %p199, %s17, 1
          %s201 = smul.addr %s200, 16
          %s202 = smul.addr %s198, 32
          %s203 = sadd.s32 %s201, %s202
          %s204 = smul.addr %s203, 4
          %s205 = scalar_lea.vmem %s2, %s204
        $region28: #{gqa_forward.4} parent=15 // pred_fallthru
          _
      $region16: #{gqa_forward.4} parent=5 // pred_fallthru
        _
      %p206 = scmp.le.s32.totalorder 1, %s9
      %p207 = scmp.lt.s32.totalorder %s9, 5
      %p208 = pnand %p206, %p207
      %p209 = pneg %p208
      // Predicated region
      $region29: #{gqa_forward.4} parent=5 // pred_check
        _
      $region30: #{gqa_forward.4} parent=5 // pred_check_branch
        %211 = sbr.rel (%p208) target = $region32
      $region31: #{gqa_forward.4} parent=5 // pred_region
        %s212 = ssub.s32 %s9, 1
        %s213 = smul.u32 4, %s20
        %s214 = smul.u32 16, %s21
        %p215 = scmp.lt.s32.totalorder %s19, 1
        %s216 = scalar_select %p215, %s19, 1
        %p217 = scmp.lt.s32.totalorder %s213, 7
        %s218 = scalar_select %p217, %s213, 7
        %p219 = scmp.lt.s32.totalorder %s214, 15
        %s220 = scalar_select %p219, %s214, 15
        %s221 = smul.addr %s218, 16
        %s222 = sadd.s32 %s220, %s221
        %s223 = smul.addr %s216, 128
        %s224 = sadd.s32 %s222, %s223
        %s225 = smul.addr %s224, 4
        %s226 = scalar_lea.vmem %s0, %s225
        %p227 = pneg %p58
        %p228 = pneg %p55
        %p229 = scmp.lt.s32.totalorder %s19, 1
        %s230 = scalar_select %p229, %s19, 1
        %p231 = scmp.lt.s32.totalorder %s20, 1
        %s232 = scalar_select %p231, %s20, 1
        %s233 = smul.addr %s232, 16
        %s234 = smul.addr %s230, 32
        %s235 = sadd.s32 %s233, %s234
        %s236 = smul.addr %s235, 4
        %s237 = scalar_lea.vmem %s1, %s236
        %p238 = pneg %p86
        %p239 = pneg %p83
        %p240 = scmp.lt.s32.totalorder %s19, 1
        %s241 = scalar_select %p240, %s19, 1
        %p242 = scmp.lt.s32.totalorder %s20, 1
        %s243 = scalar_select %p242, %s20, 1
        %s244 = smul.addr %s243, 16
        %s245 = smul.addr %s241, 32
        %s246 = sadd.s32 %s244, %s245
        %s247 = smul.addr %s246, 4
        %s248 = scalar_lea.vmem %s2, %s247
        %p249 = pneg %p114
        %p250 = pneg %p111
        %p251 = pneg %p144
        %p252 = pneg %p141
        %s253 = sand.u32 %s131, 1
        %s254 = sand.u32 %s131, 1
        %s255 = smul.addr %s254, 128
        %s256 = scalar_lea.vmem [#allocation2], %s255
        %s257 = smul.u32 4, %s20
        %s258 = smul.u32 16, %s21
        %p259 = scmp.lt.s32.totalorder %s19, 1
        %s260 = scalar_select %p259, %s19, 1
        %p261 = scmp.lt.s32.totalorder %s257, 7
        %s262 = scalar_select %p261, %s257, 7
        %p263 = scmp.lt.s32.totalorder %s258, 15
        %s264 = scalar_select %p263, %s258, 15
        %s265 = smul.addr %s262, 16
        %s266 = sadd.s32 %s264, %s265
        %s267 = smul.addr %s260, 128
        %s268 = sadd.s32 %s266, %s267
        %s269 = smul.addr %s268, 4
        %s270 = scalar_lea.vmem %s0, %s269
        %s271 = smul.u32 4, %s20
        %s272 = smul.u32 16, %s21
        %p273 = scmp.lt.s32.totalorder %s19, 1
        %s274 = scalar_select %p273, %s19, 1
        %p275 = scmp.lt.s32.totalorder %s20, 1
        %s276 = scalar_select %p275, %s20, 1
        %s277 = smul.addr %s276, 16
        %s278 = smul.addr %s274, 32
        %s279 = sadd.s32 %s277, %s278
        %s280 = smul.addr %s279, 4
        %s281 = scalar_lea.vmem %s1, %s280
        %p282 = scmp.lt.s32.totalorder %s19, 1
        %s283 = scalar_select %p282, %s19, 1
        %p284 = scmp.lt.s32.totalorder %s20, 1
        %s285 = scalar_select %p284, %s20, 1
        %s286 = smul.addr %s285, 16
        %s287 = smul.addr %s283, 32
        %s288 = sadd.s32 %s286, %s287
        %s289 = smul.addr %s288, 4
        %s290 = scalar_lea.vmem %s2, %s289
        %s291 = smul.u32 16, %s21
        %s292 = smul.u32 2, %s20
        %v294 = vld [vmem:[%s270] sm:$0xf]
        %v295 = vld [vmem:[%s270 + $0x4] sm:$0xf]
        %v296 = vld [vmem:[%s270 + $0x8] sm:$0xf]
        %v297 = vld [vmem:[%s270 + $0xc] sm:$0xf]
        %v298 = vld [vmem:[%s270 + $0x10] sm:$0xf]
        %v299 = vld [vmem:[%s270 + $0x14] sm:$0xf]
        %v300 = vld [vmem:[%s270 + $0x18] sm:$0xf]
        %v301 = vld [vmem:[%s270 + $0x1c] sm:$0xf]
        %v302 = vld [vmem:[%s270 + $0x20] sm:$0xf]
        %v303 = vld [vmem:[%s270 + $0x24] sm:$0xf]
        %v304 = vld [vmem:[%s270 + $0x28] sm:$0xf]
        %v305 = vld [vmem:[%s270 + $0x2c] sm:$0xf]
        %v306 = vld [vmem:[%s270 + $0x30] sm:$0xf]
        %v307 = vld [vmem:[%s270 + $0x34] sm:$0xf]
        %v308 = vld [vmem:[%s270 + $0x38] sm:$0xf]
        %v309 = vld [vmem:[%s270 + $0x3c] sm:$0xf]
        %v310 = vld [vmem:[%s270 + $0x40] sm:$0xf]
        %v311 = vld [vmem:[%s270 + $0x44] sm:$0xf]
        %v312 = vld [vmem:[%s270 + $0x48] sm:$0xf]
        %v313 = vld [vmem:[%s270 + $0x4c] sm:$0xf]
        %v314 = vld [vmem:[%s270 + $0x50] sm:$0xf]
        %v315 = vld [vmem:[%s270 + $0x54] sm:$0xf]
        %v316 = vld [vmem:[%s270 + $0x58] sm:$0xf]
        %v317 = vld [vmem:[%s270 + $0x5c] sm:$0xf]
        %v318 = vld [vmem:[%s270 + $0x60] sm:$0xf]
        %v319 = vld [vmem:[%s270 + $0x64] sm:$0xf]
        %v320 = vld [vmem:[%s270 + $0x68] sm:$0xf]
        %v321 = vld [vmem:[%s270 + $0x6c] sm:$0xf]
        %v322 = vld [vmem:[%s270 + $0x70] sm:$0xf]
        %v323 = vld [vmem:[%s270 + $0x74] sm:$0xf]
        %v324 = vld [vmem:[%s270 + $0x78] sm:$0xf]
        %v325 = vld [vmem:[%s270 + $0x7c] sm:$0xf]
        %v326 = vld [vmem:[%s270 + $0x80] sm:$0xf]
        %v327 = vld [vmem:[%s270 + $0x84] sm:$0xf]
        %v328 = vld [vmem:[%s270 + $0x88] sm:$0xf]
        %v329 = vld [vmem:[%s270 + $0x8c] sm:$0xf]
        %v330 = vld [vmem:[%s270 + $0x90] sm:$0xf]
        %v331 = vld [vmem:[%s270 + $0x94] sm:$0xf]
        %v332 = vld [vmem:[%s270 + $0x98] sm:$0xf]
        %v333 = vld [vmem:[%s270 + $0x9c] sm:$0xf]
        %v334 = vld [vmem:[%s270 + $0xa0] sm:$0xf]
        %v335 = vld [vmem:[%s270 + $0xa4] sm:$0xf]
        %v336 = vld [vmem:[%s270 + $0xa8] sm:$0xf]
        %v337 = vld [vmem:[%s270 + $0xac] sm:$0xf]
        %v338 = vld [vmem:[%s270 + $0xb0] sm:$0xf]
        %v339 = vld [vmem:[%s270 + $0xb4] sm:$0xf]
        %v340 = vld [vmem:[%s270 + $0xb8] sm:$0xf]
        %v341 = vld [vmem:[%s270 + $0xbc] sm:$0xf]
        %v342 = vld [vmem:[%s270 + $0xc0] sm:$0xf]
        %v343 = vld [vmem:[%s270 + $0xc4] sm:$0xf]
        %v344 = vld [vmem:[%s270 + $0xc8] sm:$0xf]
        %v345 = vld [vmem:[%s270 + $0xcc] sm:$0xf]
        %v346 = vld [vmem:[%s270 + $0xd0] sm:$0xf]
        %v347 = vld [vmem:[%s270 + $0xd4] sm:$0xf]
        %v348 = vld [vmem:[%s270 + $0xd8] sm:$0xf]
        %v349 = vld [vmem:[%s270 + $0xdc] sm:$0xf]
        %v350 = vld [vmem:[%s270 + $0xe0] sm:$0xf]
        %v351 = vld [vmem:[%s270 + $0xe4] sm:$0xf]
        %v352 = vld [vmem:[%s270 + $0xe8] sm:$0xf]
        %v353 = vld [vmem:[%s270 + $0xec] sm:$0xf]
        %v354 = vld [vmem:[%s270 + $0xf0] sm:$0xf]
        %v355 = vld [vmem:[%s270 + $0xf4] sm:$0xf]
        %v356 = vld [vmem:[%s270 + $0xf8] sm:$0xf]
        %v357 = vld [vmem:[%s270 + $0xfc] sm:$0xf]
        %v358 = vld [vmem:[%s281] sm:$0xf]
        %v359 = vld [vmem:[%s281 + $0x4] sm:$0xf]
        %v360 = vld [vmem:[%s281 + $0x8] sm:$0xf]
        %v361 = vld [vmem:[%s281 + $0xc] sm:$0xf]
        %v362 = vld [vmem:[%s281 + $0x10] sm:$0xf]
        %v363 = vld [vmem:[%s281 + $0x14] sm:$0xf]
        %v364 = vld [vmem:[%s281 + $0x18] sm:$0xf]
        %v365 = vld [vmem:[%s281 + $0x1c] sm:$0xf]
        %v366 = vld [vmem:[%s281 + $0x20] sm:$0xf]
        %v367 = vld [vmem:[%s281 + $0x24] sm:$0xf]
        %v368 = vld [vmem:[%s281 + $0x28] sm:$0xf]
        %v369 = vld [vmem:[%s281 + $0x2c] sm:$0xf]
        %v370 = vld [vmem:[%s281 + $0x30] sm:$0xf]
        %v371 = vld [vmem:[%s281 + $0x34] sm:$0xf]
        %v372 = vld [vmem:[%s281 + $0x38] sm:$0xf]
        %v373 = vld [vmem:[%s281 + $0x3c] sm:$0xf]
        %v374 = vld [vmem:[%s290] sm:$0xf]
        %v375 = vld [vmem:[%s290 + $0x4] sm:$0xf]
        %v376 = vld [vmem:[%s290 + $0x8] sm:$0xf]
        %v377 = vld [vmem:[%s290 + $0xc] sm:$0xf]
        %v378 = vld [vmem:[%s290 + $0x10] sm:$0xf]
        %v379 = vld [vmem:[%s290 + $0x14] sm:$0xf]
        %v380 = vld [vmem:[%s290 + $0x18] sm:$0xf]
        %v381 = vld [vmem:[%s290 + $0x1c] sm:$0xf]
        %v382 = vld [vmem:[%s290 + $0x20] sm:$0xf]
        %v383 = vld [vmem:[%s290 + $0x24] sm:$0xf]
        %v384 = vld [vmem:[%s290 + $0x28] sm:$0xf]
        %v385 = vld [vmem:[%s290 + $0x2c] sm:$0xf]
        %v386 = vld [vmem:[%s290 + $0x30] sm:$0xf]
        %v387 = vld [vmem:[%s290 + $0x34] sm:$0xf]
        %v388 = vld [vmem:[%s290 + $0x38] sm:$0xf]
        %v389 = vld [vmem:[%s290 + $0x3c] sm:$0xf]
        %v454 = vunpack.c.l.b16 %v294
        %v455 = vunpack.c.l.b16 %v295
        %v456 = vunpack.c.l.b16 %v296
        %v457 = vunpack.c.l.b16 %v297
        %v458 = vunpack.c.l.b16 %v298
        %v459 = vunpack.c.l.b16 %v299
        %v460 = vunpack.c.l.b16 %v300
        %v461 = vunpack.c.l.b16 %v301
        %v462 = vunpack.c.l.b16 %v302
        %v463 = vunpack.c.l.b16 %v303
        %v464 = vunpack.c.l.b16 %v304
        %v465 = vunpack.c.l.b16 %v305
        %v466 = vunpack.c.l.b16 %v306
        %v467 = vunpack.c.l.b16 %v307
        %v468 = vunpack.c.l.b16 %v308
        %v469 = vunpack.c.l.b16 %v309
        %v470 = vunpack.c.l.b16 %v310
        %v471 = vunpack.c.l.b16 %v311
        %v472 = vunpack.c.l.b16 %v312
        %v473 = vunpack.c.l.b16 %v313
        %v474 = vunpack.c.l.b16 %v314
        %v475 = vunpack.c.l.b16 %v315
        %v476 = vunpack.c.l.b16 %v316
        %v477 = vunpack.c.l.b16 %v317
        %v478 = vunpack.c.l.b16 %v318
        %v479 = vunpack.c.l.b16 %v319
        %v480 = vunpack.c.l.b16 %v320
        %v481 = vunpack.c.l.b16 %v321
        %v482 = vunpack.c.l.b16 %v322
        %v483 = vunpack.c.l.b16 %v323
        %v484 = vunpack.c.l.b16 %v324
        %v485 = vunpack.c.l.b16 %v325
        %v486 = vunpack.c.l.b16 %v326
        %v487 = vunpack.c.l.b16 %v327
        %v488 = vunpack.c.l.b16 %v328
        %v489 = vunpack.c.l.b16 %v329
        %v490 = vunpack.c.l.b16 %v330
        %v491 = vunpack.c.l.b16 %v331
        %v492 = vunpack.c.l.b16 %v332
        %v493 = vunpack.c.l.b16 %v333
        %v494 = vunpack.c.l.b16 %v334
        %v495 = vunpack.c.l.b16 %v335
        %v496 = vunpack.c.l.b16 %v336
        %v497 = vunpack.c.l.b16 %v337
        %v498 = vunpack.c.l.b16 %v338
        %v499 = vunpack.c.l.b16 %v339
        %v500 = vunpack.c.l.b16 %v340
        %v501 = vunpack.c.l.b16 %v341
        %v502 = vunpack.c.l.b16 %v342
        %v503 = vunpack.c.l.b16 %v343
        %v504 = vunpack.c.l.b16 %v344
        %v505 = vunpack.c.l.b16 %v345
        %v506 = vunpack.c.l.b16 %v346
        %v507 = vunpack.c.l.b16 %v347
        %v508 = vunpack.c.l.b16 %v348
        %v509 = vunpack.c.l.b16 %v349
        %v510 = vunpack.c.l.b16 %v350
        %v511 = vunpack.c.l.b16 %v351
        %v512 = vunpack.c.l.b16 %v352
        %v513 = vunpack.c.l.b16 %v353
        %v514 = vunpack.c.l.b16 %v354
        %v515 = vunpack.c.l.b16 %v355
        %v516 = vunpack.c.l.b16 %v356
        %v517 = vunpack.c.l.b16 %v357
        %v518 = vpack.c.b16 %v455, %v454
        %v519 = vpack.c.b16 %v457, %v456
        %v520 = vpack.c.b16 %v459, %v458
        %v521 = vpack.c.b16 %v461, %v460
        %v522 = vpack.c.b16 %v463, %v462
        %v523 = vpack.c.b16 %v465, %v464
        %v524 = vpack.c.b16 %v467, %v466
        %v525 = vpack.c.b16 %v469, %v468
        %v526 = vpack.c.b16 %v471, %v470
        %v527 = vpack.c.b16 %v473, %v472
        %v528 = vpack.c.b16 %v475, %v474
        %v529 = vpack.c.b16 %v477, %v476
        %v530 = vpack.c.b16 %v479, %v478
        %v531 = vpack.c.b16 %v481, %v480
        %v532 = vpack.c.b16 %v483, %v482
        %v533 = vpack.c.b16 %v485, %v484
        %v534 = vpack.c.b16 %v487, %v486
        %v535 = vpack.c.b16 %v489, %v488
        %v536 = vpack.c.b16 %v491, %v490
        %v537 = vpack.c.b16 %v493, %v492
        %v538 = vpack.c.b16 %v495, %v494
        %v539 = vpack.c.b16 %v497, %v496
        %v540 = vpack.c.b16 %v499, %v498
        %v541 = vpack.c.b16 %v501, %v500
        %v542 = vpack.c.b16 %v503, %v502
        %v543 = vpack.c.b16 %v505, %v504
        %v544 = vpack.c.b16 %v507, %v506
        %v545 = vpack.c.b16 %v509, %v508
        %v546 = vpack.c.b16 %v511, %v510
        %v547 = vpack.c.b16 %v513, %v512
        %v548 = vpack.c.b16 %v515, %v514
        %v549 = vpack.c.b16 %v517, %v516
        %v566 = vunpack.c.l.b16 %v358
        %v567 = vunpack.c.l.b16 %v359
        %v568 = vunpack.c.l.b16 %v360
        %v569 = vunpack.c.l.b16 %v361
        %v570 = vunpack.c.l.b16 %v362
        %v571 = vunpack.c.l.b16 %v363
        %v572 = vunpack.c.l.b16 %v364
        %v573 = vunpack.c.l.b16 %v365
        %v574 = vunpack.c.l.b16 %v366
        %v575 = vunpack.c.l.b16 %v367
        %v576 = vunpack.c.l.b16 %v368
        %v577 = vunpack.c.l.b16 %v369
        %v578 = vunpack.c.l.b16 %v370
        %v579 = vunpack.c.l.b16 %v371
        %v580 = vunpack.c.l.b16 %v372
        %v581 = vunpack.c.l.b16 %v373
        %v582 = vpack.c.b16 %v567, %v566
        %v583 = vpack.c.b16 %v569, %v568
        %v584 = vpack.c.b16 %v571, %v570
        %v585 = vpack.c.b16 %v573, %v572
        %v586 = vpack.c.b16 %v575, %v574
        %v587 = vpack.c.b16 %v577, %v576
        %v588 = vpack.c.b16 %v579, %v578
        %v589 = vpack.c.b16 %v581, %v580
        %vm590 = vcmask 523264
        %v592 = vsel %vm590, %v518, 0
        %v595 = vsel %vm590, %v519, 0
        %v598 = vsel %vm590, %v520, 0
        %v601 = vsel %vm590, %v521, 0
        %v604 = vsel %vm590, %v522, 0
        %v607 = vsel %vm590, %v523, 0
        %v610 = vsel %vm590, %v524, 0
        %v613 = vsel %vm590, %v525, 0
        %v616 = vsel %vm590, %v526, 0
        %v619 = vsel %vm590, %v527, 0
        %v622 = vsel %vm590, %v528, 0
        %v625 = vsel %vm590, %v529, 0
        %v628 = vsel %vm590, %v530, 0
        %v631 = vsel %vm590, %v531, 0
        %v634 = vsel %vm590, %v532, 0
        %v637 = vsel %vm590, %v533, 0
        %v640 = vsel %vm590, %v534, 0
        %v643 = vsel %vm590, %v535, 0
        %v646 = vsel %vm590, %v536, 0
        %v649 = vsel %vm590, %v537, 0
        %v652 = vsel %vm590, %v538, 0
        %v655 = vsel %vm590, %v539, 0
        %v658 = vsel %vm590, %v540, 0
        %v661 = vsel %vm590, %v541, 0
        %v664 = vsel %vm590, %v542, 0
        %v667 = vsel %vm590, %v543, 0
        %v670 = vsel %vm590, %v544, 0
        %v673 = vsel %vm590, %v545, 0
        %v676 = vsel %vm590, %v546, 0
        %v679 = vsel %vm590, %v547, 0
        %v682 = vsel %vm590, %v548, 0
        %v685 = vsel %vm590, %v549, 0
        %v688 = vsel %vm590, %v582, 0
        %v691 = vsel %vm590, %v583, 0
        %v694 = vsel %vm590, %v584, 0
        %v697 = vsel %vm590, %v585, 0
        %v700 = vsel %vm590, %v586, 0
        %v703 = vsel %vm590, %v587, 0
        %v706 = vsel %vm590, %v588, 0
        %v709 = vsel %vm590, %v589, 0
        %711 = vmatprep.subr.bf16.mxu0 0
        %712 = vmatpush1.bf16.xpose.msra.mxu0 %v709
        %713 = vmatprep.subr.bf16.mxu0 0
        %714 = vmatpush1.bf16.xpose.msra.mxu0 %v706
        %715 = vmatprep.subr.bf16.mxu0 0
        %716 = vmatpush1.bf16.xpose.msra.mxu0 %v703
        %717 = vmatprep.subr.bf16.mxu0 0
        %718 = vmatpush1.bf16.xpose.msra.mxu0 %v700
        %719 = vmatprep.subr.bf16.mxu0 0
        %720 = vmatpush1.bf16.xpose.msra.mxu0 %v697
        %721 = vmatprep.subr.bf16.mxu0 0
        %722 = vmatpush1.bf16.xpose.msra.mxu0 %v694
        %723 = vmatprep.subr.bf16.mxu0 0
        %724 = vmatpush1.bf16.xpose.msra.mxu0 %v691
        %725 = vmatprep.subr.bf16.mxu0 0
        %726 = vmatpush1.bf16.xpose.msra.mxu0 %v688
        %727 = vmatprep.subr.bf16.mxu0 0
        %728 = vmatpush2.bf16.xpose.msra.mxu0 0
        %729 = vmatprep.subr.bf16.mxu0 0
        %730 = vmatpush2.bf16.xpose.msra.mxu0 0
        %731 = vmatprep.subr.bf16.mxu0 0
        %732 = vmatpush2.bf16.xpose.msra.mxu0 0
        %733 = vmatprep.subr.bf16.mxu0 0
        %734 = vmatpush2.bf16.xpose.msra.mxu0 0
        %735 = vmatprep.subr.bf16.mxu0 0
        %736 = vmatpush2.bf16.xpose.msra.mxu0 0
        %737 = vmatprep.subr.bf16.mxu0 0
        %738 = vmatpush2.bf16.xpose.msra.mxu0 0
        %739 = vmatprep.subr.bf16.mxu0 0
        %740 = vmatpush2.bf16.xpose.msra.mxu0 0
        %741 = vmatprep.subr.bf16.mxu0 0
        %742 = vmatpush2.bf16.xpose.msra.mxu0 0
        %743 = vmatprep.mubr.bf16.mxu0 0
        %744 = vmatmul.mubr.bf16.gmra.mxu0 %v592
        %v745 = vpop.f32.mrf.mxu0
        %v746 = vadd.f32 0.0, %v745
        %v747 = vpop.f32.mrf.mxu0
        %v748 = vpop.f32.mrf.mxu0
        %v749 = vadd.f32 0.0, %v748
        %v750 = vpop.f32.mrf.mxu0
        %751 = vmatprep.mubr.bf16.mxu0 0
        %752 = vmatmul.mubr.bf16.gmra.mxu0 %v595
        %v753 = vpop.f32.mrf.mxu0
        %v754 = vadd.f32 0.0, %v753
        %v755 = vpop.f32.mrf.mxu0
        %v756 = vpop.f32.mrf.mxu0
        %v757 = vadd.f32 0.0, %v756
        %v758 = vpop.f32.mrf.mxu0
        %759 = vmatprep.mubr.bf16.mxu0 0
        %760 = vmatmul.mubr.bf16.gmra.mxu0 %v598
        %v761 = vpop.f32.mrf.mxu0
        %v762 = vadd.f32 0.0, %v761
        %v763 = vpop.f32.mrf.mxu0
        %v764 = vpop.f32.mrf.mxu0
        %v765 = vadd.f32 0.0, %v764
        %v766 = vpop.f32.mrf.mxu0
        %767 = vmatprep.mubr.bf16.mxu0 0
        %768 = vmatmul.mubr.bf16.gmra.mxu0 %v601
        %v769 = vpop.f32.mrf.mxu0
        %v770 = vadd.f32 0.0, %v769
        %v771 = vpop.f32.mrf.mxu0
        %v772 = vpop.f32.mrf.mxu0
        %v773 = vadd.f32 0.0, %v772
        %v774 = vpop.f32.mrf.mxu0
        %775 = vmatprep.mubr.bf16.mxu0 0
        %776 = vmatmul.mubr.bf16.gmra.mxu0 %v604
        %v777 = vpop.f32.mrf.mxu0
        %v778 = vadd.f32 0.0, %v777
        %v779 = vpop.f32.mrf.mxu0
        %v780 = vpop.f32.mrf.mxu0
        %v781 = vadd.f32 0.0, %v780
        %v782 = vpop.f32.mrf.mxu0
        %783 = vmatprep.mubr.bf16.mxu0 0
        %784 = vmatmul.mubr.bf16.gmra.mxu0 %v607
        %v785 = vpop.f32.mrf.mxu0
        %v786 = vadd.f32 0.0, %v785
        %v787 = vpop.f32.mrf.mxu0
        %v788 = vpop.f32.mrf.mxu0
        %v789 = vadd.f32 0.0, %v788
        %v790 = vpop.f32.mrf.mxu0
        %791 = vmatprep.mubr.bf16.mxu0 0
        %792 = vmatmul.mubr.bf16.gmra.mxu0 %v610
        %v793 = vpop.f32.mrf.mxu0
        %v794 = vadd.f32 0.0, %v793
        %v795 = vpop.f32.mrf.mxu0
        %v796 = vpop.f32.mrf.mxu0
        %v797 = vadd.f32 0.0, %v796
        %v798 = vpop.f32.mrf.mxu0
        %799 = vmatprep.mubr.bf16.mxu0 0
        %800 = vmatmul.mubr.bf16.gmra.mxu0 %v613
        %v801 = vpop.f32.mrf.mxu0
        %v802 = vadd.f32 0.0, %v801
        %v803 = vpop.f32.mrf.mxu0
        %v804 = vpop.f32.mrf.mxu0
        %v805 = vadd.f32 0.0, %v804
        %v806 = vpop.f32.mrf.mxu0
        %807 = vmatprep.mubr.bf16.mxu0 0
        %808 = vmatmul.mubr.bf16.gmra.mxu0 %v616
        %v809 = vpop.f32.mrf.mxu0
        %v810 = vadd.f32 0.0, %v809
        %v811 = vpop.f32.mrf.mxu0
        %v812 = vpop.f32.mrf.mxu0
        %v813 = vadd.f32 0.0, %v812
        %v814 = vpop.f32.mrf.mxu0
        %815 = vmatprep.mubr.bf16.mxu0 0
        %816 = vmatmul.mubr.bf16.gmra.mxu0 %v619
        %v817 = vpop.f32.mrf.mxu0
        %v818 = vadd.f32 0.0, %v817
        %v819 = vpop.f32.mrf.mxu0
        %v820 = vpop.f32.mrf.mxu0
        %v821 = vadd.f32 0.0, %v820
        %v822 = vpop.f32.mrf.mxu0
        %823 = vmatprep.mubr.bf16.mxu0 0
        %824 = vmatmul.mubr.bf16.gmra.mxu0 %v622
        %v825 = vpop.f32.mrf.mxu0
        %v826 = vadd.f32 0.0, %v825
        %v827 = vpop.f32.mrf.mxu0
        %v828 = vpop.f32.mrf.mxu0
        %v829 = vadd.f32 0.0, %v828
        %v830 = vpop.f32.mrf.mxu0
        %831 = vmatprep.mubr.bf16.mxu0 0
        %832 = vmatmul.mubr.bf16.gmra.mxu0 %v625
        %v833 = vpop.f32.mrf.mxu0
        %v834 = vadd.f32 0.0, %v833
        %v835 = vpop.f32.mrf.mxu0
        %v836 = vpop.f32.mrf.mxu0
        %v837 = vadd.f32 0.0, %v836
        %v838 = vpop.f32.mrf.mxu0
        %839 = vmatprep.mubr.bf16.mxu0 0
        %840 = vmatmul.mubr.bf16.gmra.mxu0 %v628
        %v841 = vpop.f32.mrf.mxu0
        %v842 = vadd.f32 0.0, %v841
        %v843 = vpop.f32.mrf.mxu0
        %v844 = vpop.f32.mrf.mxu0
        %v845 = vadd.f32 0.0, %v844
        %v846 = vpop.f32.mrf.mxu0
        %847 = vmatprep.mubr.bf16.mxu0 0
        %848 = vmatmul.mubr.bf16.gmra.mxu0 %v631
        %v849 = vpop.f32.mrf.mxu0
        %v850 = vadd.f32 0.0, %v849
        %v851 = vpop.f32.mrf.mxu0
        %v852 = vpop.f32.mrf.mxu0
        %v853 = vadd.f32 0.0, %v852
        %v854 = vpop.f32.mrf.mxu0
        %855 = vmatprep.mubr.bf16.mxu0 0
        %856 = vmatmul.mubr.bf16.gmra.mxu0 %v634
        %v857 = vpop.f32.mrf.mxu0
        %v858 = vadd.f32 0.0, %v857
        %v859 = vpop.f32.mrf.mxu0
        %v860 = vpop.f32.mrf.mxu0
        %v861 = vadd.f32 0.0, %v860
        %v862 = vpop.f32.mrf.mxu0
        %863 = vmatprep.mubr.bf16.mxu0 0
        %864 = vmatmul.mubr.bf16.gmra.mxu0 %v637
        %v865 = vpop.f32.mrf.mxu0
        %v866 = vadd.f32 0.0, %v865
        %v867 = vpop.f32.mrf.mxu0
        %v868 = vpop.f32.mrf.mxu0
        %v869 = vadd.f32 0.0, %v868
        %v870 = vpop.f32.mrf.mxu0
        %871 = vmatprep.mubr.bf16.mxu0 0
        %872 = vmatmul.mubr.bf16.gmra.mxu0 %v640
        %v873 = vpop.f32.mrf.mxu0
        %v874 = vadd.f32 0.0, %v873
        %v875 = vpop.f32.mrf.mxu0
        %v876 = vpop.f32.mrf.mxu0
        %v877 = vadd.f32 0.0, %v876
        %v878 = vpop.f32.mrf.mxu0
        %879 = vmatprep.mubr.bf16.mxu0 0
        %880 = vmatmul.mubr.bf16.gmra.mxu0 %v643
        %v881 = vpop.f32.mrf.mxu0
        %v882 = vadd.f32 0.0, %v881
        %v883 = vpop.f32.mrf.mxu0
        %v884 = vpop.f32.mrf.mxu0
        %v885 = vadd.f32 0.0, %v884
        %v886 = vpop.f32.mrf.mxu0
        %887 = vmatprep.mubr.bf16.mxu0 0
        %888 = vmatmul.mubr.bf16.gmra.mxu0 %v646
        %v889 = vpop.f32.mrf.mxu0
        %v890 = vadd.f32 0.0, %v889
        %v891 = vpop.f32.mrf.mxu0
        %v892 = vpop.f32.mrf.mxu0
        %v893 = vadd.f32 0.0, %v892
        %v894 = vpop.f32.mrf.mxu0
        %895 = vmatprep.mubr.bf16.mxu0 0
        %896 = vmatmul.mubr.bf16.gmra.mxu0 %v649
        %v897 = vpop.f32.mrf.mxu0
        %v898 = vadd.f32 0.0, %v897
        %v899 = vpop.f32.mrf.mxu0
        %v900 = vpop.f32.mrf.mxu0
        %v901 = vadd.f32 0.0, %v900
        %v902 = vpop.f32.mrf.mxu0
        %903 = vmatprep.mubr.bf16.mxu0 0
        %904 = vmatmul.mubr.bf16.gmra.mxu0 %v652
        %v905 = vpop.f32.mrf.mxu0
        %v906 = vadd.f32 0.0, %v905
        %v907 = vpop.f32.mrf.mxu0
        %v908 = vpop.f32.mrf.mxu0
        %v909 = vadd.f32 0.0, %v908
        %v910 = vpop.f32.mrf.mxu0
        %911 = vmatprep.mubr.bf16.mxu0 0
        %912 = vmatmul.mubr.bf16.gmra.mxu0 %v655
        %v913 = vpop.f32.mrf.mxu0
        %v914 = vadd.f32 0.0, %v913
        %v915 = vpop.f32.mrf.mxu0
        %v916 = vpop.f32.mrf.mxu0
        %v917 = vadd.f32 0.0, %v916
        %v918 = vpop.f32.mrf.mxu0
        %919 = vmatprep.mubr.bf16.mxu0 0
        %920 = vmatmul.mubr.bf16.gmra.mxu0 %v658
        %v921 = vpop.f32.mrf.mxu0
        %v922 = vadd.f32 0.0, %v921
        %v923 = vpop.f32.mrf.mxu0
        %v924 = vpop.f32.mrf.mxu0
        %v925 = vadd.f32 0.0, %v924
        %v926 = vpop.f32.mrf.mxu0
        %927 = vmatprep.mubr.bf16.mxu0 0
        %928 = vmatmul.mubr.bf16.gmra.mxu0 %v661
        %v929 = vpop.f32.mrf.mxu0
        %v930 = vadd.f32 0.0, %v929
        %v931 = vpop.f32.mrf.mxu0
        %v932 = vpop.f32.mrf.mxu0
        %v933 = vadd.f32 0.0, %v932
        %v934 = vpop.f32.mrf.mxu0
        %935 = vmatprep.mubr.bf16.mxu0 0
        %936 = vmatmul.mubr.bf16.gmra.mxu0 %v664
        %v937 = vpop.f32.mrf.mxu0
        %v938 = vadd.f32 0.0, %v937
        %v939 = vpop.f32.mrf.mxu0
        %v940 = vpop.f32.mrf.mxu0
        %v941 = vadd.f32 0.0, %v940
        %v942 = vpop.f32.mrf.mxu0
        %943 = vmatprep.mubr.bf16.mxu0 0
        %944 = vmatmul.mubr.bf16.gmra.mxu0 %v667
        %v945 = vpop.f32.mrf.mxu0
        %v946 = vadd.f32 0.0, %v945
        %v947 = vpop.f32.mrf.mxu0
        %v948 = vpop.f32.mrf.mxu0
        %v949 = vadd.f32 0.0, %v948
        %v950 = vpop.f32.mrf.mxu0
        %951 = vmatprep.mubr.bf16.mxu0 0
        %952 = vmatmul.mubr.bf16.gmra.mxu0 %v670
        %v953 = vpop.f32.mrf.mxu0
        %v954 = vadd.f32 0.0, %v953
        %v955 = vpop.f32.mrf.mxu0
        %v956 = vpop.f32.mrf.mxu0
        %v957 = vadd.f32 0.0, %v956
        %v958 = vpop.f32.mrf.mxu0
        %959 = vmatprep.mubr.bf16.mxu0 0
        %960 = vmatmul.mubr.bf16.gmra.mxu0 %v673
        %v961 = vpop.f32.mrf.mxu0
        %v962 = vadd.f32 0.0, %v961
        %v963 = vpop.f32.mrf.mxu0
        %v964 = vpop.f32.mrf.mxu0
        %v965 = vadd.f32 0.0, %v964
        %v966 = vpop.f32.mrf.mxu0
        %967 = vmatprep.mubr.bf16.mxu0 0
        %968 = vmatmul.mubr.bf16.gmra.mxu0 %v676
        %v969 = vpop.f32.mrf.mxu0
        %v970 = vadd.f32 0.0, %v969
        %v971 = vpop.f32.mrf.mxu0
        %v972 = vpop.f32.mrf.mxu0
        %v973 = vadd.f32 0.0, %v972
        %v974 = vpop.f32.mrf.mxu0
        %975 = vmatprep.mubr.bf16.mxu0 0
        %976 = vmatmul.mubr.bf16.gmra.mxu0 %v679
        %v977 = vpop.f32.mrf.mxu0
        %v978 = vadd.f32 0.0, %v977
        %v979 = vpop.f32.mrf.mxu0
        %v980 = vpop.f32.mrf.mxu0
        %v981 = vadd.f32 0.0, %v980
        %v982 = vpop.f32.mrf.mxu0
        %983 = vmatprep.mubr.bf16.mxu0 0
        %984 = vmatmul.mubr.bf16.gmra.mxu0 %v682
        %v985 = vpop.f32.mrf.mxu0
        %v986 = vadd.f32 0.0, %v985
        %v987 = vpop.f32.mrf.mxu0
        %v988 = vpop.f32.mrf.mxu0
        %v989 = vadd.f32 0.0, %v988
        %v990 = vpop.f32.mrf.mxu0
        %991 = vmatprep.mubr.bf16.mxu0 0
        %992 = vmatmul.mubr.bf16.gmra.mxu0 %v685
        %v993 = vpop.f32.mrf.mxu0
        %v994 = vadd.f32 0.0, %v993
        %v995 = vpop.f32.mrf.mxu0
        %v996 = vpop.f32.mrf.mxu0
        %v997 = vadd.f32 0.0, %v996
        %v998 = vpop.f32.mrf.mxu0
        %999 = vdwg.mxu0
        %1000 = vmax.xlane.f32.xlu0 %v746
        %v1001 = vpop.xlane.xlu0 %1000
        %1002 = vmax.xlane.f32.xlu0 %v749
        %v1003 = vpop.xlane.xlu0 %1002
        %1004 = vmax.xlane.f32.xlu0 %v754
        %v1005 = vpop.xlane.xlu0 %1004
        %1006 = vmax.xlane.f32.xlu0 %v757
        %v1007 = vpop.xlane.xlu0 %1006
        %1008 = vmax.xlane.f32.xlu0 %v762
        %v1009 = vpop.xlane.xlu0 %1008
        %1010 = vmax.xlane.f32.xlu0 %v765
        %v1011 = vpop.xlane.xlu0 %1010
        %1012 = vmax.xlane.f32.xlu0 %v770
        %v1013 = vpop.xlane.xlu0 %1012
        %1014 = vmax.xlane.f32.xlu0 %v773
        %v1015 = vpop.xlane.xlu0 %1014
        %1016 = vmax.xlane.f32.xlu0 %v778
        %v1017 = vpop.xlane.xlu0 %1016
        %1018 = vmax.xlane.f32.xlu0 %v781
        %v1019 = vpop.xlane.xlu0 %1018
        %1020 = vmax.xlane.f32.xlu0 %v786
        %v1021 = vpop.xlane.xlu0 %1020
        %1022 = vmax.xlane.f32.xlu0 %v789
        %v1023 = vpop.xlane.xlu0 %1022
        %1024 = vmax.xlane.f32.xlu0 %v794
        %v1025 = vpop.xlane.xlu0 %1024
        %1026 = vmax.xlane.f32.xlu0 %v797
        %v1027 = vpop.xlane.xlu0 %1026
        %1028 = vmax.xlane.f32.xlu0 %v802
        %v1029 = vpop.xlane.xlu0 %1028
        %1030 = vmax.xlane.f32.xlu0 %v805
        %v1031 = vpop.xlane.xlu0 %1030
        %1032 = vmax.xlane.f32.xlu0 %v810
        %v1033 = vpop.xlane.xlu0 %1032
        %1034 = vmax.xlane.f32.xlu0 %v813
        %v1035 = vpop.xlane.xlu0 %1034
        %1036 = vmax.xlane.f32.xlu0 %v818
        %v1037 = vpop.xlane.xlu0 %1036
        %1038 = vmax.xlane.f32.xlu0 %v821
        %v1039 = vpop.xlane.xlu0 %1038
        %1040 = vmax.xlane.f32.xlu0 %v826
        %v1041 = vpop.xlane.xlu0 %1040
        %1042 = vmax.xlane.f32.xlu0 %v829
        %v1043 = vpop.xlane.xlu0 %1042
        %1044 = vmax.xlane.f32.xlu0 %v834
        %v1045 = vpop.xlane.xlu0 %1044
        %1046 = vmax.xlane.f32.xlu0 %v837
        %v1047 = vpop.xlane.xlu0 %1046
        %1048 = vmax.xlane.f32.xlu0 %v842
        %v1049 = vpop.xlane.xlu0 %1048
        %1050 = vmax.xlane.f32.xlu0 %v845
        %v1051 = vpop.xlane.xlu0 %1050
        %1052 = vmax.xlane.f32.xlu0 %v850
        %v1053 = vpop.xlane.xlu0 %1052
        %1054 = vmax.xlane.f32.xlu0 %v853
        %v1055 = vpop.xlane.xlu0 %1054
        %1056 = vmax.xlane.f32.xlu0 %v858
        %v1057 = vpop.xlane.xlu0 %1056
        %1058 = vmax.xlane.f32.xlu0 %v861
        %v1059 = vpop.xlane.xlu0 %1058
        %1060 = vmax.xlane.f32.xlu0 %v866
        %v1061 = vpop.xlane.xlu0 %1060
        %1062 = vmax.xlane.f32.xlu0 %v869
        %v1063 = vpop.xlane.xlu0 %1062
        %1064 = vmax.xlane.f32.xlu0 %v874
        %v1065 = vpop.xlane.xlu0 %1064
        %1066 = vmax.xlane.f32.xlu0 %v877
        %v1067 = vpop.xlane.xlu0 %1066
        %1068 = vmax.xlane.f32.xlu0 %v882
        %v1069 = vpop.xlane.xlu0 %1068
        %1070 = vmax.xlane.f32.xlu0 %v885
        %v1071 = vpop.xlane.xlu0 %1070
        %1072 = vmax.xlane.f32.xlu0 %v890
        %v1073 = vpop.xlane.xlu0 %1072
        %1074 = vmax.xlane.f32.xlu0 %v893
        %v1075 = vpop.xlane.xlu0 %1074
        %1076 = vmax.xlane.f32.xlu0 %v898
        %v1077 = vpop.xlane.xlu0 %1076
        %1078 = vmax.xlane.f32.xlu0 %v901
        %v1079 = vpop.xlane.xlu0 %1078
        %1080 = vmax.xlane.f32.xlu0 %v906
        %v1081 = vpop.xlane.xlu0 %1080
        %1082 = vmax.xlane.f32.xlu0 %v909
        %v1083 = vpop.xlane.xlu0 %1082
        %1084 = vmax.xlane.f32.xlu0 %v914
        %v1085 = vpop.xlane.xlu0 %1084
        %1086 = vmax.xlane.f32.xlu0 %v917
        %v1087 = vpop.xlane.xlu0 %1086
        %1088 = vmax.xlane.f32.xlu0 %v922
        %v1089 = vpop.xlane.xlu0 %1088
        %1090 = vmax.xlane.f32.xlu0 %v925
        %v1091 = vpop.xlane.xlu0 %1090
        %1092 = vmax.xlane.f32.xlu0 %v930
        %v1093 = vpop.xlane.xlu0 %1092
        %1094 = vmax.xlane.f32.xlu0 %v933
        %v1095 = vpop.xlane.xlu0 %1094
        %1096 = vmax.xlane.f32.xlu0 %v938
        %v1097 = vpop.xlane.xlu0 %1096
        %1098 = vmax.xlane.f32.xlu0 %v941
        %v1099 = vpop.xlane.xlu0 %1098
        %1100 = vmax.xlane.f32.xlu0 %v946
        %v1101 = vpop.xlane.xlu0 %1100
        %1102 = vmax.xlane.f32.xlu0 %v949
        %v1103 = vpop.xlane.xlu0 %1102
        %1104 = vmax.xlane.f32.xlu0 %v954
        %v1105 = vpop.xlane.xlu0 %1104
        %1106 = vmax.xlane.f32.xlu0 %v957
        %v1107 = vpop.xlane.xlu0 %1106
        %1108 = vmax.xlane.f32.xlu0 %v962
        %v1109 = vpop.xlane.xlu0 %1108
        %1110 = vmax.xlane.f32.xlu0 %v965
        %v1111 = vpop.xlane.xlu0 %1110
        %1112 = vmax.xlane.f32.xlu0 %v970
        %v1113 = vpop.xlane.xlu0 %1112
        %1114 = vmax.xlane.f32.xlu0 %v973
        %v1115 = vpop.xlane.xlu0 %1114
        %1116 = vmax.xlane.f32.xlu0 %v978
        %v1117 = vpop.xlane.xlu0 %1116
        %1118 = vmax.xlane.f32.xlu0 %v981
        %v1119 = vpop.xlane.xlu0 %1118
        %1120 = vmax.xlane.f32.xlu0 %v986
        %v1121 = vpop.xlane.xlu0 %1120
        %1122 = vmax.xlane.f32.xlu0 %v989
        %v1123 = vpop.xlane.xlu0 %1122
        %1124 = vmax.xlane.f32.xlu0 %v994
        %v1125 = vpop.xlane.xlu0 %1124
        %1126 = vmax.xlane.f32.xlu0 %v997
        %v1127 = vpop.xlane.xlu0 %1126
        %v1128 = vsub.f32 %v746, %v1001
        %v1129 = vsub.f32 %v749, %v1003
        %v1130 = vsub.f32 %v754, %v1005
        %v1131 = vsub.f32 %v757, %v1007
        %v1132 = vsub.f32 %v762, %v1009
        %v1133 = vsub.f32 %v765, %v1011
        %v1134 = vsub.f32 %v770, %v1013
        %v1135 = vsub.f32 %v773, %v1015
        %v1136 = vsub.f32 %v778, %v1017
        %v1137 = vsub.f32 %v781, %v1019
        %v1138 = vsub.f32 %v786, %v1021
        %v1139 = vsub.f32 %v789, %v1023
        %v1140 = vsub.f32 %v794, %v1025
        %v1141 = vsub.f32 %v797, %v1027
        %v1142 = vsub.f32 %v802, %v1029
        %v1143 = vsub.f32 %v805, %v1031
        %v1144 = vsub.f32 %v810, %v1033
        %v1145 = vsub.f32 %v813, %v1035
        %v1146 = vsub.f32 %v818, %v1037
        %v1147 = vsub.f32 %v821, %v1039
        %v1148 = vsub.f32 %v826, %v1041
        %v1149 = vsub.f32 %v829, %v1043
        %v1150 = vsub.f32 %v834, %v1045
        %v1151 = vsub.f32 %v837, %v1047
        %v1152 = vsub.f32 %v842, %v1049
        %v1153 = vsub.f32 %v845, %v1051
        %v1154 = vsub.f32 %v850, %v1053
        %v1155 = vsub.f32 %v853, %v1055
        %v1156 = vsub.f32 %v858, %v1057
        %v1157 = vsub.f32 %v861, %v1059
        %v1158 = vsub.f32 %v866, %v1061
        %v1159 = vsub.f32 %v869, %v1063
        %v1160 = vsub.f32 %v874, %v1065
        %v1161 = vsub.f32 %v877, %v1067
        %v1162 = vsub.f32 %v882, %v1069
        %v1163 = vsub.f32 %v885, %v1071
        %v1164 = vsub.f32 %v890, %v1073
        %v1165 = vsub.f32 %v893, %v1075
        %v1166 = vsub.f32 %v898, %v1077
        %v1167 = vsub.f32 %v901, %v1079
        %v1168 = vsub.f32 %v906, %v1081
        %v1169 = vsub.f32 %v909, %v1083
        %v1170 = vsub.f32 %v914, %v1085
        %v1171 = vsub.f32 %v917, %v1087
        %v1172 = vsub.f32 %v922, %v1089
        %v1173 = vsub.f32 %v925, %v1091
        %v1174 = vsub.f32 %v930, %v1093
        %v1175 = vsub.f32 %v933, %v1095
        %v1176 = vsub.f32 %v938, %v1097
        %v1177 = vsub.f32 %v941, %v1099
        %v1178 = vsub.f32 %v946, %v1101
        %v1179 = vsub.f32 %v949, %v1103
        %v1180 = vsub.f32 %v954, %v1105
        %v1181 = vsub.f32 %v957, %v1107
        %v1182 = vsub.f32 %v962, %v1109
        %v1183 = vsub.f32 %v965, %v1111
        %v1184 = vsub.f32 %v970, %v1113
        %v1185 = vsub.f32 %v973, %v1115
        %v1186 = vsub.f32 %v978, %v1117
        %v1187 = vsub.f32 %v981, %v1119
        %v1188 = vsub.f32 %v986, %v1121
        %v1189 = vsub.f32 %v989, %v1123
        %v1190 = vsub.f32 %v994, %v1125
        %v1191 = vsub.f32 %v997, %v1127
        %v1192 = vpack.c.bf16 %v1129, %v1128
        %v1193 = vpack.c.bf16 %v1131, %v1130
        %v1194 = vpack.c.bf16 %v1133, %v1132
        %v1195 = vpack.c.bf16 %v1135, %v1134
        %v1196 = vpack.c.bf16 %v1137, %v1136
        %v1197 = vpack.c.bf16 %v1139, %v1138
        %v1198 = vpack.c.bf16 %v1141, %v1140
        %v1199 = vpack.c.bf16 %v1143, %v1142
        %v1200 = vpack.c.bf16 %v1145, %v1144
        %v1201 = vpack.c.bf16 %v1147, %v1146
        %v1202 = vpack.c.bf16 %v1149, %v1148
        %v1203 = vpack.c.bf16 %v1151, %v1150
        %v1204 = vpack.c.bf16 %v1153, %v1152
        %v1205 = vpack.c.bf16 %v1155, %v1154
        %v1206 = vpack.c.bf16 %v1157, %v1156
        %v1207 = vpack.c.bf16 %v1159, %v1158
        %v1208 = vpack.c.bf16 %v1161, %v1160
        %v1209 = vpack.c.bf16 %v1163, %v1162
        %v1210 = vpack.c.bf16 %v1165, %v1164
        %v1211 = vpack.c.bf16 %v1167, %v1166
        %v1212 = vpack.c.bf16 %v1169, %v1168
        %v1213 = vpack.c.bf16 %v1171, %v1170
        %v1214 = vpack.c.bf16 %v1173, %v1172
        %v1215 = vpack.c.bf16 %v1175, %v1174
        %v1216 = vpack.c.bf16 %v1177, %v1176
        %v1217 = vpack.c.bf16 %v1179, %v1178
        %v1218 = vpack.c.bf16 %v1181, %v1180
        %v1219 = vpack.c.bf16 %v1183, %v1182
        %v1220 = vpack.c.bf16 %v1185, %v1184
        %v1221 = vpack.c.bf16 %v1187, %v1186
        %v1222 = vpack.c.bf16 %v1189, %v1188
        %v1223 = vpack.c.bf16 %v1191, %v1190
        %v1225 = vmul.bf16 %v1192, 1069105081
        %v1226 = vpow.bf16.pop %v1225
        %v1228 = vmul.bf16 %v1193, 1069105081
        %v1229 = vpow.bf16.pop %v1228
        %v1231 = vmul.bf16 %v1194, 1069105081
        %v1232 = vpow.bf16.pop %v1231
        %v1234 = vmul.bf16 %v1195, 1069105081
        %v1235 = vpow.bf16.pop %v1234
        %v1237 = vmul.bf16 %v1196, 1069105081
        %v1238 = vpow.bf16.pop %v1237
        %v1240 = vmul.bf16 %v1197, 1069105081
        %v1241 = vpow.bf16.pop %v1240
        %v1243 = vmul.bf16 %v1198, 1069105081
        %v1244 = vpow.bf16.pop %v1243
        %v1246 = vmul.bf16 %v1199, 1069105081
        %v1247 = vpow.bf16.pop %v1246
        %v1249 = vmul.bf16 %v1200, 1069105081
        %v1250 = vpow.bf16.pop %v1249
        %v1252 = vmul.bf16 %v1201, 1069105081
        %v1253 = vpow.bf16.pop %v1252
        %v1255 = vmul.bf16 %v1202, 1069105081
        %v1256 = vpow.bf16.pop %v1255
        %v1258 = vmul.bf16 %v1203, 1069105081
        %v1259 = vpow.bf16.pop %v1258
        %v1261 = vmul.bf16 %v1204, 1069105081
        %v1262 = vpow.bf16.pop %v1261
        %v1264 = vmul.bf16 %v1205, 1069105081
        %v1265 = vpow.bf16.pop %v1264
        %v1267 = vmul.bf16 %v1206, 1069105081
        %v1268 = vpow.bf16.pop %v1267
        %v1270 = vmul.bf16 %v1207, 1069105081
        %v1271 = vpow.bf16.pop %v1270
        %v1273 = vmul.bf16 %v1208, 1069105081
        %v1274 = vpow.bf16.pop %v1273
        %v1276 = vmul.bf16 %v1209, 1069105081
        %v1277 = vpow.bf16.pop %v1276
        %v1279 = vmul.bf16 %v1210, 1069105081
        %v1280 = vpow.bf16.pop %v1279
        %v1282 = vmul.bf16 %v1211, 1069105081
        %v1283 = vpow.bf16.pop %v1282
        %v1285 = vmul.bf16 %v1212, 1069105081
        %v1286 = vpow.bf16.pop %v1285
        %v1288 = vmul.bf16 %v1213, 1069105081
        %v1289 = vpow.bf16.pop %v1288
        %v1291 = vmul.bf16 %v1214, 1069105081
        %v1292 = vpow.bf16.pop %v1291
        %v1294 = vmul.bf16 %v1215, 1069105081
        %v1295 = vpow.bf16.pop %v1294
        %v1297 = vmul.bf16 %v1216, 1069105081
        %v1298 = vpow.bf16.pop %v1297
        %v1300 = vmul.bf16 %v1217, 1069105081
        %v1301 = vpow.bf16.pop %v1300
        %v1303 = vmul.bf16 %v1218, 1069105081
        %v1304 = vpow.bf16.pop %v1303
        %v1306 = vmul.bf16 %v1219, 1069105081
        %v1307 = vpow.bf16.pop %v1306
        %v1309 = vmul.bf16 %v1220, 1069105081
        %v1310 = vpow.bf16.pop %v1309
        %v1312 = vmul.bf16 %v1221, 1069105081
        %v1313 = vpow.bf16.pop %v1312
        %v1315 = vmul.bf16 %v1222, 1069105081
        %v1316 = vpow.bf16.pop %v1315
        %v1318 = vmul.bf16 %v1223, 1069105081
        %v1319 = vpow.bf16.pop %v1318
        %v1320 = vunpack.c.l.bf16 %v1226
        %v1321 = vunpack.c.h.bf16 %v1226
        %v1322 = vunpack.c.l.bf16 %v1229
        %v1323 = vunpack.c.h.bf16 %v1229
        %v1324 = vunpack.c.l.bf16 %v1232
        %v1325 = vunpack.c.h.bf16 %v1232
        %v1326 = vunpack.c.l.bf16 %v1235
        %v1327 = vunpack.c.h.bf16 %v1235
        %v1328 = vunpack.c.l.bf16 %v1238
        %v1329 = vunpack.c.h.bf16 %v1238
        %v1330 = vunpack.c.l.bf16 %v1241
        %v1331 = vunpack.c.h.bf16 %v1241
        %v1332 = vunpack.c.l.bf16 %v1244
        %v1333 = vunpack.c.h.bf16 %v1244
        %v1334 = vunpack.c.l.bf16 %v1247
        %v1335 = vunpack.c.h.bf16 %v1247
        %v1336 = vunpack.c.l.bf16 %v1250
        %v1337 = vunpack.c.h.bf16 %v1250
        %v1338 = vunpack.c.l.bf16 %v1253
        %v1339 = vunpack.c.h.bf16 %v1253
        %v1340 = vunpack.c.l.bf16 %v1256
        %v1341 = vunpack.c.h.bf16 %v1256
        %v1342 = vunpack.c.l.bf16 %v1259
        %v1343 = vunpack.c.h.bf16 %v1259
        %v1344 = vunpack.c.l.bf16 %v1262
        %v1345 = vunpack.c.h.bf16 %v1262
        %v1346 = vunpack.c.l.bf16 %v1265
        %v1347 = vunpack.c.h.bf16 %v1265
        %v1348 = vunpack.c.l.bf16 %v1268
        %v1349 = vunpack.c.h.bf16 %v1268
        %v1350 = vunpack.c.l.bf16 %v1271
        %v1351 = vunpack.c.h.bf16 %v1271
        %v1352 = vunpack.c.l.bf16 %v1274
        %v1353 = vunpack.c.h.bf16 %v1274
        %v1354 = vunpack.c.l.bf16 %v1277
        %v1355 = vunpack.c.h.bf16 %v1277
        %v1356 = vunpack.c.l.bf16 %v1280
        %v1357 = vunpack.c.h.bf16 %v1280
        %v1358 = vunpack.c.l.bf16 %v1283
        %v1359 = vunpack.c.h.bf16 %v1283
        %v1360 = vunpack.c.l.bf16 %v1286
        %v1361 = vunpack.c.h.bf16 %v1286
        %v1362 = vunpack.c.l.bf16 %v1289
        %v1363 = vunpack.c.h.bf16 %v1289
        %v1364 = vunpack.c.l.bf16 %v1292
        %v1365 = vunpack.c.h.bf16 %v1292
        %v1366 = vunpack.c.l.bf16 %v1295
        %v1367 = vunpack.c.h.bf16 %v1295
        %v1368 = vunpack.c.l.bf16 %v1298
        %v1369 = vunpack.c.h.bf16 %v1298
        %v1370 = vunpack.c.l.bf16 %v1301
        %v1371 = vunpack.c.h.bf16 %v1301
        %v1372 = vunpack.c.l.bf16 %v1304
        %v1373 = vunpack.c.h.bf16 %v1304
        %v1374 = vunpack.c.l.bf16 %v1307
        %v1375 = vunpack.c.h.bf16 %v1307
        %v1376 = vunpack.c.l.bf16 %v1310
        %v1377 = vunpack.c.h.bf16 %v1310
        %v1378 = vunpack.c.l.bf16 %v1313
        %v1379 = vunpack.c.h.bf16 %v1313
        %v1380 = vunpack.c.l.bf16 %v1316
        %v1381 = vunpack.c.h.bf16 %v1316
        %v1382 = vunpack.c.l.bf16 %v1319
        %v1383 = vunpack.c.h.bf16 %v1319
        %1384 = vadd.xlane.f32.xlu0 %v1320
        %v1385 = vpop.xlane.xlu0 %1384
        %1386 = vadd.xlane.f32.xlu0 %v1321
        %v1387 = vpop.xlane.xlu0 %1386
        %1388 = vadd.xlane.f32.xlu0 %v1322
        %v1389 = vpop.xlane.xlu0 %1388
        %1390 = vadd.xlane.f32.xlu0 %v1323
        %v1391 = vpop.xlane.xlu0 %1390
        %1392 = vadd.xlane.f32.xlu0 %v1324
        %v1393 = vpop.xlane.xlu0 %1392
        %1394 = vadd.xlane.f32.xlu0 %v1325
        %v1395 = vpop.xlane.xlu0 %1394
        %1396 = vadd.xlane.f32.xlu0 %v1326
        %v1397 = vpop.xlane.xlu0 %1396
        %1398 = vadd.xlane.f32.xlu0 %v1327
        %v1399 = vpop.xlane.xlu0 %1398
        %1400 = vadd.xlane.f32.xlu0 %v1328
        %v1401 = vpop.xlane.xlu0 %1400
        %1402 = vadd.xlane.f32.xlu0 %v1329
        %v1403 = vpop.xlane.xlu0 %1402
        %1404 = vadd.xlane.f32.xlu0 %v1330
        %v1405 = vpop.xlane.xlu0 %1404
        %1406 = vadd.xlane.f32.xlu0 %v1331
        %v1407 = vpop.xlane.xlu0 %1406
        %1408 = vadd.xlane.f32.xlu0 %v1332
        %v1409 = vpop.xlane.xlu0 %1408
        %1410 = vadd.xlane.f32.xlu0 %v1333
        %v1411 = vpop.xlane.xlu0 %1410
        %1412 = vadd.xlane.f32.xlu0 %v1334
        %v1413 = vpop.xlane.xlu0 %1412
        %1414 = vadd.xlane.f32.xlu0 %v1335
        %v1415 = vpop.xlane.xlu0 %1414
        %1416 = vadd.xlane.f32.xlu0 %v1336
        %v1417 = vpop.xlane.xlu0 %1416
        %1418 = vadd.xlane.f32.xlu0 %v1337
        %v1419 = vpop.xlane.xlu0 %1418
        %1420 = vadd.xlane.f32.xlu0 %v1338
        %v1421 = vpop.xlane.xlu0 %1420
        %1422 = vadd.xlane.f32.xlu0 %v1339
        %v1423 = vpop.xlane.xlu0 %1422
        %1424 = vadd.xlane.f32.xlu0 %v1340
        %v1425 = vpop.xlane.xlu0 %1424
        %1426 = vadd.xlane.f32.xlu0 %v1341
        %v1427 = vpop.xlane.xlu0 %1426
        %1428 = vadd.xlane.f32.xlu0 %v1342
        %v1429 = vpop.xlane.xlu0 %1428
        %1430 = vadd.xlane.f32.xlu0 %v1343
        %v1431 = vpop.xlane.xlu0 %1430
        %1432 = vadd.xlane.f32.xlu0 %v1344
        %v1433 = vpop.xlane.xlu0 %1432
        %1434 = vadd.xlane.f32.xlu0 %v1345
        %v1435 = vpop.xlane.xlu0 %1434
        %1436 = vadd.xlane.f32.xlu0 %v1346
        %v1437 = vpop.xlane.xlu0 %1436
        %1438 = vadd.xlane.f32.xlu0 %v1347
        %v1439 = vpop.xlane.xlu0 %1438
        %1440 = vadd.xlane.f32.xlu0 %v1348
        %v1441 = vpop.xlane.xlu0 %1440
        %1442 = vadd.xlane.f32.xlu0 %v1349
        %v1443 = vpop.xlane.xlu0 %1442
        %1444 = vadd.xlane.f32.xlu0 %v1350
        %v1445 = vpop.xlane.xlu0 %1444
        %1446 = vadd.xlane.f32.xlu0 %v1351
        %v1447 = vpop.xlane.xlu0 %1446
        %1448 = vadd.xlane.f32.xlu0 %v1352
        %v1449 = vpop.xlane.xlu0 %1448
        %1450 = vadd.xlane.f32.xlu0 %v1353
        %v1451 = vpop.xlane.xlu0 %1450
        %1452 = vadd.xlane.f32.xlu0 %v1354
        %v1453 = vpop.xlane.xlu0 %1452
        %1454 = vadd.xlane.f32.xlu0 %v1355
        %v1455 = vpop.xlane.xlu0 %1454
        %1456 = vadd.xlane.f32.xlu0 %v1356
        %v1457 = vpop.xlane.xlu0 %1456
        %1458 = vadd.xlane.f32.xlu0 %v1357
        %v1459 = vpop.xlane.xlu0 %1458
        %1460 = vadd.xlane.f32.xlu0 %v1358
        %v1461 = vpop.xlane.xlu0 %1460
        %1462 = vadd.xlane.f32.xlu0 %v1359
        %v1463 = vpop.xlane.xlu0 %1462
        %1464 = vadd.xlane.f32.xlu0 %v1360
        %v1465 = vpop.xlane.xlu0 %1464
        %1466 = vadd.xlane.f32.xlu0 %v1361
        %v1467 = vpop.xlane.xlu0 %1466
        %1468 = vadd.xlane.f32.xlu0 %v1362
        %v1469 = vpop.xlane.xlu0 %1468
        %1470 = vadd.xlane.f32.xlu0 %v1363
        %v1471 = vpop.xlane.xlu0 %1470
        %1472 = vadd.xlane.f32.xlu0 %v1364
        %v1473 = vpop.xlane.xlu0 %1472
        %1474 = vadd.xlane.f32.xlu0 %v1365
        %v1475 = vpop.xlane.xlu0 %1474
        %1476 = vadd.xlane.f32.xlu0 %v1366
        %v1477 = vpop.xlane.xlu0 %1476
        %1478 = vadd.xlane.f32.xlu0 %v1367
        %v1479 = vpop.xlane.xlu0 %1478
        %1480 = vadd.xlane.f32.xlu0 %v1368
        %v1481 = vpop.xlane.xlu0 %1480
        %1482 = vadd.xlane.f32.xlu0 %v1369
        %v1483 = vpop.xlane.xlu0 %1482
        %1484 = vadd.xlane.f32.xlu0 %v1370
        %v1485 = vpop.xlane.xlu0 %1484
        %1486 = vadd.xlane.f32.xlu0 %v1371
        %v1487 = vpop.xlane.xlu0 %1486
        %1488 = vadd.xlane.f32.xlu0 %v1372
        %v1489 = vpop.xlane.xlu0 %1488
        %1490 = vadd.xlane.f32.xlu0 %v1373
        %v1491 = vpop.xlane.xlu0 %1490
        %1492 = vadd.xlane.f32.xlu0 %v1374
        %v1493 = vpop.xlane.xlu0 %1492
        %1494 = vadd.xlane.f32.xlu0 %v1375
        %v1495 = vpop.xlane.xlu0 %1494
        %1496 = vadd.xlane.f32.xlu0 %v1376
        %v1497 = vpop.xlane.xlu0 %1496
        %1498 = vadd.xlane.f32.xlu0 %v1377
        %v1499 = vpop.xlane.xlu0 %1498
        %1500 = vadd.xlane.f32.xlu0 %v1378
        %v1501 = vpop.xlane.xlu0 %1500
        %1502 = vadd.xlane.f32.xlu0 %v1379
        %v1503 = vpop.xlane.xlu0 %1502
        %1504 = vadd.xlane.f32.xlu0 %v1380
        %v1505 = vpop.xlane.xlu0 %1504
        %1506 = vadd.xlane.f32.xlu0 %v1381
        %v1507 = vpop.xlane.xlu0 %1506
        %1508 = vadd.xlane.f32.xlu0 %v1382
        %v1509 = vpop.xlane.xlu0 %1508
        %1510 = vadd.xlane.f32.xlu0 %v1383
        %v1511 = vpop.xlane.xlu0 %1510
        %v1512 = vrcp.pop %v1385
        %v1513 = vrcp.pop %v1387
        %v1514 = vrcp.pop %v1389
        %v1515 = vrcp.pop %v1391
        %v1516 = vrcp.pop %v1393
        %v1517 = vrcp.pop %v1395
        %v1518 = vrcp.pop %v1397
        %v1519 = vrcp.pop %v1399
        %v1520 = vrcp.pop %v1401
        %v1521 = vrcp.pop %v1403
        %v1522 = vrcp.pop %v1405
        %v1523 = vrcp.pop %v1407
        %v1524 = vrcp.pop %v1409
        %v1525 = vrcp.pop %v1411
        %v1526 = vrcp.pop %v1413
        %v1527 = vrcp.pop %v1415
        %v1528 = vrcp.pop %v1417
        %v1529 = vrcp.pop %v1419
        %v1530 = vrcp.pop %v1421
        %v1531 = vrcp.pop %v1423
        %v1532 = vrcp.pop %v1425
        %v1533 = vrcp.pop %v1427
        %v1534 = vrcp.pop %v1429
        %v1535 = vrcp.pop %v1431
        %v1536 = vrcp.pop %v1433
        %v1537 = vrcp.pop %v1435
        %v1538 = vrcp.pop %v1437
        %v1539 = vrcp.pop %v1439
        %v1540 = vrcp.pop %v1441
        %v1541 = vrcp.pop %v1443
        %v1542 = vrcp.pop %v1445
        %v1543 = vrcp.pop %v1447
        %v1544 = vrcp.pop %v1449
        %v1545 = vrcp.pop %v1451
        %v1546 = vrcp.pop %v1453
        %v1547 = vrcp.pop %v1455
        %v1548 = vrcp.pop %v1457
        %v1549 = vrcp.pop %v1459
        %v1550 = vrcp.pop %v1461
        %v1551 = vrcp.pop %v1463
        %v1552 = vrcp.pop %v1465
        %v1553 = vrcp.pop %v1467
        %v1554 = vrcp.pop %v1469
        %v1555 = vrcp.pop %v1471
        %v1556 = vrcp.pop %v1473
        %v1557 = vrcp.pop %v1475
        %v1558 = vrcp.pop %v1477
        %v1559 = vrcp.pop %v1479
        %v1560 = vrcp.pop %v1481
        %v1561 = vrcp.pop %v1483
        %v1562 = vrcp.pop %v1485
        %v1563 = vrcp.pop %v1487
        %v1564 = vrcp.pop %v1489
        %v1565 = vrcp.pop %v1491
        %v1566 = vrcp.pop %v1493
        %v1567 = vrcp.pop %v1495
        %v1568 = vrcp.pop %v1497
        %v1569 = vrcp.pop %v1499
        %v1570 = vrcp.pop %v1501
        %v1571 = vrcp.pop %v1503
        %v1572 = vrcp.pop %v1505
        %v1573 = vrcp.pop %v1507
        %v1574 = vrcp.pop %v1509
        %v1575 = vrcp.pop %v1511
        %v1592 = vunpack.c.l.b16 %v374
        %v1593 = vunpack.c.l.b16 %v375
        %v1594 = vunpack.c.l.b16 %v376
        %v1595 = vunpack.c.l.b16 %v377
        %v1596 = vunpack.c.l.b16 %v378
        %v1597 = vunpack.c.l.b16 %v379
        %v1598 = vunpack.c.l.b16 %v380
        %v1599 = vunpack.c.l.b16 %v381
        %v1600 = vunpack.c.l.b16 %v382
        %v1601 = vunpack.c.l.b16 %v383
        %v1602 = vunpack.c.l.b16 %v384
        %v1603 = vunpack.c.l.b16 %v385
        %v1604 = vunpack.c.l.b16 %v386
        %v1605 = vunpack.c.l.b16 %v387
        %v1606 = vunpack.c.l.b16 %v388
        %v1607 = vunpack.c.l.b16 %v389
        %v1608 = vpack.c.b16 %v1593, %v1592
        %v1609 = vpack.c.b16 %v1595, %v1594
        %v1610 = vpack.c.b16 %v1597, %v1596
        %v1611 = vpack.c.b16 %v1599, %v1598
        %v1612 = vpack.c.b16 %v1601, %v1600
        %v1613 = vpack.c.b16 %v1603, %v1602
        %v1614 = vpack.c.b16 %v1605, %v1604
        %v1615 = vpack.c.b16 %v1607, %v1606
        %1624 = vmatprep.subr.bf16.mxu0 0
        %1625 = vmatpush1.bf16.msra.mxu0 %v1615
        %1626 = vmatprep.subr.bf16.mxu0 0
        %1627 = vmatpush1.bf16.msra.mxu0 %v1614
        %1628 = vmatprep.subr.bf16.mxu0 0
        %1629 = vmatpush1.bf16.msra.mxu0 %v1613
        %1630 = vmatprep.subr.bf16.mxu0 0
        %1631 = vmatpush1.bf16.msra.mxu0 %v1612
        %1632 = vmatprep.subr.bf16.mxu0 0
        %1633 = vmatpush1.bf16.msra.mxu0 %v1611
        %1634 = vmatprep.subr.bf16.mxu0 0
        %1635 = vmatpush1.bf16.msra.mxu0 %v1610
        %1636 = vmatprep.subr.bf16.mxu0 0
        %1637 = vmatpush1.bf16.msra.mxu0 %v1609
        %1638 = vmatprep.subr.bf16.mxu0 0
        %1639 = vmatpush1.bf16.msra.mxu0 %v1608
        %1640 = vmatprep.subr.bf16.mxu0 0
        %1641 = vmatpush2.bf16.msra.mxu0 0
        %1642 = vmatprep.subr.bf16.mxu0 0
        %1643 = vmatpush2.bf16.msra.mxu0 0
        %1644 = vmatprep.subr.bf16.mxu0 0
        %1645 = vmatpush2.bf16.msra.mxu0 0
        %1646 = vmatprep.subr.bf16.mxu0 0
        %1647 = vmatpush2.bf16.msra.mxu0 0
        %1648 = vmatprep.subr.bf16.mxu0 0
        %1649 = vmatpush2.bf16.msra.mxu0 0
        %1650 = vmatprep.subr.bf16.mxu0 0
        %1651 = vmatpush2.bf16.msra.mxu0 0
        %1652 = vmatprep.subr.bf16.mxu0 0
        %1653 = vmatpush2.bf16.msra.mxu0 0
        %1654 = vmatprep.subr.bf16.mxu0 0
        %1655 = vmatpush2.bf16.msra.mxu0 0
        %1656 = vmatprep.mubr.bf16.mxu0 0
        %1657 = vmatmul.mubr.bf16.gmra.mxu0 %v1226
        %v1658 = vpop.f32.mrf.mxu0
        %v1659 = vadd.f32 0.0, %v1658
        %v1660 = vpop.f32.mrf.mxu0
        %v1661 = vpop.f32.mrf.mxu0
        %v1662 = vadd.f32 0.0, %v1661
        %v1663 = vpop.f32.mrf.mxu0
        %1664 = vmatprep.mubr.bf16.mxu0 0
        %1665 = vmatmul.mubr.bf16.gmra.mxu0 %v1229
        %v1666 = vpop.f32.mrf.mxu0
        %v1667 = vadd.f32 0.0, %v1666
        %v1668 = vpop.f32.mrf.mxu0
        %v1669 = vpop.f32.mrf.mxu0
        %v1670 = vadd.f32 0.0, %v1669
        %v1671 = vpop.f32.mrf.mxu0
        %1672 = vmatprep.mubr.bf16.mxu0 0
        %1673 = vmatmul.mubr.bf16.gmra.mxu0 %v1232
        %v1674 = vpop.f32.mrf.mxu0
        %v1675 = vadd.f32 0.0, %v1674
        %v1676 = vpop.f32.mrf.mxu0
        %v1677 = vpop.f32.mrf.mxu0
        %v1678 = vadd.f32 0.0, %v1677
        %v1679 = vpop.f32.mrf.mxu0
        %1680 = vmatprep.mubr.bf16.mxu0 0
        %1681 = vmatmul.mubr.bf16.gmra.mxu0 %v1235
        %v1682 = vpop.f32.mrf.mxu0
        %v1683 = vadd.f32 0.0, %v1682
        %v1684 = vpop.f32.mrf.mxu0
        %v1685 = vpop.f32.mrf.mxu0
        %v1686 = vadd.f32 0.0, %v1685
        %v1687 = vpop.f32.mrf.mxu0
        %1688 = vmatprep.mubr.bf16.mxu0 0
        %1689 = vmatmul.mubr.bf16.gmra.mxu0 %v1238
        %v1690 = vpop.f32.mrf.mxu0
        %v1691 = vadd.f32 0.0, %v1690
        %v1692 = vpop.f32.mrf.mxu0
        %v1693 = vpop.f32.mrf.mxu0
        %v1694 = vadd.f32 0.0, %v1693
        %v1695 = vpop.f32.mrf.mxu0
        %1696 = vmatprep.mubr.bf16.mxu0 0
        %1697 = vmatmul.mubr.bf16.gmra.mxu0 %v1241
        %v1698 = vpop.f32.mrf.mxu0
        %v1699 = vadd.f32 0.0, %v1698
        %v1700 = vpop.f32.mrf.mxu0
        %v1701 = vpop.f32.mrf.mxu0
        %v1702 = vadd.f32 0.0, %v1701
        %v1703 = vpop.f32.mrf.mxu0
        %1704 = vmatprep.mubr.bf16.mxu0 0
        %1705 = vmatmul.mubr.bf16.gmra.mxu0 %v1244
        %v1706 = vpop.f32.mrf.mxu0
        %v1707 = vadd.f32 0.0, %v1706
        %v1708 = vpop.f32.mrf.mxu0
        %v1709 = vpop.f32.mrf.mxu0
        %v1710 = vadd.f32 0.0, %v1709
        %v1711 = vpop.f32.mrf.mxu0
        %1712 = vmatprep.mubr.bf16.mxu0 0
        %1713 = vmatmul.mubr.bf16.gmra.mxu0 %v1247
        %v1714 = vpop.f32.mrf.mxu0
        %v1715 = vadd.f32 0.0, %v1714
        %v1716 = vpop.f32.mrf.mxu0
        %v1717 = vpop.f32.mrf.mxu0
        %v1718 = vadd.f32 0.0, %v1717
        %v1719 = vpop.f32.mrf.mxu0
        %1720 = vdwg.mxu0
        %v1721 = vmul.f32 %v1659, %v1512
        %v1722 = vmul.f32 %v1662, %v1513
        %v1723 = vmul.f32 %v1667, %v1514
        %v1724 = vmul.f32 %v1670, %v1515
        %v1725 = vmul.f32 %v1675, %v1516
        %v1726 = vmul.f32 %v1678, %v1517
        %v1727 = vmul.f32 %v1683, %v1518
        %v1728 = vmul.f32 %v1686, %v1519
        %v1729 = vmul.f32 %v1691, %v1520
        %v1730 = vmul.f32 %v1694, %v1521
        %v1731 = vmul.f32 %v1699, %v1522
        %v1732 = vmul.f32 %v1702, %v1523
        %v1733 = vmul.f32 %v1707, %v1524
        %v1734 = vmul.f32 %v1710, %v1525
        %v1735 = vmul.f32 %v1715, %v1526
        %v1736 = vmul.f32 %v1718, %v1527
        %v1737 = vpack.c.bf16 %v1722, %v1721
        %v1738 = vpack.c.bf16 %v1724, %v1723
        %v1739 = vpack.c.bf16 %v1726, %v1725
        %v1740 = vpack.c.bf16 %v1728, %v1727
        %v1741 = vpack.c.bf16 %v1730, %v1729
        %v1742 = vpack.c.bf16 %v1732, %v1731
        %v1743 = vpack.c.bf16 %v1734, %v1733
        %v1744 = vpack.c.bf16 %v1736, %v1735
        %1745 = vmatprep.subr.bf16.mxu0 0
        %1746 = vmatpush1.bf16.msra.mxu0 %v1615
        %1747 = vmatprep.subr.bf16.mxu0 0
        %1748 = vmatpush1.bf16.msra.mxu0 %v1614
        %1749 = vmatprep.subr.bf16.mxu0 0
        %1750 = vmatpush1.bf16.msra.mxu0 %v1613
        %1751 = vmatprep.subr.bf16.mxu0 0
        %1752 = vmatpush1.bf16.msra.mxu0 %v1612
        %1753 = vmatprep.subr.bf16.mxu0 0
        %1754 = vmatpush1.bf16.msra.mxu0 %v1611
        %1755 = vmatprep.subr.bf16.mxu0 0
        %1756 = vmatpush1.bf16.msra.mxu0 %v1610
        %1757 = vmatprep.subr.bf16.mxu0 0
        %1758 = vmatpush1.bf16.msra.mxu0 %v1609
        %1759 = vmatprep.subr.bf16.mxu0 0
        %1760 = vmatpush1.bf16.msra.mxu0 %v1608
        %1761 = vmatprep.subr.bf16.mxu0 0
        %1762 = vmatpush2.bf16.msra.mxu0 0
        %1763 = vmatprep.subr.bf16.mxu0 0
        %1764 = vmatpush2.bf16.msra.mxu0 0
        %1765 = vmatprep.subr.bf16.mxu0 0
        %1766 = vmatpush2.bf16.msra.mxu0 0
        %1767 = vmatprep.subr.bf16.mxu0 0
        %1768 = vmatpush2.bf16.msra.mxu0 0
        %1769 = vmatprep.subr.bf16.mxu0 0
        %1770 = vmatpush2.bf16.msra.mxu0 0
        %1771 = vmatprep.subr.bf16.mxu0 0
        %1772 = vmatpush2.bf16.msra.mxu0 0
        %1773 = vmatprep.subr.bf16.mxu0 0
        %1774 = vmatpush2.bf16.msra.mxu0 0
        %1775 = vmatprep.subr.bf16.mxu0 0
        %1776 = vmatpush2.bf16.msra.mxu0 0
        %1777 = vmatprep.mubr.bf16.mxu0 0
        %1778 = vmatmul.mubr.bf16.gmra.mxu0 %v1250
        %v1779 = vpop.f32.mrf.mxu0
        %v1780 = vadd.f32 0.0, %v1779
        %v1781 = vpop.f32.mrf.mxu0
        %v1782 = vpop.f32.mrf.mxu0
        %v1783 = vadd.f32 0.0, %v1782
        %v1784 = vpop.f32.mrf.mxu0
        %1785 = vmatprep.mubr.bf16.mxu0 0
        %1786 = vmatmul.mubr.bf16.gmra.mxu0 %v1253
        %v1787 = vpop.f32.mrf.mxu0
        %v1788 = vadd.f32 0.0, %v1787
        %v1789 = vpop.f32.mrf.mxu0
        %v1790 = vpop.f32.mrf.mxu0
        %v1791 = vadd.f32 0.0, %v1790
        %v1792 = vpop.f32.mrf.mxu0
        %1793 = vmatprep.mubr.bf16.mxu0 0
        %1794 = vmatmul.mubr.bf16.gmra.mxu0 %v1256
        %v1795 = vpop.f32.mrf.mxu0
        %v1796 = vadd.f32 0.0, %v1795
        %v1797 = vpop.f32.mrf.mxu0
        %v1798 = vpop.f32.mrf.mxu0
        %v1799 = vadd.f32 0.0, %v1798
        %v1800 = vpop.f32.mrf.mxu0
        %1801 = vmatprep.mubr.bf16.mxu0 0
        %1802 = vmatmul.mubr.bf16.gmra.mxu0 %v1259
        %v1803 = vpop.f32.mrf.mxu0
        %v1804 = vadd.f32 0.0, %v1803
        %v1805 = vpop.f32.mrf.mxu0
        %v1806 = vpop.f32.mrf.mxu0
        %v1807 = vadd.f32 0.0, %v1806
        %v1808 = vpop.f32.mrf.mxu0
        %1809 = vmatprep.mubr.bf16.mxu0 0
        %1810 = vmatmul.mubr.bf16.gmra.mxu0 %v1262
        %v1811 = vpop.f32.mrf.mxu0
        %v1812 = vadd.f32 0.0, %v1811
        %v1813 = vpop.f32.mrf.mxu0
        %v1814 = vpop.f32.mrf.mxu0
        %v1815 = vadd.f32 0.0, %v1814
        %v1816 = vpop.f32.mrf.mxu0
        %1817 = vmatprep.mubr.bf16.mxu0 0
        %1818 = vmatmul.mubr.bf16.gmra.mxu0 %v1265
        %v1819 = vpop.f32.mrf.mxu0
        %v1820 = vadd.f32 0.0, %v1819
        %v1821 = vpop.f32.mrf.mxu0
        %v1822 = vpop.f32.mrf.mxu0
        %v1823 = vadd.f32 0.0, %v1822
        %v1824 = vpop.f32.mrf.mxu0
        %1825 = vmatprep.mubr.bf16.mxu0 0
        %1826 = vmatmul.mubr.bf16.gmra.mxu0 %v1268
        %v1827 = vpop.f32.mrf.mxu0
        %v1828 = vadd.f32 0.0, %v1827
        %v1829 = vpop.f32.mrf.mxu0
        %v1830 = vpop.f32.mrf.mxu0
        %v1831 = vadd.f32 0.0, %v1830
        %v1832 = vpop.f32.mrf.mxu0
        %1833 = vmatprep.mubr.bf16.mxu0 0
        %1834 = vmatmul.mubr.bf16.gmra.mxu0 %v1271
        %v1835 = vpop.f32.mrf.mxu0
        %v1836 = vadd.f32 0.0, %v1835
        %v1837 = vpop.f32.mrf.mxu0
        %v1838 = vpop.f32.mrf.mxu0
        %v1839 = vadd.f32 0.0, %v1838
        %v1840 = vpop.f32.mrf.mxu0
        %1841 = vdwg.mxu0
        %v1842 = vmul.f32 %v1780, %v1528
        %v1843 = vmul.f32 %v1783, %v1529
        %v1844 = vmul.f32 %v1788, %v1530
        %v1845 = vmul.f32 %v1791, %v1531
        %v1846 = vmul.f32 %v1796, %v1532
        %v1847 = vmul.f32 %v1799, %v1533
        %v1848 = vmul.f32 %v1804, %v1534
        %v1849 = vmul.f32 %v1807, %v1535
        %v1850 = vmul.f32 %v1812, %v1536
        %v1851 = vmul.f32 %v1815, %v1537
        %v1852 = vmul.f32 %v1820, %v1538
        %v1853 = vmul.f32 %v1823, %v1539
        %v1854 = vmul.f32 %v1828, %v1540
        %v1855 = vmul.f32 %v1831, %v1541
        %v1856 = vmul.f32 %v1836, %v1542
        %v1857 = vmul.f32 %v1839, %v1543
        %v1858 = vpack.c.bf16 %v1843, %v1842
        %v1859 = vpack.c.bf16 %v1845, %v1844
        %v1860 = vpack.c.bf16 %v1847, %v1846
        %v1861 = vpack.c.bf16 %v1849, %v1848
        %v1862 = vpack.c.bf16 %v1851, %v1850
        %v1863 = vpack.c.bf16 %v1853, %v1852
        %v1864 = vpack.c.bf16 %v1855, %v1854
        %v1865 = vpack.c.bf16 %v1857, %v1856
        %1866 = vmatprep.subr.bf16.mxu0 0
        %1867 = vmatpush1.bf16.msra.mxu0 %v1615
        %1868 = vmatprep.subr.bf16.mxu0 0
        %1869 = vmatpush1.bf16.msra.mxu0 %v1614
        %1870 = vmatprep.subr.bf16.mxu0 0
        %1871 = vmatpush1.bf16.msra.mxu0 %v1613
        %1872 = vmatprep.subr.bf16.mxu0 0
        %1873 = vmatpush1.bf16.msra.mxu0 %v1612
        %1874 = vmatprep.subr.bf16.mxu0 0
        %1875 = vmatpush1.bf16.msra.mxu0 %v1611
        %1876 = vmatprep.subr.bf16.mxu0 0
        %1877 = vmatpush1.bf16.msra.mxu0 %v1610
        %1878 = vmatprep.subr.bf16.mxu0 0
        %1879 = vmatpush1.bf16.msra.mxu0 %v1609
        %1880 = vmatprep.subr.bf16.mxu0 0
        %1881 = vmatpush1.bf16.msra.mxu0 %v1608
        %1882 = vmatprep.subr.bf16.mxu0 0
        %1883 = vmatpush2.bf16.msra.mxu0 0
        %1884 = vmatprep.subr.bf16.mxu0 0
        %1885 = vmatpush2.bf16.msra.mxu0 0
        %1886 = vmatprep.subr.bf16.mxu0 0
        %1887 = vmatpush2.bf16.msra.mxu0 0
        %1888 = vmatprep.subr.bf16.mxu0 0
        %1889 = vmatpush2.bf16.msra.mxu0 0
        %1890 = vmatprep.subr.bf16.mxu0 0
        %1891 = vmatpush2.bf16.msra.mxu0 0
        %1892 = vmatprep.subr.bf16.mxu0 0
        %1893 = vmatpush2.bf16.msra.mxu0 0
        %1894 = vmatprep.subr.bf16.mxu0 0
        %1895 = vmatpush2.bf16.msra.mxu0 0
        %1896 = vmatprep.subr.bf16.mxu0 0
        %1897 = vmatpush2.bf16.msra.mxu0 0
        %1898 = vmatprep.mubr.bf16.mxu0 0
        %1899 = vmatmul.mubr.bf16.gmra.mxu0 %v1274
        %v1900 = vpop.f32.mrf.mxu0
        %v1901 = vadd.f32 0.0, %v1900
        %v1902 = vpop.f32.mrf.mxu0
        %v1903 = vpop.f32.mrf.mxu0
        %v1904 = vadd.f32 0.0, %v1903
        %v1905 = vpop.f32.mrf.mxu0
        %1906 = vmatprep.mubr.bf16.mxu0 0
        %1907 = vmatmul.mubr.bf16.gmra.mxu0 %v1277
        %v1908 = vpop.f32.mrf.mxu0
        %v1909 = vadd.f32 0.0, %v1908
        %v1910 = vpop.f32.mrf.mxu0
        %v1911 = vpop.f32.mrf.mxu0
        %v1912 = vadd.f32 0.0, %v1911
        %v1913 = vpop.f32.mrf.mxu0
        %1914 = vmatprep.mubr.bf16.mxu0 0
        %1915 = vmatmul.mubr.bf16.gmra.mxu0 %v1280
        %v1916 = vpop.f32.mrf.mxu0
        %v1917 = vadd.f32 0.0, %v1916
        %v1918 = vpop.f32.mrf.mxu0
        %v1919 = vpop.f32.mrf.mxu0
        %v1920 = vadd.f32 0.0, %v1919
        %v1921 = vpop.f32.mrf.mxu0
        %1922 = vmatprep.mubr.bf16.mxu0 0
        %1923 = vmatmul.mubr.bf16.gmra.mxu0 %v1283
        %v1924 = vpop.f32.mrf.mxu0
        %v1925 = vadd.f32 0.0, %v1924
        %v1926 = vpop.f32.mrf.mxu0
        %v1927 = vpop.f32.mrf.mxu0
        %v1928 = vadd.f32 0.0, %v1927
        %v1929 = vpop.f32.mrf.mxu0
        %1930 = vmatprep.mubr.bf16.mxu0 0
        %1931 = vmatmul.mubr.bf16.gmra.mxu0 %v1286
        %v1932 = vpop.f32.mrf.mxu0
        %v1933 = vadd.f32 0.0, %v1932
        %v1934 = vpop.f32.mrf.mxu0
        %v1935 = vpop.f32.mrf.mxu0
        %v1936 = vadd.f32 0.0, %v1935
        %v1937 = vpop.f32.mrf.mxu0
        %1938 = vmatprep.mubr.bf16.mxu0 0
        %1939 = vmatmul.mubr.bf16.gmra.mxu0 %v1289
        %v1940 = vpop.f32.mrf.mxu0
        %v1941 = vadd.f32 0.0, %v1940
        %v1942 = vpop.f32.mrf.mxu0
        %v1943 = vpop.f32.mrf.mxu0
        %v1944 = vadd.f32 0.0, %v1943
        %v1945 = vpop.f32.mrf.mxu0
        %1946 = vmatprep.mubr.bf16.mxu0 0
        %1947 = vmatmul.mubr.bf16.gmra.mxu0 %v1292
        %v1948 = vpop.f32.mrf.mxu0
        %v1949 = vadd.f32 0.0, %v1948
        %v1950 = vpop.f32.mrf.mxu0
        %v1951 = vpop.f32.mrf.mxu0
        %v1952 = vadd.f32 0.0, %v1951
        %v1953 = vpop.f32.mrf.mxu0
        %1954 = vmatprep.mubr.bf16.mxu0 0
        %1955 = vmatmul.mubr.bf16.gmra.mxu0 %v1295
        %v1956 = vpop.f32.mrf.mxu0
        %v1957 = vadd.f32 0.0, %v1956
        %v1958 = vpop.f32.mrf.mxu0
        %v1959 = vpop.f32.mrf.mxu0
        %v1960 = vadd.f32 0.0, %v1959
        %v1961 = vpop.f32.mrf.mxu0
        %1962 = vdwg.mxu0
        %v1963 = vmul.f32 %v1901, %v1544
        %v1964 = vmul.f32 %v1904, %v1545
        %v1965 = vmul.f32 %v1909, %v1546
        %v1966 = vmul.f32 %v1912, %v1547
        %v1967 = vmul.f32 %v1917, %v1548
        %v1968 = vmul.f32 %v1920, %v1549
        %v1969 = vmul.f32 %v1925, %v1550
        %v1970 = vmul.f32 %v1928, %v1551
        %v1971 = vmul.f32 %v1933, %v1552
        %v1972 = vmul.f32 %v1936, %v1553
        %v1973 = vmul.f32 %v1941, %v1554
        %v1974 = vmul.f32 %v1944, %v1555
        %v1975 = vmul.f32 %v1949, %v1556
        %v1976 = vmul.f32 %v1952, %v1557
        %v1977 = vmul.f32 %v1957, %v1558
        %v1978 = vmul.f32 %v1960, %v1559
        %v1979 = vpack.c.bf16 %v1964, %v1963
        %v1980 = vpack.c.bf16 %v1966, %v1965
        %v1981 = vpack.c.bf16 %v1968, %v1967
        %v1982 = vpack.c.bf16 %v1970, %v1969
        %v1983 = vpack.c.bf16 %v1972, %v1971
        %v1984 = vpack.c.bf16 %v1974, %v1973
        %v1985 = vpack.c.bf16 %v1976, %v1975
        %v1986 = vpack.c.bf16 %v1978, %v1977
        %1987 = vmatprep.subr.bf16.mxu0 0
        %1988 = vmatpush1.bf16.msra.mxu0 %v1615
        %1989 = vmatprep.subr.bf16.mxu0 0
        %1990 = vmatpush1.bf16.msra.mxu0 %v1614
        %1991 = vmatprep.subr.bf16.mxu0 0
        %1992 = vmatpush1.bf16.msra.mxu0 %v1613
        %1993 = vmatprep.subr.bf16.mxu0 0
        %1994 = vmatpush1.bf16.msra.mxu0 %v1612
        %1995 = vmatprep.subr.bf16.mxu0 0
        %1996 = vmatpush1.bf16.msra.mxu0 %v1611
        %1997 = vmatprep.subr.bf16.mxu0 0
        %1998 = vmatpush1.bf16.msra.mxu0 %v1610
        %1999 = vmatprep.subr.bf16.mxu0 0
        %2000 = vmatpush1.bf16.msra.mxu0 %v1609
        %2001 = vmatprep.subr.bf16.mxu0 0
        %2002 = vmatpush1.bf16.msra.mxu0 %v1608
        %2003 = vmatprep.subr.bf16.mxu0 0
        %2004 = vmatpush2.bf16.msra.mxu0 0
        %2005 = vmatprep.subr.bf16.mxu0 0
        %2006 = vmatpush2.bf16.msra.mxu0 0
        %2007 = vmatprep.subr.bf16.mxu0 0
        %2008 = vmatpush2.bf16.msra.mxu0 0
        %2009 = vmatprep.subr.bf16.mxu0 0
        %2010 = vmatpush2.bf16.msra.mxu0 0
        %2011 = vmatprep.subr.bf16.mxu0 0
        %2012 = vmatpush2.bf16.msra.mxu0 0
        %2013 = vmatprep.subr.bf16.mxu0 0
        %2014 = vmatpush2.bf16.msra.mxu0 0
        %2015 = vmatprep.subr.bf16.mxu0 0
        %2016 = vmatpush2.bf16.msra.mxu0 0
        %2017 = vmatprep.subr.bf16.mxu0 0
        %2018 = vmatpush2.bf16.msra.mxu0 0
        %2019 = vmatprep.mubr.bf16.mxu0 0
        %2020 = vmatmul.mubr.bf16.gmra.mxu0 %v1298
        %v2021 = vpop.f32.mrf.mxu0
        %v2022 = vadd.f32 0.0, %v2021
        %v2023 = vpop.f32.mrf.mxu0
        %v2024 = vpop.f32.mrf.mxu0
        %v2025 = vadd.f32 0.0, %v2024
        %v2026 = vpop.f32.mrf.mxu0
        %2027 = vmatprep.mubr.bf16.mxu0 0
        %2028 = vmatmul.mubr.bf16.gmra.mxu0 %v1301
        %v2029 = vpop.f32.mrf.mxu0
        %v2030 = vadd.f32 0.0, %v2029
        %v2031 = vpop.f32.mrf.mxu0
        %v2032 = vpop.f32.mrf.mxu0
        %v2033 = vadd.f32 0.0, %v2032
        %v2034 = vpop.f32.mrf.mxu0
        %2035 = vmatprep.mubr.bf16.mxu0 0
        %2036 = vmatmul.mubr.bf16.gmra.mxu0 %v1304
        %v2037 = vpop.f32.mrf.mxu0
        %v2038 = vadd.f32 0.0, %v2037
        %v2039 = vpop.f32.mrf.mxu0
        %v2040 = vpop.f32.mrf.mxu0
        %v2041 = vadd.f32 0.0, %v2040
        %v2042 = vpop.f32.mrf.mxu0
        %2043 = vmatprep.mubr.bf16.mxu0 0
        %2044 = vmatmul.mubr.bf16.gmra.mxu0 %v1307
        %v2045 = vpop.f32.mrf.mxu0
        %v2046 = vadd.f32 0.0, %v2045
        %v2047 = vpop.f32.mrf.mxu0
        %v2048 = vpop.f32.mrf.mxu0
        %v2049 = vadd.f32 0.0, %v2048
        %v2050 = vpop.f32.mrf.mxu0
        %2051 = vmatprep.mubr.bf16.mxu0 0
        %2052 = vmatmul.mubr.bf16.gmra.mxu0 %v1310
        %v2053 = vpop.f32.mrf.mxu0
        %v2054 = vadd.f32 0.0, %v2053
        %v2055 = vpop.f32.mrf.mxu0
        %v2056 = vpop.f32.mrf.mxu0
        %v2057 = vadd.f32 0.0, %v2056
        %v2058 = vpop.f32.mrf.mxu0
        %2059 = vmatprep.mubr.bf16.mxu0 0
        %2060 = vmatmul.mubr.bf16.gmra.mxu0 %v1313
        %v2061 = vpop.f32.mrf.mxu0
        %v2062 = vadd.f32 0.0, %v2061
        %v2063 = vpop.f32.mrf.mxu0
        %v2064 = vpop.f32.mrf.mxu0
        %v2065 = vadd.f32 0.0, %v2064
        %v2066 = vpop.f32.mrf.mxu0
        %2067 = vmatprep.mubr.bf16.mxu0 0
        %2068 = vmatmul.mubr.bf16.gmra.mxu0 %v1316
        %v2069 = vpop.f32.mrf.mxu0
        %v2070 = vadd.f32 0.0, %v2069
        %v2071 = vpop.f32.mrf.mxu0
        %v2072 = vpop.f32.mrf.mxu0
        %v2073 = vadd.f32 0.0, %v2072
        %v2074 = vpop.f32.mrf.mxu0
        %2075 = vmatprep.mubr.bf16.mxu0 0
        %2076 = vmatmul.mubr.bf16.gmra.mxu0 %v1319
        %v2077 = vpop.f32.mrf.mxu0
        %v2078 = vadd.f32 0.0, %v2077
        %v2079 = vpop.f32.mrf.mxu0
        %v2080 = vpop.f32.mrf.mxu0
        %v2081 = vadd.f32 0.0, %v2080
        %v2082 = vpop.f32.mrf.mxu0
        %2083 = vdwg.mxu0
        %v2084 = vmul.f32 %v2022, %v1560
        %v2085 = vmul.f32 %v2025, %v1561
        %v2086 = vmul.f32 %v2030, %v1562
        %v2087 = vmul.f32 %v2033, %v1563
        %v2088 = vmul.f32 %v2038, %v1564
        %v2089 = vmul.f32 %v2041, %v1565
        %v2090 = vmul.f32 %v2046, %v1566
        %v2091 = vmul.f32 %v2049, %v1567
        %v2092 = vmul.f32 %v2054, %v1568
        %v2093 = vmul.f32 %v2057, %v1569
        %v2094 = vmul.f32 %v2062, %v1570
        %v2095 = vmul.f32 %v2065, %v1571
        %v2096 = vmul.f32 %v2070, %v1572
        %v2097 = vmul.f32 %v2073, %v1573
        %v2098 = vmul.f32 %v2078, %v1574
        %v2099 = vmul.f32 %v2081, %v1575
        %v2100 = vpack.c.bf16 %v2085, %v2084
        %v2101 = vpack.c.bf16 %v2087, %v2086
        %v2102 = vpack.c.bf16 %v2089, %v2088
        %v2103 = vpack.c.bf16 %v2091, %v2090
        %v2104 = vpack.c.bf16 %v2093, %v2092
        %v2105 = vpack.c.bf16 %v2095, %v2094
        %v2106 = vpack.c.bf16 %v2097, %v2096
        %v2107 = vpack.c.bf16 %v2099, %v2098
        %2116 = vrot.lane.b32.xlu0 %v1858, 64
        %v2117 = vpop.permute.xlu0 %2116
        %2118 = vrot.lane.b32.xlu0 %v1859, 64
        %v2119 = vpop.permute.xlu0 %2118
        %2120 = vrot.lane.b32.xlu0 %v1860, 64
        %v2121 = vpop.permute.xlu0 %2120
        %2122 = vrot.lane.b32.xlu0 %v1861, 64
        %v2123 = vpop.permute.xlu0 %2122
        %2124 = vrot.lane.b32.xlu0 %v1862, 64
        %v2125 = vpop.permute.xlu0 %2124
        %2126 = vrot.lane.b32.xlu0 %v1863, 64
        %v2127 = vpop.permute.xlu0 %2126
        %2128 = vrot.lane.b32.xlu0 %v1864, 64
        %v2129 = vpop.permute.xlu0 %2128
        %2130 = vrot.lane.b32.xlu0 %v1865, 64
        %v2131 = vpop.permute.xlu0 %2130
        %2140 = vrot.lane.b32.xlu0 %v2100, 64
        %v2141 = vpop.permute.xlu0 %2140
        %2142 = vrot.lane.b32.xlu0 %v2101, 64
        %v2143 = vpop.permute.xlu0 %2142
        %2144 = vrot.lane.b32.xlu0 %v2102, 64
        %v2145 = vpop.permute.xlu0 %2144
        %2146 = vrot.lane.b32.xlu0 %v2103, 64
        %v2147 = vpop.permute.xlu0 %2146
        %2148 = vrot.lane.b32.xlu0 %v2104, 64
        %v2149 = vpop.permute.xlu0 %2148
        %2150 = vrot.lane.b32.xlu0 %v2105, 64
        %v2151 = vpop.permute.xlu0 %2150
        %2152 = vrot.lane.b32.xlu0 %v2106, 64
        %v2153 = vpop.permute.xlu0 %2152
        %2154 = vrot.lane.b32.xlu0 %v2107, 64
        %v2155 = vpop.permute.xlu0 %2154
        %v2158 = vsel %vm590, %v1737, %v2117
        %v2161 = vsel %vm590, %v1738, %v2119
        %v2164 = vsel %vm590, %v1739, %v2121
        %v2167 = vsel %vm590, %v1740, %v2123
        %v2170 = vsel %vm590, %v1741, %v2125
        %v2173 = vsel %vm590, %v1742, %v2127
        %v2176 = vsel %vm590, %v1743, %v2129
        %v2179 = vsel %vm590, %v1744, %v2131
        %v2182 = vsel %vm590, %v1979, %v2141
        %v2185 = vsel %vm590, %v1980, %v2143
        %v2188 = vsel %vm590, %v1981, %v2145
        %v2191 = vsel %vm590, %v1982, %v2147
        %v2194 = vsel %vm590, %v1983, %v2149
        %v2197 = vsel %vm590, %v1984, %v2151
        %v2200 = vsel %vm590, %v1985, %v2153
        %v2203 = vsel %vm590, %v1986, %v2155
        %v2220 = vunpack.c.l.b16 %v2158
        %v2221 = vunpack.c.l.b16 %v2182
        %v2222 = vunpack.c.h.b16 %v2158
        %v2223 = vunpack.c.h.b16 %v2182
        %v2224 = vunpack.c.l.b16 %v2161
        %v2225 = vunpack.c.l.b16 %v2185
        %v2226 = vunpack.c.h.b16 %v2161
        %v2227 = vunpack.c.h.b16 %v2185
        %v2228 = vunpack.c.l.b16 %v2164
        %v2229 = vunpack.c.l.b16 %v2188
        %v2230 = vunpack.c.h.b16 %v2164
        %v2231 = vunpack.c.h.b16 %v2188
        %v2232 = vunpack.c.l.b16 %v2167
        %v2233 = vunpack.c.l.b16 %v2191
        %v2234 = vunpack.c.h.b16 %v2167
        %v2235 = vunpack.c.h.b16 %v2191
        %v2236 = vunpack.c.l.b16 %v2170
        %v2237 = vunpack.c.l.b16 %v2194
        %v2238 = vunpack.c.h.b16 %v2170
        %v2239 = vunpack.c.h.b16 %v2194
        %v2240 = vunpack.c.l.b16 %v2173
        %v2241 = vunpack.c.l.b16 %v2197
        %v2242 = vunpack.c.h.b16 %v2173
        %v2243 = vunpack.c.h.b16 %v2197
        %v2244 = vunpack.c.l.b16 %v2176
        %v2245 = vunpack.c.l.b16 %v2200
        %v2246 = vunpack.c.h.b16 %v2176
        %v2247 = vunpack.c.h.b16 %v2200
        %v2248 = vunpack.c.l.b16 %v2179
        %v2249 = vunpack.c.l.b16 %v2203
        %v2250 = vunpack.c.h.b16 %v2179
        %v2251 = vunpack.c.h.b16 %v2203
        %v2252 = vpack.c.b16 %v2221, %v2220
        %v2253 = vpack.c.b16 %v2223, %v2222
        %v2254 = vpack.c.b16 %v2225, %v2224
        %v2255 = vpack.c.b16 %v2227, %v2226
        %v2256 = vpack.c.b16 %v2229, %v2228
        %v2257 = vpack.c.b16 %v2231, %v2230
        %v2258 = vpack.c.b16 %v2233, %v2232
        %v2259 = vpack.c.b16 %v2235, %v2234
        %v2260 = vpack.c.b16 %v2237, %v2236
        %v2261 = vpack.c.b16 %v2239, %v2238
        %v2262 = vpack.c.b16 %v2241, %v2240
        %v2263 = vpack.c.b16 %v2243, %v2242
        %v2264 = vpack.c.b16 %v2245, %v2244
        %v2265 = vpack.c.b16 %v2247, %v2246
        %v2266 = vpack.c.b16 %v2249, %v2248
        %v2267 = vpack.c.b16 %v2251, %v2250
        %2284 = vst [vmem:[%s256] sm:$0xff] %v2252
        %2285 = vst [vmem:[%s256 + $0x8] sm:$0xff] %v2253
        %2286 = vst [vmem:[%s256 + $0x10] sm:$0xff] %v2254
        %2287 = vst [vmem:[%s256 + $0x18] sm:$0xff] %v2255
        %2288 = vst [vmem:[%s256 + $0x20] sm:$0xff] %v2256
        %2289 = vst [vmem:[%s256 + $0x28] sm:$0xff] %v2257
        %2290 = vst [vmem:[%s256 + $0x30] sm:$0xff] %v2258
        %2291 = vst [vmem:[%s256 + $0x38] sm:$0xff] %v2259
        %2292 = vst [vmem:[%s256 + $0x40] sm:$0xff] %v2260
        %2293 = vst [vmem:[%s256 + $0x48] sm:$0xff] %v2261
        %2294 = vst [vmem:[%s256 + $0x50] sm:$0xff] %v2262
        %2295 = vst [vmem:[%s256 + $0x58] sm:$0xff] %v2263
        %2296 = vst [vmem:[%s256 + $0x60] sm:$0xff] %v2264
        %2297 = vst [vmem:[%s256 + $0x68] sm:$0xff] %v2265
        %2298 = vst [vmem:[%s256 + $0x70] sm:$0xff] %v2266
        %2299 = vst [vmem:[%s256 + $0x78] sm:$0xff] %v2267
        %s2300 = sand.u32 %s131, 1
        %s2301 = sand.u32 %s131, 1
        %s2302 = smul.addr %s2301, 128
        %s2303 = scalar_lea.vmem [#allocation2], %s2302
        // Predicated region
        $region33: #{gqa_forward.4} parent=31 // pred_check
          %p2304 = pneg %p141
        $region34: #{gqa_forward.4} parent=31 // pred_check_branch
          %2306 = sbr.rel (%p2304) target = $region36
        $region35: #{gqa_forward.4} parent=31 // pred_region
          %s2307 = smul.u32 16, %s21
          %s2308 = smul.u32 2, %s20
          %s2309 = smul.addr %s2307, 4
          %s2310 = sadd.s32 %s2308, %s2309
          %s2311 = smul.addr %s19, 64
          %s2312 = sadd.s32 %s2310, %s2311
          %s2313 = smul.addr %s2312, 4
          %s2314 = scalar_lea.vmem %s3, %s2313
          // Predicated region
          $region37: #{gqa_forward.4} parent=35 // pred_check
            _
          $region38: #{gqa_forward.4} parent=35 // pred_check_branch
            %2316 = sbr.rel (0) target = $region40
          $region39: #{gqa_forward.4} parent=35 // pred_region
            // Predicated region
            $region41: #{gqa_forward.4} parent=39 // pred_check
              _
            $region42: #{gqa_forward.4} parent=39 // pred_check_branch
              %2318 = sbr.rel (0) target = $region44
            $region43: #{gqa_forward.4} parent=39 // pred_region
              // Predicated region
              $region56: #{gqa_forward.4} parent=43 // pred_check
                _
              $region57: #{gqa_forward.4} parent=43 // pred_check_branch
                %2364 = sbr.rel (0) target = $region59
              $region58: #{gqa_forward.4} parent=43 // pred_region
                loop: start=0, step=1, limit=1
                $region60: #{gqa_forward.4} parent=58 // loop_pre_header
                  _
                $region61: #{gqa_forward.4} parent=58 // loop_header
                  %s2366 = sphi 0, %s2370
                  %p2367 = scmp.ge.s32.totalorder %s2366, 1
                  %s2371 = sphi %s2303, %s2303
                  %s2372 = sphi %s2314, %s2314
                $region62: #{gqa_forward.4} parent=58 // loop_header_branch
                  %2369 = sbr.rel (%p2367) target = $region66
                $region63: #{gqa_forward.4} parent=58 // loop_body
                  %v2373 = vld [vmem:[%s2371] sm:$0xff]
                  %2374 = vst [vmem:[%s2372] sm:$0xff] %v2373
                  %v2375 = vld [vmem:[%s2371 + $0x8] sm:$0xff]
                  %2376 = vst [vmem:[%s2372 + $0x10] sm:$0xff] %v2375
                  %v2377 = vld [vmem:[%s2371 + $0x10] sm:$0xff]
                  %2378 = vst [vmem:[%s2372 + $0x20] sm:$0xff] %v2377
                  %v2379 = vld [vmem:[%s2371 + $0x18] sm:$0xff]
                  %2380 = vst [vmem:[%s2372 + $0x30] sm:$0xff] %v2379
                  %v2381 = vld [vmem:[%s2371 + $0x20] sm:$0xff]
                  %2382 = vst [vmem:[%s2372 + $0x40] sm:$0xff] %v2381
                  %v2383 = vld [vmem:[%s2371 + $0x28] sm:$0xff]
                  %2384 = vst [vmem:[%s2372 + $0x50] sm:$0xff] %v2383
                  %v2385 = vld [vmem:[%s2371 + $0x30] sm:$0xff]
                  %2386 = vst [vmem:[%s2372 + $0x60] sm:$0xff] %v2385
                  %v2387 = vld [vmem:[%s2371 + $0x38] sm:$0xff]
                  %2388 = vst [vmem:[%s2372 + $0x70] sm:$0xff] %v2387
                  %v2389 = vld [vmem:[%s2371 + $0x40] sm:$0xff]
                  %2390 = vst [vmem:[%s2372 + $0x80] sm:$0xff] %v2389
                  %v2391 = vld [vmem:[%s2371 + $0x48] sm:$0xff]
                  %2392 = vst [vmem:[%s2372 + $0x90] sm:$0xff] %v2391
                  %v2393 = vld [vmem:[%s2371 + $0x50] sm:$0xff]
                  %2394 = vst [vmem:[%s2372 + $0xa0] sm:$0xff] %v2393
                  %v2395 = vld [vmem:[%s2371 + $0x58] sm:$0xff]
                  %2396 = vst [vmem:[%s2372 + $0xb0] sm:$0xff] %v2395
                  %v2397 = vld [vmem:[%s2371 + $0x60] sm:$0xff]
                  %2398 = vst [vmem:[%s2372 + $0xc0] sm:$0xff] %v2397
                  %v2399 = vld [vmem:[%s2371 + $0x68] sm:$0xff]
                  %2400 = vst [vmem:[%s2372 + $0xd0] sm:$0xff] %v2399
                  %v2401 = vld [vmem:[%s2371 + $0x70] sm:$0xff]
                  %2402 = vst [vmem:[%s2372 + $0xe0] sm:$0xff] %v2401
                  %v2403 = vld [vmem:[%s2371 + $0x78] sm:$0xff]
                  %2404 = vst [vmem:[%s2372 + $0xf0] sm:$0xff] %v2403
                $region64: #{gqa_forward.4} parent=58 // loop_footer
                  %s2370 = sadd.s32 1, %s2366
                $region65: #{gqa_forward.4} parent=58 // loop_footer_branch
                  %2365 = sbr.rel target = $region61
                $region66: #{gqa_forward.4} parent=58 // loop_exit
                  _
              $region59: #{gqa_forward.4} parent=43 // pred_fallthru
                _
              // Predicated region
              $region67: #{gqa_forward.4} parent=43 // pred_check
                _
              $region68: #{gqa_forward.4} parent=43 // pred_check_branch
                %2406 = sbr.rel target = $region70
              $region69: #{gqa_forward.4} parent=43 // pred_region
                _
              $region70: #{gqa_forward.4} parent=43 // pred_fallthru
                _
            $region44: #{gqa_forward.4} parent=39 // pred_fallthru
              _
            // Predicated region
            $region45: #{gqa_forward.4} parent=39 // pred_check
              _
            $region46: #{gqa_forward.4} parent=39 // pred_check_branch
              %2320 = sbr.rel target = $region48
            $region47: #{gqa_forward.4} parent=39 // pred_region
              %s2322 = ssub.s32 256, 1
              loop: start=0, step=1, limit=1
              $region49: #{gqa_forward.4} parent=47 // loop_pre_header
                _
              $region50: #{gqa_forward.4} parent=47 // loop_header
                %s2324 = sphi 0, %s2328
                %p2325 = scmp.ge.s32.totalorder %s2324, 1
                %s2329 = sphi %s2303, %s2303
                %s2330 = sphi %s2314, %s2314
              $region51: #{gqa_forward.4} parent=47 // loop_header_branch
                %2327 = sbr.rel (%p2325) target = $region55
              $region52: #{gqa_forward.4} parent=47 // loop_body
                %v2331 = vld [vmem:[%s2329] sm:%s2322]
                %2332 = vst [vmem:[%s2330] sm:%s2322] %v2331
                %v2333 = vld [vmem:[%s2329 + $0x8] sm:%s2322]
                %2334 = vst [vmem:[%s2330 + $0x10] sm:%s2322] %v2333
                %v2335 = vld [vmem:[%s2329 + $0x10] sm:%s2322]
                %2336 = vst [vmem:[%s2330 + $0x20] sm:%s2322] %v2335
                %v2337 = vld [vmem:[%s2329 + $0x18] sm:%s2322]
                %2338 = vst [vmem:[%s2330 + $0x30] sm:%s2322] %v2337
                %v2339 = vld [vmem:[%s2329 + $0x20] sm:%s2322]
                %2340 = vst [vmem:[%s2330 + $0x40] sm:%s2322] %v2339
                %v2341 = vld [vmem:[%s2329 + $0x28] sm:%s2322]
                %2342 = vst [vmem:[%s2330 + $0x50] sm:%s2322] %v2341
                %v2343 = vld [vmem:[%s2329 + $0x30] sm:%s2322]
                %2344 = vst [vmem:[%s2330 + $0x60] sm:%s2322] %v2343
                %v2345 = vld [vmem:[%s2329 + $0x38] sm:%s2322]
                %2346 = vst [vmem:[%s2330 + $0x70] sm:%s2322] %v2345
                %v2347 = vld [vmem:[%s2329 + $0x40] sm:%s2322]
                %2348 = vst [vmem:[%s2330 + $0x80] sm:%s2322] %v2347
                %v2349 = vld [vmem:[%s2329 + $0x48] sm:%s2322]
                %2350 = vst [vmem:[%s2330 + $0x90] sm:%s2322] %v2349
                %v2351 = vld [vmem:[%s2329 + $0x50] sm:%s2322]
                %2352 = vst [vmem:[%s2330 + $0xa0] sm:%s2322] %v2351
                %v2353 = vld [vmem:[%s2329 + $0x58] sm:%s2322]
                %2354 = vst [vmem:[%s2330 + $0xb0] sm:%s2322] %v2353
                %v2355 = vld [vmem:[%s2329 + $0x60] sm:%s2322]
                %2356 = vst [vmem:[%s2330 + $0xc0] sm:%s2322] %v2355
                %v2357 = vld [vmem:[%s2329 + $0x68] sm:%s2322]
                %2358 = vst [vmem:[%s2330 + $0xd0] sm:%s2322] %v2357
                %v2359 = vld [vmem:[%s2329 + $0x70] sm:%s2322]
                %2360 = vst [vmem:[%s2330 + $0xe0] sm:%s2322] %v2359
                %v2361 = vld [vmem:[%s2329 + $0x78] sm:%s2322]
                %2362 = vst [vmem:[%s2330 + $0xf0] sm:%s2322] %v2361
              $region53: #{gqa_forward.4} parent=47 // loop_footer
                %s2328 = sadd.s32 1, %s2324
              $region54: #{gqa_forward.4} parent=47 // loop_footer_branch
                %2323 = sbr.rel target = $region50
              $region55: #{gqa_forward.4} parent=47 // loop_exit
                _
            $region48: #{gqa_forward.4} parent=39 // pred_fallthru
              _
          $region40: #{gqa_forward.4} parent=35 // pred_fallthru
            _
          %2407 = vnop
        $region36: #{gqa_forward.4} parent=31 // pred_fallthru
          _
      $region32: #{gqa_forward.4} parent=5 // pred_fallthru
        _
      %p2408 = scmp.le.s32.totalorder 2, %s9
      // Predicated region
      $region71: #{gqa_forward.4} parent=5 // pred_check
        %p2409 = pneg %p2408
      $region72: #{gqa_forward.4} parent=5 // pred_check_branch
        %2411 = sbr.rel (%p2409) target = $region74
      $region73: #{gqa_forward.4} parent=5 // pred_region
        %s2412 = ssub.s32 %s9, 2
        // Predicated region
        $region75: #{gqa_forward.4} parent=73 // pred_check
          %p2413 = pneg %p147
        $region76: #{gqa_forward.4} parent=73 // pred_check_branch
          %2415 = sbr.rel (%p2413) target = $region78
        $region77: #{gqa_forward.4} parent=73 // pred_region
          %s2416 = sand.u32 %s132, 1
          %s2417 = sand.u32 %s132, 1
          %s2418 = smul.addr %s2417, 128
          %s2419 = scalar_lea.vmem [#allocation2], %s2418
        $region78: #{gqa_forward.4} parent=73 // pred_fallthru
          _
      $region74: #{gqa_forward.4} parent=5 // pred_fallthru
        _
    $region6: #{gqa_forward.4} parent=1 // loop_footer
      %s13 = sadd.s32 1, %s9
    $region7: #{gqa_forward.4} parent=1 // loop_footer_branch
      %8 = sbr.rel target = $region3
    $region8: #{gqa_forward.4} parent=1 // loop_exit
      _

// kernel: gqa_forward.3
$region0: #{gqa_forward.3}
  #allocation0 [shape = 'u32[]', space=smem, size = 0x4, offset = 0x4, fixed_abs, tag = 'smem constant byte address 0x4 - core index']
  #allocation1 [shape = 'u32[144,128]{1,0:T(1,128)}', space=vmem, size = 0x12000, scoped, tag = 'internal scratch']
  %s0 = inlined_call_operand.vmem [shape: f32[256,512], index: 0, kind: input, shape index: {}]
  %s1 = inlined_call_operand.vmem [shape: bf16[512,768], index: 1, kind: input, shape index: {}]
  %s2 = inlined_call_operand.vmem [shape: f32[1,768], index: 2, kind: input, shape index: {}]
  %s3 = inlined_call_operand.vmem [shape: bf16[256,512], index: 3, kind: output, shape index: {0}]
  %s4 = inlined_call_operand.vmem [shape: bf16[256,128], index: 4, kind: output, shape index: {1}]
  %s5 = inlined_call_operand.vmem [shape: bf16[256,128], index: 5, kind: output, shape index: {2}]
  %6 = xla_tuple %s3, %s4, %s5
  %s7 = sld [smem:[#allocation0]]
  $region38: #{gqa_forward.3} parent=0
    _
  %s9 = ssub.s32 1, %s7
  %s10 = scalar_select 0, %s9, %s7
  // Predicated region
  $region2: #{gqa_forward.3} parent=0 // pred_check
    _
  $region3: #{gqa_forward.3} parent=0 // pred_check_branch
    %12 = sbr.rel (0) target = $region5
  $region4: #{gqa_forward.3} parent=0 // pred_region
    _
  $region5: #{gqa_forward.3} parent=0 // pred_fallthru
    _
  // Predicated region
  $region6: #{gqa_forward.3} parent=0 // pred_check
    _
  $region7: #{gqa_forward.3} parent=0 // pred_check_branch
    %14 = sbr.rel (0) target = $region9
  $region8: #{gqa_forward.3} parent=0 // pred_region
    _
  $region9: #{gqa_forward.3} parent=0 // pred_fallthru
    _
  // Predicated region
  $region10: #{gqa_forward.3} parent=0 // pred_check
    _
  $region11: #{gqa_forward.3} parent=0 // pred_check_branch
    %16 = sbr.rel (0) target = $region13
  $region12: #{gqa_forward.3} parent=0 // pred_region
    _
  $region13: #{gqa_forward.3} parent=0 // pred_fallthru
    _
  %v17 = vld [vmem:[%s0] sm:$0xff]
  %v18 = vld [vmem:[%s0 + $0x8] sm:$0xff]
  %v19 = vld [vmem:[%s0 + $0x10] sm:$0xff]
  %v20 = vld [vmem:[%s0 + $0x18] sm:$0xff]
  %v21 = vld [vmem:[%s0 + $0x20] sm:$0xff]
  %v22 = vld [vmem:[%s0 + $0x28] sm:$0xff]
  %v23 = vld [vmem:[%s0 + $0x30] sm:$0xff]
  %v24 = vld [vmem:[%s0 + $0x38] sm:$0xff]
  %v25 = vld [vmem:[%s0 + $0x40] sm:$0xff]
  %v26 = vld [vmem:[%s0 + $0x48] sm:$0xff]
  %v27 = vld [vmem:[%s0 + $0x50] sm:$0xff]
  %v28 = vld [vmem:[%s0 + $0x58] sm:$0xff]
  %v29 = vld [vmem:[%s0 + $0x60] sm:$0xff]
  %v30 = vld [vmem:[%s0 + $0x68] sm:$0xff]
  %v31 = vld [vmem:[%s0 + $0x70] sm:$0xff]
  %v32 = vld [vmem:[%s0 + $0x78] sm:$0xff]
  %v33 = vld [vmem:[%s0 + $0x80] sm:$0xff]
  %v34 = vld [vmem:[%s0 + $0x88] sm:$0xff]
  %v35 = vld [vmem:[%s0 + $0x90] sm:$0xff]
  %v36 = vld [vmem:[%s0 + $0x98] sm:$0xff]
  %v37 = vld [vmem:[%s0 + $0xa0] sm:$0xff]
  %v38 = vld [vmem:[%s0 + $0xa8] sm:$0xff]
  %v39 = vld [vmem:[%s0 + $0xb0] sm:$0xff]
  %v40 = vld [vmem:[%s0 + $0xb8] sm:$0xff]
  %v41 = vld [vmem:[%s0 + $0xc0] sm:$0xff]
  %v42 = vld [vmem:[%s0 + $0xc8] sm:$0xff]
  %v43 = vld [vmem:[%s0 + $0xd0] sm:$0xff]
  %v44 = vld [vmem:[%s0 + $0xd8] sm:$0xff]
  %v45 = vld [vmem:[%s0 + $0xe0] sm:$0xff]
  %v46 = vld [vmem:[%s0 + $0xe8] sm:$0xff]
  %v47 = vld [vmem:[%s0 + $0xf0] sm:$0xff]
  %v48 = vld [vmem:[%s0 + $0xf8] sm:$0xff]
  %v49 = vld [vmem:[%s0 + $0x100] sm:$0xff]
  %v50 = vld [vmem:[%s0 + $0x108] sm:$0xff]
  %v51 = vld [vmem:[%s0 + $0x110] sm:$0xff]
  %v52 = vld [vmem:[%s0 + $0x118] sm:$0xff]
  %v53 = vld [vmem:[%s0 + $0x120] sm:$0xff]
  %v54 = vld [vmem:[%s0 + $0x128] sm:$0xff]
  %v55 = vld [vmem:[%s0 + $0x130] sm:$0xff]
  %v56 = vld [vmem:[%s0 + $0x138] sm:$0xff]
  %v57 = vld [vmem:[%s0 + $0x140] sm:$0xff]
  %v58 = vld [vmem:[%s0 + $0x148] sm:$0xff]
  %v59 = vld [vmem:[%s0 + $0x150] sm:$0xff]
  %v60 = vld [vmem:[%s0 + $0x158] sm:$0xff]
  %v61 = vld [vmem:[%s0 + $0x160] sm:$0xff]
  %v62 = vld [vmem:[%s0 + $0x168] sm:$0xff]
  %v63 = vld [vmem:[%s0 + $0x170] sm:$0xff]
  %v64 = vld [vmem:[%s0 + $0x178] sm:$0xff]
  %v65 = vld [vmem:[%s0 + $0x180] sm:$0xff]
  %v66 = vld [vmem:[%s0 + $0x188] sm:$0xff]
  %v67 = vld [vmem:[%s0 + $0x190] sm:$0xff]
  %v68 = vld [vmem:[%s0 + $0x198] sm:$0xff]
  %v69 = vld [vmem:[%s0 + $0x1a0] sm:$0xff]
  %v70 = vld [vmem:[%s0 + $0x1a8] sm:$0xff]
  %v71 = vld [vmem:[%s0 + $0x1b0] sm:$0xff]
  %v72 = vld [vmem:[%s0 + $0x1b8] sm:$0xff]
  %v73 = vld [vmem:[%s0 + $0x1c0] sm:$0xff]
  %v74 = vld [vmem:[%s0 + $0x1c8] sm:$0xff]
  %v75 = vld [vmem:[%s0 + $0x1d0] sm:$0xff]
  %v76 = vld [vmem:[%s0 + $0x1d8] sm:$0xff]
  %v77 = vld [vmem:[%s0 + $0x1e0] sm:$0xff]
  %v78 = vld [vmem:[%s0 + $0x1e8] sm:$0xff]
  %v79 = vld [vmem:[%s0 + $0x1f0] sm:$0xff]
  %v80 = vld [vmem:[%s0 + $0x1f8] sm:$0xff]
  %v81 = vld [vmem:[%s0 + $0x200] sm:$0xff]
  %v82 = vld [vmem:[%s0 + $0x208] sm:$0xff]
  %v83 = vld [vmem:[%s0 + $0x210] sm:$0xff]
  %v84 = vld [vmem:[%s0 + $0x218] sm:$0xff]
  %v85 = vld [vmem:[%s0 + $0x220] sm:$0xff]
  %v86 = vld [vmem:[%s0 + $0x228] sm:$0xff]
  %v87 = vld [vmem:[%s0 + $0x230] sm:$0xff]
  %v88 = vld [vmem:[%s0 + $0x238] sm:$0xff]
  %v89 = vld [vmem:[%s0 + $0x240] sm:$0xff]
  %v90 = vld [vmem:[%s0 + $0x248] sm:$0xff]
  %v91 = vld [vmem:[%s0 + $0x250] sm:$0xff]
  %v92 = vld [vmem:[%s0 + $0x258] sm:$0xff]
  %v93 = vld [vmem:[%s0 + $0x260] sm:$0xff]
  %v94 = vld [vmem:[%s0 + $0x268] sm:$0xff]
  %v95 = vld [vmem:[%s0 + $0x270] sm:$0xff]
  %v96 = vld [vmem:[%s0 + $0x278] sm:$0xff]
  %v97 = vld [vmem:[%s0 + $0x280] sm:$0xff]
  %v98 = vld [vmem:[%s0 + $0x288] sm:$0xff]
  %v99 = vld [vmem:[%s0 + $0x290] sm:$0xff]
  %v100 = vld [vmem:[%s0 + $0x298] sm:$0xff]
  %v101 = vld [vmem:[%s0 + $0x2a0] sm:$0xff]
  %v102 = vld [vmem:[%s0 + $0x2a8] sm:$0xff]
  %v103 = vld [vmem:[%s0 + $0x2b0] sm:$0xff]
  %v104 = vld [vmem:[%s0 + $0x2b8] sm:$0xff]
  %v105 = vld [vmem:[%s0 + $0x2c0] sm:$0xff]
  %v106 = vld [vmem:[%s0 + $0x2c8] sm:$0xff]
  %v107 = vld [vmem:[%s0 + $0x2d0] sm:$0xff]
  %v108 = vld [vmem:[%s0 + $0x2d8] sm:$0xff]
  %v109 = vld [vmem:[%s0 + $0x2e0] sm:$0xff]
  %v110 = vld [vmem:[%s0 + $0x2e8] sm:$0xff]
  %v111 = vld [vmem:[%s0 + $0x2f0] sm:$0xff]
  %v112 = vld [vmem:[%s0 + $0x2f8] sm:$0xff]
  %v113 = vld [vmem:[%s0 + $0x300] sm:$0xff]
  %v114 = vld [vmem:[%s0 + $0x308] sm:$0xff]
  %v115 = vld [vmem:[%s0 + $0x310] sm:$0xff]
  %v116 = vld [vmem:[%s0 + $0x318] sm:$0xff]
  %v117 = vld [vmem:[%s0 + $0x320] sm:$0xff]
  %v118 = vld [vmem:[%s0 + $0x328] sm:$0xff]
  %v119 = vld [vmem:[%s0 + $0x330] sm:$0xff]
  %v120 = vld [vmem:[%s0 + $0x338] sm:$0xff]
  %v121 = vld [vmem:[%s0 + $0x340] sm:$0xff]
  %v122 = vld [vmem:[%s0 + $0x348] sm:$0xff]
  %v123 = vld [vmem:[%s0 + $0x350] sm:$0xff]
  %v124 = vld [vmem:[%s0 + $0x358] sm:$0xff]
  %v125 = vld [vmem:[%s0 + $0x360] sm:$0xff]
  %v126 = vld [vmem:[%s0 + $0x368] sm:$0xff]
  %v127 = vld [vmem:[%s0 + $0x370] sm:$0xff]
  %v128 = vld [vmem:[%s0 + $0x378] sm:$0xff]
  %v129 = vld [vmem:[%s0 + $0x380] sm:$0xff]
  %v130 = vld [vmem:[%s0 + $0x388] sm:$0xff]
  %v131 = vld [vmem:[%s0 + $0x390] sm:$0xff]
  %v132 = vld [vmem:[%s0 + $0x398] sm:$0xff]
  %v133 = vld [vmem:[%s0 + $0x3a0] sm:$0xff]
  %v134 = vld [vmem:[%s0 + $0x3a8] sm:$0xff]
  %v135 = vld [vmem:[%s0 + $0x3b0] sm:$0xff]
  %v136 = vld [vmem:[%s0 + $0x3b8] sm:$0xff]
  %v137 = vld [vmem:[%s0 + $0x3c0] sm:$0xff]
  %v138 = vld [vmem:[%s0 + $0x3c8] sm:$0xff]
  %v139 = vld [vmem:[%s0 + $0x3d0] sm:$0xff]
  %v140 = vld [vmem:[%s0 + $0x3d8] sm:$0xff]
  %v141 = vld [vmem:[%s0 + $0x3e0] sm:$0xff]
  %v142 = vld [vmem:[%s0 + $0x3e8] sm:$0xff]
  %v143 = vld [vmem:[%s0 + $0x3f0] sm:$0xff]
  %v144 = vld [vmem:[%s0 + $0x3f8] sm:$0xff]
  %v145 = vpack.c.bf16 %v21, %v17
  %v146 = vpack.c.bf16 %v22, %v18
  %v147 = vpack.c.bf16 %v23, %v19
  %v148 = vpack.c.bf16 %v24, %v20
  %v149 = vpack.c.bf16 %v29, %v25
  %v150 = vpack.c.bf16 %v30, %v26
  %v151 = vpack.c.bf16 %v31, %v27
  %v152 = vpack.c.bf16 %v32, %v28
  %v153 = vpack.c.bf16 %v37, %v33
  %v154 = vpack.c.bf16 %v38, %v34
  %v155 = vpack.c.bf16 %v39, %v35
  %v156 = vpack.c.bf16 %v40, %v36
  %v157 = vpack.c.bf16 %v45, %v41
  %v158 = vpack.c.bf16 %v46, %v42
  %v159 = vpack.c.bf16 %v47, %v43
  %v160 = vpack.c.bf16 %v48, %v44
  %v161 = vpack.c.bf16 %v53, %v49
  %v162 = vpack.c.bf16 %v54, %v50
  %v163 = vpack.c.bf16 %v55, %v51
  %v164 = vpack.c.bf16 %v56, %v52
  %v165 = vpack.c.bf16 %v61, %v57
  %v166 = vpack.c.bf16 %v62, %v58
  %v167 = vpack.c.bf16 %v63, %v59
  %v168 = vpack.c.bf16 %v64, %v60
  %v169 = vpack.c.bf16 %v69, %v65
  %v170 = vpack.c.bf16 %v70, %v66
  %v171 = vpack.c.bf16 %v71, %v67
  %v172 = vpack.c.bf16 %v72, %v68
  %v173 = vpack.c.bf16 %v77, %v73
  %v174 = vpack.c.bf16 %v78, %v74
  %v175 = vpack.c.bf16 %v79, %v75
  %v176 = vpack.c.bf16 %v80, %v76
  %v177 = vpack.c.bf16 %v85, %v81
  %v178 = vpack.c.bf16 %v86, %v82
  %v179 = vpack.c.bf16 %v87, %v83
  %v180 = vpack.c.bf16 %v88, %v84
  %v181 = vpack.c.bf16 %v93, %v89
  %v182 = vpack.c.bf16 %v94, %v90
  %v183 = vpack.c.bf16 %v95, %v91
  %v184 = vpack.c.bf16 %v96, %v92
  %v185 = vpack.c.bf16 %v101, %v97
  %v186 = vpack.c.bf16 %v102, %v98
  %v187 = vpack.c.bf16 %v103, %v99
  %v188 = vpack.c.bf16 %v104, %v100
  %v189 = vpack.c.bf16 %v109, %v105
  %v190 = vpack.c.bf16 %v110, %v106
  %v191 = vpack.c.bf16 %v111, %v107
  %v192 = vpack.c.bf16 %v112, %v108
  %v193 = vpack.c.bf16 %v117, %v113
  %v194 = vpack.c.bf16 %v118, %v114
  %v195 = vpack.c.bf16 %v119, %v115
  %v196 = vpack.c.bf16 %v120, %v116
  %v197 = vpack.c.bf16 %v125, %v121
  %v198 = vpack.c.bf16 %v126, %v122
  %v199 = vpack.c.bf16 %v127, %v123
  %v200 = vpack.c.bf16 %v128, %v124
  %v201 = vpack.c.bf16 %v133, %v129
  %v202 = vpack.c.bf16 %v134, %v130
  %v203 = vpack.c.bf16 %v135, %v131
  %v204 = vpack.c.bf16 %v136, %v132
  %v205 = vpack.c.bf16 %v141, %v137
  %v206 = vpack.c.bf16 %v142, %v138
  %v207 = vpack.c.bf16 %v143, %v139
  %v208 = vpack.c.bf16 %v144, %v140
  %v209 = vld [vmem:[%s1] sm:$0xff]
  %v210 = vld [vmem:[%s1 + $0x8] sm:$0xff]
  %v211 = vld [vmem:[%s1 + $0x10] sm:$0xff]
  %v212 = vld [vmem:[%s1 + $0x18] sm:$0xff]
  %v213 = vld [vmem:[%s1 + $0x20] sm:$0xff]
  %v214 = vld [vmem:[%s1 + $0x28] sm:$0xff]
  %v215 = vld [vmem:[%s1 + $0x30] sm:$0xff]
  %v216 = vld [vmem:[%s1 + $0x38] sm:$0xff]
  %v217 = vld [vmem:[%s1 + $0x40] sm:$0xff]
  %v218 = vld [vmem:[%s1 + $0x48] sm:$0xff]
  %v219 = vld [vmem:[%s1 + $0x50] sm:$0xff]
  %v220 = vld [vmem:[%s1 + $0x58] sm:$0xff]
  %v221 = vld [vmem:[%s1 + $0x60] sm:$0xff]
  %v222 = vld [vmem:[%s1 + $0x68] sm:$0xff]
  %v223 = vld [vmem:[%s1 + $0x70] sm:$0xff]
  %v224 = vld [vmem:[%s1 + $0x78] sm:$0xff]
  %v225 = vld [vmem:[%s1 + $0x80] sm:$0xff]
  %v226 = vld [vmem:[%s1 + $0x88] sm:$0xff]
  %v227 = vld [vmem:[%s1 + $0x90] sm:$0xff]
  %v228 = vld [vmem:[%s1 + $0x98] sm:$0xff]
  %v229 = vld [vmem:[%s1 + $0xa0] sm:$0xff]
  %v230 = vld [vmem:[%s1 + $0xa8] sm:$0xff]
  %v231 = vld [vmem:[%s1 + $0xb0] sm:$0xff]
  %v232 = vld [vmem:[%s1 + $0xb8] sm:$0xff]
  %v233 = vld [vmem:[%s1 + $0xc0] sm:$0xff]
  %v234 = vld [vmem:[%s1 + $0xc8] sm:$0xff]
  %v235 = vld [vmem:[%s1 + $0xd0] sm:$0xff]
  %v236 = vld [vmem:[%s1 + $0xd8] sm:$0xff]
  %v237 = vld [vmem:[%s1 + $0xe0] sm:$0xff]
  %v238 = vld [vmem:[%s1 + $0xe8] sm:$0xff]
  %v239 = vld [vmem:[%s1 + $0xf0] sm:$0xff]
  %v240 = vld [vmem:[%s1 + $0xf8] sm:$0xff]
  %v241 = vld [vmem:[%s1 + $0x100] sm:$0xff]
  %v242 = vld [vmem:[%s1 + $0x108] sm:$0xff]
  %v243 = vld [vmem:[%s1 + $0x110] sm:$0xff]
  %v244 = vld [vmem:[%s1 + $0x118] sm:$0xff]
  %v245 = vld [vmem:[%s1 + $0x120] sm:$0xff]
  %v246 = vld [vmem:[%s1 + $0x128] sm:$0xff]
  %v247 = vld [vmem:[%s1 + $0x130] sm:$0xff]
  %v248 = vld [vmem:[%s1 + $0x138] sm:$0xff]
  %v249 = vld [vmem:[%s1 + $0x140] sm:$0xff]
  %v250 = vld [vmem:[%s1 + $0x148] sm:$0xff]
  %v251 = vld [vmem:[%s1 + $0x150] sm:$0xff]
  %v252 = vld [vmem:[%s1 + $0x158] sm:$0xff]
  %v253 = vld [vmem:[%s1 + $0x160] sm:$0xff]
  %v254 = vld [vmem:[%s1 + $0x168] sm:$0xff]
  %v255 = vld [vmem:[%s1 + $0x170] sm:$0xff]
  %v256 = vld [vmem:[%s1 + $0x178] sm:$0xff]
  %v257 = vld [vmem:[%s1 + $0x180] sm:$0xff]
  %v258 = vld [vmem:[%s1 + $0x188] sm:$0xff]
  %v259 = vld [vmem:[%s1 + $0x190] sm:$0xff]
  %v260 = vld [vmem:[%s1 + $0x198] sm:$0xff]
  %v261 = vld [vmem:[%s1 + $0x1a0] sm:$0xff]
  %v262 = vld [vmem:[%s1 + $0x1a8] sm:$0xff]
  %v263 = vld [vmem:[%s1 + $0x1b0] sm:$0xff]
  %v264 = vld [vmem:[%s1 + $0x1b8] sm:$0xff]
  %v265 = vld [vmem:[%s1 + $0x1c0] sm:$0xff]
  %v266 = vld [vmem:[%s1 + $0x1c8] sm:$0xff]
  %v267 = vld [vmem:[%s1 + $0x1d0] sm:$0xff]
  %v268 = vld [vmem:[%s1 + $0x1d8] sm:$0xff]
  %v269 = vld [vmem:[%s1 + $0x1e0] sm:$0xff]
  %v270 = vld [vmem:[%s1 + $0x1e8] sm:$0xff]
  %v271 = vld [vmem:[%s1 + $0x1f0] sm:$0xff]
  %v272 = vld [vmem:[%s1 + $0x1f8] sm:$0xff]
  %v273 = vld [vmem:[%s1 + $0x200] sm:$0xff]
  %v274 = vld [vmem:[%s1 + $0x208] sm:$0xff]
  %v275 = vld [vmem:[%s1 + $0x210] sm:$0xff]
  %v276 = vld [vmem:[%s1 + $0x218] sm:$0xff]
  %v277 = vld [vmem:[%s1 + $0x220] sm:$0xff]
  %v278 = vld [vmem:[%s1 + $0x228] sm:$0xff]
  %v279 = vld [vmem:[%s1 + $0x230] sm:$0xff]
  %v280 = vld [vmem:[%s1 + $0x238] sm:$0xff]
  %v281 = vld [vmem:[%s1 + $0x240] sm:$0xff]
  %v282 = vld [vmem:[%s1 + $0x248] sm:$0xff]
  %v283 = vld [vmem:[%s1 + $0x250] sm:$0xff]
  %v284 = vld [vmem:[%s1 + $0x258] sm:$0xff]
  %v285 = vld [vmem:[%s1 + $0x260] sm:$0xff]
  %v286 = vld [vmem:[%s1 + $0x268] sm:$0xff]
  %v287 = vld [vmem:[%s1 + $0x270] sm:$0xff]
  %v288 = vld [vmem:[%s1 + $0x278] sm:$0xff]
  %v289 = vld [vmem:[%s1 + $0x280] sm:$0xff]
  %v290 = vld [vmem:[%s1 + $0x288] sm:$0xff]
  %v291 = vld [vmem:[%s1 + $0x290] sm:$0xff]
  %v292 = vld [vmem:[%s1 + $0x298] sm:$0xff]
  %v293 = vld [vmem:[%s1 + $0x2a0] sm:$0xff]
  %v294 = vld [vmem:[%s1 + $0x2a8] sm:$0xff]
  %v295 = vld [vmem:[%s1 + $0x2b0] sm:$0xff]
  %v296 = vld [vmem:[%s1 + $0x2b8] sm:$0xff]
  %v297 = vld [vmem:[%s1 + $0x2c0] sm:$0xff]
  %v298 = vld [vmem:[%s1 + $0x2c8] sm:$0xff]
  %v299 = vld [vmem:[%s1 + $0x2d0] sm:$0xff]
  %v300 = vld [vmem:[%s1 + $0x2d8] sm:$0xff]
  %v301 = vld [vmem:[%s1 + $0x2e0] sm:$0xff]
  %v302 = vld [vmem:[%s1 + $0x2e8] sm:$0xff]
  %v303 = vld [vmem:[%s1 + $0x2f0] sm:$0xff]
  %v304 = vld [vmem:[%s1 + $0x2f8] sm:$0xff]
  %v305 = vld [vmem:[%s1 + $0x300] sm:$0xff]
  %v306 = vld [vmem:[%s1 + $0x308] sm:$0xff]
  %v307 = vld [vmem:[%s1 + $0x310] sm:$0xff]
  %v308 = vld [vmem:[%s1 + $0x318] sm:$0xff]
  %v309 = vld [vmem:[%s1 + $0x320] sm:$0xff]
  %v310 = vld [vmem:[%s1 + $0x328] sm:$0xff]
  %v311 = vld [vmem:[%s1 + $0x330] sm:$0xff]
  %v312 = vld [vmem:[%s1 + $0x338] sm:$0xff]
  %v313 = vld [vmem:[%s1 + $0x340] sm:$0xff]
  %v314 = vld [vmem:[%s1 + $0x348] sm:$0xff]
  %v315 = vld [vmem:[%s1 + $0x350] sm:$0xff]
  %v316 = vld [vmem:[%s1 + $0x358] sm:$0xff]
  %v317 = vld [vmem:[%s1 + $0x360] sm:$0xff]
  %v318 = vld [vmem:[%s1 + $0x368] sm:$0xff]
  %v319 = vld [vmem:[%s1 + $0x370] sm:$0xff]
  %v320 = vld [vmem:[%s1 + $0x378] sm:$0xff]
  %v321 = vld [vmem:[%s1 + $0x380] sm:$0xff]
  %v322 = vld [vmem:[%s1 + $0x388] sm:$0xff]
  %v323 = vld [vmem:[%s1 + $0x390] sm:$0xff]
  %v324 = vld [vmem:[%s1 + $0x398] sm:$0xff]
  %v325 = vld [vmem:[%s1 + $0x3a0] sm:$0xff]
  %v326 = vld [vmem:[%s1 + $0x3a8] sm:$0xff]
  %v327 = vld [vmem:[%s1 + $0x3b0] sm:$0xff]
  %v328 = vld [vmem:[%s1 + $0x3b8] sm:$0xff]
  %v329 = vld [vmem:[%s1 + $0x3c0] sm:$0xff]
  %v330 = vld [vmem:[%s1 + $0x3c8] sm:$0xff]
  %v331 = vld [vmem:[%s1 + $0x3d0] sm:$0xff]
  %v332 = vld [vmem:[%s1 + $0x3d8] sm:$0xff]
  %v333 = vld [vmem:[%s1 + $0x3e0] sm:$0xff]
  %v334 = vld [vmem:[%s1 + $0x3e8] sm:$0xff]
  %v335 = vld [vmem:[%s1 + $0x3f0] sm:$0xff]
  %v336 = vld [vmem:[%s1 + $0x3f8] sm:$0xff]
  %v337 = vld [vmem:[%s1 + $0x400] sm:$0xff]
  %v338 = vld [vmem:[%s1 + $0x408] sm:$0xff]
  %v339 = vld [vmem:[%s1 + $0x410] sm:$0xff]
  %v340 = vld [vmem:[%s1 + $0x418] sm:$0xff]
  %v341 = vld [vmem:[%s1 + $0x420] sm:$0xff]
  %v342 = vld [vmem:[%s1 + $0x428] sm:$0xff]
  %v343 = vld [vmem:[%s1 + $0x430] sm:$0xff]
  %v344 = vld [vmem:[%s1 + $0x438] sm:$0xff]
  %v345 = vld [vmem:[%s1 + $0x440] sm:$0xff]
  %v346 = vld [vmem:[%s1 + $0x448] sm:$0xff]
  %v347 = vld [vmem:[%s1 + $0x450] sm:$0xff]
  %v348 = vld [vmem:[%s1 + $0x458] sm:$0xff]
  %v349 = vld [vmem:[%s1 + $0x460] sm:$0xff]
  %v350 = vld [vmem:[%s1 + $0x468] sm:$0xff]
  %v351 = vld [vmem:[%s1 + $0x470] sm:$0xff]
  %v352 = vld [vmem:[%s1 + $0x478] sm:$0xff]
  %v353 = vld [vmem:[%s1 + $0x480] sm:$0xff]
  %v354 = vld [vmem:[%s1 + $0x488] sm:$0xff]
  %v355 = vld [vmem:[%s1 + $0x490] sm:$0xff]
  %v356 = vld [vmem:[%s1 + $0x498] sm:$0xff]
  %v357 = vld [vmem:[%s1 + $0x4a0] sm:$0xff]
  %v358 = vld [vmem:[%s1 + $0x4a8] sm:$0xff]
  %v359 = vld [vmem:[%s1 + $0x4b0] sm:$0xff]
  %v360 = vld [vmem:[%s1 + $0x4b8] sm:$0xff]
  %v361 = vld [vmem:[%s1 + $0x4c0] sm:$0xff]
  %v362 = vld [vmem:[%s1 + $0x4c8] sm:$0xff]
  %v363 = vld [vmem:[%s1 + $0x4d0] sm:$0xff]
  %v364 = vld [vmem:[%s1 + $0x4d8] sm:$0xff]
  %v365 = vld [vmem:[%s1 + $0x4e0] sm:$0xff]
  %v366 = vld [vmem:[%s1 + $0x4e8] sm:$0xff]
  %v367 = vld [vmem:[%s1 + $0x4f0] sm:$0xff]
  %v368 = vld [vmem:[%s1 + $0x4f8] sm:$0xff]
  %v369 = vld [vmem:[%s1 + $0x500] sm:$0xff]
  %v370 = vld [vmem:[%s1 + $0x508] sm:$0xff]
  %v371 = vld [vmem:[%s1 + $0x510] sm:$0xff]
  %v372 = vld [vmem:[%s1 + $0x518] sm:$0xff]
  %v373 = vld [vmem:[%s1 + $0x520] sm:$0xff]
  %v374 = vld [vmem:[%s1 + $0x528] sm:$0xff]
  %v375 = vld [vmem:[%s1 + $0x530] sm:$0xff]
  %v376 = vld [vmem:[%s1 + $0x538] sm:$0xff]
  %v377 = vld [vmem:[%s1 + $0x540] sm:$0xff]
  %v378 = vld [vmem:[%s1 + $0x548] sm:$0xff]
  %v379 = vld [vmem:[%s1 + $0x550] sm:$0xff]
  %v380 = vld [vmem:[%s1 + $0x558] sm:$0xff]
  %v381 = vld [vmem:[%s1 + $0x560] sm:$0xff]
  %v382 = vld [vmem:[%s1 + $0x568] sm:$0xff]
  %v383 = vld [vmem:[%s1 + $0x570] sm:$0xff]
  %v384 = vld [vmem:[%s1 + $0x578] sm:$0xff]
  %v385 = vld [vmem:[%s1 + $0x580] sm:$0xff]
  %v386 = vld [vmem:[%s1 + $0x588] sm:$0xff]
  %v387 = vld [vmem:[%s1 + $0x590] sm:$0xff]
  %v388 = vld [vmem:[%s1 + $0x598] sm:$0xff]
  %v389 = vld [vmem:[%s1 + $0x5a0] sm:$0xff]
  %v390 = vld [vmem:[%s1 + $0x5a8] sm:$0xff]
  %v391 = vld [vmem:[%s1 + $0x5b0] sm:$0xff]
  %v392 = vld [vmem:[%s1 + $0x5b8] sm:$0xff]
  %v393 = vld [vmem:[%s1 + $0x5c0] sm:$0xff]
  %v394 = vld [vmem:[%s1 + $0x5c8] sm:$0xff]
  %v395 = vld [vmem:[%s1 + $0x5d0] sm:$0xff]
  %v396 = vld [vmem:[%s1 + $0x5d8] sm:$0xff]
  %v397 = vld [vmem:[%s1 + $0x5e0] sm:$0xff]
  %v398 = vld [vmem:[%s1 + $0x5e8] sm:$0xff]
  %v399 = vld [vmem:[%s1 + $0x5f0] sm:$0xff]
  %v400 = vld [vmem:[%s1 + $0x5f8] sm:$0xff]
  %v401 = vld [vmem:[%s2] sm:$0x3f]
  %v403 = vlaneseq
  %v404 = vshrl.u32 %v403, 7
  %v405 = vsub.s32 0, %v404
  %v406 = vrot.slane %v401, %v405
  %v407 = vlaneseq
  %v408 = vshrl.u32 %v407, 7
  %v409 = vsub.s32 1, %v408
  %v410 = vrot.slane %v401, %v409
  %v411 = vlaneseq
  %v412 = vshrl.u32 %v411, 7
  %v413 = vsub.s32 2, %v412
  %v414 = vrot.slane %v401, %v413
  %v415 = vlaneseq
  %v416 = vshrl.u32 %v415, 7
  %v417 = vsub.s32 3, %v416
  %v418 = vrot.slane %v401, %v417
  %v419 = vlaneseq
  %v420 = vshrl.u32 %v419, 7
  %v421 = vsub.s32 4, %v420
  %v422 = vrot.slane %v401, %v421
  %v423 = vlaneseq
  %v424 = vshrl.u32 %v423, 7
  %v425 = vsub.s32 5, %v424
  %v426 = vrot.slane %v401, %v425
  %v625 = vunpack.c.l.b16 %v209
  %v626 = vunpack.c.h.b16 %v209
  %v627 = vunpack.c.l.b16 %v210
  %v628 = vunpack.c.h.b16 %v210
  %v629 = vunpack.c.l.b16 %v211
  %v630 = vunpack.c.h.b16 %v211
  %v631 = vunpack.c.l.b16 %v212
  %v632 = vunpack.c.h.b16 %v212
  %v633 = vunpack.c.l.b16 %v213
  %v634 = vunpack.c.h.b16 %v213
  %v635 = vunpack.c.l.b16 %v214
  %v636 = vunpack.c.h.b16 %v214
  %v637 = vunpack.c.l.b16 %v215
  %v638 = vunpack.c.h.b16 %v215
  %v639 = vunpack.c.l.b16 %v216
  %v640 = vunpack.c.h.b16 %v216
  %v641 = vunpack.c.l.b16 %v217
  %v642 = vunpack.c.h.b16 %v217
  %v643 = vunpack.c.l.b16 %v218
  %v644 = vunpack.c.h.b16 %v218
  %v645 = vunpack.c.l.b16 %v219
  %v646 = vunpack.c.h.b16 %v219
  %v647 = vunpack.c.l.b16 %v220
  %v648 = vunpack.c.h.b16 %v220
  %v649 = vunpack.c.l.b16 %v221
  %v650 = vunpack.c.h.b16 %v221
  %v651 = vunpack.c.l.b16 %v222
  %v652 = vunpack.c.h.b16 %v222
  %v653 = vunpack.c.l.b16 %v223
  %v654 = vunpack.c.h.b16 %v223
  %v655 = vunpack.c.l.b16 %v224
  %v656 = vunpack.c.h.b16 %v224
  %v657 = vunpack.c.l.b16 %v225
  %v658 = vunpack.c.h.b16 %v225
  %v659 = vunpack.c.l.b16 %v226
  %v660 = vunpack.c.h.b16 %v226
  %v661 = vunpack.c.l.b16 %v227
  %v662 = vunpack.c.h.b16 %v227
  %v663 = vunpack.c.l.b16 %v228
  %v664 = vunpack.c.h.b16 %v228
  %v665 = vunpack.c.l.b16 %v229
  %v666 = vunpack.c.h.b16 %v229
  %v667 = vunpack.c.l.b16 %v230
  %v668 = vunpack.c.h.b16 %v230
  %v669 = vunpack.c.l.b16 %v231
  %v670 = vunpack.c.h.b16 %v231
  %v671 = vunpack.c.l.b16 %v232
  %v672 = vunpack.c.h.b16 %v232
  %v673 = vunpack.c.l.b16 %v233
  %v674 = vunpack.c.h.b16 %v233
  %v675 = vunpack.c.l.b16 %v234
  %v676 = vunpack.c.h.b16 %v234
  %v677 = vunpack.c.l.b16 %v235
  %v678 = vunpack.c.h.b16 %v235
  %v679 = vunpack.c.l.b16 %v236
  %v680 = vunpack.c.h.b16 %v236
  %v681 = vunpack.c.l.b16 %v237
  %v682 = vunpack.c.h.b16 %v237
  %v683 = vunpack.c.l.b16 %v238
  %v684 = vunpack.c.h.b16 %v238
  %v685 = vunpack.c.l.b16 %v239
  %v686 = vunpack.c.h.b16 %v239
  %v687 = vunpack.c.l.b16 %v240
  %v688 = vunpack.c.h.b16 %v240
  %v689 = vunpack.c.l.b16 %v241
  %v690 = vunpack.c.h.b16 %v241
  %v691 = vunpack.c.l.b16 %v242
  %v692 = vunpack.c.h.b16 %v242
  %v693 = vunpack.c.l.b16 %v243
  %v694 = vunpack.c.h.b16 %v243
  %v695 = vunpack.c.l.b16 %v244
  %v696 = vunpack.c.h.b16 %v244
  %v697 = vunpack.c.l.b16 %v245
  %v698 = vunpack.c.h.b16 %v245
  %v699 = vunpack.c.l.b16 %v246
  %v700 = vunpack.c.h.b16 %v246
  %v701 = vunpack.c.l.b16 %v247
  %v702 = vunpack.c.h.b16 %v247
  %v703 = vunpack.c.l.b16 %v248
  %v704 = vunpack.c.h.b16 %v248
  %v705 = vunpack.c.l.b16 %v249
  %v706 = vunpack.c.h.b16 %v249
  %v707 = vunpack.c.l.b16 %v250
  %v708 = vunpack.c.h.b16 %v250
  %v709 = vunpack.c.l.b16 %v251
  %v710 = vunpack.c.h.b16 %v251
  %v711 = vunpack.c.l.b16 %v252
  %v712 = vunpack.c.h.b16 %v252
  %v713 = vunpack.c.l.b16 %v253
  %v714 = vunpack.c.h.b16 %v253
  %v715 = vunpack.c.l.b16 %v254
  %v716 = vunpack.c.h.b16 %v254
  %v717 = vunpack.c.l.b16 %v255
  %v718 = vunpack.c.h.b16 %v255
  %v719 = vunpack.c.l.b16 %v256
  %v720 = vunpack.c.h.b16 %v256
  %v721 = vunpack.c.l.b16 %v257
  %v722 = vunpack.c.h.b16 %v257
  %v723 = vunpack.c.l.b16 %v258
  %v724 = vunpack.c.h.b16 %v258
  %v725 = vunpack.c.l.b16 %v259
  %v726 = vunpack.c.h.b16 %v259
  %v727 = vunpack.c.l.b16 %v260
  %v728 = vunpack.c.h.b16 %v260
  %v729 = vunpack.c.l.b16 %v261
  %v730 = vunpack.c.h.b16 %v261
  %v731 = vunpack.c.l.b16 %v262
  %v732 = vunpack.c.h.b16 %v262
  %v733 = vunpack.c.l.b16 %v263
  %v734 = vunpack.c.h.b16 %v263
  %v735 = vunpack.c.l.b16 %v264
  %v736 = vunpack.c.h.b16 %v264
  %v737 = vunpack.c.l.b16 %v265
  %v738 = vunpack.c.h.b16 %v265
  %v739 = vunpack.c.l.b16 %v266
  %v740 = vunpack.c.h.b16 %v266
  %v741 = vunpack.c.l.b16 %v267
  %v742 = vunpack.c.h.b16 %v267
  %v743 = vunpack.c.l.b16 %v268
  %v744 = vunpack.c.h.b16 %v268
  %v745 = vunpack.c.l.b16 %v269
  %v746 = vunpack.c.h.b16 %v269
  %v747 = vunpack.c.l.b16 %v270
  %v748 = vunpack.c.h.b16 %v270
  %v749 = vunpack.c.l.b16 %v271
  %v750 = vunpack.c.h.b16 %v271
  %v751 = vunpack.c.l.b16 %v272
  %v752 = vunpack.c.h.b16 %v272
  %v753 = vunpack.c.l.b16 %v273
  %v754 = vunpack.c.h.b16 %v273
  %v755 = vunpack.c.l.b16 %v274
  %v756 = vunpack.c.h.b16 %v274
  %v757 = vunpack.c.l.b16 %v275
  %v758 = vunpack.c.h.b16 %v275
  %v759 = vunpack.c.l.b16 %v276
  %v760 = vunpack.c.h.b16 %v276
  %v761 = vunpack.c.l.b16 %v277
  %v762 = vunpack.c.h.b16 %v277
  %v763 = vunpack.c.l.b16 %v278
  %v764 = vunpack.c.h.b16 %v278
  %v765 = vunpack.c.l.b16 %v279
  %v766 = vunpack.c.h.b16 %v279
  %v767 = vunpack.c.l.b16 %v280
  %v768 = vunpack.c.h.b16 %v280
  %v769 = vunpack.c.l.b16 %v281
  %v770 = vunpack.c.h.b16 %v281
  %v771 = vunpack.c.l.b16 %v282
  %v772 = vunpack.c.h.b16 %v282
  %v773 = vunpack.c.l.b16 %v283
  %v774 = vunpack.c.h.b16 %v283
  %v775 = vunpack.c.l.b16 %v284
  %v776 = vunpack.c.h.b16 %v284
  %v777 = vunpack.c.l.b16 %v285
  %v778 = vunpack.c.h.b16 %v285
  %v779 = vunpack.c.l.b16 %v286
  %v780 = vunpack.c.h.b16 %v286
  %v781 = vunpack.c.l.b16 %v287
  %v782 = vunpack.c.h.b16 %v287
  %v783 = vunpack.c.l.b16 %v288
  %v784 = vunpack.c.h.b16 %v288
  %v785 = vunpack.c.l.b16 %v289
  %v786 = vunpack.c.h.b16 %v289
  %v787 = vunpack.c.l.b16 %v290
  %v788 = vunpack.c.h.b16 %v290
  %v789 = vunpack.c.l.b16 %v291
  %v790 = vunpack.c.h.b16 %v291
  %v791 = vunpack.c.l.b16 %v292
  %v792 = vunpack.c.h.b16 %v292
  %v793 = vunpack.c.l.b16 %v293
  %v794 = vunpack.c.h.b16 %v293
  %v795 = vunpack.c.l.b16 %v294
  %v796 = vunpack.c.h.b16 %v294
  %v797 = vunpack.c.l.b16 %v295
  %v798 = vunpack.c.h.b16 %v295
  %v799 = vunpack.c.l.b16 %v296
  %v800 = vunpack.c.h.b16 %v296
  %v801 = vunpack.c.l.b16 %v297
  %v802 = vunpack.c.h.b16 %v297
  %v803 = vunpack.c.l.b16 %v298
  %v804 = vunpack.c.h.b16 %v298
  %v805 = vunpack.c.l.b16 %v299
  %v806 = vunpack.c.h.b16 %v299
  %v807 = vunpack.c.l.b16 %v300
  %v808 = vunpack.c.h.b16 %v300
  %v809 = vunpack.c.l.b16 %v301
  %v810 = vunpack.c.h.b16 %v301
  %v811 = vunpack.c.l.b16 %v302
  %v812 = vunpack.c.h.b16 %v302
  %v813 = vunpack.c.l.b16 %v303
  %v814 = vunpack.c.h.b16 %v303
  %v815 = vunpack.c.l.b16 %v304
  %v816 = vunpack.c.h.b16 %v304
  %v817 = vunpack.c.l.b16 %v305
  %v818 = vunpack.c.h.b16 %v305
  %v819 = vunpack.c.l.b16 %v306
  %v820 = vunpack.c.h.b16 %v306
  %v821 = vunpack.c.l.b16 %v307
  %v822 = vunpack.c.h.b16 %v307
  %v823 = vunpack.c.l.b16 %v308
  %v824 = vunpack.c.h.b16 %v308
  %v825 = vunpack.c.l.b16 %v309
  %v826 = vunpack.c.h.b16 %v309
  %v827 = vunpack.c.l.b16 %v310
  %v828 = vunpack.c.h.b16 %v310
  %v829 = vunpack.c.l.b16 %v311
  %v830 = vunpack.c.h.b16 %v311
  %v831 = vunpack.c.l.b16 %v312
  %v832 = vunpack.c.h.b16 %v312
  %v833 = vunpack.c.l.b16 %v313
  %v834 = vunpack.c.h.b16 %v313
  %v835 = vunpack.c.l.b16 %v314
  %v836 = vunpack.c.h.b16 %v314
  %v837 = vunpack.c.l.b16 %v315
  %v838 = vunpack.c.h.b16 %v315
  %v839 = vunpack.c.l.b16 %v316
  %v840 = vunpack.c.h.b16 %v316
  %v841 = vunpack.c.l.b16 %v317
  %v842 = vunpack.c.h.b16 %v317
  %v843 = vunpack.c.l.b16 %v318
  %v844 = vunpack.c.h.b16 %v318
  %v845 = vunpack.c.l.b16 %v319
  %v846 = vunpack.c.h.b16 %v319
  %v847 = vunpack.c.l.b16 %v320
  %v848 = vunpack.c.h.b16 %v320
  %v849 = vunpack.c.l.b16 %v321
  %v850 = vunpack.c.h.b16 %v321
  %v851 = vunpack.c.l.b16 %v322
  %v852 = vunpack.c.h.b16 %v322
  %v853 = vunpack.c.l.b16 %v323
  %v854 = vunpack.c.h.b16 %v323
  %v855 = vunpack.c.l.b16 %v324
  %v856 = vunpack.c.h.b16 %v324
  %v857 = vunpack.c.l.b16 %v325
  %v858 = vunpack.c.h.b16 %v325
  %v859 = vunpack.c.l.b16 %v326
  %v860 = vunpack.c.h.b16 %v326
  %v861 = vunpack.c.l.b16 %v327
  %v862 = vunpack.c.h.b16 %v327
  %v863 = vunpack.c.l.b16 %v328
  %v864 = vunpack.c.h.b16 %v328
  %v865 = vunpack.c.l.b16 %v329
  %v866 = vunpack.c.h.b16 %v329
  %v867 = vunpack.c.l.b16 %v330
  %v868 = vunpack.c.h.b16 %v330
  %v869 = vunpack.c.l.b16 %v331
  %v870 = vunpack.c.h.b16 %v331
  %v871 = vunpack.c.l.b16 %v332
  %v872 = vunpack.c.h.b16 %v332
  %v873 = vunpack.c.l.b16 %v333
  %v874 = vunpack.c.h.b16 %v333
  %v875 = vunpack.c.l.b16 %v334
  %v876 = vunpack.c.h.b16 %v334
  %v877 = vunpack.c.l.b16 %v335
  %v878 = vunpack.c.h.b16 %v335
  %v879 = vunpack.c.l.b16 %v336
  %v880 = vunpack.c.h.b16 %v336
  %v881 = vunpack.c.l.b16 %v337
  %v882 = vunpack.c.h.b16 %v337
  %v883 = vunpack.c.l.b16 %v338
  %v884 = vunpack.c.h.b16 %v338
  %v885 = vunpack.c.l.b16 %v339
  %v886 = vunpack.c.h.b16 %v339
  %v887 = vunpack.c.l.b16 %v340
  %v888 = vunpack.c.h.b16 %v340
  %v889 = vunpack.c.l.b16 %v341
  %v890 = vunpack.c.h.b16 %v341
  %v891 = vunpack.c.l.b16 %v342
  %v892 = vunpack.c.h.b16 %v342
  %v893 = vunpack.c.l.b16 %v343
  %v894 = vunpack.c.h.b16 %v343
  %v895 = vunpack.c.l.b16 %v344
  %v896 = vunpack.c.h.b16 %v344
  %v897 = vunpack.c.l.b16 %v345
  %v898 = vunpack.c.h.b16 %v345
  %v899 = vunpack.c.l.b16 %v346
  %v900 = vunpack.c.h.b16 %v346
  %v901 = vunpack.c.l.b16 %v347
  %v902 = vunpack.c.h.b16 %v347
  %v903 = vunpack.c.l.b16 %v348
  %v904 = vunpack.c.h.b16 %v348
  %v905 = vunpack.c.l.b16 %v349
  %v906 = vunpack.c.h.b16 %v349
  %v907 = vunpack.c.l.b16 %v350
  %v908 = vunpack.c.h.b16 %v350
  %v909 = vunpack.c.l.b16 %v351
  %v910 = vunpack.c.h.b16 %v351
  %v911 = vunpack.c.l.b16 %v352
  %v912 = vunpack.c.h.b16 %v352
  %v913 = vunpack.c.l.b16 %v353
  %v914 = vunpack.c.h.b16 %v353
  %v915 = vunpack.c.l.b16 %v354
  %v916 = vunpack.c.h.b16 %v354
  %v917 = vunpack.c.l.b16 %v355
  %v918 = vunpack.c.h.b16 %v355
  %v919 = vunpack.c.l.b16 %v356
  %v920 = vunpack.c.h.b16 %v356
  %v921 = vunpack.c.l.b16 %v357
  %v922 = vunpack.c.h.b16 %v357
  %v923 = vunpack.c.l.b16 %v358
  %v924 = vunpack.c.h.b16 %v358
  %v925 = vunpack.c.l.b16 %v359
  %v926 = vunpack.c.h.b16 %v359
  %v927 = vunpack.c.l.b16 %v360
  %v928 = vunpack.c.h.b16 %v360
  %v929 = vunpack.c.l.b16 %v361
  %v930 = vunpack.c.h.b16 %v361
  %v931 = vunpack.c.l.b16 %v362
  %v932 = vunpack.c.h.b16 %v362
  %v933 = vunpack.c.l.b16 %v363
  %v934 = vunpack.c.h.b16 %v363
  %v935 = vunpack.c.l.b16 %v364
  %v936 = vunpack.c.h.b16 %v364
  %v937 = vunpack.c.l.b16 %v365
  %v938 = vunpack.c.h.b16 %v365
  %v939 = vunpack.c.l.b16 %v366
  %v940 = vunpack.c.h.b16 %v366
  %v941 = vunpack.c.l.b16 %v367
  %v942 = vunpack.c.h.b16 %v367
  %v943 = vunpack.c.l.b16 %v368
  %v944 = vunpack.c.h.b16 %v368
  %v945 = vunpack.c.l.b16 %v369
  %v946 = vunpack.c.h.b16 %v369
  %v947 = vunpack.c.l.b16 %v370
  %v948 = vunpack.c.h.b16 %v370
  %v949 = vunpack.c.l.b16 %v371
  %v950 = vunpack.c.h.b16 %v371
  %v951 = vunpack.c.l.b16 %v372
  %v952 = vunpack.c.h.b16 %v372
  %v953 = vunpack.c.l.b16 %v373
  %v954 = vunpack.c.h.b16 %v373
  %v955 = vunpack.c.l.b16 %v374
  %v956 = vunpack.c.h.b16 %v374
  %v957 = vunpack.c.l.b16 %v375
  %v958 = vunpack.c.h.b16 %v375
  %v959 = vunpack.c.l.b16 %v376
  %v960 = vunpack.c.h.b16 %v376
  %v961 = vunpack.c.l.b16 %v377
  %v962 = vunpack.c.h.b16 %v377
  %v963 = vunpack.c.l.b16 %v378
  %v964 = vunpack.c.h.b16 %v378
  %v965 = vunpack.c.l.b16 %v379
  %v966 = vunpack.c.h.b16 %v379
  %v967 = vunpack.c.l.b16 %v380
  %v968 = vunpack.c.h.b16 %v380
  %v969 = vunpack.c.l.b16 %v381
  %v970 = vunpack.c.h.b16 %v381
  %v971 = vunpack.c.l.b16 %v382
  %v972 = vunpack.c.h.b16 %v382
  %v973 = vunpack.c.l.b16 %v383
  %v974 = vunpack.c.h.b16 %v383
  %v975 = vunpack.c.l.b16 %v384
  %v976 = vunpack.c.h.b16 %v384
  %v977 = vunpack.c.l.b16 %v385
  %v978 = vunpack.c.h.b16 %v385
  %v979 = vunpack.c.l.b16 %v386
  %v980 = vunpack.c.h.b16 %v386
  %v981 = vunpack.c.l.b16 %v387
  %v982 = vunpack.c.h.b16 %v387
  %v983 = vunpack.c.l.b16 %v388
  %v984 = vunpack.c.h.b16 %v388
  %v985 = vunpack.c.l.b16 %v389
  %v986 = vunpack.c.h.b16 %v389
  %v987 = vunpack.c.l.b16 %v390
  %v988 = vunpack.c.h.b16 %v390
  %v989 = vunpack.c.l.b16 %v391
  %v990 = vunpack.c.h.b16 %v391
  %v991 = vunpack.c.l.b16 %v392
  %v992 = vunpack.c.h.b16 %v392
  %v993 = vunpack.c.l.b16 %v393
  %v994 = vunpack.c.h.b16 %v393
  %v995 = vunpack.c.l.b16 %v394
  %v996 = vunpack.c.h.b16 %v394
  %v997 = vunpack.c.l.b16 %v395
  %v998 = vunpack.c.h.b16 %v395
  %v999 = vunpack.c.l.b16 %v396
  %v1000 = vunpack.c.h.b16 %v396
  %v1001 = vunpack.c.l.b16 %v397
  %v1002 = vunpack.c.h.b16 %v397
  %v1003 = vunpack.c.l.b16 %v398
  %v1004 = vunpack.c.h.b16 %v398
  %v1005 = vunpack.c.l.b16 %v399
  %v1006 = vunpack.c.h.b16 %v399
  %v1007 = vunpack.c.l.b16 %v400
  %v1008 = vunpack.c.h.b16 %v400
  %v1009 = vpack.c.b16 %v631, %v625
  %v1010 = vpack.c.b16 %v632, %v626
  %v1011 = vpack.c.b16 %v633, %v627
  %v1012 = vpack.c.b16 %v634, %v628
  %v1013 = vpack.c.b16 %v635, %v629
  %v1014 = vpack.c.b16 %v636, %v630
  %v1015 = vpack.c.b16 %v643, %v637
  %v1016 = vpack.c.b16 %v644, %v638
  %v1017 = vpack.c.b16 %v645, %v639
  %v1018 = vpack.c.b16 %v646, %v640
  %v1019 = vpack.c.b16 %v647, %v641
  %v1020 = vpack.c.b16 %v648, %v642
  %v1021 = vpack.c.b16 %v655, %v649
  %v1022 = vpack.c.b16 %v656, %v650
  %v1023 = vpack.c.b16 %v657, %v651
  %v1024 = vpack.c.b16 %v658, %v652
  %v1025 = vpack.c.b16 %v659, %v653
  %v1026 = vpack.c.b16 %v660, %v654
  %v1027 = vpack.c.b16 %v667, %v661
  %v1028 = vpack.c.b16 %v668, %v662
  %v1029 = vpack.c.b16 %v669, %v663
  %v1030 = vpack.c.b16 %v670, %v664
  %v1031 = vpack.c.b16 %v671, %v665
  %v1032 = vpack.c.b16 %v672, %v666
  %v1033 = vpack.c.b16 %v679, %v673
  %v1034 = vpack.c.b16 %v680, %v674
  %v1035 = vpack.c.b16 %v681, %v675
  %v1036 = vpack.c.b16 %v682, %v676
  %v1037 = vpack.c.b16 %v683, %v677
  %v1038 = vpack.c.b16 %v684, %v678
  %v1039 = vpack.c.b16 %v691, %v685
  %v1040 = vpack.c.b16 %v692, %v686
  %v1041 = vpack.c.b16 %v693, %v687
  %v1042 = vpack.c.b16 %v694, %v688
  %v1043 = vpack.c.b16 %v695, %v689
  %v1044 = vpack.c.b16 %v696, %v690
  %v1045 = vpack.c.b16 %v703, %v697
  %v1046 = vpack.c.b16 %v704, %v698
  %v1047 = vpack.c.b16 %v705, %v699
  %v1048 = vpack.c.b16 %v706, %v700
  %v1049 = vpack.c.b16 %v707, %v701
  %v1050 = vpack.c.b16 %v708, %v702
  %v1051 = vpack.c.b16 %v715, %v709
  %v1052 = vpack.c.b16 %v716, %v710
  %v1053 = vpack.c.b16 %v717, %v711
  %v1054 = vpack.c.b16 %v718, %v712
  %v1055 = vpack.c.b16 %v719, %v713
  %v1056 = vpack.c.b16 %v720, %v714
  %v1057 = vpack.c.b16 %v727, %v721
  %v1058 = vpack.c.b16 %v728, %v722
  %v1059 = vpack.c.b16 %v729, %v723
  %v1060 = vpack.c.b16 %v730, %v724
  %v1061 = vpack.c.b16 %v731, %v725
  %v1062 = vpack.c.b16 %v732, %v726
  %v1063 = vpack.c.b16 %v739, %v733
  %v1064 = vpack.c.b16 %v740, %v734
  %v1065 = vpack.c.b16 %v741, %v735
  %v1066 = vpack.c.b16 %v742, %v736
  %v1067 = vpack.c.b16 %v743, %v737
  %v1068 = vpack.c.b16 %v744, %v738
  %v1069 = vpack.c.b16 %v751, %v745
  %v1070 = vpack.c.b16 %v752, %v746
  %v1071 = vpack.c.b16 %v753, %v747
  %v1072 = vpack.c.b16 %v754, %v748
  %v1073 = vpack.c.b16 %v755, %v749
  %v1074 = vpack.c.b16 %v756, %v750
  %v1075 = vpack.c.b16 %v763, %v757
  %v1076 = vpack.c.b16 %v764, %v758
  %v1077 = vpack.c.b16 %v765, %v759
  %v1078 = vpack.c.b16 %v766, %v760
  %v1079 = vpack.c.b16 %v767, %v761
  %v1080 = vpack.c.b16 %v768, %v762
  %v1081 = vpack.c.b16 %v775, %v769
  %v1082 = vpack.c.b16 %v776, %v770
  %v1083 = vpack.c.b16 %v777, %v771
  %v1084 = vpack.c.b16 %v778, %v772
  %v1085 = vpack.c.b16 %v779, %v773
  %v1086 = vpack.c.b16 %v780, %v774
  %v1087 = vpack.c.b16 %v787, %v781
  %v1088 = vpack.c.b16 %v788, %v782
  %v1089 = vpack.c.b16 %v789, %v783
  %v1090 = vpack.c.b16 %v790, %v784
  %v1091 = vpack.c.b16 %v791, %v785
  %v1092 = vpack.c.b16 %v792, %v786
  %v1093 = vpack.c.b16 %v799, %v793
  %v1094 = vpack.c.b16 %v800, %v794
  %v1095 = vpack.c.b16 %v801, %v795
  %v1096 = vpack.c.b16 %v802, %v796
  %v1097 = vpack.c.b16 %v803, %v797
  %v1098 = vpack.c.b16 %v804, %v798
  %v1099 = vpack.c.b16 %v811, %v805
  %v1100 = vpack.c.b16 %v812, %v806
  %v1101 = vpack.c.b16 %v813, %v807
  %v1102 = vpack.c.b16 %v814, %v808
  %v1103 = vpack.c.b16 %v815, %v809
  %v1104 = vpack.c.b16 %v816, %v810
  %v1105 = vpack.c.b16 %v823, %v817
  %v1106 = vpack.c.b16 %v824, %v818
  %v1107 = vpack.c.b16 %v825, %v819
  %v1108 = vpack.c.b16 %v826, %v820
  %v1109 = vpack.c.b16 %v827, %v821
  %v1110 = vpack.c.b16 %v828, %v822
  %v1111 = vpack.c.b16 %v835, %v829
  %v1112 = vpack.c.b16 %v836, %v830
  %v1113 = vpack.c.b16 %v837, %v831
  %v1114 = vpack.c.b16 %v838, %v832
  %v1115 = vpack.c.b16 %v839, %v833
  %v1116 = vpack.c.b16 %v840, %v834
  %v1117 = vpack.c.b16 %v847, %v841
  %v1118 = vpack.c.b16 %v848, %v842
  %v1119 = vpack.c.b16 %v849, %v843
  %v1120 = vpack.c.b16 %v850, %v844
  %v1121 = vpack.c.b16 %v851, %v845
  %v1122 = vpack.c.b16 %v852, %v846
  %v1123 = vpack.c.b16 %v859, %v853
  %v1124 = vpack.c.b16 %v860, %v854
  %v1125 = vpack.c.b16 %v861, %v855
  %v1126 = vpack.c.b16 %v862, %v856
  %v1127 = vpack.c.b16 %v863, %v857
  %v1128 = vpack.c.b16 %v864, %v858
  %v1129 = vpack.c.b16 %v871, %v865
  %v1130 = vpack.c.b16 %v872, %v866
  %v1131 = vpack.c.b16 %v873, %v867
  %v1132 = vpack.c.b16 %v874, %v868
  %v1133 = vpack.c.b16 %v875, %v869
  %v1134 = vpack.c.b16 %v876, %v870
  %v1135 = vpack.c.b16 %v883, %v877
  %v1136 = vpack.c.b16 %v884, %v878
  %v1137 = vpack.c.b16 %v885, %v879
  %v1138 = vpack.c.b16 %v886, %v880
  %v1139 = vpack.c.b16 %v887, %v881
  %v1140 = vpack.c.b16 %v888, %v882
  %v1141 = vpack.c.b16 %v895, %v889
  %v1142 = vpack.c.b16 %v896, %v890
  %v1143 = vpack.c.b16 %v897, %v891
  %v1144 = vpack.c.b16 %v898, %v892
  %v1145 = vpack.c.b16 %v899, %v893
  %v1146 = vpack.c.b16 %v900, %v894
  %v1147 = vpack.c.b16 %v907, %v901
  %v1148 = vpack.c.b16 %v908, %v902
  %v1149 = vpack.c.b16 %v909, %v903
  %v1150 = vpack.c.b16 %v910, %v904
  %v1151 = vpack.c.b16 %v911, %v905
  %v1152 = vpack.c.b16 %v912, %v906
  %v1153 = vpack.c.b16 %v919, %v913
  %v1154 = vpack.c.b16 %v920, %v914
  %v1155 = vpack.c.b16 %v921, %v915
  %v1156 = vpack.c.b16 %v922, %v916
  %v1157 = vpack.c.b16 %v923, %v917
  %v1158 = vpack.c.b16 %v924, %v918
  %v1159 = vpack.c.b16 %v931, %v925
  %v1160 = vpack.c.b16 %v932, %v926
  %v1161 = vpack.c.b16 %v933, %v927
  %v1162 = vpack.c.b16 %v934, %v928
  %v1163 = vpack.c.b16 %v935, %v929
  %v1164 = vpack.c.b16 %v936, %v930
  %v1165 = vpack.c.b16 %v943, %v937
  %v1166 = vpack.c.b16 %v944, %v938
  %v1167 = vpack.c.b16 %v945, %v939
  %v1168 = vpack.c.b16 %v946, %v940
  %v1169 = vpack.c.b16 %v947, %v941
  %v1170 = vpack.c.b16 %v948, %v942
  %v1171 = vpack.c.b16 %v955, %v949
  %v1172 = vpack.c.b16 %v956, %v950
  %v1173 = vpack.c.b16 %v957, %v951
  %v1174 = vpack.c.b16 %v958, %v952
  %v1175 = vpack.c.b16 %v959, %v953
  %v1176 = vpack.c.b16 %v960, %v954
  %v1177 = vpack.c.b16 %v967, %v961
  %v1178 = vpack.c.b16 %v968, %v962
  %v1179 = vpack.c.b16 %v969, %v963
  %v1180 = vpack.c.b16 %v970, %v964
  %v1181 = vpack.c.b16 %v971, %v965
  %v1182 = vpack.c.b16 %v972, %v966
  %v1183 = vpack.c.b16 %v979, %v973
  %v1184 = vpack.c.b16 %v980, %v974
  %v1185 = vpack.c.b16 %v981, %v975
  %v1186 = vpack.c.b16 %v982, %v976
  %v1187 = vpack.c.b16 %v983, %v977
  %v1188 = vpack.c.b16 %v984, %v978
  %v1189 = vpack.c.b16 %v991, %v985
  %v1190 = vpack.c.b16 %v992, %v986
  %v1191 = vpack.c.b16 %v993, %v987
  %v1192 = vpack.c.b16 %v994, %v988
  %v1193 = vpack.c.b16 %v995, %v989
  %v1194 = vpack.c.b16 %v996, %v990
  %v1195 = vpack.c.b16 %v1003, %v997
  %v1196 = vpack.c.b16 %v1004, %v998
  %v1197 = vpack.c.b16 %v1005, %v999
  %v1198 = vpack.c.b16 %v1006, %v1000
  %v1199 = vpack.c.b16 %v1007, %v1001
  %v1200 = vpack.c.b16 %v1008, %v1002
  %1393 = vmatprep.subr.bf16.mxu0 %v1052
  %1394 = vmatpush1.bf16.msra.mxu0 %v1051
  %1395 = vmatprep.subr.bf16.mxu0 %v1046
  %1396 = vmatpush1.bf16.msra.mxu0 %v1045
  %1397 = vmatprep.subr.bf16.mxu0 %v1040
  %1398 = vmatpush1.bf16.msra.mxu0 %v1039
  %1399 = vmatprep.subr.bf16.mxu0 %v1034
  %1400 = vmatpush1.bf16.msra.mxu0 %v1033
  %1401 = vmatprep.subr.bf16.mxu0 %v1028
  %1402 = vmatpush1.bf16.msra.mxu0 %v1027
  %1403 = vmatprep.subr.bf16.mxu0 %v1022
  %1404 = vmatpush1.bf16.msra.mxu0 %v1021
  %1405 = vmatprep.subr.bf16.mxu0 %v1016
  %1406 = vmatpush1.bf16.msra.mxu0 %v1015
  %1407 = vmatprep.subr.bf16.mxu0 %v1010
  %1408 = vmatpush1.bf16.msra.mxu0 %v1009
  %1409 = vmatprep.subr.bf16.mxu0 %v1100
  %1410 = vmatpush2.bf16.msra.mxu0 %v1099
  %1411 = vmatprep.subr.bf16.mxu0 %v1094
  %1412 = vmatpush2.bf16.msra.mxu0 %v1093
  %1413 = vmatprep.subr.bf16.mxu0 %v1088
  %1414 = vmatpush2.bf16.msra.mxu0 %v1087
  %1415 = vmatprep.subr.bf16.mxu0 %v1082
  %1416 = vmatpush2.bf16.msra.mxu0 %v1081
  %1417 = vmatprep.subr.bf16.mxu0 %v1076
  %1418 = vmatpush2.bf16.msra.mxu0 %v1075
  %1419 = vmatprep.subr.bf16.mxu0 %v1070
  %1420 = vmatpush2.bf16.msra.mxu0 %v1069
  %1421 = vmatprep.subr.bf16.mxu0 %v1064
  %1422 = vmatpush2.bf16.msra.mxu0 %v1063
  %1423 = vmatprep.subr.bf16.mxu0 %v1058
  %1424 = vmatpush2.bf16.msra.mxu0 %v1057
  %1425 = vmatprep.mubr.bf16.mxu0 %v146
  %1426 = vmatmul.mubr.bf16.gmra.mxu0 %v145
  %v1427 = vpop.f32.mrf.mxu0
  %v1428 = vadd.f32 %v406, %v1427
  %v1429 = vpop.f32.mrf.mxu0
  %v1430 = vadd.f32 %v410, %v1429
  %v1431 = vpop.f32.mrf.mxu0
  %v1432 = vadd.f32 %v406, %v1431
  %v1433 = vpop.f32.mrf.mxu0
  %v1434 = vadd.f32 %v410, %v1433
  %1435 = vmatprep.mubr.bf16.mxu0 %v150
  %1436 = vmatmul.mubr.bf16.gmra.mxu0 %v149
  %v1437 = vpop.f32.mrf.mxu0
  %v1438 = vadd.f32 %v406, %v1437
  %v1439 = vpop.f32.mrf.mxu0
  %v1440 = vadd.f32 %v410, %v1439
  %v1441 = vpop.f32.mrf.mxu0
  %v1442 = vadd.f32 %v406, %v1441
  %v1443 = vpop.f32.mrf.mxu0
  %v1444 = vadd.f32 %v410, %v1443
  %1445 = vmatprep.mubr.bf16.mxu0 %v154
  %1446 = vmatmul.mubr.bf16.gmra.mxu0 %v153
  %v1447 = vpop.f32.mrf.mxu0
  %v1448 = vadd.f32 %v406, %v1447
  %v1449 = vpop.f32.mrf.mxu0
  %v1450 = vadd.f32 %v410, %v1449
  %v1451 = vpop.f32.mrf.mxu0
  %v1452 = vadd.f32 %v406, %v1451
  %v1453 = vpop.f32.mrf.mxu0
  %v1454 = vadd.f32 %v410, %v1453
  %1455 = vmatprep.mubr.bf16.mxu0 %v158
  %1456 = vmatmul.mubr.bf16.gmra.mxu0 %v157
  %v1457 = vpop.f32.mrf.mxu0
  %v1458 = vadd.f32 %v406, %v1457
  %v1459 = vpop.f32.mrf.mxu0
  %v1460 = vadd.f32 %v410, %v1459
  %v1461 = vpop.f32.mrf.mxu0
  %v1462 = vadd.f32 %v406, %v1461
  %v1463 = vpop.f32.mrf.mxu0
  %v1464 = vadd.f32 %v410, %v1463
  %1465 = vmatprep.mubr.bf16.mxu0 %v162
  %1466 = vmatmul.mubr.bf16.gmra.mxu0 %v161
  %v1467 = vpop.f32.mrf.mxu0
  %v1468 = vadd.f32 %v406, %v1467
  %v1469 = vpop.f32.mrf.mxu0
  %v1470 = vadd.f32 %v410, %v1469
  %v1471 = vpop.f32.mrf.mxu0
  %v1472 = vadd.f32 %v406, %v1471
  %v1473 = vpop.f32.mrf.mxu0
  %v1474 = vadd.f32 %v410, %v1473
  %1475 = vmatprep.mubr.bf16.mxu0 %v166
  %1476 = vmatmul.mubr.bf16.gmra.mxu0 %v165
  %v1477 = vpop.f32.mrf.mxu0
  %v1478 = vadd.f32 %v406, %v1477
  %v1479 = vpop.f32.mrf.mxu0
  %v1480 = vadd.f32 %v410, %v1479
  %v1481 = vpop.f32.mrf.mxu0
  %v1482 = vadd.f32 %v406, %v1481
  %v1483 = vpop.f32.mrf.mxu0
  %v1484 = vadd.f32 %v410, %v1483
  %1485 = vmatprep.mubr.bf16.mxu0 %v170
  %1486 = vmatmul.mubr.bf16.gmra.mxu0 %v169
  %v1487 = vpop.f32.mrf.mxu0
  %v1488 = vadd.f32 %v406, %v1487
  %v1489 = vpop.f32.mrf.mxu0
  %v1490 = vadd.f32 %v410, %v1489
  %v1491 = vpop.f32.mrf.mxu0
  %v1492 = vadd.f32 %v406, %v1491
  %v1493 = vpop.f32.mrf.mxu0
  %v1494 = vadd.f32 %v410, %v1493
  %1495 = vmatprep.mubr.bf16.mxu0 %v174
  %1496 = vmatmul.mubr.bf16.gmra.mxu0 %v173
  %v1497 = vpop.f32.mrf.mxu0
  %v1498 = vadd.f32 %v406, %v1497
  %v1499 = vpop.f32.mrf.mxu0
  %v1500 = vadd.f32 %v410, %v1499
  %v1501 = vpop.f32.mrf.mxu0
  %v1502 = vadd.f32 %v406, %v1501
  %v1503 = vpop.f32.mrf.mxu0
  %v1504 = vadd.f32 %v410, %v1503
  %1505 = vmatprep.mubr.bf16.mxu0 %v178
  %1506 = vmatmul.mubr.bf16.gmra.mxu0 %v177
  %v1507 = vpop.f32.mrf.mxu0
  %v1508 = vadd.f32 %v406, %v1507
  %v1509 = vpop.f32.mrf.mxu0
  %v1510 = vadd.f32 %v410, %v1509
  %v1511 = vpop.f32.mrf.mxu0
  %v1512 = vadd.f32 %v406, %v1511
  %v1513 = vpop.f32.mrf.mxu0
  %v1514 = vadd.f32 %v410, %v1513
  %1515 = vmatprep.mubr.bf16.mxu0 %v182
  %1516 = vmatmul.mubr.bf16.gmra.mxu0 %v181
  %v1517 = vpop.f32.mrf.mxu0
  %v1518 = vadd.f32 %v406, %v1517
  %v1519 = vpop.f32.mrf.mxu0
  %v1520 = vadd.f32 %v410, %v1519
  %v1521 = vpop.f32.mrf.mxu0
  %v1522 = vadd.f32 %v406, %v1521
  %v1523 = vpop.f32.mrf.mxu0
  %v1524 = vadd.f32 %v410, %v1523
  %1525 = vmatprep.mubr.bf16.mxu0 %v186
  %1526 = vmatmul.mubr.bf16.gmra.mxu0 %v185
  %v1527 = vpop.f32.mrf.mxu0
  %v1528 = vadd.f32 %v406, %v1527
  %v1529 = vpop.f32.mrf.mxu0
  %v1530 = vadd.f32 %v410, %v1529
  %v1531 = vpop.f32.mrf.mxu0
  %v1532 = vadd.f32 %v406, %v1531
  %v1533 = vpop.f32.mrf.mxu0
  %v1534 = vadd.f32 %v410, %v1533
  %1535 = vmatprep.mubr.bf16.mxu0 %v190
  %1536 = vmatmul.mubr.bf16.gmra.mxu0 %v189
  %v1537 = vpop.f32.mrf.mxu0
  %v1538 = vadd.f32 %v406, %v1537
  %v1539 = vpop.f32.mrf.mxu0
  %v1540 = vadd.f32 %v410, %v1539
  %v1541 = vpop.f32.mrf.mxu0
  %v1542 = vadd.f32 %v406, %v1541
  %v1543 = vpop.f32.mrf.mxu0
  %v1544 = vadd.f32 %v410, %v1543
  %1545 = vmatprep.mubr.bf16.mxu0 %v194
  %1546 = vmatmul.mubr.bf16.gmra.mxu0 %v193
  %v1547 = vpop.f32.mrf.mxu0
  %v1548 = vadd.f32 %v406, %v1547
  %v1549 = vpop.f32.mrf.mxu0
  %v1550 = vadd.f32 %v410, %v1549
  %v1551 = vpop.f32.mrf.mxu0
  %v1552 = vadd.f32 %v406, %v1551
  %v1553 = vpop.f32.mrf.mxu0
  %v1554 = vadd.f32 %v410, %v1553
  %1555 = vmatprep.mubr.bf16.mxu0 %v198
  %1556 = vmatmul.mubr.bf16.gmra.mxu0 %v197
  %v1557 = vpop.f32.mrf.mxu0
  %v1558 = vadd.f32 %v406, %v1557
  %v1559 = vpop.f32.mrf.mxu0
  %v1560 = vadd.f32 %v410, %v1559
  %v1561 = vpop.f32.mrf.mxu0
  %v1562 = vadd.f32 %v406, %v1561
  %v1563 = vpop.f32.mrf.mxu0
  %v1564 = vadd.f32 %v410, %v1563
  %1565 = vmatprep.mubr.bf16.mxu0 %v202
  %1566 = vmatmul.mubr.bf16.gmra.mxu0 %v201
  %v1567 = vpop.f32.mrf.mxu0
  %v1568 = vadd.f32 %v406, %v1567
  %v1569 = vpop.f32.mrf.mxu0
  %v1570 = vadd.f32 %v410, %v1569
  %v1571 = vpop.f32.mrf.mxu0
  %v1572 = vadd.f32 %v406, %v1571
  %v1573 = vpop.f32.mrf.mxu0
  %v1574 = vadd.f32 %v410, %v1573
  %1575 = vmatprep.mubr.bf16.mxu0 %v206
  %1576 = vmatmul.mubr.bf16.gmra.mxu0 %v205
  %v1577 = vpop.f32.mrf.mxu0
  %v1578 = vadd.f32 %v406, %v1577
  %v1579 = vpop.f32.mrf.mxu0
  %v1580 = vadd.f32 %v410, %v1579
  %v1581 = vpop.f32.mrf.mxu0
  %v1582 = vadd.f32 %v406, %v1581
  %v1583 = vpop.f32.mrf.mxu0
  %v1584 = vadd.f32 %v410, %v1583
  %1585 = vdwg.mxu0
  %1586 = vmatprep.subr.bf16.mxu0 %v1148
  %1587 = vmatpush1.bf16.msra.mxu0 %v1147
  %1588 = vmatprep.subr.bf16.mxu0 %v1142
  %1589 = vmatpush1.bf16.msra.mxu0 %v1141
  %1590 = vmatprep.subr.bf16.mxu0 %v1136
  %1591 = vmatpush1.bf16.msra.mxu0 %v1135
  %1592 = vmatprep.subr.bf16.mxu0 %v1130
  %1593 = vmatpush1.bf16.msra.mxu0 %v1129
  %1594 = vmatprep.subr.bf16.mxu0 %v1124
  %1595 = vmatpush1.bf16.msra.mxu0 %v1123
  %1596 = vmatprep.subr.bf16.mxu0 %v1118
  %1597 = vmatpush1.bf16.msra.mxu0 %v1117
  %1598 = vmatprep.subr.bf16.mxu0 %v1112
  %1599 = vmatpush1.bf16.msra.mxu0 %v1111
  %1600 = vmatprep.subr.bf16.mxu0 %v1106
  %1601 = vmatpush1.bf16.msra.mxu0 %v1105
  %1602 = vmatprep.subr.bf16.mxu0 %v1196
  %1603 = vmatpush2.bf16.msra.mxu0 %v1195
  %1604 = vmatprep.subr.bf16.mxu0 %v1190
  %1605 = vmatpush2.bf16.msra.mxu0 %v1189
  %1606 = vmatprep.subr.bf16.mxu0 %v1184
  %1607 = vmatpush2.bf16.msra.mxu0 %v1183
  %1608 = vmatprep.subr.bf16.mxu0 %v1178
  %1609 = vmatpush2.bf16.msra.mxu0 %v1177
  %1610 = vmatprep.subr.bf16.mxu0 %v1172
  %1611 = vmatpush2.bf16.msra.mxu0 %v1171
  %1612 = vmatprep.subr.bf16.mxu0 %v1166
  %1613 = vmatpush2.bf16.msra.mxu0 %v1165
  %1614 = vmatprep.subr.bf16.mxu0 %v1160
  %1615 = vmatpush2.bf16.msra.mxu0 %v1159
  %1616 = vmatprep.subr.bf16.mxu0 %v1154
  %1617 = vmatpush2.bf16.msra.mxu0 %v1153
  %1618 = vmatprep.mubr.bf16.mxu0 %v148
  %1619 = vmatmul.mubr.bf16.gmra.mxu0 %v147
  %v1620 = vpop.f32.mrf.mxu0
  %v1621 = vadd.f32 %v1428, %v1620
  %v1622 = vpop.f32.mrf.mxu0
  %v1623 = vadd.f32 %v1430, %v1622
  %v1624 = vpop.f32.mrf.mxu0
  %v1625 = vadd.f32 %v1432, %v1624
  %v1626 = vpop.f32.mrf.mxu0
  %v1627 = vadd.f32 %v1434, %v1626
  %1628 = vmatprep.mubr.bf16.mxu0 %v152
  %1629 = vmatmul.mubr.bf16.gmra.mxu0 %v151
  %v1630 = vpop.f32.mrf.mxu0
  %v1631 = vadd.f32 %v1438, %v1630
  %v1632 = vpop.f32.mrf.mxu0
  %v1633 = vadd.f32 %v1440, %v1632
  %v1634 = vpop.f32.mrf.mxu0
  %v1635 = vadd.f32 %v1442, %v1634
  %v1636 = vpop.f32.mrf.mxu0
  %v1637 = vadd.f32 %v1444, %v1636
  %1638 = vmatprep.mubr.bf16.mxu0 %v156
  %1639 = vmatmul.mubr.bf16.gmra.mxu0 %v155
  %v1640 = vpop.f32.mrf.mxu0
  %v1641 = vadd.f32 %v1448, %v1640
  %v1642 = vpop.f32.mrf.mxu0
  %v1643 = vadd.f32 %v1450, %v1642
  %v1644 = vpop.f32.mrf.mxu0
  %v1645 = vadd.f32 %v1452, %v1644
  %v1646 = vpop.f32.mrf.mxu0
  %v1647 = vadd.f32 %v1454, %v1646
  %1648 = vmatprep.mubr.bf16.mxu0 %v160
  %1649 = vmatmul.mubr.bf16.gmra.mxu0 %v159
  %v1650 = vpop.f32.mrf.mxu0
  %v1651 = vadd.f32 %v1458, %v1650
  %v1652 = vpop.f32.mrf.mxu0
  %v1653 = vadd.f32 %v1460, %v1652
  %v1654 = vpop.f32.mrf.mxu0
  %v1655 = vadd.f32 %v1462, %v1654
  %v1656 = vpop.f32.mrf.mxu0
  %v1657 = vadd.f32 %v1464, %v1656
  %1658 = vmatprep.mubr.bf16.mxu0 %v164
  %1659 = vmatmul.mubr.bf16.gmra.mxu0 %v163
  %v1660 = vpop.f32.mrf.mxu0
  %v1661 = vadd.f32 %v1468, %v1660
  %v1662 = vpop.f32.mrf.mxu0
  %v1663 = vadd.f32 %v1470, %v1662
  %v1664 = vpop.f32.mrf.mxu0
  %v1665 = vadd.f32 %v1472, %v1664
  %v1666 = vpop.f32.mrf.mxu0
  %v1667 = vadd.f32 %v1474, %v1666
  %1668 = vmatprep.mubr.bf16.mxu0 %v168
  %1669 = vmatmul.mubr.bf16.gmra.mxu0 %v167
  %v1670 = vpop.f32.mrf.mxu0
  %v1671 = vadd.f32 %v1478, %v1670
  %v1672 = vpop.f32.mrf.mxu0
  %v1673 = vadd.f32 %v1480, %v1672
  %v1674 = vpop.f32.mrf.mxu0
  %v1675 = vadd.f32 %v1482, %v1674
  %v1676 = vpop.f32.mrf.mxu0
  %v1677 = vadd.f32 %v1484, %v1676
  %1678 = vmatprep.mubr.bf16.mxu0 %v172
  %1679 = vmatmul.mubr.bf16.gmra.mxu0 %v171
  %v1680 = vpop.f32.mrf.mxu0
  %v1681 = vadd.f32 %v1488, %v1680
  %v1682 = vpop.f32.mrf.mxu0
  %v1683 = vadd.f32 %v1490, %v1682
  %v1684 = vpop.f32.mrf.mxu0
  %v1685 = vadd.f32 %v1492, %v1684
  %v1686 = vpop.f32.mrf.mxu0
  %v1687 = vadd.f32 %v1494, %v1686
  %1688 = vmatprep.mubr.bf16.mxu0 %v176
  %1689 = vmatmul.mubr.bf16.gmra.mxu0 %v175
  %v1690 = vpop.f32.mrf.mxu0
  %v1691 = vadd.f32 %v1498, %v1690
  %v1692 = vpop.f32.mrf.mxu0
  %v1693 = vadd.f32 %v1500, %v1692
  %v1694 = vpop.f32.mrf.mxu0
  %v1695 = vadd.f32 %v1502, %v1694
  %v1696 = vpop.f32.mrf.mxu0
  %v1697 = vadd.f32 %v1504, %v1696
  %1698 = vmatprep.mubr.bf16.mxu0 %v180
  %1699 = vmatmul.mubr.bf16.gmra.mxu0 %v179
  %v1700 = vpop.f32.mrf.mxu0
  %v1701 = vadd.f32 %v1508, %v1700
  %v1702 = vpop.f32.mrf.mxu0
  %v1703 = vadd.f32 %v1510, %v1702
  %v1704 = vpop.f32.mrf.mxu0
  %v1705 = vadd.f32 %v1512, %v1704
  %v1706 = vpop.f32.mrf.mxu0
  %v1707 = vadd.f32 %v1514, %v1706
  %1708 = vmatprep.mubr.bf16.mxu0 %v184
  %1709 = vmatmul.mubr.bf16.gmra.mxu0 %v183
  %v1710 = vpop.f32.mrf.mxu0
  %v1711 = vadd.f32 %v1518, %v1710
  %v1712 = vpop.f32.mrf.mxu0
  %v1713 = vadd.f32 %v1520, %v1712
  %v1714 = vpop.f32.mrf.mxu0
  %v1715 = vadd.f32 %v1522, %v1714
  %v1716 = vpop.f32.mrf.mxu0
  %v1717 = vadd.f32 %v1524, %v1716
  %1718 = vmatprep.mubr.bf16.mxu0 %v188
  %1719 = vmatmul.mubr.bf16.gmra.mxu0 %v187
  %v1720 = vpop.f32.mrf.mxu0
  %v1721 = vadd.f32 %v1528, %v1720
  %v1722 = vpop.f32.mrf.mxu0
  %v1723 = vadd.f32 %v1530, %v1722
  %v1724 = vpop.f32.mrf.mxu0
  %v1725 = vadd.f32 %v1532, %v1724
  %v1726 = vpop.f32.mrf.mxu0
  %v1727 = vadd.f32 %v1534, %v1726
  %1728 = vmatprep.mubr.bf16.mxu0 %v192
  %1729 = vmatmul.mubr.bf16.gmra.mxu0 %v191
  %v1730 = vpop.f32.mrf.mxu0
  %v1731 = vadd.f32 %v1538, %v1730
  %v1732 = vpop.f32.mrf.mxu0
  %v1733 = vadd.f32 %v1540, %v1732
  %v1734 = vpop.f32.mrf.mxu0
  %v1735 = vadd.f32 %v1542, %v1734
  %v1736 = vpop.f32.mrf.mxu0
  %v1737 = vadd.f32 %v1544, %v1736
  %1738 = vmatprep.mubr.bf16.mxu0 %v196
  %1739 = vmatmul.mubr.bf16.gmra.mxu0 %v195
  %v1740 = vpop.f32.mrf.mxu0
  %v1741 = vadd.f32 %v1548, %v1740
  %v1742 = vpop.f32.mrf.mxu0
  %v1743 = vadd.f32 %v1550, %v1742
  %v1744 = vpop.f32.mrf.mxu0
  %v1745 = vadd.f32 %v1552, %v1744
  %v1746 = vpop.f32.mrf.mxu0
  %v1747 = vadd.f32 %v1554, %v1746
  %1748 = vmatprep.mubr.bf16.mxu0 %v200
  %1749 = vmatmul.mubr.bf16.gmra.mxu0 %v199
  %v1750 = vpop.f32.mrf.mxu0
  %v1751 = vadd.f32 %v1558, %v1750
  %v1752 = vpop.f32.mrf.mxu0
  %v1753 = vadd.f32 %v1560, %v1752
  %v1754 = vpop.f32.mrf.mxu0
  %v1755 = vadd.f32 %v1562, %v1754
  %v1756 = vpop.f32.mrf.mxu0
  %v1757 = vadd.f32 %v1564, %v1756
  %1758 = vmatprep.mubr.bf16.mxu0 %v204
  %1759 = vmatmul.mubr.bf16.gmra.mxu0 %v203
  %v1760 = vpop.f32.mrf.mxu0
  %v1761 = vadd.f32 %v1568, %v1760
  %v1762 = vpop.f32.mrf.mxu0
  %v1763 = vadd.f32 %v1570, %v1762
  %v1764 = vpop.f32.mrf.mxu0
  %v1765 = vadd.f32 %v1572, %v1764
  %v1766 = vpop.f32.mrf.mxu0
  %v1767 = vadd.f32 %v1574, %v1766
  %1768 = vmatprep.mubr.bf16.mxu0 %v208
  %1769 = vmatmul.mubr.bf16.gmra.mxu0 %v207
  %v1770 = vpop.f32.mrf.mxu0
  %v1771 = vadd.f32 %v1578, %v1770
  %v1772 = vpop.f32.mrf.mxu0
  %v1773 = vadd.f32 %v1580, %v1772
  %v1774 = vpop.f32.mrf.mxu0
  %v1775 = vadd.f32 %v1582, %v1774
  %v1776 = vpop.f32.mrf.mxu0
  %v1777 = vadd.f32 %v1584, %v1776
  %1778 = vdwg.mxu0
  %1779 = vmatprep.subr.bf16.mxu0 %v1054
  %1780 = vmatpush1.bf16.msra.mxu0 %v1053
  %1781 = vmatprep.subr.bf16.mxu0 %v1048
  %1782 = vmatpush1.bf16.msra.mxu0 %v1047
  %1783 = vmatprep.subr.bf16.mxu0 %v1042
  %1784 = vmatpush1.bf16.msra.mxu0 %v1041
  %1785 = vmatprep.subr.bf16.mxu0 %v1036
  %1786 = vmatpush1.bf16.msra.mxu0 %v1035
  %1787 = vmatprep.subr.bf16.mxu0 %v1030
  %1788 = vmatpush1.bf16.msra.mxu0 %v1029
  %1789 = vmatprep.subr.bf16.mxu0 %v1024
  %1790 = vmatpush1.bf16.msra.mxu0 %v1023
  %1791 = vmatprep.subr.bf16.mxu0 %v1018
  %1792 = vmatpush1.bf16.msra.mxu0 %v1017
  %1793 = vmatprep.subr.bf16.mxu0 %v1012
  %1794 = vmatpush1.bf16.msra.mxu0 %v1011
  %1795 = vmatprep.subr.bf16.mxu0 %v1102
  %1796 = vmatpush2.bf16.msra.mxu0 %v1101
  %1797 = vmatprep.subr.bf16.mxu0 %v1096
  %1798 = vmatpush2.bf16.msra.mxu0 %v1095
  %1799 = vmatprep.subr.bf16.mxu0 %v1090
  %1800 = vmatpush2.bf16.msra.mxu0 %v1089
  %1801 = vmatprep.subr.bf16.mxu0 %v1084
  %1802 = vmatpush2.bf16.msra.mxu0 %v1083
  %1803 = vmatprep.subr.bf16.mxu0 %v1078
  %1804 = vmatpush2.bf16.msra.mxu0 %v1077
  %1805 = vmatprep.subr.bf16.mxu0 %v1072
  %1806 = vmatpush2.bf16.msra.mxu0 %v1071
  %1807 = vmatprep.subr.bf16.mxu0 %v1066
  %1808 = vmatpush2.bf16.msra.mxu0 %v1065
  %1809 = vmatprep.subr.bf16.mxu0 %v1060
  %1810 = vmatpush2.bf16.msra.mxu0 %v1059
  %1811 = vmatprep.mubr.bf16.mxu0 %v146
  %1812 = vmatmul.mubr.bf16.gmra.mxu0 %v145
  %v1813 = vpop.f32.mrf.mxu0
  %v1814 = vadd.f32 %v414, %v1813
  %v1815 = vpop.f32.mrf.mxu0
  %v1816 = vadd.f32 %v418, %v1815
  %v1817 = vpop.f32.mrf.mxu0
  %v1818 = vadd.f32 %v414, %v1817
  %v1819 = vpop.f32.mrf.mxu0
  %v1820 = vadd.f32 %v418, %v1819
  %1821 = vmatprep.mubr.bf16.mxu0 %v150
  %1822 = vmatmul.mubr.bf16.gmra.mxu0 %v149
  %v1823 = vpop.f32.mrf.mxu0
  %v1824 = vadd.f32 %v414, %v1823
  %v1825 = vpop.f32.mrf.mxu0
  %v1826 = vadd.f32 %v418, %v1825
  %v1827 = vpop.f32.mrf.mxu0
  %v1828 = vadd.f32 %v414, %v1827
  %v1829 = vpop.f32.mrf.mxu0
  %v1830 = vadd.f32 %v418, %v1829
  %1831 = vmatprep.mubr.bf16.mxu0 %v154
  %1832 = vmatmul.mubr.bf16.gmra.mxu0 %v153
  %v1833 = vpop.f32.mrf.mxu0
  %v1834 = vadd.f32 %v414, %v1833
  %v1835 = vpop.f32.mrf.mxu0
  %v1836 = vadd.f32 %v418, %v1835
  %v1837 = vpop.f32.mrf.mxu0
  %v1838 = vadd.f32 %v414, %v1837
  %v1839 = vpop.f32.mrf.mxu0
  %v1840 = vadd.f32 %v418, %v1839
  %1841 = vmatprep.mubr.bf16.mxu0 %v158
  %1842 = vmatmul.mubr.bf16.gmra.mxu0 %v157
  %v1843 = vpop.f32.mrf.mxu0
  %v1844 = vadd.f32 %v414, %v1843
  %v1845 = vpop.f32.mrf.mxu0
  %v1846 = vadd.f32 %v418, %v1845
  %v1847 = vpop.f32.mrf.mxu0
  %v1848 = vadd.f32 %v414, %v1847
  %v1849 = vpop.f32.mrf.mxu0
  %v1850 = vadd.f32 %v418, %v1849
  %1851 = vmatprep.mubr.bf16.mxu0 %v162
  %1852 = vmatmul.mubr.bf16.gmra.mxu0 %v161
  %v1853 = vpop.f32.mrf.mxu0
  %v1854 = vadd.f32 %v414, %v1853
  %v1855 = vpop.f32.mrf.mxu0
  %v1856 = vadd.f32 %v418, %v1855
  %v1857 = vpop.f32.mrf.mxu0
  %v1858 = vadd.f32 %v414, %v1857
  %v1859 = vpop.f32.mrf.mxu0
  %v1860 = vadd.f32 %v418, %v1859
  %1861 = vmatprep.mubr.bf16.mxu0 %v166
  %1862 = vmatmul.mubr.bf16.gmra.mxu0 %v165
  %v1863 = vpop.f32.mrf.mxu0
  %v1864 = vadd.f32 %v414, %v1863
  %v1865 = vpop.f32.mrf.mxu0
  %v1866 = vadd.f32 %v418, %v1865
  %v1867 = vpop.f32.mrf.mxu0
  %v1868 = vadd.f32 %v414, %v1867
  %v1869 = vpop.f32.mrf.mxu0
  %v1870 = vadd.f32 %v418, %v1869
  %1871 = vmatprep.mubr.bf16.mxu0 %v170
  %1872 = vmatmul.mubr.bf16.gmra.mxu0 %v169
  %v1873 = vpop.f32.mrf.mxu0
  %v1874 = vadd.f32 %v414, %v1873
  %v1875 = vpop.f32.mrf.mxu0
  %v1876 = vadd.f32 %v418, %v1875
  %v1877 = vpop.f32.mrf.mxu0
  %v1878 = vadd.f32 %v414, %v1877
  %v1879 = vpop.f32.mrf.mxu0
  %v1880 = vadd.f32 %v418, %v1879
  %1881 = vmatprep.mubr.bf16.mxu0 %v174
  %1882 = vmatmul.mubr.bf16.gmra.mxu0 %v173
  %v1883 = vpop.f32.mrf.mxu0
  %v1884 = vadd.f32 %v414, %v1883
  %v1885 = vpop.f32.mrf.mxu0
  %v1886 = vadd.f32 %v418, %v1885
  %v1887 = vpop.f32.mrf.mxu0
  %v1888 = vadd.f32 %v414, %v1887
  %v1889 = vpop.f32.mrf.mxu0
  %v1890 = vadd.f32 %v418, %v1889
  %1891 = vmatprep.mubr.bf16.mxu0 %v178
  %1892 = vmatmul.mubr.bf16.gmra.mxu0 %v177
  %v1893 = vpop.f32.mrf.mxu0
  %v1894 = vadd.f32 %v414, %v1893
  %v1895 = vpop.f32.mrf.mxu0
  %v1896 = vadd.f32 %v418, %v1895
  %v1897 = vpop.f32.mrf.mxu0
  %v1898 = vadd.f32 %v414, %v1897
  %v1899 = vpop.f32.mrf.mxu0
  %v1900 = vadd.f32 %v418, %v1899
  %1901 = vmatprep.mubr.bf16.mxu0 %v182
  %1902 = vmatmul.mubr.bf16.gmra.mxu0 %v181
  %v1903 = vpop.f32.mrf.mxu0
  %v1904 = vadd.f32 %v414, %v1903
  %v1905 = vpop.f32.mrf.mxu0
  %v1906 = vadd.f32 %v418, %v1905
  %v1907 = vpop.f32.mrf.mxu0
  %v1908 = vadd.f32 %v414, %v1907
  %v1909 = vpop.f32.mrf.mxu0
  %v1910 = vadd.f32 %v418, %v1909
  %1911 = vmatprep.mubr.bf16.mxu0 %v186
  %1912 = vmatmul.mubr.bf16.gmra.mxu0 %v185
  %v1913 = vpop.f32.mrf.mxu0
  %v1914 = vadd.f32 %v414, %v1913
  %v1915 = vpop.f32.mrf.mxu0
  %v1916 = vadd.f32 %v418, %v1915
  %v1917 = vpop.f32.mrf.mxu0
  %v1918 = vadd.f32 %v414, %v1917
  %v1919 = vpop.f32.mrf.mxu0
  %v1920 = vadd.f32 %v418, %v1919
  %1921 = vmatprep.mubr.bf16.mxu0 %v190
  %1922 = vmatmul.mubr.bf16.gmra.mxu0 %v189
  %v1923 = vpop.f32.mrf.mxu0
  %v1924 = vadd.f32 %v414, %v1923
  %v1925 = vpop.f32.mrf.mxu0
  %v1926 = vadd.f32 %v418, %v1925
  %v1927 = vpop.f32.mrf.mxu0
  %v1928 = vadd.f32 %v414, %v1927
  %v1929 = vpop.f32.mrf.mxu0
  %v1930 = vadd.f32 %v418, %v1929
  %1931 = vmatprep.mubr.bf16.mxu0 %v194
  %1932 = vmatmul.mubr.bf16.gmra.mxu0 %v193
  %v1933 = vpop.f32.mrf.mxu0
  %v1934 = vadd.f32 %v414, %v1933
  %v1935 = vpop.f32.mrf.mxu0
  %v1936 = vadd.f32 %v418, %v1935
  %v1937 = vpop.f32.mrf.mxu0
  %v1938 = vadd.f32 %v414, %v1937
  %v1939 = vpop.f32.mrf.mxu0
  %v1940 = vadd.f32 %v418, %v1939
  %1941 = vmatprep.mubr.bf16.mxu0 %v198
  %1942 = vmatmul.mubr.bf16.gmra.mxu0 %v197
  %v1943 = vpop.f32.mrf.mxu0
  %v1944 = vadd.f32 %v414, %v1943
  %v1945 = vpop.f32.mrf.mxu0
  %v1946 = vadd.f32 %v418, %v1945
  %v1947 = vpop.f32.mrf.mxu0
  %v1948 = vadd.f32 %v414, %v1947
  %v1949 = vpop.f32.mrf.mxu0
  %v1950 = vadd.f32 %v418, %v1949
  %1951 = vmatprep.mubr.bf16.mxu0 %v202
  %1952 = vmatmul.mubr.bf16.gmra.mxu0 %v201
  %v1953 = vpop.f32.mrf.mxu0
  %v1954 = vadd.f32 %v414, %v1953
  %v1955 = vpop.f32.mrf.mxu0
  %v1956 = vadd.f32 %v418, %v1955
  %v1957 = vpop.f32.mrf.mxu0
  %v1958 = vadd.f32 %v414, %v1957
  %v1959 = vpop.f32.mrf.mxu0
  %v1960 = vadd.f32 %v418, %v1959
  %1961 = vmatprep.mubr.bf16.mxu0 %v206
  %1962 = vmatmul.mubr.bf16.gmra.mxu0 %v205
  %v1963 = vpop.f32.mrf.mxu0
  %v1964 = vadd.f32 %v414, %v1963
  %v1965 = vpop.f32.mrf.mxu0
  %v1966 = vadd.f32 %v418, %v1965
  %v1967 = vpop.f32.mrf.mxu0
  %v1968 = vadd.f32 %v414, %v1967
  %v1969 = vpop.f32.mrf.mxu0
  %v1970 = vadd.f32 %v418, %v1969
  %1971 = vdwg.mxu0
  %1972 = vmatprep.subr.bf16.mxu0 %v1150
  %1973 = vmatpush1.bf16.msra.mxu0 %v1149
  %1974 = vmatprep.subr.bf16.mxu0 %v1144
  %1975 = vmatpush1.bf16.msra.mxu0 %v1143
  %1976 = vmatprep.subr.bf16.mxu0 %v1138
  %1977 = vmatpush1.bf16.msra.mxu0 %v1137
  %1978 = vmatprep.subr.bf16.mxu0 %v1132
  %1979 = vmatpush1.bf16.msra.mxu0 %v1131
  %1980 = vmatprep.subr.bf16.mxu0 %v1126
  %1981 = vmatpush1.bf16.msra.mxu0 %v1125
  %1982 = vmatprep.subr.bf16.mxu0 %v1120
  %1983 = vmatpush1.bf16.msra.mxu0 %v1119
  %1984 = vmatprep.subr.bf16.mxu0 %v1114
  %1985 = vmatpush1.bf16.msra.mxu0 %v1113
  %1986 = vmatprep.subr.bf16.mxu0 %v1108
  %1987 = vmatpush1.bf16.msra.mxu0 %v1107
  %1988 = vmatprep.subr.bf16.mxu0 %v1198
  %1989 = vmatpush2.bf16.msra.mxu0 %v1197
  %1990 = vmatprep.subr.bf16.mxu0 %v1192
  %1991 = vmatpush2.bf16.msra.mxu0 %v1191
  %1992 = vmatprep.subr.bf16.mxu0 %v1186
  %1993 = vmatpush2.bf16.msra.mxu0 %v1185
  %1994 = vmatprep.subr.bf16.mxu0 %v1180
  %1995 = vmatpush2.bf16.msra.mxu0 %v1179
  %1996 = vmatprep.subr.bf16.mxu0 %v1174
  %1997 = vmatpush2.bf16.msra.mxu0 %v1173
  %1998 = vmatprep.subr.bf16.mxu0 %v1168
  %1999 = vmatpush2.bf16.msra.mxu0 %v1167
  %2000 = vmatprep.subr.bf16.mxu0 %v1162
  %2001 = vmatpush2.bf16.msra.mxu0 %v1161
  %2002 = vmatprep.subr.bf16.mxu0 %v1156
  %2003 = vmatpush2.bf16.msra.mxu0 %v1155
  %2004 = vmatprep.mubr.bf16.mxu0 %v148
  %2005 = vmatmul.mubr.bf16.gmra.mxu0 %v147
  %v2006 = vpop.f32.mrf.mxu0
  %v2007 = vadd.f32 %v1814, %v2006
  %v2008 = vpop.f32.mrf.mxu0
  %v2009 = vadd.f32 %v1816, %v2008
  %v2010 = vpop.f32.mrf.mxu0
  %v2011 = vadd.f32 %v1818, %v2010
  %v2012 = vpop.f32.mrf.mxu0
  %v2013 = vadd.f32 %v1820, %v2012
  %2014 = vmatprep.mubr.bf16.mxu0 %v152
  %2015 = vmatmul.mubr.bf16.gmra.mxu0 %v151
  %v2016 = vpop.f32.mrf.mxu0
  %v2017 = vadd.f32 %v1824, %v2016
  %v2018 = vpop.f32.mrf.mxu0
  %v2019 = vadd.f32 %v1826, %v2018
  %v2020 = vpop.f32.mrf.mxu0
  %v2021 = vadd.f32 %v1828, %v2020
  %v2022 = vpop.f32.mrf.mxu0
  %v2023 = vadd.f32 %v1830, %v2022
  %2024 = vmatprep.mubr.bf16.mxu0 %v156
  %2025 = vmatmul.mubr.bf16.gmra.mxu0 %v155
  %v2026 = vpop.f32.mrf.mxu0
  %v2027 = vadd.f32 %v1834, %v2026
  %v2028 = vpop.f32.mrf.mxu0
  %v2029 = vadd.f32 %v1836, %v2028
  %v2030 = vpop.f32.mrf.mxu0
  %v2031 = vadd.f32 %v1838, %v2030
  %v2032 = vpop.f32.mrf.mxu0
  %v2033 = vadd.f32 %v1840, %v2032
  %2034 = vmatprep.mubr.bf16.mxu0 %v160
  %2035 = vmatmul.mubr.bf16.gmra.mxu0 %v159
  %v2036 = vpop.f32.mrf.mxu0
  %v2037 = vadd.f32 %v1844, %v2036
  %v2038 = vpop.f32.mrf.mxu0
  %v2039 = vadd.f32 %v1846, %v2038
  %v2040 = vpop.f32.mrf.mxu0
  %v2041 = vadd.f32 %v1848, %v2040
  %v2042 = vpop.f32.mrf.mxu0
  %v2043 = vadd.f32 %v1850, %v2042
  %2044 = vmatprep.mubr.bf16.mxu0 %v164
  %2045 = vmatmul.mubr.bf16.gmra.mxu0 %v163
  %v2046 = vpop.f32.mrf.mxu0
  %v2047 = vadd.f32 %v1854, %v2046
  %v2048 = vpop.f32.mrf.mxu0
  %v2049 = vadd.f32 %v1856, %v2048
  %v2050 = vpop.f32.mrf.mxu0
  %v2051 = vadd.f32 %v1858, %v2050
  %v2052 = vpop.f32.mrf.mxu0
  %v2053 = vadd.f32 %v1860, %v2052
  %2054 = vmatprep.mubr.bf16.mxu0 %v168
  %2055 = vmatmul.mubr.bf16.gmra.mxu0 %v167
  %v2056 = vpop.f32.mrf.mxu0
  %v2057 = vadd.f32 %v1864, %v2056
  %v2058 = vpop.f32.mrf.mxu0
  %v2059 = vadd.f32 %v1866, %v2058
  %v2060 = vpop.f32.mrf.mxu0
  %v2061 = vadd.f32 %v1868, %v2060
  %v2062 = vpop.f32.mrf.mxu0
  %v2063 = vadd.f32 %v1870, %v2062
  %2064 = vmatprep.mubr.bf16.mxu0 %v172
  %2065 = vmatmul.mubr.bf16.gmra.mxu0 %v171
  %v2066 = vpop.f32.mrf.mxu0
  %v2067 = vadd.f32 %v1874, %v2066
  %v2068 = vpop.f32.mrf.mxu0
  %v2069 = vadd.f32 %v1876, %v2068
  %v2070 = vpop.f32.mrf.mxu0
  %v2071 = vadd.f32 %v1878, %v2070
  %v2072 = vpop.f32.mrf.mxu0
  %v2073 = vadd.f32 %v1880, %v2072
  %2074 = vmatprep.mubr.bf16.mxu0 %v176
  %2075 = vmatmul.mubr.bf16.gmra.mxu0 %v175
  %v2076 = vpop.f32.mrf.mxu0
  %v2077 = vadd.f32 %v1884, %v2076
  %v2078 = vpop.f32.mrf.mxu0
  %v2079 = vadd.f32 %v1886, %v2078
  %v2080 = vpop.f32.mrf.mxu0
  %v2081 = vadd.f32 %v1888, %v2080
  %v2082 = vpop.f32.mrf.mxu0
  %v2083 = vadd.f32 %v1890, %v2082
  %2084 = vmatprep.mubr.bf16.mxu0 %v180
  %2085 = vmatmul.mubr.bf16.gmra.mxu0 %v179
  %v2086 = vpop.f32.mrf.mxu0
  %v2087 = vadd.f32 %v1894, %v2086
  %v2088 = vpop.f32.mrf.mxu0
  %v2089 = vadd.f32 %v1896, %v2088
  %v2090 = vpop.f32.mrf.mxu0
  %v2091 = vadd.f32 %v1898, %v2090
  %v2092 = vpop.f32.mrf.mxu0
  %v2093 = vadd.f32 %v1900, %v2092
  %2094 = vmatprep.mubr.bf16.mxu0 %v184
  %2095 = vmatmul.mubr.bf16.gmra.mxu0 %v183
  %v2096 = vpop.f32.mrf.mxu0
  %v2097 = vadd.f32 %v1904, %v2096
  %v2098 = vpop.f32.mrf.mxu0
  %v2099 = vadd.f32 %v1906, %v2098
  %v2100 = vpop.f32.mrf.mxu0
  %v2101 = vadd.f32 %v1908, %v2100
  %v2102 = vpop.f32.mrf.mxu0
  %v2103 = vadd.f32 %v1910, %v2102
  %2104 = vmatprep.mubr.bf16.mxu0 %v188
  %2105 = vmatmul.mubr.bf16.gmra.mxu0 %v187
  %v2106 = vpop.f32.mrf.mxu0
  %v2107 = vadd.f32 %v1914, %v2106
  %v2108 = vpop.f32.mrf.mxu0
  %v2109 = vadd.f32 %v1916, %v2108
  %v2110 = vpop.f32.mrf.mxu0
  %v2111 = vadd.f32 %v1918, %v2110
  %v2112 = vpop.f32.mrf.mxu0
  %v2113 = vadd.f32 %v1920, %v2112
  %2114 = vmatprep.mubr.bf16.mxu0 %v192
  %2115 = vmatmul.mubr.bf16.gmra.mxu0 %v191
  %v2116 = vpop.f32.mrf.mxu0
  %v2117 = vadd.f32 %v1924, %v2116
  %v2118 = vpop.f32.mrf.mxu0
  %v2119 = vadd.f32 %v1926, %v2118
  %v2120 = vpop.f32.mrf.mxu0
  %v2121 = vadd.f32 %v1928, %v2120
  %v2122 = vpop.f32.mrf.mxu0
  %v2123 = vadd.f32 %v1930, %v2122
  %2124 = vmatprep.mubr.bf16.mxu0 %v196
  %2125 = vmatmul.mubr.bf16.gmra.mxu0 %v195
  %v2126 = vpop.f32.mrf.mxu0
  %v2127 = vadd.f32 %v1934, %v2126
  %v2128 = vpop.f32.mrf.mxu0
  %v2129 = vadd.f32 %v1936, %v2128
  %v2130 = vpop.f32.mrf.mxu0
  %v2131 = vadd.f32 %v1938, %v2130
  %v2132 = vpop.f32.mrf.mxu0
  %v2133 = vadd.f32 %v1940, %v2132
  %2134 = vmatprep.mubr.bf16.mxu0 %v200
  %2135 = vmatmul.mubr.bf16.gmra.mxu0 %v199
  %v2136 = vpop.f32.mrf.mxu0
  %v2137 = vadd.f32 %v1944, %v2136
  %v2138 = vpop.f32.mrf.mxu0
  %v2139 = vadd.f32 %v1946, %v2138
  %v2140 = vpop.f32.mrf.mxu0
  %v2141 = vadd.f32 %v1948, %v2140
  %v2142 = vpop.f32.mrf.mxu0
  %v2143 = vadd.f32 %v1950, %v2142
  %2144 = vmatprep.mubr.bf16.mxu0 %v204
  %2145 = vmatmul.mubr.bf16.gmra.mxu0 %v203
  %v2146 = vpop.f32.mrf.mxu0
  %v2147 = vadd.f32 %v1954, %v2146
  %v2148 = vpop.f32.mrf.mxu0
  %v2149 = vadd.f32 %v1956, %v2148
  %v2150 = vpop.f32.mrf.mxu0
  %v2151 = vadd.f32 %v1958, %v2150
  %v2152 = vpop.f32.mrf.mxu0
  %v2153 = vadd.f32 %v1960, %v2152
  %2154 = vmatprep.mubr.bf16.mxu0 %v208
  %2155 = vmatmul.mubr.bf16.gmra.mxu0 %v207
  %v2156 = vpop.f32.mrf.mxu0
  %v2157 = vadd.f32 %v1964, %v2156
  %v2158 = vpop.f32.mrf.mxu0
  %v2159 = vadd.f32 %v1966, %v2158
  %v2160 = vpop.f32.mrf.mxu0
  %v2161 = vadd.f32 %v1968, %v2160
  %v2162 = vpop.f32.mrf.mxu0
  %v2163 = vadd.f32 %v1970, %v2162
  %2164 = vdwg.mxu0
  %2165 = vmatprep.subr.bf16.mxu0 %v1056
  %2166 = vmatpush1.bf16.msra.mxu0 %v1055
  %2167 = vmatprep.subr.bf16.mxu0 %v1050
  %2168 = vmatpush1.bf16.msra.mxu0 %v1049
  %2169 = vmatprep.subr.bf16.mxu0 %v1044
  %2170 = vmatpush1.bf16.msra.mxu0 %v1043
  %2171 = vmatprep.subr.bf16.mxu0 %v1038
  %2172 = vmatpush1.bf16.msra.mxu0 %v1037
  %2173 = vmatprep.subr.bf16.mxu0 %v1032
  %2174 = vmatpush1.bf16.msra.mxu0 %v1031
  %2175 = vmatprep.subr.bf16.mxu0 %v1026
  %2176 = vmatpush1.bf16.msra.mxu0 %v1025
  %2177 = vmatprep.subr.bf16.mxu0 %v1020
  %2178 = vmatpush1.bf16.msra.mxu0 %v1019
  %2179 = vmatprep.subr.bf16.mxu0 %v1014
  %2180 = vmatpush1.bf16.msra.mxu0 %v1013
  %2181 = vmatprep.subr.bf16.mxu0 %v1104
  %2182 = vmatpush2.bf16.msra.mxu0 %v1103
  %2183 = vmatprep.subr.bf16.mxu0 %v1098
  %2184 = vmatpush2.bf16.msra.mxu0 %v1097
  %2185 = vmatprep.subr.bf16.mxu0 %v1092
  %2186 = vmatpush2.bf16.msra.mxu0 %v1091
  %2187 = vmatprep.subr.bf16.mxu0 %v1086
  %2188 = vmatpush2.bf16.msra.mxu0 %v1085
  %2189 = vmatprep.subr.bf16.mxu0 %v1080
  %2190 = vmatpush2.bf16.msra.mxu0 %v1079
  %2191 = vmatprep.subr.bf16.mxu0 %v1074
  %2192 = vmatpush2.bf16.msra.mxu0 %v1073
  %2193 = vmatprep.subr.bf16.mxu0 %v1068
  %2194 = vmatpush2.bf16.msra.mxu0 %v1067
  %2195 = vmatprep.subr.bf16.mxu0 %v1062
  %2196 = vmatpush2.bf16.msra.mxu0 %v1061
  %2197 = vmatprep.mubr.bf16.mxu0 %v146
  %2198 = vmatmul.mubr.bf16.gmra.mxu0 %v145
  %v2199 = vpop.f32.mrf.mxu0
  %v2200 = vadd.f32 %v422, %v2199
  %v2201 = vpop.f32.mrf.mxu0
  %v2202 = vadd.f32 %v426, %v2201
  %v2203 = vpop.f32.mrf.mxu0
  %v2204 = vadd.f32 %v422, %v2203
  %v2205 = vpop.f32.mrf.mxu0
  %v2206 = vadd.f32 %v426, %v2205
  %2207 = vmatprep.mubr.bf16.mxu0 %v150
  %2208 = vmatmul.mubr.bf16.gmra.mxu0 %v149
  %v2209 = vpop.f32.mrf.mxu0
  %v2210 = vadd.f32 %v422, %v2209
  %v2211 = vpop.f32.mrf.mxu0
  %v2212 = vadd.f32 %v426, %v2211
  %v2213 = vpop.f32.mrf.mxu0
  %v2214 = vadd.f32 %v422, %v2213
  %v2215 = vpop.f32.mrf.mxu0
  %v2216 = vadd.f32 %v426, %v2215
  %2217 = vmatprep.mubr.bf16.mxu0 %v154
  %2218 = vmatmul.mubr.bf16.gmra.mxu0 %v153
  %v2219 = vpop.f32.mrf.mxu0
  %v2220 = vadd.f32 %v422, %v2219
  %v2221 = vpop.f32.mrf.mxu0
  %v2222 = vadd.f32 %v426, %v2221
  %v2223 = vpop.f32.mrf.mxu0
  %v2224 = vadd.f32 %v422, %v2223
  %v2225 = vpop.f32.mrf.mxu0
  %v2226 = vadd.f32 %v426, %v2225
  %2227 = vmatprep.mubr.bf16.mxu0 %v158
  %2228 = vmatmul.mubr.bf16.gmra.mxu0 %v157
  %v2229 = vpop.f32.mrf.mxu0
  %v2230 = vadd.f32 %v422, %v2229
  %v2231 = vpop.f32.mrf.mxu0
  %v2232 = vadd.f32 %v426, %v2231
  %v2233 = vpop.f32.mrf.mxu0
  %v2234 = vadd.f32 %v422, %v2233
  %v2235 = vpop.f32.mrf.mxu0
  %v2236 = vadd.f32 %v426, %v2235
  %2237 = vmatprep.mubr.bf16.mxu0 %v162
  %2238 = vmatmul.mubr.bf16.gmra.mxu0 %v161
  %v2239 = vpop.f32.mrf.mxu0
  %v2240 = vadd.f32 %v422, %v2239
  %v2241 = vpop.f32.mrf.mxu0
  %v2242 = vadd.f32 %v426, %v2241
  %v2243 = vpop.f32.mrf.mxu0
  %v2244 = vadd.f32 %v422, %v2243
  %v2245 = vpop.f32.mrf.mxu0
  %v2246 = vadd.f32 %v426, %v2245
  %2247 = vmatprep.mubr.bf16.mxu0 %v166
  %2248 = vmatmul.mubr.bf16.gmra.mxu0 %v165
  %v2249 = vpop.f32.mrf.mxu0
  %v2250 = vadd.f32 %v422, %v2249
  %v2251 = vpop.f32.mrf.mxu0
  %v2252 = vadd.f32 %v426, %v2251
  %v2253 = vpop.f32.mrf.mxu0
  %v2254 = vadd.f32 %v422, %v2253
  %v2255 = vpop.f32.mrf.mxu0
  %v2256 = vadd.f32 %v426, %v2255
  %2257 = vmatprep.mubr.bf16.mxu0 %v170
  %2258 = vmatmul.mubr.bf16.gmra.mxu0 %v169
  %v2259 = vpop.f32.mrf.mxu0
  %v2260 = vadd.f32 %v422, %v2259
  %v2261 = vpop.f32.mrf.mxu0
  %v2262 = vadd.f32 %v426, %v2261
  %v2263 = vpop.f32.mrf.mxu0
  %v2264 = vadd.f32 %v422, %v2263
  %v2265 = vpop.f32.mrf.mxu0
  %v2266 = vadd.f32 %v426, %v2265
  %2267 = vmatprep.mubr.bf16.mxu0 %v174
  %2268 = vmatmul.mubr.bf16.gmra.mxu0 %v173
  %v2269 = vpop.f32.mrf.mxu0
  %v2270 = vadd.f32 %v422, %v2269
  %v2271 = vpop.f32.mrf.mxu0
  %v2272 = vadd.f32 %v426, %v2271
  %v2273 = vpop.f32.mrf.mxu0
  %v2274 = vadd.f32 %v422, %v2273
  %v2275 = vpop.f32.mrf.mxu0
  %v2276 = vadd.f32 %v426, %v2275
  %2277 = vmatprep.mubr.bf16.mxu0 %v178
  %2278 = vmatmul.mubr.bf16.gmra.mxu0 %v177
  %v2279 = vpop.f32.mrf.mxu0
  %v2280 = vadd.f32 %v422, %v2279
  %v2281 = vpop.f32.mrf.mxu0
  %v2282 = vadd.f32 %v426, %v2281
  %v2283 = vpop.f32.mrf.mxu0
  %v2284 = vadd.f32 %v422, %v2283
  %v2285 = vpop.f32.mrf.mxu0
  %v2286 = vadd.f32 %v426, %v2285
  %2287 = vmatprep.mubr.bf16.mxu0 %v182
  %2288 = vmatmul.mubr.bf16.gmra.mxu0 %v181
  %v2289 = vpop.f32.mrf.mxu0
  %v2290 = vadd.f32 %v422, %v2289
  %v2291 = vpop.f32.mrf.mxu0
  %v2292 = vadd.f32 %v426, %v2291
  %v2293 = vpop.f32.mrf.mxu0
  %v2294 = vadd.f32 %v422, %v2293
  %v2295 = vpop.f32.mrf.mxu0
  %v2296 = vadd.f32 %v426, %v2295
  %2297 = vmatprep.mubr.bf16.mxu0 %v186
  %2298 = vmatmul.mubr.bf16.gmra.mxu0 %v185
  %v2299 = vpop.f32.mrf.mxu0
  %v2300 = vadd.f32 %v422, %v2299
  %v2301 = vpop.f32.mrf.mxu0
  %v2302 = vadd.f32 %v426, %v2301
  %v2303 = vpop.f32.mrf.mxu0
  %v2304 = vadd.f32 %v422, %v2303
  %v2305 = vpop.f32.mrf.mxu0
  %v2306 = vadd.f32 %v426, %v2305
  %2307 = vmatprep.mubr.bf16.mxu0 %v190
  %2308 = vmatmul.mubr.bf16.gmra.mxu0 %v189
  %v2309 = vpop.f32.mrf.mxu0
  %v2310 = vadd.f32 %v422, %v2309
  %v2311 = vpop.f32.mrf.mxu0
  %v2312 = vadd.f32 %v426, %v2311
  %v2313 = vpop.f32.mrf.mxu0
  %v2314 = vadd.f32 %v422, %v2313
  %v2315 = vpop.f32.mrf.mxu0
  %v2316 = vadd.f32 %v426, %v2315
  %2317 = vmatprep.mubr.bf16.mxu0 %v194
  %2318 = vmatmul.mubr.bf16.gmra.mxu0 %v193
  %v2319 = vpop.f32.mrf.mxu0
  %v2320 = vadd.f32 %v422, %v2319
  %v2321 = vpop.f32.mrf.mxu0
  %v2322 = vadd.f32 %v426, %v2321
  %v2323 = vpop.f32.mrf.mxu0
  %v2324 = vadd.f32 %v422, %v2323
  %v2325 = vpop.f32.mrf.mxu0
  %v2326 = vadd.f32 %v426, %v2325
  %2327 = vmatprep.mubr.bf16.mxu0 %v198
  %2328 = vmatmul.mubr.bf16.gmra.mxu0 %v197
  %v2329 = vpop.f32.mrf.mxu0
  %v2330 = vadd.f32 %v422, %v2329
  %v2331 = vpop.f32.mrf.mxu0
  %v2332 = vadd.f32 %v426, %v2331
  %v2333 = vpop.f32.mrf.mxu0
  %v2334 = vadd.f32 %v422, %v2333
  %v2335 = vpop.f32.mrf.mxu0
  %v2336 = vadd.f32 %v426, %v2335
  %2337 = vmatprep.mubr.bf16.mxu0 %v202
  %2338 = vmatmul.mubr.bf16.gmra.mxu0 %v201
  %v2339 = vpop.f32.mrf.mxu0
  %v2340 = vadd.f32 %v422, %v2339
  %v2341 = vpop.f32.mrf.mxu0
  %v2342 = vadd.f32 %v426, %v2341
  %v2343 = vpop.f32.mrf.mxu0
  %v2344 = vadd.f32 %v422, %v2343
  %v2345 = vpop.f32.mrf.mxu0
  %v2346 = vadd.f32 %v426, %v2345
  %2347 = vmatprep.mubr.bf16.mxu0 %v206
  %2348 = vmatmul.mubr.bf16.gmra.mxu0 %v205
  %v2349 = vpop.f32.mrf.mxu0
  %v2350 = vadd.f32 %v422, %v2349
  %v2351 = vpop.f32.mrf.mxu0
  %v2352 = vadd.f32 %v426, %v2351
  %v2353 = vpop.f32.mrf.mxu0
  %v2354 = vadd.f32 %v422, %v2353
  %v2355 = vpop.f32.mrf.mxu0
  %v2356 = vadd.f32 %v426, %v2355
  %2357 = vdwg.mxu0
  %2358 = vmatprep.subr.bf16.mxu0 %v1152
  %2359 = vmatpush1.bf16.msra.mxu0 %v1151
  %2360 = vmatprep.subr.bf16.mxu0 %v1146
  %2361 = vmatpush1.bf16.msra.mxu0 %v1145
  %2362 = vmatprep.subr.bf16.mxu0 %v1140
  %2363 = vmatpush1.bf16.msra.mxu0 %v1139
  %2364 = vmatprep.subr.bf16.mxu0 %v1134
  %2365 = vmatpush1.bf16.msra.mxu0 %v1133
  %2366 = vmatprep.subr.bf16.mxu0 %v1128
  %2367 = vmatpush1.bf16.msra.mxu0 %v1127
  %2368 = vmatprep.subr.bf16.mxu0 %v1122
  %2369 = vmatpush1.bf16.msra.mxu0 %v1121
  %2370 = vmatprep.subr.bf16.mxu0 %v1116
  %2371 = vmatpush1.bf16.msra.mxu0 %v1115
  %2372 = vmatprep.subr.bf16.mxu0 %v1110
  %2373 = vmatpush1.bf16.msra.mxu0 %v1109
  %2374 = vmatprep.subr.bf16.mxu0 %v1200
  %2375 = vmatpush2.bf16.msra.mxu0 %v1199
  %2376 = vmatprep.subr.bf16.mxu0 %v1194
  %2377 = vmatpush2.bf16.msra.mxu0 %v1193
  %2378 = vmatprep.subr.bf16.mxu0 %v1188
  %2379 = vmatpush2.bf16.msra.mxu0 %v1187
  %2380 = vmatprep.subr.bf16.mxu0 %v1182
  %2381 = vmatpush2.bf16.msra.mxu0 %v1181
  %2382 = vmatprep.subr.bf16.mxu0 %v1176
  %2383 = vmatpush2.bf16.msra.mxu0 %v1175
  %2384 = vmatprep.subr.bf16.mxu0 %v1170
  %2385 = vmatpush2.bf16.msra.mxu0 %v1169
  %2386 = vmatprep.subr.bf16.mxu0 %v1164
  %2387 = vmatpush2.bf16.msra.mxu0 %v1163
  %2388 = vmatprep.subr.bf16.mxu0 %v1158
  %2389 = vmatpush2.bf16.msra.mxu0 %v1157
  %2390 = vmatprep.mubr.bf16.mxu0 %v148
  %2391 = vmatmul.mubr.bf16.gmra.mxu0 %v147
  %v2392 = vpop.f32.mrf.mxu0
  %v2393 = vadd.f32 %v2200, %v2392
  %v2394 = vpop.f32.mrf.mxu0
  %v2395 = vadd.f32 %v2202, %v2394
  %v2396 = vpop.f32.mrf.mxu0
  %v2397 = vadd.f32 %v2204, %v2396
  %v2398 = vpop.f32.mrf.mxu0
  %v2399 = vadd.f32 %v2206, %v2398
  %2400 = vmatprep.mubr.bf16.mxu0 %v152
  %2401 = vmatmul.mubr.bf16.gmra.mxu0 %v151
  %v2402 = vpop.f32.mrf.mxu0
  %v2403 = vadd.f32 %v2210, %v2402
  %v2404 = vpop.f32.mrf.mxu0
  %v2405 = vadd.f32 %v2212, %v2404
  %v2406 = vpop.f32.mrf.mxu0
  %v2407 = vadd.f32 %v2214, %v2406
  %v2408 = vpop.f32.mrf.mxu0
  %v2409 = vadd.f32 %v2216, %v2408
  %2410 = vmatprep.mubr.bf16.mxu0 %v156
  %2411 = vmatmul.mubr.bf16.gmra.mxu0 %v155
  %v2412 = vpop.f32.mrf.mxu0
  %v2413 = vadd.f32 %v2220, %v2412
  %v2414 = vpop.f32.mrf.mxu0
  %v2415 = vadd.f32 %v2222, %v2414
  %v2416 = vpop.f32.mrf.mxu0
  %v2417 = vadd.f32 %v2224, %v2416
  %v2418 = vpop.f32.mrf.mxu0
  %v2419 = vadd.f32 %v2226, %v2418
  %2420 = vmatprep.mubr.bf16.mxu0 %v160
  %2421 = vmatmul.mubr.bf16.gmra.mxu0 %v159
  %v2422 = vpop.f32.mrf.mxu0
  %v2423 = vadd.f32 %v2230, %v2422
  %v2424 = vpop.f32.mrf.mxu0
  %v2425 = vadd.f32 %v2232, %v2424
  %v2426 = vpop.f32.mrf.mxu0
  %v2427 = vadd.f32 %v2234, %v2426
  %v2428 = vpop.f32.mrf.mxu0
  %v2429 = vadd.f32 %v2236, %v2428
  %2430 = vmatprep.mubr.bf16.mxu0 %v164
  %2431 = vmatmul.mubr.bf16.gmra.mxu0 %v163
  %v2432 = vpop.f32.mrf.mxu0
  %v2433 = vadd.f32 %v2240, %v2432
  %v2434 = vpop.f32.mrf.mxu0
  %v2435 = vadd.f32 %v2242, %v2434
  %v2436 = vpop.f32.mrf.mxu0
  %v2437 = vadd.f32 %v2244, %v2436
  %v2438 = vpop.f32.mrf.mxu0
  %v2439 = vadd.f32 %v2246, %v2438
  %2440 = vmatprep.mubr.bf16.mxu0 %v168
  %2441 = vmatmul.mubr.bf16.gmra.mxu0 %v167
  %v2442 = vpop.f32.mrf.mxu0
  %v2443 = vadd.f32 %v2250, %v2442
  %v2444 = vpop.f32.mrf.mxu0
  %v2445 = vadd.f32 %v2252, %v2444
  %v2446 = vpop.f32.mrf.mxu0
  %v2447 = vadd.f32 %v2254, %v2446
  %v2448 = vpop.f32.mrf.mxu0
  %v2449 = vadd.f32 %v2256, %v2448
  %2450 = vmatprep.mubr.bf16.mxu0 %v172
  %2451 = vmatmul.mubr.bf16.gmra.mxu0 %v171
  %v2452 = vpop.f32.mrf.mxu0
  %v2453 = vadd.f32 %v2260, %v2452
  %v2454 = vpop.f32.mrf.mxu0
  %v2455 = vadd.f32 %v2262, %v2454
  %v2456 = vpop.f32.mrf.mxu0
  %v2457 = vadd.f32 %v2264, %v2456
  %v2458 = vpop.f32.mrf.mxu0
  %v2459 = vadd.f32 %v2266, %v2458
  %2460 = vmatprep.mubr.bf16.mxu0 %v176
  %2461 = vmatmul.mubr.bf16.gmra.mxu0 %v175
  %v2462 = vpop.f32.mrf.mxu0
  %v2463 = vadd.f32 %v2270, %v2462
  %v2464 = vpop.f32.mrf.mxu0
  %v2465 = vadd.f32 %v2272, %v2464
  %v2466 = vpop.f32.mrf.mxu0
  %v2467 = vadd.f32 %v2274, %v2466
  %v2468 = vpop.f32.mrf.mxu0
  %v2469 = vadd.f32 %v2276, %v2468
  %2470 = vmatprep.mubr.bf16.mxu0 %v180
  %2471 = vmatmul.mubr.bf16.gmra.mxu0 %v179
  %v2472 = vpop.f32.mrf.mxu0
  %v2473 = vadd.f32 %v2280, %v2472
  %v2474 = vpop.f32.mrf.mxu0
  %v2475 = vadd.f32 %v2282, %v2474
  %v2476 = vpop.f32.mrf.mxu0
  %v2477 = vadd.f32 %v2284, %v2476
  %v2478 = vpop.f32.mrf.mxu0
  %v2479 = vadd.f32 %v2286, %v2478
  %2480 = vmatprep.mubr.bf16.mxu0 %v184
  %2481 = vmatmul.mubr.bf16.gmra.mxu0 %v183
  %v2482 = vpop.f32.mrf.mxu0
  %v2483 = vadd.f32 %v2290, %v2482
  %v2484 = vpop.f32.mrf.mxu0
  %v2485 = vadd.f32 %v2292, %v2484
  %v2486 = vpop.f32.mrf.mxu0
  %v2487 = vadd.f32 %v2294, %v2486
  %v2488 = vpop.f32.mrf.mxu0
  %v2489 = vadd.f32 %v2296, %v2488
  %2490 = vmatprep.mubr.bf16.mxu0 %v188
  %2491 = vmatmul.mubr.bf16.gmra.mxu0 %v187
  %v2492 = vpop.f32.mrf.mxu0
  %v2493 = vadd.f32 %v2300, %v2492
  %v2494 = vpop.f32.mrf.mxu0
  %v2495 = vadd.f32 %v2302, %v2494
  %v2496 = vpop.f32.mrf.mxu0
  %v2497 = vadd.f32 %v2304, %v2496
  %v2498 = vpop.f32.mrf.mxu0
  %v2499 = vadd.f32 %v2306, %v2498
  %2500 = vmatprep.mubr.bf16.mxu0 %v192
  %2501 = vmatmul.mubr.bf16.gmra.mxu0 %v191
  %v2502 = vpop.f32.mrf.mxu0
  %v2503 = vadd.f32 %v2310, %v2502
  %v2504 = vpop.f32.mrf.mxu0
  %v2505 = vadd.f32 %v2312, %v2504
  %v2506 = vpop.f32.mrf.mxu0
  %v2507 = vadd.f32 %v2314, %v2506
  %v2508 = vpop.f32.mrf.mxu0
  %v2509 = vadd.f32 %v2316, %v2508
  %2510 = vmatprep.mubr.bf16.mxu0 %v196
  %2511 = vmatmul.mubr.bf16.gmra.mxu0 %v195
  %v2512 = vpop.f32.mrf.mxu0
  %v2513 = vadd.f32 %v2320, %v2512
  %v2514 = vpop.f32.mrf.mxu0
  %v2515 = vadd.f32 %v2322, %v2514
  %v2516 = vpop.f32.mrf.mxu0
  %v2517 = vadd.f32 %v2324, %v2516
  %v2518 = vpop.f32.mrf.mxu0
  %v2519 = vadd.f32 %v2326, %v2518
  %2520 = vmatprep.mubr.bf16.mxu0 %v200
  %2521 = vmatmul.mubr.bf16.gmra.mxu0 %v199
  %v2522 = vpop.f32.mrf.mxu0
  %v2523 = vadd.f32 %v2330, %v2522
  %v2524 = vpop.f32.mrf.mxu0
  %v2525 = vadd.f32 %v2332, %v2524
  %v2526 = vpop.f32.mrf.mxu0
  %v2527 = vadd.f32 %v2334, %v2526
  %v2528 = vpop.f32.mrf.mxu0
  %v2529 = vadd.f32 %v2336, %v2528
  %2530 = vmatprep.mubr.bf16.mxu0 %v204
  %2531 = vmatmul.mubr.bf16.gmra.mxu0 %v203
  %v2532 = vpop.f32.mrf.mxu0
  %v2533 = vadd.f32 %v2340, %v2532
  %v2534 = vpop.f32.mrf.mxu0
  %v2535 = vadd.f32 %v2342, %v2534
  %v2536 = vpop.f32.mrf.mxu0
  %v2537 = vadd.f32 %v2344, %v2536
  %v2538 = vpop.f32.mrf.mxu0
  %v2539 = vadd.f32 %v2346, %v2538
  %2540 = vmatprep.mubr.bf16.mxu0 %v208
  %2541 = vmatmul.mubr.bf16.gmra.mxu0 %v207
  %v2542 = vpop.f32.mrf.mxu0
  %v2543 = vadd.f32 %v2350, %v2542
  %v2544 = vpop.f32.mrf.mxu0
  %v2545 = vadd.f32 %v2352, %v2544
  %v2546 = vpop.f32.mrf.mxu0
  %v2547 = vadd.f32 %v2354, %v2546
  %v2548 = vpop.f32.mrf.mxu0
  %v2549 = vadd.f32 %v2356, %v2548
  %2550 = vdwg.mxu0
  %v2551 = vpack.c.bf16 %v1625, %v1621
  %v2552 = vpack.c.bf16 %v1627, %v1623
  %v2553 = vpack.c.bf16 %v2011, %v2007
  %v2554 = vpack.c.bf16 %v2013, %v2009
  %v2555 = vpack.c.bf16 %v1635, %v1631
  %v2556 = vpack.c.bf16 %v1637, %v1633
  %v2557 = vpack.c.bf16 %v2021, %v2017
  %v2558 = vpack.c.bf16 %v2023, %v2019
  %v2559 = vpack.c.bf16 %v1645, %v1641
  %v2560 = vpack.c.bf16 %v1647, %v1643
  %v2561 = vpack.c.bf16 %v2031, %v2027
  %v2562 = vpack.c.bf16 %v2033, %v2029
  %v2563 = vpack.c.bf16 %v1655, %v1651
  %v2564 = vpack.c.bf16 %v1657, %v1653
  %v2565 = vpack.c.bf16 %v2041, %v2037
  %v2566 = vpack.c.bf16 %v2043, %v2039
  %v2567 = vpack.c.bf16 %v1665, %v1661
  %v2568 = vpack.c.bf16 %v1667, %v1663
  %v2569 = vpack.c.bf16 %v2051, %v2047
  %v2570 = vpack.c.bf16 %v2053, %v2049
  %v2571 = vpack.c.bf16 %v1675, %v1671
  %v2572 = vpack.c.bf16 %v1677, %v1673
  %v2573 = vpack.c.bf16 %v2061, %v2057
  %v2574 = vpack.c.bf16 %v2063, %v2059
  %v2575 = vpack.c.bf16 %v1685, %v1681
  %v2576 = vpack.c.bf16 %v1687, %v1683
  %v2577 = vpack.c.bf16 %v2071, %v2067
  %v2578 = vpack.c.bf16 %v2073, %v2069
  %v2579 = vpack.c.bf16 %v1695, %v1691
  %v2580 = vpack.c.bf16 %v1697, %v1693
  %v2581 = vpack.c.bf16 %v2081, %v2077
  %v2582 = vpack.c.bf16 %v2083, %v2079
  %v2583 = vpack.c.bf16 %v1705, %v1701
  %v2584 = vpack.c.bf16 %v1707, %v1703
  %v2585 = vpack.c.bf16 %v2091, %v2087
  %v2586 = vpack.c.bf16 %v2093, %v2089
  %v2587 = vpack.c.bf16 %v1715, %v1711
  %v2588 = vpack.c.bf16 %v1717, %v1713
  %v2589 = vpack.c.bf16 %v2101, %v2097
  %v2590 = vpack.c.bf16 %v2103, %v2099
  %v2591 = vpack.c.bf16 %v1725, %v1721
  %v2592 = vpack.c.bf16 %v1727, %v1723
  %v2593 = vpack.c.bf16 %v2111, %v2107
  %v2594 = vpack.c.bf16 %v2113, %v2109
  %v2595 = vpack.c.bf16 %v1735, %v1731
  %v2596 = vpack.c.bf16 %v1737, %v1733
  %v2597 = vpack.c.bf16 %v2121, %v2117
  %v2598 = vpack.c.bf16 %v2123, %v2119
  %v2599 = vpack.c.bf16 %v1745, %v1741
  %v2600 = vpack.c.bf16 %v1747, %v1743
  %v2601 = vpack.c.bf16 %v2131, %v2127
  %v2602 = vpack.c.bf16 %v2133, %v2129
  %v2603 = vpack.c.bf16 %v1755, %v1751
  %v2604 = vpack.c.bf16 %v1757, %v1753
  %v2605 = vpack.c.bf16 %v2141, %v2137
  %v2606 = vpack.c.bf16 %v2143, %v2139
  %v2607 = vpack.c.bf16 %v1765, %v1761
  %v2608 = vpack.c.bf16 %v1767, %v1763
  %v2609 = vpack.c.bf16 %v2151, %v2147
  %v2610 = vpack.c.bf16 %v2153, %v2149
  %v2611 = vpack.c.bf16 %v1775, %v1771
  %v2612 = vpack.c.bf16 %v1777, %v1773
  %v2613 = vpack.c.bf16 %v2161, %v2157
  %v2614 = vpack.c.bf16 %v2163, %v2159
  %v2679 = vunpack.c.l.b16 %v2551
  %v2680 = vunpack.c.l.b16 %v2552
  %v2681 = vunpack.c.l.b16 %v2553
  %v2682 = vunpack.c.l.b16 %v2554
  %v2683 = vunpack.c.h.b16 %v2551
  %v2684 = vunpack.c.h.b16 %v2552
  %v2685 = vunpack.c.h.b16 %v2553
  %v2686 = vunpack.c.h.b16 %v2554
  %v2687 = vunpack.c.l.b16 %v2555
  %v2688 = vunpack.c.l.b16 %v2556
  %v2689 = vunpack.c.l.b16 %v2557
  %v2690 = vunpack.c.l.b16 %v2558
  %v2691 = vunpack.c.h.b16 %v2555
  %v2692 = vunpack.c.h.b16 %v2556
  %v2693 = vunpack.c.h.b16 %v2557
  %v2694 = vunpack.c.h.b16 %v2558
  %v2695 = vunpack.c.l.b16 %v2559
  %v2696 = vunpack.c.l.b16 %v2560
  %v2697 = vunpack.c.l.b16 %v2561
  %v2698 = vunpack.c.l.b16 %v2562
  %v2699 = vunpack.c.h.b16 %v2559
  %v2700 = vunpack.c.h.b16 %v2560
  %v2701 = vunpack.c.h.b16 %v2561
  %v2702 = vunpack.c.h.b16 %v2562
  %v2703 = vunpack.c.l.b16 %v2563
  %v2704 = vunpack.c.l.b16 %v2564
  %v2705 = vunpack.c.l.b16 %v2565
  %v2706 = vunpack.c.l.b16 %v2566
  %v2707 = vunpack.c.h.b16 %v2563
  %v2708 = vunpack.c.h.b16 %v2564
  %v2709 = vunpack.c.h.b16 %v2565
  %v2710 = vunpack.c.h.b16 %v2566
  %v2711 = vunpack.c.l.b16 %v2567
  %v2712 = vunpack.c.l.b16 %v2568
  %v2713 = vunpack.c.l.b16 %v2569
  %v2714 = vunpack.c.l.b16 %v2570
  %v2715 = vunpack.c.h.b16 %v2567
  %v2716 = vunpack.c.h.b16 %v2568
  %v2717 = vunpack.c.h.b16 %v2569
  %v2718 = vunpack.c.h.b16 %v2570
  %v2719 = vunpack.c.l.b16 %v2571
  %v2720 = vunpack.c.l.b16 %v2572
  %v2721 = vunpack.c.l.b16 %v2573
  %v2722 = vunpack.c.l.b16 %v2574
  %v2723 = vunpack.c.h.b16 %v2571
  %v2724 = vunpack.c.h.b16 %v2572
  %v2725 = vunpack.c.h.b16 %v2573
  %v2726 = vunpack.c.h.b16 %v2574
  %v2727 = vunpack.c.l.b16 %v2575
  %v2728 = vunpack.c.l.b16 %v2576
  %v2729 = vunpack.c.l.b16 %v2577
  %v2730 = vunpack.c.l.b16 %v2578
  %v2731 = vunpack.c.h.b16 %v2575
  %v2732 = vunpack.c.h.b16 %v2576
  %v2733 = vunpack.c.h.b16 %v2577
  %v2734 = vunpack.c.h.b16 %v2578
  %v2735 = vunpack.c.l.b16 %v2579
  %v2736 = vunpack.c.l.b16 %v2580
  %v2737 = vunpack.c.l.b16 %v2581
  %v2738 = vunpack.c.l.b16 %v2582
  %v2739 = vunpack.c.h.b16 %v2579
  %v2740 = vunpack.c.h.b16 %v2580
  %v2741 = vunpack.c.h.b16 %v2581
  %v2742 = vunpack.c.h.b16 %v2582
  %v2743 = vunpack.c.l.b16 %v2583
  %v2744 = vunpack.c.l.b16 %v2584
  %v2745 = vunpack.c.l.b16 %v2585
  %v2746 = vunpack.c.l.b16 %v2586
  %v2747 = vunpack.c.h.b16 %v2583
  %v2748 = vunpack.c.h.b16 %v2584
  %v2749 = vunpack.c.h.b16 %v2585
  %v2750 = vunpack.c.h.b16 %v2586
  %v2751 = vunpack.c.l.b16 %v2587
  %v2752 = vunpack.c.l.b16 %v2588
  %v2753 = vunpack.c.l.b16 %v2589
  %v2754 = vunpack.c.l.b16 %v2590
  %v2755 = vunpack.c.h.b16 %v2587
  %v2756 = vunpack.c.h.b16 %v2588
  %v2757 = vunpack.c.h.b16 %v2589
  %v2758 = vunpack.c.h.b16 %v2590
  %v2759 = vunpack.c.l.b16 %v2591
  %v2760 = vunpack.c.l.b16 %v2592
  %v2761 = vunpack.c.l.b16 %v2593
  %v2762 = vunpack.c.l.b16 %v2594
  %v2763 = vunpack.c.h.b16 %v2591
  %v2764 = vunpack.c.h.b16 %v2592
  %v2765 = vunpack.c.h.b16 %v2593
  %v2766 = vunpack.c.h.b16 %v2594
  %v2767 = vunpack.c.l.b16 %v2595
  %v2768 = vunpack.c.l.b16 %v2596
  %v2769 = vunpack.c.l.b16 %v2597
  %v2770 = vunpack.c.l.b16 %v2598
  %v2771 = vunpack.c.h.b16 %v2595
  %v2772 = vunpack.c.h.b16 %v2596
  %v2773 = vunpack.c.h.b16 %v2597
  %v2774 = vunpack.c.h.b16 %v2598
  %v2775 = vunpack.c.l.b16 %v2599
  %v2776 = vunpack.c.l.b16 %v2600
  %v2777 = vunpack.c.l.b16 %v2601
  %v2778 = vunpack.c.l.b16 %v2602
  %v2779 = vunpack.c.h.b16 %v2599
  %v2780 = vunpack.c.h.b16 %v2600
  %v2781 = vunpack.c.h.b16 %v2601
  %v2782 = vunpack.c.h.b16 %v2602
  %v2783 = vunpack.c.l.b16 %v2603
  %v2784 = vunpack.c.l.b16 %v2604
  %v2785 = vunpack.c.l.b16 %v2605
  %v2786 = vunpack.c.l.b16 %v2606
  %v2787 = vunpack.c.h.b16 %v2603
  %v2788 = vunpack.c.h.b16 %v2604
  %v2789 = vunpack.c.h.b16 %v2605
  %v2790 = vunpack.c.h.b16 %v2606
  %v2791 = vunpack.c.l.b16 %v2607
  %v2792 = vunpack.c.l.b16 %v2608
  %v2793 = vunpack.c.l.b16 %v2609
  %v2794 = vunpack.c.l.b16 %v2610
  %v2795 = vunpack.c.h.b16 %v2607
  %v2796 = vunpack.c.h.b16 %v2608
  %v2797 = vunpack.c.h.b16 %v2609
  %v2798 = vunpack.c.h.b16 %v2610
  %v2799 = vunpack.c.l.b16 %v2611
  %v2800 = vunpack.c.l.b16 %v2612
  %v2801 = vunpack.c.l.b16 %v2613
  %v2802 = vunpack.c.l.b16 %v2614
  %v2803 = vunpack.c.h.b16 %v2611
  %v2804 = vunpack.c.h.b16 %v2612
  %v2805 = vunpack.c.h.b16 %v2613
  %v2806 = vunpack.c.h.b16 %v2614
  %v2807 = vpack.c.b16 %v2680, %v2679
  %v2808 = vpack.c.b16 %v2682, %v2681
  %v2809 = vpack.c.b16 %v2684, %v2683
  %v2810 = vpack.c.b16 %v2686, %v2685
  %v2811 = vpack.c.b16 %v2688, %v2687
  %v2812 = vpack.c.b16 %v2690, %v2689
  %v2813 = vpack.c.b16 %v2692, %v2691
  %v2814 = vpack.c.b16 %v2694, %v2693
  %v2815 = vpack.c.b16 %v2696, %v2695
  %v2816 = vpack.c.b16 %v2698, %v2697
  %v2817 = vpack.c.b16 %v2700, %v2699
  %v2818 = vpack.c.b16 %v2702, %v2701
  %v2819 = vpack.c.b16 %v2704, %v2703
  %v2820 = vpack.c.b16 %v2706, %v2705
  %v2821 = vpack.c.b16 %v2708, %v2707
  %v2822 = vpack.c.b16 %v2710, %v2709
  %v2823 = vpack.c.b16 %v2712, %v2711
  %v2824 = vpack.c.b16 %v2714, %v2713
  %v2825 = vpack.c.b16 %v2716, %v2715
  %v2826 = vpack.c.b16 %v2718, %v2717
  %v2827 = vpack.c.b16 %v2720, %v2719
  %v2828 = vpack.c.b16 %v2722, %v2721
  %v2829 = vpack.c.b16 %v2724, %v2723
  %v2830 = vpack.c.b16 %v2726, %v2725
  %v2831 = vpack.c.b16 %v2728, %v2727
  %v2832 = vpack.c.b16 %v2730, %v2729
  %v2833 = vpack.c.b16 %v2732, %v2731
  %v2834 = vpack.c.b16 %v2734, %v2733
  %v2835 = vpack.c.b16 %v2736, %v2735
  %v2836 = vpack.c.b16 %v2738, %v2737
  %v2837 = vpack.c.b16 %v2740, %v2739
  %v2838 = vpack.c.b16 %v2742, %v2741
  %v2839 = vpack.c.b16 %v2744, %v2743
  %v2840 = vpack.c.b16 %v2746, %v2745
  %v2841 = vpack.c.b16 %v2748, %v2747
  %v2842 = vpack.c.b16 %v2750, %v2749
  %v2843 = vpack.c.b16 %v2752, %v2751
  %v2844 = vpack.c.b16 %v2754, %v2753
  %v2845 = vpack.c.b16 %v2756, %v2755
  %v2846 = vpack.c.b16 %v2758, %v2757
  %v2847 = vpack.c.b16 %v2760, %v2759
  %v2848 = vpack.c.b16 %v2762, %v2761
  %v2849 = vpack.c.b16 %v2764, %v2763
  %v2850 = vpack.c.b16 %v2766, %v2765
  %v2851 = vpack.c.b16 %v2768, %v2767
  %v2852 = vpack.c.b16 %v2770, %v2769
  %v2853 = vpack.c.b16 %v2772, %v2771
  %v2854 = vpack.c.b16 %v2774, %v2773
  %v2855 = vpack.c.b16 %v2776, %v2775
  %v2856 = vpack.c.b16 %v2778, %v2777
  %v2857 = vpack.c.b16 %v2780, %v2779
  %v2858 = vpack.c.b16 %v2782, %v2781
  %v2859 = vpack.c.b16 %v2784, %v2783
  %v2860 = vpack.c.b16 %v2786, %v2785
  %v2861 = vpack.c.b16 %v2788, %v2787
  %v2862 = vpack.c.b16 %v2790, %v2789
  %v2863 = vpack.c.b16 %v2792, %v2791
  %v2864 = vpack.c.b16 %v2794, %v2793
  %v2865 = vpack.c.b16 %v2796, %v2795
  %v2866 = vpack.c.b16 %v2798, %v2797
  %v2867 = vpack.c.b16 %v2800, %v2799
  %v2868 = vpack.c.b16 %v2802, %v2801
  %v2869 = vpack.c.b16 %v2804, %v2803
  %v2870 = vpack.c.b16 %v2806, %v2805
  %2935 = vst [vmem:[%s3] sm:$0xff] %v2807
  %2936 = vst [vmem:[%s3 + $0x8] sm:$0xff] %v2808
  %2937 = vst [vmem:[%s3 + $0x10] sm:$0xff] %v2809
  %2938 = vst [vmem:[%s3 + $0x18] sm:$0xff] %v2810
  %2939 = vst [vmem:[%s3 + $0x20] sm:$0xff] %v2811
  %2940 = vst [vmem:[%s3 + $0x28] sm:$0xff] %v2812
  %2941 = vst [vmem:[%s3 + $0x30] sm:$0xff] %v2813
  %2942 = vst [vmem:[%s3 + $0x38] sm:$0xff] %v2814
  %2943 = vst [vmem:[%s3 + $0x40] sm:$0xff] %v2815
  %2944 = vst [vmem:[%s3 + $0x48] sm:$0xff] %v2816
  %2945 = vst [vmem:[%s3 + $0x50] sm:$0xff] %v2817
  %2946 = vst [vmem:[%s3 + $0x58] sm:$0xff] %v2818
  %2947 = vst [vmem:[%s3 + $0x60] sm:$0xff] %v2819
  %2948 = vst [vmem:[%s3 + $0x68] sm:$0xff] %v2820
  %2949 = vst [vmem:[%s3 + $0x70] sm:$0xff] %v2821
  %2950 = vst [vmem:[%s3 + $0x78] sm:$0xff] %v2822
  %2951 = vst [vmem:[%s3 + $0x80] sm:$0xff] %v2823
  %2952 = vst [vmem:[%s3 + $0x88] sm:$0xff] %v2824
  %2953 = vst [vmem:[%s3 + $0x90] sm:$0xff] %v2825
  %2954 = vst [vmem:[%s3 + $0x98] sm:$0xff] %v2826
  %2955 = vst [vmem:[%s3 + $0xa0] sm:$0xff] %v2827
  %2956 = vst [vmem:[%s3 + $0xa8] sm:$0xff] %v2828
  %2957 = vst [vmem:[%s3 + $0xb0] sm:$0xff] %v2829
  %2958 = vst [vmem:[%s3 + $0xb8] sm:$0xff] %v2830
  %2959 = vst [vmem:[%s3 + $0xc0] sm:$0xff] %v2831
  %2960 = vst [vmem:[%s3 + $0xc8] sm:$0xff] %v2832
  %2961 = vst [vmem:[%s3 + $0xd0] sm:$0xff] %v2833
  %2962 = vst [vmem:[%s3 + $0xd8] sm:$0xff] %v2834
  %2963 = vst [vmem:[%s3 + $0xe0] sm:$0xff] %v2835
  %2964 = vst [vmem:[%s3 + $0xe8] sm:$0xff] %v2836
  %2965 = vst [vmem:[%s3 + $0xf0] sm:$0xff] %v2837
  %2966 = vst [vmem:[%s3 + $0xf8] sm:$0xff] %v2838
  %2967 = vst [vmem:[%s3 + $0x100] sm:$0xff] %v2839
  %2968 = vst [vmem:[%s3 + $0x108] sm:$0xff] %v2840
  %2969 = vst [vmem:[%s3 + $0x110] sm:$0xff] %v2841
  %2970 = vst [vmem:[%s3 + $0x118] sm:$0xff] %v2842
  %2971 = vst [vmem:[%s3 + $0x120] sm:$0xff] %v2843
  %2972 = vst [vmem:[%s3 + $0x128] sm:$0xff] %v2844
  %2973 = vst [vmem:[%s3 + $0x130] sm:$0xff] %v2845
  %2974 = vst [vmem:[%s3 + $0x138] sm:$0xff] %v2846
  %2975 = vst [vmem:[%s3 + $0x140] sm:$0xff] %v2847
  %2976 = vst [vmem:[%s3 + $0x148] sm:$0xff] %v2848
  %2977 = vst [vmem:[%s3 + $0x150] sm:$0xff] %v2849
  %2978 = vst [vmem:[%s3 + $0x158] sm:$0xff] %v2850
  %2979 = vst [vmem:[%s3 + $0x160] sm:$0xff] %v2851
  %2980 = vst [vmem:[%s3 + $0x168] sm:$0xff] %v2852
  %2981 = vst [vmem:[%s3 + $0x170] sm:$0xff] %v2853
  %2982 = vst [vmem:[%s3 + $0x178] sm:$0xff] %v2854
  %2983 = vst [vmem:[%s3 + $0x180] sm:$0xff] %v2855
  %2984 = vst [vmem:[%s3 + $0x188] sm:$0xff] %v2856
  %2985 = vst [vmem:[%s3 + $0x190] sm:$0xff] %v2857
  %2986 = vst [vmem:[%s3 + $0x198] sm:$0xff] %v2858
  %2987 = vst [vmem:[%s3 + $0x1a0] sm:$0xff] %v2859
  %2988 = vst [vmem:[%s3 + $0x1a8] sm:$0xff] %v2860
  %2989 = vst [vmem:[%s3 + $0x1b0] sm:$0xff] %v2861
  %2990 = vst [vmem:[%s3 + $0x1b8] sm:$0xff] %v2862
  %2991 = vst [vmem:[%s3 + $0x1c0] sm:$0xff] %v2863
  %2992 = vst [vmem:[%s3 + $0x1c8] sm:$0xff] %v2864
  %2993 = vst [vmem:[%s3 + $0x1d0] sm:$0xff] %v2865
  %2994 = vst [vmem:[%s3 + $0x1d8] sm:$0xff] %v2866
  %2995 = vst [vmem:[%s3 + $0x1e0] sm:$0xff] %v2867
  %2996 = vst [vmem:[%s3 + $0x1e8] sm:$0xff] %v2868
  %2997 = vst [vmem:[%s3 + $0x1f0] sm:$0xff] %v2869
  %2998 = vst [vmem:[%s3 + $0x1f8] sm:$0xff] %v2870
  %v2999 = vpack.c.bf16 %v2397, %v2393
  %v3000 = vpack.c.bf16 %v2407, %v2403
  %v3001 = vpack.c.bf16 %v2417, %v2413
  %v3002 = vpack.c.bf16 %v2427, %v2423
  %v3003 = vpack.c.bf16 %v2437, %v2433
  %v3004 = vpack.c.bf16 %v2447, %v2443
  %v3005 = vpack.c.bf16 %v2457, %v2453
  %v3006 = vpack.c.bf16 %v2467, %v2463
  %v3007 = vpack.c.bf16 %v2477, %v2473
  %v3008 = vpack.c.bf16 %v2487, %v2483
  %v3009 = vpack.c.bf16 %v2497, %v2493
  %v3010 = vpack.c.bf16 %v2507, %v2503
  %v3011 = vpack.c.bf16 %v2517, %v2513
  %v3012 = vpack.c.bf16 %v2527, %v2523
  %v3013 = vpack.c.bf16 %v2537, %v2533
  %v3014 = vpack.c.bf16 %v2547, %v2543
  %v3031 = vunpack.c.l.b16 %v2999
  %v3032 = vunpack.c.h.b16 %v2999
  %v3033 = vunpack.c.l.b16 %v3000
  %v3034 = vunpack.c.h.b16 %v3000
  %v3035 = vunpack.c.l.b16 %v3001
  %v3036 = vunpack.c.h.b16 %v3001
  %v3037 = vunpack.c.l.b16 %v3002
  %v3038 = vunpack.c.h.b16 %v3002
  %v3039 = vunpack.c.l.b16 %v3003
  %v3040 = vunpack.c.h.b16 %v3003
  %v3041 = vunpack.c.l.b16 %v3004
  %v3042 = vunpack.c.h.b16 %v3004
  %v3043 = vunpack.c.l.b16 %v3005
  %v3044 = vunpack.c.h.b16 %v3005
  %v3045 = vunpack.c.l.b16 %v3006
  %v3046 = vunpack.c.h.b16 %v3006
  %v3047 = vunpack.c.l.b16 %v3007
  %v3048 = vunpack.c.h.b16 %v3007
  %v3049 = vunpack.c.l.b16 %v3008
  %v3050 = vunpack.c.h.b16 %v3008
  %v3051 = vunpack.c.l.b16 %v3009
  %v3052 = vunpack.c.h.b16 %v3009
  %v3053 = vunpack.c.l.b16 %v3010
  %v3054 = vunpack.c.h.b16 %v3010
  %v3055 = vunpack.c.l.b16 %v3011
  %v3056 = vunpack.c.h.b16 %v3011
  %v3057 = vunpack.c.l.b16 %v3012
  %v3058 = vunpack.c.h.b16 %v3012
  %v3059 = vunpack.c.l.b16 %v3013
  %v3060 = vunpack.c.h.b16 %v3013
  %v3061 = vunpack.c.l.b16 %v3014
  %v3062 = vunpack.c.h.b16 %v3014
  %v3063 = vpack.c.b16 %v3031, %v3031
  %v3064 = vpack.c.b16 %v3032, %v3032
  %v3065 = vpack.c.b16 %v3033, %v3033
  %v3066 = vpack.c.b16 %v3034, %v3034
  %v3067 = vpack.c.b16 %v3035, %v3035
  %v3068 = vpack.c.b16 %v3036, %v3036
  %v3069 = vpack.c.b16 %v3037, %v3037
  %v3070 = vpack.c.b16 %v3038, %v3038
  %v3071 = vpack.c.b16 %v3039, %v3039
  %v3072 = vpack.c.b16 %v3040, %v3040
  %v3073 = vpack.c.b16 %v3041, %v3041
  %v3074 = vpack.c.b16 %v3042, %v3042
  %v3075 = vpack.c.b16 %v3043, %v3043
  %v3076 = vpack.c.b16 %v3044, %v3044
  %v3077 = vpack.c.b16 %v3045, %v3045
  %v3078 = vpack.c.b16 %v3046, %v3046
  %v3079 = vpack.c.b16 %v3047, %v3047
  %v3080 = vpack.c.b16 %v3048, %v3048
  %v3081 = vpack.c.b16 %v3049, %v3049
  %v3082 = vpack.c.b16 %v3050, %v3050
  %v3083 = vpack.c.b16 %v3051, %v3051
  %v3084 = vpack.c.b16 %v3052, %v3052
  %v3085 = vpack.c.b16 %v3053, %v3053
  %v3086 = vpack.c.b16 %v3054, %v3054
  %v3087 = vpack.c.b16 %v3055, %v3055
  %v3088 = vpack.c.b16 %v3056, %v3056
  %v3089 = vpack.c.b16 %v3057, %v3057
  %v3090 = vpack.c.b16 %v3058, %v3058
  %v3091 = vpack.c.b16 %v3059, %v3059
  %v3092 = vpack.c.b16 %v3060, %v3060
  %v3093 = vpack.c.b16 %v3061, %v3061
  %v3094 = vpack.c.b16 %v3062, %v3062
  %3127 = vst [vmem:[%s4] sm:$0xf] %v3063
  %3128 = vst [vmem:[%s4 + $0x4] sm:$0xf] %v3064
  %3129 = vst [vmem:[%s4 + $0x8] sm:$0xf] %v3065
  %3130 = vst [vmem:[%s4 + $0xc] sm:$0xf] %v3066
  %3131 = vst [vmem:[%s4 + $0x10] sm:$0xf] %v3067
  %3132 = vst [vmem:[%s4 + $0x14] sm:$0xf] %v3068
  %3133 = vst [vmem:[%s4 + $0x18] sm:$0xf] %v3069
  %3134 = vst [vmem:[%s4 + $0x1c] sm:$0xf] %v3070
  %3135 = vst [vmem:[%s4 + $0x20] sm:$0xf] %v3071
  %3136 = vst [vmem:[%s4 + $0x24] sm:$0xf] %v3072
  %3137 = vst [vmem:[%s4 + $0x28] sm:$0xf] %v3073
  %3138 = vst [vmem:[%s4 + $0x2c] sm:$0xf] %v3074
  %3139 = vst [vmem:[%s4 + $0x30] sm:$0xf] %v3075
  %3140 = vst [vmem:[%s4 + $0x34] sm:$0xf] %v3076
  %3141 = vst [vmem:[%s4 + $0x38] sm:$0xf] %v3077
  %3142 = vst [vmem:[%s4 + $0x3c] sm:$0xf] %v3078
  %3143 = vst [vmem:[%s4 + $0x40] sm:$0xf] %v3079
  %3144 = vst [vmem:[%s4 + $0x44] sm:$0xf] %v3080
  %3145 = vst [vmem:[%s4 + $0x48] sm:$0xf] %v3081
  %3146 = vst [vmem:[%s4 + $0x4c] sm:$0xf] %v3082
  %3147 = vst [vmem:[%s4 + $0x50] sm:$0xf] %v3083
  %3148 = vst [vmem:[%s4 + $0x54] sm:$0xf] %v3084
  %3149 = vst [vmem:[%s4 + $0x58] sm:$0xf] %v3085
  %3150 = vst [vmem:[%s4 + $0x5c] sm:$0xf] %v3086
  %3151 = vst [vmem:[%s4 + $0x60] sm:$0xf] %v3087
  %3152 = vst [vmem:[%s4 + $0x64] sm:$0xf] %v3088
  %3153 = vst [vmem:[%s4 + $0x68] sm:$0xf] %v3089
  %3154 = vst [vmem:[%s4 + $0x6c] sm:$0xf] %v3090
  %3155 = vst [vmem:[%s4 + $0x70] sm:$0xf] %v3091
  %3156 = vst [vmem:[%s4 + $0x74] sm:$0xf] %v3092
  %3157 = vst [vmem:[%s4 + $0x78] sm:$0xf] %v3093
  %3158 = vst [vmem:[%s4 + $0x7c] sm:$0xf] %v3094
  %v3159 = vpack.c.bf16 %v2399, %v2395
  %v3160 = vpack.c.bf16 %v2409, %v2405
  %v3161 = vpack.c.bf16 %v2419, %v2415
  %v3162 = vpack.c.bf16 %v2429, %v2425
  %v3163 = vpack.c.bf16 %v2439, %v2435
  %v3164 = vpack.c.bf16 %v2449, %v2445
  %v3165 = vpack.c.bf16 %v2459, %v2455
  %v3166 = vpack.c.bf16 %v2469, %v2465
  %v3167 = vpack.c.bf16 %v2479, %v2475
  %v3168 = vpack.c.bf16 %v2489, %v2485
  %v3169 = vpack.c.bf16 %v2499, %v2495
  %v3170 = vpack.c.bf16 %v2509, %v2505
  %v3171 = vpack.c.bf16 %v2519, %v2515
  %v3172 = vpack.c.bf16 %v2529, %v2525
  %v3173 = vpack.c.bf16 %v2539, %v2535
  %v3174 = vpack.c.bf16 %v2549, %v2545
  %v3191 = vunpack.c.l.b16 %v3159
  %v3192 = vunpack.c.h.b16 %v3159
  %v3193 = vunpack.c.l.b16 %v3160
  %v3194 = vunpack.c.h.b16 %v3160
  %v3195 = vunpack.c.l.b16 %v3161
  %v3196 = vunpack.c.h.b16 %v3161
  %v3197 = vunpack.c.l.b16 %v3162
  %v3198 = vunpack.c.h.b16 %v3162
  %v3199 = vunpack.c.l.b16 %v3163
  %v3200 = vunpack.c.h.b16 %v3163
  %v3201 = vunpack.c.l.b16 %v3164
  %v3202 = vunpack.c.h.b16 %v3164
  %v3203 = vunpack.c.l.b16 %v3165
  %v3204 = vunpack.c.h.b16 %v3165
  %v3205 = vunpack.c.l.b16 %v3166
  %v3206 = vunpack.c.h.b16 %v3166
  %v3207 = vunpack.c.l.b16 %v3167
  %v3208 = vunpack.c.h.b16 %v3167
  %v3209 = vunpack.c.l.b16 %v3168
  %v3210 = vunpack.c.h.b16 %v3168
  %v3211 = vunpack.c.l.b16 %v3169
  %v3212 = vunpack.c.h.b16 %v3169
  %v3213 = vunpack.c.l.b16 %v3170
  %v3214 = vunpack.c.h.b16 %v3170
  %v3215 = vunpack.c.l.b16 %v3171
  %v3216 = vunpack.c.h.b16 %v3171
  %v3217 = vunpack.c.l.b16 %v3172
  %v3218 = vunpack.c.h.b16 %v3172
  %v3219 = vunpack.c.l.b16 %v3173
  %v3220 = vunpack.c.h.b16 %v3173
  %v3221 = vunpack.c.l.b16 %v3174
  %v3222 = vunpack.c.h.b16 %v3174
  %v3223 = vpack.c.b16 %v3191, %v3191
  %v3224 = vpack.c.b16 %v3192, %v3192
  %v3225 = vpack.c.b16 %v3193, %v3193
  %v3226 = vpack.c.b16 %v3194, %v3194
  %v3227 = vpack.c.b16 %v3195, %v3195
  %v3228 = vpack.c.b16 %v3196, %v3196
  %v3229 = vpack.c.b16 %v3197, %v3197
  %v3230 = vpack.c.b16 %v3198, %v3198
  %v3231 = vpack.c.b16 %v3199, %v3199
  %v3232 = vpack.c.b16 %v3200, %v3200
  %v3233 = vpack.c.b16 %v3201, %v3201
  %v3234 = vpack.c.b16 %v3202, %v3202
  %v3235 = vpack.c.b16 %v3203, %v3203
  %v3236 = vpack.c.b16 %v3204, %v3204
  %v3237 = vpack.c.b16 %v3205, %v3205
  %v3238 = vpack.c.b16 %v3206, %v3206
  %v3239 = vpack.c.b16 %v3207, %v3207
  %v3240 = vpack.c.b16 %v3208, %v3208
  %v3241 = vpack.c.b16 %v3209, %v3209
  %v3242 = vpack.c.b16 %v3210, %v3210
  %v3243 = vpack.c.b16 %v3211, %v3211
  %v3244 = vpack.c.b16 %v3212, %v3212
  %v3245 = vpack.c.b16 %v3213, %v3213
  %v3246 = vpack.c.b16 %v3214, %v3214
  %v3247 = vpack.c.b16 %v3215, %v3215
  %v3248 = vpack.c.b16 %v3216, %v3216
  %v3249 = vpack.c.b16 %v3217, %v3217
  %v3250 = vpack.c.b16 %v3218, %v3218
  %v3251 = vpack.c.b16 %v3219, %v3219
  %v3252 = vpack.c.b16 %v3220, %v3220
  %v3253 = vpack.c.b16 %v3221, %v3221
  %v3254 = vpack.c.b16 %v3222, %v3222
  %3287 = vst [vmem:[%s5] sm:$0xf] %v3223
  %3288 = vst [vmem:[%s5 + $0x4] sm:$0xf] %v3224
  %3289 = vst [vmem:[%s5 + $0x8] sm:$0xf] %v3225
  %3290 = vst [vmem:[%s5 + $0xc] sm:$0xf] %v3226
  %3291 = vst [vmem:[%s5 + $0x10] sm:$0xf] %v3227
  %3292 = vst [vmem:[%s5 + $0x14] sm:$0xf] %v3228
  %3293 = vst [vmem:[%s5 + $0x18] sm:$0xf] %v3229
  %3294 = vst [vmem:[%s5 + $0x1c] sm:$0xf] %v3230
  %3295 = vst [vmem:[%s5 + $0x20] sm:$0xf] %v3231
  %3296 = vst [vmem:[%s5 + $0x24] sm:$0xf] %v3232
  %3297 = vst [vmem:[%s5 + $0x28] sm:$0xf] %v3233
  %3298 = vst [vmem:[%s5 + $0x2c] sm:$0xf] %v3234
  %3299 = vst [vmem:[%s5 + $0x30] sm:$0xf] %v3235
  %3300 = vst [vmem:[%s5 + $0x34] sm:$0xf] %v3236
  %3301 = vst [vmem:[%s5 + $0x38] sm:$0xf] %v3237
  %3302 = vst [vmem:[%s5 + $0x3c] sm:$0xf] %v3238
  %3303 = vst [vmem:[%s5 + $0x40] sm:$0xf] %v3239
  %3304 = vst [vmem:[%s5 + $0x44] sm:$0xf] %v3240
  %3305 = vst [vmem:[%s5 + $0x48] sm:$0xf] %v3241
  %3306 = vst [vmem:[%s5 + $0x4c] sm:$0xf] %v3242
  %3307 = vst [vmem:[%s5 + $0x50] sm:$0xf] %v3243
  %3308 = vst [vmem:[%s5 + $0x54] sm:$0xf] %v3244
  %3309 = vst [vmem:[%s5 + $0x58] sm:$0xf] %v3245
  %3310 = vst [vmem:[%s5 + $0x5c] sm:$0xf] %v3246
  %3311 = vst [vmem:[%s5 + $0x60] sm:$0xf] %v3247
  %3312 = vst [vmem:[%s5 + $0x64] sm:$0xf] %v3248
  %3313 = vst [vmem:[%s5 + $0x68] sm:$0xf] %v3249
  %3314 = vst [vmem:[%s5 + $0x6c] sm:$0xf] %v3250
  %3315 = vst [vmem:[%s5 + $0x70] sm:$0xf] %v3251
  %3316 = vst [vmem:[%s5 + $0x74] sm:$0xf] %v3252
  %3317 = vst [vmem:[%s5 + $0x78] sm:$0xf] %v3253
  %3318 = vst [vmem:[%s5 + $0x7c] sm:$0xf] %v3254
  // Predicated region
  $region14: #{gqa_forward.3} parent=0 // pred_check
    _
  $region15: #{gqa_forward.3} parent=0 // pred_check_branch
    %3320 = sbr.rel (0) target = $region17
  $region16: #{gqa_forward.3} parent=0 // pred_region
    _
  $region17: #{gqa_forward.3} parent=0 // pred_fallthru
    _
  // Predicated region
  $region18: #{gqa_forward.3} parent=0 // pred_check
    _
  $region19: #{gqa_forward.3} parent=0 // pred_check_branch
    %3322 = sbr.rel (0) target = $region21
  $region20: #{gqa_forward.3} parent=0 // pred_region
    _
  $region21: #{gqa_forward.3} parent=0 // pred_fallthru
    _
  // Predicated region
  $region22: #{gqa_forward.3} parent=0 // pred_check
    _
  $region23: #{gqa_forward.3} parent=0 // pred_check_branch
    %3324 = sbr.rel (0) target = $region25
  $region24: #{gqa_forward.3} parent=0 // pred_region
    _
  $region25: #{gqa_forward.3} parent=0 // pred_fallthru
    _
  // Predicated region
  $region26: #{gqa_forward.3} parent=0 // pred_check
    _
  $region27: #{gqa_forward.3} parent=0 // pred_check_branch
    %3326 = sbr.rel (0) target = $region29
  $region28: #{gqa_forward.3} parent=0 // pred_region
    _
  $region29: #{gqa_forward.3} parent=0 // pred_fallthru
    _
  // Predicated region
  $region30: #{gqa_forward.3} parent=0 // pred_check
    _
  $region31: #{gqa_forward.3} parent=0 // pred_check_branch
    %3328 = sbr.rel (0) target = $region33
  $region32: #{gqa_forward.3} parent=0 // pred_region
    _
  $region33: #{gqa_forward.3} parent=0 // pred_fallthru
    _
  // Predicated region
  $region34: #{gqa_forward.3} parent=0 // pred_check
    _
  $region35: #{gqa_forward.3} parent=0 // pred_check_branch
    %3330 = sbr.rel (0) target = $region37
  $region36: #{gqa_forward.3} parent=0 // pred_region
    _
  $region37: #{gqa_forward.3} parent=0 // pred_fallthru
    _

// kernel: gqa_forward.5
$region0: #{gqa_forward.5}
  #allocation0 [shape = 'u32[]', space=smem, size = 0x4, offset = 0x4, fixed_abs, tag = 'smem constant byte address 0x4 - core index']
  #allocation1 [shape = 'u32[144,128]{1,0:T(1,128)}', space=vmem, size = 0x12000, scoped, tag = 'internal scratch']
  %s0 = inlined_call_operand.vmem [shape: bf16[256,512], index: 0, kind: input, shape index: {}]
  %s1 = inlined_call_operand.vmem [shape: bf16[512,512], index: 1, kind: input, shape index: {}]
  %s2 = inlined_call_operand.vmem [shape: f32[1,512], index: 2, kind: input, shape index: {}]
  %s3 = inlined_call_operand.hbm [shape: f32[256,512], index: 3, kind: output, shape index: {}]
  %s4 = sld [smem:[#allocation0]]
  $region22: #{gqa_forward.5} parent=0
    _
  %s6 = ssub.s32 1, %s4
  %s7 = scalar_select 0, %s6, %s4
  $region1: #{gqa_forward.5} parent=0
    #allocation2 [shape = 'u8[524288]{0}', space=vmem, size = 0x80000, scoped, tag = 'output window, operand 0, single buffered']
    #allocation3 [shape = 's32[1]{0}', space=sflag, size = 0x4, scoped, tag = 'scoped memory for gqa_forward.5']
    %8 = vsyncpa [#allocation3], 0
    // Predicated region
    $region2: #{gqa_forward.5} parent=1 // pred_check
      _
    $region3: #{gqa_forward.5} parent=1 // pred_check_branch
      %10 = sbr.rel (0) target = $region5
    $region4: #{gqa_forward.5} parent=1 // pred_region
      _
    $region5: #{gqa_forward.5} parent=1 // pred_fallthru
      _
    // Predicated region
    $region6: #{gqa_forward.5} parent=1 // pred_check
      _
    $region7: #{gqa_forward.5} parent=1 // pred_check_branch
      %12 = sbr.rel (0) target = $region9
    $region8: #{gqa_forward.5} parent=1 // pred_region
      _
    $region9: #{gqa_forward.5} parent=1 // pred_fallthru
      _
    // Predicated region
    $region10: #{gqa_forward.5} parent=1 // pred_check
      _
    $region11: #{gqa_forward.5} parent=1 // pred_check_branch
      %14 = sbr.rel (0) target = $region13
    $region12: #{gqa_forward.5} parent=1 // pred_region
      _
    $region13: #{gqa_forward.5} parent=1 // pred_fallthru
      _
    %v15 = vld [vmem:[%s0] sm:$0xff]
    %v16 = vld [vmem:[%s0 + $0x8] sm:$0xff]
    %v17 = vld [vmem:[%s0 + $0x10] sm:$0xff]
    %v18 = vld [vmem:[%s0 + $0x18] sm:$0xff]
    %v19 = vld [vmem:[%s0 + $0x20] sm:$0xff]
    %v20 = vld [vmem:[%s0 + $0x28] sm:$0xff]
    %v21 = vld [vmem:[%s0 + $0x30] sm:$0xff]
    %v22 = vld [vmem:[%s0 + $0x38] sm:$0xff]
    %v23 = vld [vmem:[%s0 + $0x40] sm:$0xff]
    %v24 = vld [vmem:[%s0 + $0x48] sm:$0xff]
    %v25 = vld [vmem:[%s0 + $0x50] sm:$0xff]
    %v26 = vld [vmem:[%s0 + $0x58] sm:$0xff]
    %v27 = vld [vmem:[%s0 + $0x60] sm:$0xff]
    %v28 = vld [vmem:[%s0 + $0x68] sm:$0xff]
    %v29 = vld [vmem:[%s0 + $0x70] sm:$0xff]
    %v30 = vld [vmem:[%s0 + $0x78] sm:$0xff]
    %v31 = vld [vmem:[%s0 + $0x80] sm:$0xff]
    %v32 = vld [vmem:[%s0 + $0x88] sm:$0xff]
    %v33 = vld [vmem:[%s0 + $0x90] sm:$0xff]
    %v34 = vld [vmem:[%s0 + $0x98] sm:$0xff]
    %v35 = vld [vmem:[%s0 + $0xa0] sm:$0xff]
    %v36 = vld [vmem:[%s0 + $0xa8] sm:$0xff]
    %v37 = vld [vmem:[%s0 + $0xb0] sm:$0xff]
    %v38 = vld [vmem:[%s0 + $0xb8] sm:$0xff]
    %v39 = vld [vmem:[%s0 + $0xc0] sm:$0xff]
    %v40 = vld [vmem:[%s0 + $0xc8] sm:$0xff]
    %v41 = vld [vmem:[%s0 + $0xd0] sm:$0xff]
    %v42 = vld [vmem:[%s0 + $0xd8] sm:$0xff]
    %v43 = vld [vmem:[%s0 + $0xe0] sm:$0xff]
    %v44 = vld [vmem:[%s0 + $0xe8] sm:$0xff]
    %v45 = vld [vmem:[%s0 + $0xf0] sm:$0xff]
    %v46 = vld [vmem:[%s0 + $0xf8] sm:$0xff]
    %v47 = vld [vmem:[%s0 + $0x100] sm:$0xff]
    %v48 = vld [vmem:[%s0 + $0x108] sm:$0xff]
    %v49 = vld [vmem:[%s0 + $0x110] sm:$0xff]
    %v50 = vld [vmem:[%s0 + $0x118] sm:$0xff]
    %v51 = vld [vmem:[%s0 + $0x120] sm:$0xff]
    %v52 = vld [vmem:[%s0 + $0x128] sm:$0xff]
    %v53 = vld [vmem:[%s0 + $0x130] sm:$0xff]
    %v54 = vld [vmem:[%s0 + $0x138] sm:$0xff]
    %v55 = vld [vmem:[%s0 + $0x140] sm:$0xff]
    %v56 = vld [vmem:[%s0 + $0x148] sm:$0xff]
    %v57 = vld [vmem:[%s0 + $0x150] sm:$0xff]
    %v58 = vld [vmem:[%s0 + $0x158] sm:$0xff]
    %v59 = vld [vmem:[%s0 + $0x160] sm:$0xff]
    %v60 = vld [vmem:[%s0 + $0x168] sm:$0xff]
    %v61 = vld [vmem:[%s0 + $0x170] sm:$0xff]
    %v62 = vld [vmem:[%s0 + $0x178] sm:$0xff]
    %v63 = vld [vmem:[%s0 + $0x180] sm:$0xff]
    %v64 = vld [vmem:[%s0 + $0x188] sm:$0xff]
    %v65 = vld [vmem:[%s0 + $0x190] sm:$0xff]
    %v66 = vld [vmem:[%s0 + $0x198] sm:$0xff]
    %v67 = vld [vmem:[%s0 + $0x1a0] sm:$0xff]
    %v68 = vld [vmem:[%s0 + $0x1a8] sm:$0xff]
    %v69 = vld [vmem:[%s0 + $0x1b0] sm:$0xff]
    %v70 = vld [vmem:[%s0 + $0x1b8] sm:$0xff]
    %v71 = vld [vmem:[%s0 + $0x1c0] sm:$0xff]
    %v72 = vld [vmem:[%s0 + $0x1c8] sm:$0xff]
    %v73 = vld [vmem:[%s0 + $0x1d0] sm:$0xff]
    %v74 = vld [vmem:[%s0 + $0x1d8] sm:$0xff]
    %v75 = vld [vmem:[%s0 + $0x1e0] sm:$0xff]
    %v76 = vld [vmem:[%s0 + $0x1e8] sm:$0xff]
    %v77 = vld [vmem:[%s0 + $0x1f0] sm:$0xff]
    %v78 = vld [vmem:[%s0 + $0x1f8] sm:$0xff]
    %v79 = vld [vmem:[%s1] sm:$0xff]
    %v80 = vld [vmem:[%s1 + $0x8] sm:$0xff]
    %v81 = vld [vmem:[%s1 + $0x10] sm:$0xff]
    %v82 = vld [vmem:[%s1 + $0x18] sm:$0xff]
    %v83 = vld [vmem:[%s1 + $0x20] sm:$0xff]
    %v84 = vld [vmem:[%s1 + $0x28] sm:$0xff]
    %v85 = vld [vmem:[%s1 + $0x30] sm:$0xff]
    %v86 = vld [vmem:[%s1 + $0x38] sm:$0xff]
    %v87 = vld [vmem:[%s1 + $0x40] sm:$0xff]
    %v88 = vld [vmem:[%s1 + $0x48] sm:$0xff]
    %v89 = vld [vmem:[%s1 + $0x50] sm:$0xff]
    %v90 = vld [vmem:[%s1 + $0x58] sm:$0xff]
    %v91 = vld [vmem:[%s1 + $0x60] sm:$0xff]
    %v92 = vld [vmem:[%s1 + $0x68] sm:$0xff]
    %v93 = vld [vmem:[%s1 + $0x70] sm:$0xff]
    %v94 = vld [vmem:[%s1 + $0x78] sm:$0xff]
    %v95 = vld [vmem:[%s1 + $0x80] sm:$0xff]
    %v96 = vld [vmem:[%s1 + $0x88] sm:$0xff]
    %v97 = vld [vmem:[%s1 + $0x90] sm:$0xff]
    %v98 = vld [vmem:[%s1 + $0x98] sm:$0xff]
    %v99 = vld [vmem:[%s1 + $0xa0] sm:$0xff]
    %v100 = vld [vmem:[%s1 + $0xa8] sm:$0xff]
    %v101 = vld [vmem:[%s1 + $0xb0] sm:$0xff]
    %v102 = vld [vmem:[%s1 + $0xb8] sm:$0xff]
    %v103 = vld [vmem:[%s1 + $0xc0] sm:$0xff]
    %v104 = vld [vmem:[%s1 + $0xc8] sm:$0xff]
    %v105 = vld [vmem:[%s1 + $0xd0] sm:$0xff]
    %v106 = vld [vmem:[%s1 + $0xd8] sm:$0xff]
    %v107 = vld [vmem:[%s1 + $0xe0] sm:$0xff]
    %v108 = vld [vmem:[%s1 + $0xe8] sm:$0xff]
    %v109 = vld [vmem:[%s1 + $0xf0] sm:$0xff]
    %v110 = vld [vmem:[%s1 + $0xf8] sm:$0xff]
    %v111 = vld [vmem:[%s1 + $0x100] sm:$0xff]
    %v112 = vld [vmem:[%s1 + $0x108] sm:$0xff]
    %v113 = vld [vmem:[%s1 + $0x110] sm:$0xff]
    %v114 = vld [vmem:[%s1 + $0x118] sm:$0xff]
    %v115 = vld [vmem:[%s1 + $0x120] sm:$0xff]
    %v116 = vld [vmem:[%s1 + $0x128] sm:$0xff]
    %v117 = vld [vmem:[%s1 + $0x130] sm:$0xff]
    %v118 = vld [vmem:[%s1 + $0x138] sm:$0xff]
    %v119 = vld [vmem:[%s1 + $0x140] sm:$0xff]
    %v120 = vld [vmem:[%s1 + $0x148] sm:$0xff]
    %v121 = vld [vmem:[%s1 + $0x150] sm:$0xff]
    %v122 = vld [vmem:[%s1 + $0x158] sm:$0xff]
    %v123 = vld [vmem:[%s1 + $0x160] sm:$0xff]
    %v124 = vld [vmem:[%s1 + $0x168] sm:$0xff]
    %v125 = vld [vmem:[%s1 + $0x170] sm:$0xff]
    %v126 = vld [vmem:[%s1 + $0x178] sm:$0xff]
    %v127 = vld [vmem:[%s1 + $0x180] sm:$0xff]
    %v128 = vld [vmem:[%s1 + $0x188] sm:$0xff]
    %v129 = vld [vmem:[%s1 + $0x190] sm:$0xff]
    %v130 = vld [vmem:[%s1 + $0x198] sm:$0xff]
    %v131 = vld [vmem:[%s1 + $0x1a0] sm:$0xff]
    %v132 = vld [vmem:[%s1 + $0x1a8] sm:$0xff]
    %v133 = vld [vmem:[%s1 + $0x1b0] sm:$0xff]
    %v134 = vld [vmem:[%s1 + $0x1b8] sm:$0xff]
    %v135 = vld [vmem:[%s1 + $0x1c0] sm:$0xff]
    %v136 = vld [vmem:[%s1 + $0x1c8] sm:$0xff]
    %v137 = vld [vmem:[%s1 + $0x1d0] sm:$0xff]
    %v138 = vld [vmem:[%s1 + $0x1d8] sm:$0xff]
    %v139 = vld [vmem:[%s1 + $0x1e0] sm:$0xff]
    %v140 = vld [vmem:[%s1 + $0x1e8] sm:$0xff]
    %v141 = vld [vmem:[%s1 + $0x1f0] sm:$0xff]
    %v142 = vld [vmem:[%s1 + $0x1f8] sm:$0xff]
    %v143 = vld [vmem:[%s1 + $0x200] sm:$0xff]
    %v144 = vld [vmem:[%s1 + $0x208] sm:$0xff]
    %v145 = vld [vmem:[%s1 + $0x210] sm:$0xff]
    %v146 = vld [vmem:[%s1 + $0x218] sm:$0xff]
    %v147 = vld [vmem:[%s1 + $0x220] sm:$0xff]
    %v148 = vld [vmem:[%s1 + $0x228] sm:$0xff]
    %v149 = vld [vmem:[%s1 + $0x230] sm:$0xff]
    %v150 = vld [vmem:[%s1 + $0x238] sm:$0xff]
    %v151 = vld [vmem:[%s1 + $0x240] sm:$0xff]
    %v152 = vld [vmem:[%s1 + $0x248] sm:$0xff]
    %v153 = vld [vmem:[%s1 + $0x250] sm:$0xff]
    %v154 = vld [vmem:[%s1 + $0x258] sm:$0xff]
    %v155 = vld [vmem:[%s1 + $0x260] sm:$0xff]
    %v156 = vld [vmem:[%s1 + $0x268] sm:$0xff]
    %v157 = vld [vmem:[%s1 + $0x270] sm:$0xff]
    %v158 = vld [vmem:[%s1 + $0x278] sm:$0xff]
    %v159 = vld [vmem:[%s1 + $0x280] sm:$0xff]
    %v160 = vld [vmem:[%s1 + $0x288] sm:$0xff]
    %v161 = vld [vmem:[%s1 + $0x290] sm:$0xff]
    %v162 = vld [vmem:[%s1 + $0x298] sm:$0xff]
    %v163 = vld [vmem:[%s1 + $0x2a0] sm:$0xff]
    %v164 = vld [vmem:[%s1 + $0x2a8] sm:$0xff]
    %v165 = vld [vmem:[%s1 + $0x2b0] sm:$0xff]
    %v166 = vld [vmem:[%s1 + $0x2b8] sm:$0xff]
    %v167 = vld [vmem:[%s1 + $0x2c0] sm:$0xff]
    %v168 = vld [vmem:[%s1 + $0x2c8] sm:$0xff]
    %v169 = vld [vmem:[%s1 + $0x2d0] sm:$0xff]
    %v170 = vld [vmem:[%s1 + $0x2d8] sm:$0xff]
    %v171 = vld [vmem:[%s1 + $0x2e0] sm:$0xff]
    %v172 = vld [vmem:[%s1 + $0x2e8] sm:$0xff]
    %v173 = vld [vmem:[%s1 + $0x2f0] sm:$0xff]
    %v174 = vld [vmem:[%s1 + $0x2f8] sm:$0xff]
    %v175 = vld [vmem:[%s1 + $0x300] sm:$0xff]
    %v176 = vld [vmem:[%s1 + $0x308] sm:$0xff]
    %v177 = vld [vmem:[%s1 + $0x310] sm:$0xff]
    %v178 = vld [vmem:[%s1 + $0x318] sm:$0xff]
    %v179 = vld [vmem:[%s1 + $0x320] sm:$0xff]
    %v180 = vld [vmem:[%s1 + $0x328] sm:$0xff]
    %v181 = vld [vmem:[%s1 + $0x330] sm:$0xff]
    %v182 = vld [vmem:[%s1 + $0x338] sm:$0xff]
    %v183 = vld [vmem:[%s1 + $0x340] sm:$0xff]
    %v184 = vld [vmem:[%s1 + $0x348] sm:$0xff]
    %v185 = vld [vmem:[%s1 + $0x350] sm:$0xff]
    %v186 = vld [vmem:[%s1 + $0x358] sm:$0xff]
    %v187 = vld [vmem:[%s1 + $0x360] sm:$0xff]
    %v188 = vld [vmem:[%s1 + $0x368] sm:$0xff]
    %v189 = vld [vmem:[%s1 + $0x370] sm:$0xff]
    %v190 = vld [vmem:[%s1 + $0x378] sm:$0xff]
    %v191 = vld [vmem:[%s1 + $0x380] sm:$0xff]
    %v192 = vld [vmem:[%s1 + $0x388] sm:$0xff]
    %v193 = vld [vmem:[%s1 + $0x390] sm:$0xff]
    %v194 = vld [vmem:[%s1 + $0x398] sm:$0xff]
    %v195 = vld [vmem:[%s1 + $0x3a0] sm:$0xff]
    %v196 = vld [vmem:[%s1 + $0x3a8] sm:$0xff]
    %v197 = vld [vmem:[%s1 + $0x3b0] sm:$0xff]
    %v198 = vld [vmem:[%s1 + $0x3b8] sm:$0xff]
    %v199 = vld [vmem:[%s1 + $0x3c0] sm:$0xff]
    %v200 = vld [vmem:[%s1 + $0x3c8] sm:$0xff]
    %v201 = vld [vmem:[%s1 + $0x3d0] sm:$0xff]
    %v202 = vld [vmem:[%s1 + $0x3d8] sm:$0xff]
    %v203 = vld [vmem:[%s1 + $0x3e0] sm:$0xff]
    %v204 = vld [vmem:[%s1 + $0x3e8] sm:$0xff]
    %v205 = vld [vmem:[%s1 + $0x3f0] sm:$0xff]
    %v206 = vld [vmem:[%s1 + $0x3f8] sm:$0xff]
    %v207 = vld [vmem:[%s2] sm:$0xf]
    %v209 = vlaneseq
    %v210 = vshrl.u32 %v209, 7
    %v211 = vsub.s32 0, %v210
    %v212 = vrot.slane %v207, %v211
    %v213 = vlaneseq
    %v214 = vshrl.u32 %v213, 7
    %v215 = vsub.s32 1, %v214
    %v216 = vrot.slane %v207, %v215
    %v217 = vlaneseq
    %v218 = vshrl.u32 %v217, 7
    %v219 = vsub.s32 2, %v218
    %v220 = vrot.slane %v207, %v219
    %v221 = vlaneseq
    %v222 = vshrl.u32 %v221, 7
    %v223 = vsub.s32 3, %v222
    %v224 = vrot.slane %v207, %v223
    %v293 = vunpack.c.l.b16 %v15
    %v294 = vunpack.c.h.b16 %v15
    %v295 = vunpack.c.l.b16 %v16
    %v296 = vunpack.c.h.b16 %v16
    %v297 = vunpack.c.l.b16 %v17
    %v298 = vunpack.c.h.b16 %v17
    %v299 = vunpack.c.l.b16 %v18
    %v300 = vunpack.c.h.b16 %v18
    %v301 = vunpack.c.l.b16 %v19
    %v302 = vunpack.c.h.b16 %v19
    %v303 = vunpack.c.l.b16 %v20
    %v304 = vunpack.c.h.b16 %v20
    %v305 = vunpack.c.l.b16 %v21
    %v306 = vunpack.c.h.b16 %v21
    %v307 = vunpack.c.l.b16 %v22
    %v308 = vunpack.c.h.b16 %v22
    %v309 = vunpack.c.l.b16 %v23
    %v310 = vunpack.c.h.b16 %v23
    %v311 = vunpack.c.l.b16 %v24
    %v312 = vunpack.c.h.b16 %v24
    %v313 = vunpack.c.l.b16 %v25
    %v314 = vunpack.c.h.b16 %v25
    %v315 = vunpack.c.l.b16 %v26
    %v316 = vunpack.c.h.b16 %v26
    %v317 = vunpack.c.l.b16 %v27
    %v318 = vunpack.c.h.b16 %v27
    %v319 = vunpack.c.l.b16 %v28
    %v320 = vunpack.c.h.b16 %v28
    %v321 = vunpack.c.l.b16 %v29
    %v322 = vunpack.c.h.b16 %v29
    %v323 = vunpack.c.l.b16 %v30
    %v324 = vunpack.c.h.b16 %v30
    %v325 = vunpack.c.l.b16 %v31
    %v326 = vunpack.c.h.b16 %v31
    %v327 = vunpack.c.l.b16 %v32
    %v328 = vunpack.c.h.b16 %v32
    %v329 = vunpack.c.l.b16 %v33
    %v330 = vunpack.c.h.b16 %v33
    %v331 = vunpack.c.l.b16 %v34
    %v332 = vunpack.c.h.b16 %v34
    %v333 = vunpack.c.l.b16 %v35
    %v334 = vunpack.c.h.b16 %v35
    %v335 = vunpack.c.l.b16 %v36
    %v336 = vunpack.c.h.b16 %v36
    %v337 = vunpack.c.l.b16 %v37
    %v338 = vunpack.c.h.b16 %v37
    %v339 = vunpack.c.l.b16 %v38
    %v340 = vunpack.c.h.b16 %v38
    %v341 = vunpack.c.l.b16 %v39
    %v342 = vunpack.c.h.b16 %v39
    %v343 = vunpack.c.l.b16 %v40
    %v344 = vunpack.c.h.b16 %v40
    %v345 = vunpack.c.l.b16 %v41
    %v346 = vunpack.c.h.b16 %v41
    %v347 = vunpack.c.l.b16 %v42
    %v348 = vunpack.c.h.b16 %v42
    %v349 = vunpack.c.l.b16 %v43
    %v350 = vunpack.c.h.b16 %v43
    %v351 = vunpack.c.l.b16 %v44
    %v352 = vunpack.c.h.b16 %v44
    %v353 = vunpack.c.l.b16 %v45
    %v354 = vunpack.c.h.b16 %v45
    %v355 = vunpack.c.l.b16 %v46
    %v356 = vunpack.c.h.b16 %v46
    %v357 = vunpack.c.l.b16 %v47
    %v358 = vunpack.c.h.b16 %v47
    %v359 = vunpack.c.l.b16 %v48
    %v360 = vunpack.c.h.b16 %v48
    %v361 = vunpack.c.l.b16 %v49
    %v362 = vunpack.c.h.b16 %v49
    %v363 = vunpack.c.l.b16 %v50
    %v364 = vunpack.c.h.b16 %v50
    %v365 = vunpack.c.l.b16 %v51
    %v366 = vunpack.c.h.b16 %v51
    %v367 = vunpack.c.l.b16 %v52
    %v368 = vunpack.c.h.b16 %v52
    %v369 = vunpack.c.l.b16 %v53
    %v370 = vunpack.c.h.b16 %v53
    %v371 = vunpack.c.l.b16 %v54
    %v372 = vunpack.c.h.b16 %v54
    %v373 = vunpack.c.l.b16 %v55
    %v374 = vunpack.c.h.b16 %v55
    %v375 = vunpack.c.l.b16 %v56
    %v376 = vunpack.c.h.b16 %v56
    %v377 = vunpack.c.l.b16 %v57
    %v378 = vunpack.c.h.b16 %v57
    %v379 = vunpack.c.l.b16 %v58
    %v380 = vunpack.c.h.b16 %v58
    %v381 = vunpack.c.l.b16 %v59
    %v382 = vunpack.c.h.b16 %v59
    %v383 = vunpack.c.l.b16 %v60
    %v384 = vunpack.c.h.b16 %v60
    %v385 = vunpack.c.l.b16 %v61
    %v386 = vunpack.c.h.b16 %v61
    %v387 = vunpack.c.l.b16 %v62
    %v388 = vunpack.c.h.b16 %v62
    %v389 = vunpack.c.l.b16 %v63
    %v390 = vunpack.c.h.b16 %v63
    %v391 = vunpack.c.l.b16 %v64
    %v392 = vunpack.c.h.b16 %v64
    %v393 = vunpack.c.l.b16 %v65
    %v394 = vunpack.c.h.b16 %v65
    %v395 = vunpack.c.l.b16 %v66
    %v396 = vunpack.c.h.b16 %v66
    %v397 = vunpack.c.l.b16 %v67
    %v398 = vunpack.c.h.b16 %v67
    %v399 = vunpack.c.l.b16 %v68
    %v400 = vunpack.c.h.b16 %v68
    %v401 = vunpack.c.l.b16 %v69
    %v402 = vunpack.c.h.b16 %v69
    %v403 = vunpack.c.l.b16 %v70
    %v404 = vunpack.c.h.b16 %v70
    %v405 = vunpack.c.l.b16 %v71
    %v406 = vunpack.c.h.b16 %v71
    %v407 = vunpack.c.l.b16 %v72
    %v408 = vunpack.c.h.b16 %v72
    %v409 = vunpack.c.l.b16 %v73
    %v410 = vunpack.c.h.b16 %v73
    %v411 = vunpack.c.l.b16 %v74
    %v412 = vunpack.c.h.b16 %v74
    %v413 = vunpack.c.l.b16 %v75
    %v414 = vunpack.c.h.b16 %v75
    %v415 = vunpack.c.l.b16 %v76
    %v416 = vunpack.c.h.b16 %v76
    %v417 = vunpack.c.l.b16 %v77
    %v418 = vunpack.c.h.b16 %v77
    %v419 = vunpack.c.l.b16 %v78
    %v420 = vunpack.c.h.b16 %v78
    %v421 = vpack.c.b16 %v297, %v293
    %v422 = vpack.c.b16 %v298, %v294
    %v423 = vpack.c.b16 %v299, %v295
    %v424 = vpack.c.b16 %v300, %v296
    %v425 = vpack.c.b16 %v305, %v301
    %v426 = vpack.c.b16 %v306, %v302
    %v427 = vpack.c.b16 %v307, %v303
    %v428 = vpack.c.b16 %v308, %v304
    %v429 = vpack.c.b16 %v313, %v309
    %v430 = vpack.c.b16 %v314, %v310
    %v431 = vpack.c.b16 %v315, %v311
    %v432 = vpack.c.b16 %v316, %v312
    %v433 = vpack.c.b16 %v321, %v317
    %v434 = vpack.c.b16 %v322, %v318
    %v435 = vpack.c.b16 %v323, %v319
    %v436 = vpack.c.b16 %v324, %v320
    %v437 = vpack.c.b16 %v329, %v325
    %v438 = vpack.c.b16 %v330, %v326
    %v439 = vpack.c.b16 %v331, %v327
    %v440 = vpack.c.b16 %v332, %v328
    %v441 = vpack.c.b16 %v337, %v333
    %v442 = vpack.c.b16 %v338, %v334
    %v443 = vpack.c.b16 %v339, %v335
    %v444 = vpack.c.b16 %v340, %v336
    %v445 = vpack.c.b16 %v345, %v341
    %v446 = vpack.c.b16 %v346, %v342
    %v447 = vpack.c.b16 %v347, %v343
    %v448 = vpack.c.b16 %v348, %v344
    %v449 = vpack.c.b16 %v353, %v349
    %v450 = vpack.c.b16 %v354, %v350
    %v451 = vpack.c.b16 %v355, %v351
    %v452 = vpack.c.b16 %v356, %v352
    %v453 = vpack.c.b16 %v361, %v357
    %v454 = vpack.c.b16 %v362, %v358
    %v455 = vpack.c.b16 %v363, %v359
    %v456 = vpack.c.b16 %v364, %v360
    %v457 = vpack.c.b16 %v369, %v365
    %v458 = vpack.c.b16 %v370, %v366
    %v459 = vpack.c.b16 %v371, %v367
    %v460 = vpack.c.b16 %v372, %v368
    %v461 = vpack.c.b16 %v377, %v373
    %v462 = vpack.c.b16 %v378, %v374
    %v463 = vpack.c.b16 %v379, %v375
    %v464 = vpack.c.b16 %v380, %v376
    %v465 = vpack.c.b16 %v385, %v381
    %v466 = vpack.c.b16 %v386, %v382
    %v467 = vpack.c.b16 %v387, %v383
    %v468 = vpack.c.b16 %v388, %v384
    %v469 = vpack.c.b16 %v393, %v389
    %v470 = vpack.c.b16 %v394, %v390
    %v471 = vpack.c.b16 %v395, %v391
    %v472 = vpack.c.b16 %v396, %v392
    %v473 = vpack.c.b16 %v401, %v397
    %v474 = vpack.c.b16 %v402, %v398
    %v475 = vpack.c.b16 %v403, %v399
    %v476 = vpack.c.b16 %v404, %v400
    %v477 = vpack.c.b16 %v409, %v405
    %v478 = vpack.c.b16 %v410, %v406
    %v479 = vpack.c.b16 %v411, %v407
    %v480 = vpack.c.b16 %v412, %v408
    %v481 = vpack.c.b16 %v417, %v413
    %v482 = vpack.c.b16 %v418, %v414
    %v483 = vpack.c.b16 %v419, %v415
    %v484 = vpack.c.b16 %v420, %v416
    %v677 = vunpack.c.l.b16 %v79
    %v678 = vunpack.c.h.b16 %v79
    %v679 = vunpack.c.l.b16 %v80
    %v680 = vunpack.c.h.b16 %v80
    %v681 = vunpack.c.l.b16 %v81
    %v682 = vunpack.c.h.b16 %v81
    %v683 = vunpack.c.l.b16 %v82
    %v684 = vunpack.c.h.b16 %v82
    %v685 = vunpack.c.l.b16 %v83
    %v686 = vunpack.c.h.b16 %v83
    %v687 = vunpack.c.l.b16 %v84
    %v688 = vunpack.c.h.b16 %v84
    %v689 = vunpack.c.l.b16 %v85
    %v690 = vunpack.c.h.b16 %v85
    %v691 = vunpack.c.l.b16 %v86
    %v692 = vunpack.c.h.b16 %v86
    %v693 = vunpack.c.l.b16 %v87
    %v694 = vunpack.c.h.b16 %v87
    %v695 = vunpack.c.l.b16 %v88
    %v696 = vunpack.c.h.b16 %v88
    %v697 = vunpack.c.l.b16 %v89
    %v698 = vunpack.c.h.b16 %v89
    %v699 = vunpack.c.l.b16 %v90
    %v700 = vunpack.c.h.b16 %v90
    %v701 = vunpack.c.l.b16 %v91
    %v702 = vunpack.c.h.b16 %v91
    %v703 = vunpack.c.l.b16 %v92
    %v704 = vunpack.c.h.b16 %v92
    %v705 = vunpack.c.l.b16 %v93
    %v706 = vunpack.c.h.b16 %v93
    %v707 = vunpack.c.l.b16 %v94
    %v708 = vunpack.c.h.b16 %v94
    %v709 = vunpack.c.l.b16 %v95
    %v710 = vunpack.c.h.b16 %v95
    %v711 = vunpack.c.l.b16 %v96
    %v712 = vunpack.c.h.b16 %v96
    %v713 = vunpack.c.l.b16 %v97
    %v714 = vunpack.c.h.b16 %v97
    %v715 = vunpack.c.l.b16 %v98
    %v716 = vunpack.c.h.b16 %v98
    %v717 = vunpack.c.l.b16 %v99
    %v718 = vunpack.c.h.b16 %v99
    %v719 = vunpack.c.l.b16 %v100
    %v720 = vunpack.c.h.b16 %v100
    %v721 = vunpack.c.l.b16 %v101
    %v722 = vunpack.c.h.b16 %v101
    %v723 = vunpack.c.l.b16 %v102
    %v724 = vunpack.c.h.b16 %v102
    %v725 = vunpack.c.l.b16 %v103
    %v726 = vunpack.c.h.b16 %v103
    %v727 = vunpack.c.l.b16 %v104
    %v728 = vunpack.c.h.b16 %v104
    %v729 = vunpack.c.l.b16 %v105
    %v730 = vunpack.c.h.b16 %v105
    %v731 = vunpack.c.l.b16 %v106
    %v732 = vunpack.c.h.b16 %v106
    %v733 = vunpack.c.l.b16 %v107
    %v734 = vunpack.c.h.b16 %v107
    %v735 = vunpack.c.l.b16 %v108
    %v736 = vunpack.c.h.b16 %v108
    %v737 = vunpack.c.l.b16 %v109
    %v738 = vunpack.c.h.b16 %v109
    %v739 = vunpack.c.l.b16 %v110
    %v740 = vunpack.c.h.b16 %v110
    %v741 = vunpack.c.l.b16 %v111
    %v742 = vunpack.c.h.b16 %v111
    %v743 = vunpack.c.l.b16 %v112
    %v744 = vunpack.c.h.b16 %v112
    %v745 = vunpack.c.l.b16 %v113
    %v746 = vunpack.c.h.b16 %v113
    %v747 = vunpack.c.l.b16 %v114
    %v748 = vunpack.c.h.b16 %v114
    %v749 = vunpack.c.l.b16 %v115
    %v750 = vunpack.c.h.b16 %v115
    %v751 = vunpack.c.l.b16 %v116
    %v752 = vunpack.c.h.b16 %v116
    %v753 = vunpack.c.l.b16 %v117
    %v754 = vunpack.c.h.b16 %v117
    %v755 = vunpack.c.l.b16 %v118
    %v756 = vunpack.c.h.b16 %v118
    %v757 = vunpack.c.l.b16 %v119
    %v758 = vunpack.c.h.b16 %v119
    %v759 = vunpack.c.l.b16 %v120
    %v760 = vunpack.c.h.b16 %v120
    %v761 = vunpack.c.l.b16 %v121
    %v762 = vunpack.c.h.b16 %v121
    %v763 = vunpack.c.l.b16 %v122
    %v764 = vunpack.c.h.b16 %v122
    %v765 = vunpack.c.l.b16 %v123
    %v766 = vunpack.c.h.b16 %v123
    %v767 = vunpack.c.l.b16 %v124
    %v768 = vunpack.c.h.b16 %v124
    %v769 = vunpack.c.l.b16 %v125
    %v770 = vunpack.c.h.b16 %v125
    %v771 = vunpack.c.l.b16 %v126
    %v772 = vunpack.c.h.b16 %v126
    %v773 = vunpack.c.l.b16 %v127
    %v774 = vunpack.c.h.b16 %v127
    %v775 = vunpack.c.l.b16 %v128
    %v776 = vunpack.c.h.b16 %v128
    %v777 = vunpack.c.l.b16 %v129
    %v778 = vunpack.c.h.b16 %v129
    %v779 = vunpack.c.l.b16 %v130
    %v780 = vunpack.c.h.b16 %v130
    %v781 = vunpack.c.l.b16 %v131
    %v782 = vunpack.c.h.b16 %v131
    %v783 = vunpack.c.l.b16 %v132
    %v784 = vunpack.c.h.b16 %v132
    %v785 = vunpack.c.l.b16 %v133
    %v786 = vunpack.c.h.b16 %v133
    %v787 = vunpack.c.l.b16 %v134
    %v788 = vunpack.c.h.b16 %v134
    %v789 = vunpack.c.l.b16 %v135
    %v790 = vunpack.c.h.b16 %v135
    %v791 = vunpack.c.l.b16 %v136
    %v792 = vunpack.c.h.b16 %v136
    %v793 = vunpack.c.l.b16 %v137
    %v794 = vunpack.c.h.b16 %v137
    %v795 = vunpack.c.l.b16 %v138
    %v796 = vunpack.c.h.b16 %v138
    %v797 = vunpack.c.l.b16 %v139
    %v798 = vunpack.c.h.b16 %v139
    %v799 = vunpack.c.l.b16 %v140
    %v800 = vunpack.c.h.b16 %v140
    %v801 = vunpack.c.l.b16 %v141
    %v802 = vunpack.c.h.b16 %v141
    %v803 = vunpack.c.l.b16 %v142
    %v804 = vunpack.c.h.b16 %v142
    %v805 = vunpack.c.l.b16 %v143
    %v806 = vunpack.c.h.b16 %v143
    %v807 = vunpack.c.l.b16 %v144
    %v808 = vunpack.c.h.b16 %v144
    %v809 = vunpack.c.l.b16 %v145
    %v810 = vunpack.c.h.b16 %v145
    %v811 = vunpack.c.l.b16 %v146
    %v812 = vunpack.c.h.b16 %v146
    %v813 = vunpack.c.l.b16 %v147
    %v814 = vunpack.c.h.b16 %v147
    %v815 = vunpack.c.l.b16 %v148
    %v816 = vunpack.c.h.b16 %v148
    %v817 = vunpack.c.l.b16 %v149
    %v818 = vunpack.c.h.b16 %v149
    %v819 = vunpack.c.l.b16 %v150
    %v820 = vunpack.c.h.b16 %v150
    %v821 = vunpack.c.l.b16 %v151
    %v822 = vunpack.c.h.b16 %v151
    %v823 = vunpack.c.l.b16 %v152
    %v824 = vunpack.c.h.b16 %v152
    %v825 = vunpack.c.l.b16 %v153
    %v826 = vunpack.c.h.b16 %v153
    %v827 = vunpack.c.l.b16 %v154
    %v828 = vunpack.c.h.b16 %v154
    %v829 = vunpack.c.l.b16 %v155
    %v830 = vunpack.c.h.b16 %v155
    %v831 = vunpack.c.l.b16 %v156
    %v832 = vunpack.c.h.b16 %v156
    %v833 = vunpack.c.l.b16 %v157
    %v834 = vunpack.c.h.b16 %v157
    %v835 = vunpack.c.l.b16 %v158
    %v836 = vunpack.c.h.b16 %v158
    %v837 = vunpack.c.l.b16 %v159
    %v838 = vunpack.c.h.b16 %v159
    %v839 = vunpack.c.l.b16 %v160
    %v840 = vunpack.c.h.b16 %v160
    %v841 = vunpack.c.l.b16 %v161
    %v842 = vunpack.c.h.b16 %v161
    %v843 = vunpack.c.l.b16 %v162
    %v844 = vunpack.c.h.b16 %v162
    %v845 = vunpack.c.l.b16 %v163
    %v846 = vunpack.c.h.b16 %v163
    %v847 = vunpack.c.l.b16 %v164
    %v848 = vunpack.c.h.b16 %v164
    %v849 = vunpack.c.l.b16 %v165
    %v850 = vunpack.c.h.b16 %v165
    %v851 = vunpack.c.l.b16 %v166
    %v852 = vunpack.c.h.b16 %v166
    %v853 = vunpack.c.l.b16 %v167
    %v854 = vunpack.c.h.b16 %v167
    %v855 = vunpack.c.l.b16 %v168
    %v856 = vunpack.c.h.b16 %v168
    %v857 = vunpack.c.l.b16 %v169
    %v858 = vunpack.c.h.b16 %v169
    %v859 = vunpack.c.l.b16 %v170
    %v860 = vunpack.c.h.b16 %v170
    %v861 = vunpack.c.l.b16 %v171
    %v862 = vunpack.c.h.b16 %v171
    %v863 = vunpack.c.l.b16 %v172
    %v864 = vunpack.c.h.b16 %v172
    %v865 = vunpack.c.l.b16 %v173
    %v866 = vunpack.c.h.b16 %v173
    %v867 = vunpack.c.l.b16 %v174
    %v868 = vunpack.c.h.b16 %v174
    %v869 = vunpack.c.l.b16 %v175
    %v870 = vunpack.c.h.b16 %v175
    %v871 = vunpack.c.l.b16 %v176
    %v872 = vunpack.c.h.b16 %v176
    %v873 = vunpack.c.l.b16 %v177
    %v874 = vunpack.c.h.b16 %v177
    %v875 = vunpack.c.l.b16 %v178
    %v876 = vunpack.c.h.b16 %v178
    %v877 = vunpack.c.l.b16 %v179
    %v878 = vunpack.c.h.b16 %v179
    %v879 = vunpack.c.l.b16 %v180
    %v880 = vunpack.c.h.b16 %v180
    %v881 = vunpack.c.l.b16 %v181
    %v882 = vunpack.c.h.b16 %v181
    %v883 = vunpack.c.l.b16 %v182
    %v884 = vunpack.c.h.b16 %v182
    %v885 = vunpack.c.l.b16 %v183
    %v886 = vunpack.c.h.b16 %v183
    %v887 = vunpack.c.l.b16 %v184
    %v888 = vunpack.c.h.b16 %v184
    %v889 = vunpack.c.l.b16 %v185
    %v890 = vunpack.c.h.b16 %v185
    %v891 = vunpack.c.l.b16 %v186
    %v892 = vunpack.c.h.b16 %v186
    %v893 = vunpack.c.l.b16 %v187
    %v894 = vunpack.c.h.b16 %v187
    %v895 = vunpack.c.l.b16 %v188
    %v896 = vunpack.c.h.b16 %v188
    %v897 = vunpack.c.l.b16 %v189
    %v898 = vunpack.c.h.b16 %v189
    %v899 = vunpack.c.l.b16 %v190
    %v900 = vunpack.c.h.b16 %v190
    %v901 = vunpack.c.l.b16 %v191
    %v902 = vunpack.c.h.b16 %v191
    %v903 = vunpack.c.l.b16 %v192
    %v904 = vunpack.c.h.b16 %v192
    %v905 = vunpack.c.l.b16 %v193
    %v906 = vunpack.c.h.b16 %v193
    %v907 = vunpack.c.l.b16 %v194
    %v908 = vunpack.c.h.b16 %v194
    %v909 = vunpack.c.l.b16 %v195
    %v910 = vunpack.c.h.b16 %v195
    %v911 = vunpack.c.l.b16 %v196
    %v912 = vunpack.c.h.b16 %v196
    %v913 = vunpack.c.l.b16 %v197
    %v914 = vunpack.c.h.b16 %v197
    %v915 = vunpack.c.l.b16 %v198
    %v916 = vunpack.c.h.b16 %v198
    %v917 = vunpack.c.l.b16 %v199
    %v918 = vunpack.c.h.b16 %v199
    %v919 = vunpack.c.l.b16 %v200
    %v920 = vunpack.c.h.b16 %v200
    %v921 = vunpack.c.l.b16 %v201
    %v922 = vunpack.c.h.b16 %v201
    %v923 = vunpack.c.l.b16 %v202
    %v924 = vunpack.c.h.b16 %v202
    %v925 = vunpack.c.l.b16 %v203
    %v926 = vunpack.c.h.b16 %v203
    %v927 = vunpack.c.l.b16 %v204
    %v928 = vunpack.c.h.b16 %v204
    %v929 = vunpack.c.l.b16 %v205
    %v930 = vunpack.c.h.b16 %v205
    %v931 = vunpack.c.l.b16 %v206
    %v932 = vunpack.c.h.b16 %v206
    %v933 = vpack.c.b16 %v681, %v677
    %v934 = vpack.c.b16 %v682, %v678
    %v935 = vpack.c.b16 %v683, %v679
    %v936 = vpack.c.b16 %v684, %v680
    %v937 = vpack.c.b16 %v689, %v685
    %v938 = vpack.c.b16 %v690, %v686
    %v939 = vpack.c.b16 %v691, %v687
    %v940 = vpack.c.b16 %v692, %v688
    %v941 = vpack.c.b16 %v697, %v693
    %v942 = vpack.c.b16 %v698, %v694
    %v943 = vpack.c.b16 %v699, %v695
    %v944 = vpack.c.b16 %v700, %v696
    %v945 = vpack.c.b16 %v705, %v701
    %v946 = vpack.c.b16 %v706, %v702
    %v947 = vpack.c.b16 %v707, %v703
    %v948 = vpack.c.b16 %v708, %v704
    %v949 = vpack.c.b16 %v713, %v709
    %v950 = vpack.c.b16 %v714, %v710
    %v951 = vpack.c.b16 %v715, %v711
    %v952 = vpack.c.b16 %v716, %v712
    %v953 = vpack.c.b16 %v721, %v717
    %v954 = vpack.c.b16 %v722, %v718
    %v955 = vpack.c.b16 %v723, %v719
    %v956 = vpack.c.b16 %v724, %v720
    %v957 = vpack.c.b16 %v729, %v725
    %v958 = vpack.c.b16 %v730, %v726
    %v959 = vpack.c.b16 %v731, %v727
    %v960 = vpack.c.b16 %v732, %v728
    %v961 = vpack.c.b16 %v737, %v733
    %v962 = vpack.c.b16 %v738, %v734
    %v963 = vpack.c.b16 %v739, %v735
    %v964 = vpack.c.b16 %v740, %v736
    %v965 = vpack.c.b16 %v745, %v741
    %v966 = vpack.c.b16 %v746, %v742
    %v967 = vpack.c.b16 %v747, %v743
    %v968 = vpack.c.b16 %v748, %v744
    %v969 = vpack.c.b16 %v753, %v749
    %v970 = vpack.c.b16 %v754, %v750
    %v971 = vpack.c.b16 %v755, %v751
    %v972 = vpack.c.b16 %v756, %v752
    %v973 = vpack.c.b16 %v761, %v757
    %v974 = vpack.c.b16 %v762, %v758
    %v975 = vpack.c.b16 %v763, %v759
    %v976 = vpack.c.b16 %v764, %v760
    %v977 = vpack.c.b16 %v769, %v765
    %v978 = vpack.c.b16 %v770, %v766
    %v979 = vpack.c.b16 %v771, %v767
    %v980 = vpack.c.b16 %v772, %v768
    %v981 = vpack.c.b16 %v777, %v773
    %v982 = vpack.c.b16 %v778, %v774
    %v983 = vpack.c.b16 %v779, %v775
    %v984 = vpack.c.b16 %v780, %v776
    %v985 = vpack.c.b16 %v785, %v781
    %v986 = vpack.c.b16 %v786, %v782
    %v987 = vpack.c.b16 %v787, %v783
    %v988 = vpack.c.b16 %v788, %v784
    %v989 = vpack.c.b16 %v793, %v789
    %v990 = vpack.c.b16 %v794, %v790
    %v991 = vpack.c.b16 %v795, %v791
    %v992 = vpack.c.b16 %v796, %v792
    %v993 = vpack.c.b16 %v801, %v797
    %v994 = vpack.c.b16 %v802, %v798
    %v995 = vpack.c.b16 %v803, %v799
    %v996 = vpack.c.b16 %v804, %v800
    %v997 = vpack.c.b16 %v809, %v805
    %v998 = vpack.c.b16 %v810, %v806
    %v999 = vpack.c.b16 %v811, %v807
    %v1000 = vpack.c.b16 %v812, %v808
    %v1001 = vpack.c.b16 %v817, %v813
    %v1002 = vpack.c.b16 %v818, %v814
    %v1003 = vpack.c.b16 %v819, %v815
    %v1004 = vpack.c.b16 %v820, %v816
    %v1005 = vpack.c.b16 %v825, %v821
    %v1006 = vpack.c.b16 %v826, %v822
    %v1007 = vpack.c.b16 %v827, %v823
    %v1008 = vpack.c.b16 %v828, %v824
    %v1009 = vpack.c.b16 %v833, %v829
    %v1010 = vpack.c.b16 %v834, %v830
    %v1011 = vpack.c.b16 %v835, %v831
    %v1012 = vpack.c.b16 %v836, %v832
    %v1013 = vpack.c.b16 %v841, %v837
    %v1014 = vpack.c.b16 %v842, %v838
    %v1015 = vpack.c.b16 %v843, %v839
    %v1016 = vpack.c.b16 %v844, %v840
    %v1017 = vpack.c.b16 %v849, %v845
    %v1018 = vpack.c.b16 %v850, %v846
    %v1019 = vpack.c.b16 %v851, %v847
    %v1020 = vpack.c.b16 %v852, %v848
    %v1021 = vpack.c.b16 %v857, %v853
    %v1022 = vpack.c.b16 %v858, %v854
    %v1023 = vpack.c.b16 %v859, %v855
    %v1024 = vpack.c.b16 %v860, %v856
    %v1025 = vpack.c.b16 %v865, %v861
    %v1026 = vpack.c.b16 %v866, %v862
    %v1027 = vpack.c.b16 %v867, %v863
    %v1028 = vpack.c.b16 %v868, %v864
    %v1029 = vpack.c.b16 %v873, %v869
    %v1030 = vpack.c.b16 %v874, %v870
    %v1031 = vpack.c.b16 %v875, %v871
    %v1032 = vpack.c.b16 %v876, %v872
    %v1033 = vpack.c.b16 %v881, %v877
    %v1034 = vpack.c.b16 %v882, %v878
    %v1035 = vpack.c.b16 %v883, %v879
    %v1036 = vpack.c.b16 %v884, %v880
    %v1037 = vpack.c.b16 %v889, %v885
    %v1038 = vpack.c.b16 %v890, %v886
    %v1039 = vpack.c.b16 %v891, %v887
    %v1040 = vpack.c.b16 %v892, %v888
    %v1041 = vpack.c.b16 %v897, %v893
    %v1042 = vpack.c.b16 %v898, %v894
    %v1043 = vpack.c.b16 %v899, %v895
    %v1044 = vpack.c.b16 %v900, %v896
    %v1045 = vpack.c.b16 %v905, %v901
    %v1046 = vpack.c.b16 %v906, %v902
    %v1047 = vpack.c.b16 %v907, %v903
    %v1048 = vpack.c.b16 %v908, %v904
    %v1049 = vpack.c.b16 %v913, %v909
    %v1050 = vpack.c.b16 %v914, %v910
    %v1051 = vpack.c.b16 %v915, %v911
    %v1052 = vpack.c.b16 %v916, %v912
    %v1053 = vpack.c.b16 %v921, %v917
    %v1054 = vpack.c.b16 %v922, %v918
    %v1055 = vpack.c.b16 %v923, %v919
    %v1056 = vpack.c.b16 %v924, %v920
    %v1057 = vpack.c.b16 %v929, %v925
    %v1058 = vpack.c.b16 %v930, %v926
    %v1059 = vpack.c.b16 %v931, %v927
    %v1060 = vpack.c.b16 %v932, %v928
    %1189 = vmatprep.subr.bf16.mxu0 %v962
    %1190 = vmatpush1.bf16.msra.mxu0 %v961
    %1191 = vmatprep.subr.bf16.mxu0 %v958
    %1192 = vmatpush1.bf16.msra.mxu0 %v957
    %1193 = vmatprep.subr.bf16.mxu0 %v954
    %1194 = vmatpush1.bf16.msra.mxu0 %v953
    %1195 = vmatprep.subr.bf16.mxu0 %v950
    %1196 = vmatpush1.bf16.msra.mxu0 %v949
    %1197 = vmatprep.subr.bf16.mxu0 %v946
    %1198 = vmatpush1.bf16.msra.mxu0 %v945
    %1199 = vmatprep.subr.bf16.mxu0 %v942
    %1200 = vmatpush1.bf16.msra.mxu0 %v941
    %1201 = vmatprep.subr.bf16.mxu0 %v938
    %1202 = vmatpush1.bf16.msra.mxu0 %v937
    %1203 = vmatprep.subr.bf16.mxu0 %v934
    %1204 = vmatpush1.bf16.msra.mxu0 %v933
    %1205 = vmatprep.subr.bf16.mxu0 %v994
    %1206 = vmatpush2.bf16.msra.mxu0 %v993
    %1207 = vmatprep.subr.bf16.mxu0 %v990
    %1208 = vmatpush2.bf16.msra.mxu0 %v989
    %1209 = vmatprep.subr.bf16.mxu0 %v986
    %1210 = vmatpush2.bf16.msra.mxu0 %v985
    %1211 = vmatprep.subr.bf16.mxu0 %v982
    %1212 = vmatpush2.bf16.msra.mxu0 %v981
    %1213 = vmatprep.subr.bf16.mxu0 %v978
    %1214 = vmatpush2.bf16.msra.mxu0 %v977
    %1215 = vmatprep.subr.bf16.mxu0 %v974
    %1216 = vmatpush2.bf16.msra.mxu0 %v973
    %1217 = vmatprep.subr.bf16.mxu0 %v970
    %1218 = vmatpush2.bf16.msra.mxu0 %v969
    %1219 = vmatprep.subr.bf16.mxu0 %v966
    %1220 = vmatpush2.bf16.msra.mxu0 %v965
    %1221 = vmatprep.mubr.bf16.mxu0 %v422
    %1222 = vmatmul.mubr.bf16.gmra.mxu0 %v421
    %v1223 = vpop.f32.mrf.mxu0
    %v1224 = vadd.f32 %v212, %v1223
    %v1225 = vpop.f32.mrf.mxu0
    %v1226 = vadd.f32 %v216, %v1225
    %v1227 = vpop.f32.mrf.mxu0
    %v1228 = vadd.f32 %v212, %v1227
    %v1229 = vpop.f32.mrf.mxu0
    %v1230 = vadd.f32 %v216, %v1229
    %1231 = vmatprep.mubr.bf16.mxu0 %v426
    %1232 = vmatmul.mubr.bf16.gmra.mxu0 %v425
    %v1233 = vpop.f32.mrf.mxu0
    %v1234 = vadd.f32 %v212, %v1233
    %v1235 = vpop.f32.mrf.mxu0
    %v1236 = vadd.f32 %v216, %v1235
    %v1237 = vpop.f32.mrf.mxu0
    %v1238 = vadd.f32 %v212, %v1237
    %v1239 = vpop.f32.mrf.mxu0
    %v1240 = vadd.f32 %v216, %v1239
    %1241 = vmatprep.mubr.bf16.mxu0 %v430
    %1242 = vmatmul.mubr.bf16.gmra.mxu0 %v429
    %v1243 = vpop.f32.mrf.mxu0
    %v1244 = vadd.f32 %v212, %v1243
    %v1245 = vpop.f32.mrf.mxu0
    %v1246 = vadd.f32 %v216, %v1245
    %v1247 = vpop.f32.mrf.mxu0
    %v1248 = vadd.f32 %v212, %v1247
    %v1249 = vpop.f32.mrf.mxu0
    %v1250 = vadd.f32 %v216, %v1249
    %1251 = vmatprep.mubr.bf16.mxu0 %v434
    %1252 = vmatmul.mubr.bf16.gmra.mxu0 %v433
    %v1253 = vpop.f32.mrf.mxu0
    %v1254 = vadd.f32 %v212, %v1253
    %v1255 = vpop.f32.mrf.mxu0
    %v1256 = vadd.f32 %v216, %v1255
    %v1257 = vpop.f32.mrf.mxu0
    %v1258 = vadd.f32 %v212, %v1257
    %v1259 = vpop.f32.mrf.mxu0
    %v1260 = vadd.f32 %v216, %v1259
    %1261 = vmatprep.mubr.bf16.mxu0 %v438
    %1262 = vmatmul.mubr.bf16.gmra.mxu0 %v437
    %v1263 = vpop.f32.mrf.mxu0
    %v1264 = vadd.f32 %v212, %v1263
    %v1265 = vpop.f32.mrf.mxu0
    %v1266 = vadd.f32 %v216, %v1265
    %v1267 = vpop.f32.mrf.mxu0
    %v1268 = vadd.f32 %v212, %v1267
    %v1269 = vpop.f32.mrf.mxu0
    %v1270 = vadd.f32 %v216, %v1269
    %1271 = vmatprep.mubr.bf16.mxu0 %v442
    %1272 = vmatmul.mubr.bf16.gmra.mxu0 %v441
    %v1273 = vpop.f32.mrf.mxu0
    %v1274 = vadd.f32 %v212, %v1273
    %v1275 = vpop.f32.mrf.mxu0
    %v1276 = vadd.f32 %v216, %v1275
    %v1277 = vpop.f32.mrf.mxu0
    %v1278 = vadd.f32 %v212, %v1277
    %v1279 = vpop.f32.mrf.mxu0
    %v1280 = vadd.f32 %v216, %v1279
    %1281 = vmatprep.mubr.bf16.mxu0 %v446
    %1282 = vmatmul.mubr.bf16.gmra.mxu0 %v445
    %v1283 = vpop.f32.mrf.mxu0
    %v1284 = vadd.f32 %v212, %v1283
    %v1285 = vpop.f32.mrf.mxu0
    %v1286 = vadd.f32 %v216, %v1285
    %v1287 = vpop.f32.mrf.mxu0
    %v1288 = vadd.f32 %v212, %v1287
    %v1289 = vpop.f32.mrf.mxu0
    %v1290 = vadd.f32 %v216, %v1289
    %1291 = vmatprep.mubr.bf16.mxu0 %v450
    %1292 = vmatmul.mubr.bf16.gmra.mxu0 %v449
    %v1293 = vpop.f32.mrf.mxu0
    %v1294 = vadd.f32 %v212, %v1293
    %v1295 = vpop.f32.mrf.mxu0
    %v1296 = vadd.f32 %v216, %v1295
    %v1297 = vpop.f32.mrf.mxu0
    %v1298 = vadd.f32 %v212, %v1297
    %v1299 = vpop.f32.mrf.mxu0
    %v1300 = vadd.f32 %v216, %v1299
    %1301 = vmatprep.mubr.bf16.mxu0 %v454
    %1302 = vmatmul.mubr.bf16.gmra.mxu0 %v453
    %v1303 = vpop.f32.mrf.mxu0
    %v1304 = vadd.f32 %v212, %v1303
    %v1305 = vpop.f32.mrf.mxu0
    %v1306 = vadd.f32 %v216, %v1305
    %v1307 = vpop.f32.mrf.mxu0
    %v1308 = vadd.f32 %v212, %v1307
    %v1309 = vpop.f32.mrf.mxu0
    %v1310 = vadd.f32 %v216, %v1309
    %1311 = vmatprep.mubr.bf16.mxu0 %v458
    %1312 = vmatmul.mubr.bf16.gmra.mxu0 %v457
    %v1313 = vpop.f32.mrf.mxu0
    %v1314 = vadd.f32 %v212, %v1313
    %v1315 = vpop.f32.mrf.mxu0
    %v1316 = vadd.f32 %v216, %v1315
    %v1317 = vpop.f32.mrf.mxu0
    %v1318 = vadd.f32 %v212, %v1317
    %v1319 = vpop.f32.mrf.mxu0
    %v1320 = vadd.f32 %v216, %v1319
    %1321 = vmatprep.mubr.bf16.mxu0 %v462
    %1322 = vmatmul.mubr.bf16.gmra.mxu0 %v461
    %v1323 = vpop.f32.mrf.mxu0
    %v1324 = vadd.f32 %v212, %v1323
    %v1325 = vpop.f32.mrf.mxu0
    %v1326 = vadd.f32 %v216, %v1325
    %v1327 = vpop.f32.mrf.mxu0
    %v1328 = vadd.f32 %v212, %v1327
    %v1329 = vpop.f32.mrf.mxu0
    %v1330 = vadd.f32 %v216, %v1329
    %1331 = vmatprep.mubr.bf16.mxu0 %v466
    %1332 = vmatmul.mubr.bf16.gmra.mxu0 %v465
    %v1333 = vpop.f32.mrf.mxu0
    %v1334 = vadd.f32 %v212, %v1333
    %v1335 = vpop.f32.mrf.mxu0
    %v1336 = vadd.f32 %v216, %v1335
    %v1337 = vpop.f32.mrf.mxu0
    %v1338 = vadd.f32 %v212, %v1337
    %v1339 = vpop.f32.mrf.mxu0
    %v1340 = vadd.f32 %v216, %v1339
    %1341 = vmatprep.mubr.bf16.mxu0 %v470
    %1342 = vmatmul.mubr.bf16.gmra.mxu0 %v469
    %v1343 = vpop.f32.mrf.mxu0
    %v1344 = vadd.f32 %v212, %v1343
    %v1345 = vpop.f32.mrf.mxu0
    %v1346 = vadd.f32 %v216, %v1345
    %v1347 = vpop.f32.mrf.mxu0
    %v1348 = vadd.f32 %v212, %v1347
    %v1349 = vpop.f32.mrf.mxu0
    %v1350 = vadd.f32 %v216, %v1349
    %1351 = vmatprep.mubr.bf16.mxu0 %v474
    %1352 = vmatmul.mubr.bf16.gmra.mxu0 %v473
    %v1353 = vpop.f32.mrf.mxu0
    %v1354 = vadd.f32 %v212, %v1353
    %v1355 = vpop.f32.mrf.mxu0
    %v1356 = vadd.f32 %v216, %v1355
    %v1357 = vpop.f32.mrf.mxu0
    %v1358 = vadd.f32 %v212, %v1357
    %v1359 = vpop.f32.mrf.mxu0
    %v1360 = vadd.f32 %v216, %v1359
    %1361 = vmatprep.mubr.bf16.mxu0 %v478
    %1362 = vmatmul.mubr.bf16.gmra.mxu0 %v477
    %v1363 = vpop.f32.mrf.mxu0
    %v1364 = vadd.f32 %v212, %v1363
    %v1365 = vpop.f32.mrf.mxu0
    %v1366 = vadd.f32 %v216, %v1365
    %v1367 = vpop.f32.mrf.mxu0
    %v1368 = vadd.f32 %v212, %v1367
    %v1369 = vpop.f32.mrf.mxu0
    %v1370 = vadd.f32 %v216, %v1369
    %1371 = vmatprep.mubr.bf16.mxu0 %v482
    %1372 = vmatmul.mubr.bf16.gmra.mxu0 %v481
    %v1373 = vpop.f32.mrf.mxu0
    %v1374 = vadd.f32 %v212, %v1373
    %v1375 = vpop.f32.mrf.mxu0
    %v1376 = vadd.f32 %v216, %v1375
    %v1377 = vpop.f32.mrf.mxu0
    %v1378 = vadd.f32 %v212, %v1377
    %v1379 = vpop.f32.mrf.mxu0
    %v1380 = vadd.f32 %v216, %v1379
    %1381 = vdwg.mxu0
    %1382 = vmatprep.subr.bf16.mxu0 %v1026
    %1383 = vmatpush1.bf16.msra.mxu0 %v1025
    %1384 = vmatprep.subr.bf16.mxu0 %v1022
    %1385 = vmatpush1.bf16.msra.mxu0 %v1021
    %1386 = vmatprep.subr.bf16.mxu0 %v1018
    %1387 = vmatpush1.bf16.msra.mxu0 %v1017
    %1388 = vmatprep.subr.bf16.mxu0 %v1014
    %1389 = vmatpush1.bf16.msra.mxu0 %v1013
    %1390 = vmatprep.subr.bf16.mxu0 %v1010
    %1391 = vmatpush1.bf16.msra.mxu0 %v1009
    %1392 = vmatprep.subr.bf16.mxu0 %v1006
    %1393 = vmatpush1.bf16.msra.mxu0 %v1005
    %1394 = vmatprep.subr.bf16.mxu0 %v1002
    %1395 = vmatpush1.bf16.msra.mxu0 %v1001
    %1396 = vmatprep.subr.bf16.mxu0 %v998
    %1397 = vmatpush1.bf16.msra.mxu0 %v997
    %1398 = vmatprep.subr.bf16.mxu0 %v1058
    %1399 = vmatpush2.bf16.msra.mxu0 %v1057
    %1400 = vmatprep.subr.bf16.mxu0 %v1054
    %1401 = vmatpush2.bf16.msra.mxu0 %v1053
    %1402 = vmatprep.subr.bf16.mxu0 %v1050
    %1403 = vmatpush2.bf16.msra.mxu0 %v1049
    %1404 = vmatprep.subr.bf16.mxu0 %v1046
    %1405 = vmatpush2.bf16.msra.mxu0 %v1045
    %1406 = vmatprep.subr.bf16.mxu0 %v1042
    %1407 = vmatpush2.bf16.msra.mxu0 %v1041
    %1408 = vmatprep.subr.bf16.mxu0 %v1038
    %1409 = vmatpush2.bf16.msra.mxu0 %v1037
    %1410 = vmatprep.subr.bf16.mxu0 %v1034
    %1411 = vmatpush2.bf16.msra.mxu0 %v1033
    %1412 = vmatprep.subr.bf16.mxu0 %v1030
    %1413 = vmatpush2.bf16.msra.mxu0 %v1029
    %1414 = vmatprep.mubr.bf16.mxu0 %v424
    %1415 = vmatmul.mubr.bf16.gmra.mxu0 %v423
    %v1416 = vpop.f32.mrf.mxu0
    %v1417 = vadd.f32 %v1224, %v1416
    %v1418 = vpop.f32.mrf.mxu0
    %v1419 = vadd.f32 %v1226, %v1418
    %v1420 = vpop.f32.mrf.mxu0
    %v1421 = vadd.f32 %v1228, %v1420
    %v1422 = vpop.f32.mrf.mxu0
    %v1423 = vadd.f32 %v1230, %v1422
    %1424 = vmatprep.mubr.bf16.mxu0 %v428
    %1425 = vmatmul.mubr.bf16.gmra.mxu0 %v427
    %v1426 = vpop.f32.mrf.mxu0
    %v1427 = vadd.f32 %v1234, %v1426
    %v1428 = vpop.f32.mrf.mxu0
    %v1429 = vadd.f32 %v1236, %v1428
    %v1430 = vpop.f32.mrf.mxu0
    %v1431 = vadd.f32 %v1238, %v1430
    %v1432 = vpop.f32.mrf.mxu0
    %v1433 = vadd.f32 %v1240, %v1432
    %1434 = vmatprep.mubr.bf16.mxu0 %v432
    %1435 = vmatmul.mubr.bf16.gmra.mxu0 %v431
    %v1436 = vpop.f32.mrf.mxu0
    %v1437 = vadd.f32 %v1244, %v1436
    %v1438 = vpop.f32.mrf.mxu0
    %v1439 = vadd.f32 %v1246, %v1438
    %v1440 = vpop.f32.mrf.mxu0
    %v1441 = vadd.f32 %v1248, %v1440
    %v1442 = vpop.f32.mrf.mxu0
    %v1443 = vadd.f32 %v1250, %v1442
    %1444 = vmatprep.mubr.bf16.mxu0 %v436
    %1445 = vmatmul.mubr.bf16.gmra.mxu0 %v435
    %v1446 = vpop.f32.mrf.mxu0
    %v1447 = vadd.f32 %v1254, %v1446
    %v1448 = vpop.f32.mrf.mxu0
    %v1449 = vadd.f32 %v1256, %v1448
    %v1450 = vpop.f32.mrf.mxu0
    %v1451 = vadd.f32 %v1258, %v1450
    %v1452 = vpop.f32.mrf.mxu0
    %v1453 = vadd.f32 %v1260, %v1452
    %1454 = vmatprep.mubr.bf16.mxu0 %v440
    %1455 = vmatmul.mubr.bf16.gmra.mxu0 %v439
    %v1456 = vpop.f32.mrf.mxu0
    %v1457 = vadd.f32 %v1264, %v1456
    %v1458 = vpop.f32.mrf.mxu0
    %v1459 = vadd.f32 %v1266, %v1458
    %v1460 = vpop.f32.mrf.mxu0
    %v1461 = vadd.f32 %v1268, %v1460
    %v1462 = vpop.f32.mrf.mxu0
    %v1463 = vadd.f32 %v1270, %v1462
    %1464 = vmatprep.mubr.bf16.mxu0 %v444
    %1465 = vmatmul.mubr.bf16.gmra.mxu0 %v443
    %v1466 = vpop.f32.mrf.mxu0
    %v1467 = vadd.f32 %v1274, %v1466
    %v1468 = vpop.f32.mrf.mxu0
    %v1469 = vadd.f32 %v1276, %v1468
    %v1470 = vpop.f32.mrf.mxu0
    %v1471 = vadd.f32 %v1278, %v1470
    %v1472 = vpop.f32.mrf.mxu0
    %v1473 = vadd.f32 %v1280, %v1472
    %1474 = vmatprep.mubr.bf16.mxu0 %v448
    %1475 = vmatmul.mubr.bf16.gmra.mxu0 %v447
    %v1476 = vpop.f32.mrf.mxu0
    %v1477 = vadd.f32 %v1284, %v1476
    %v1478 = vpop.f32.mrf.mxu0
    %v1479 = vadd.f32 %v1286, %v1478
    %v1480 = vpop.f32.mrf.mxu0
    %v1481 = vadd.f32 %v1288, %v1480
    %v1482 = vpop.f32.mrf.mxu0
    %v1483 = vadd.f32 %v1290, %v1482
    %1484 = vmatprep.mubr.bf16.mxu0 %v452
    %1485 = vmatmul.mubr.bf16.gmra.mxu0 %v451
    %v1486 = vpop.f32.mrf.mxu0
    %v1487 = vadd.f32 %v1294, %v1486
    %v1488 = vpop.f32.mrf.mxu0
    %v1489 = vadd.f32 %v1296, %v1488
    %v1490 = vpop.f32.mrf.mxu0
    %v1491 = vadd.f32 %v1298, %v1490
    %v1492 = vpop.f32.mrf.mxu0
    %v1493 = vadd.f32 %v1300, %v1492
    %1494 = vmatprep.mubr.bf16.mxu0 %v456
    %1495 = vmatmul.mubr.bf16.gmra.mxu0 %v455
    %v1496 = vpop.f32.mrf.mxu0
    %v1497 = vadd.f32 %v1304, %v1496
    %v1498 = vpop.f32.mrf.mxu0
    %v1499 = vadd.f32 %v1306, %v1498
    %v1500 = vpop.f32.mrf.mxu0
    %v1501 = vadd.f32 %v1308, %v1500
    %v1502 = vpop.f32.mrf.mxu0
    %v1503 = vadd.f32 %v1310, %v1502
    %1504 = vmatprep.mubr.bf16.mxu0 %v460
    %1505 = vmatmul.mubr.bf16.gmra.mxu0 %v459
    %v1506 = vpop.f32.mrf.mxu0
    %v1507 = vadd.f32 %v1314, %v1506
    %v1508 = vpop.f32.mrf.mxu0
    %v1509 = vadd.f32 %v1316, %v1508
    %v1510 = vpop.f32.mrf.mxu0
    %v1511 = vadd.f32 %v1318, %v1510
    %v1512 = vpop.f32.mrf.mxu0
    %v1513 = vadd.f32 %v1320, %v1512
    %1514 = vmatprep.mubr.bf16.mxu0 %v464
    %1515 = vmatmul.mubr.bf16.gmra.mxu0 %v463
    %v1516 = vpop.f32.mrf.mxu0
    %v1517 = vadd.f32 %v1324, %v1516
    %v1518 = vpop.f32.mrf.mxu0
    %v1519 = vadd.f32 %v1326, %v1518
    %v1520 = vpop.f32.mrf.mxu0
    %v1521 = vadd.f32 %v1328, %v1520
    %v1522 = vpop.f32.mrf.mxu0
    %v1523 = vadd.f32 %v1330, %v1522
    %1524 = vmatprep.mubr.bf16.mxu0 %v468
    %1525 = vmatmul.mubr.bf16.gmra.mxu0 %v467
    %v1526 = vpop.f32.mrf.mxu0
    %v1527 = vadd.f32 %v1334, %v1526
    %v1528 = vpop.f32.mrf.mxu0
    %v1529 = vadd.f32 %v1336, %v1528
    %v1530 = vpop.f32.mrf.mxu0
    %v1531 = vadd.f32 %v1338, %v1530
    %v1532 = vpop.f32.mrf.mxu0
    %v1533 = vadd.f32 %v1340, %v1532
    %1534 = vmatprep.mubr.bf16.mxu0 %v472
    %1535 = vmatmul.mubr.bf16.gmra.mxu0 %v471
    %v1536 = vpop.f32.mrf.mxu0
    %v1537 = vadd.f32 %v1344, %v1536
    %v1538 = vpop.f32.mrf.mxu0
    %v1539 = vadd.f32 %v1346, %v1538
    %v1540 = vpop.f32.mrf.mxu0
    %v1541 = vadd.f32 %v1348, %v1540
    %v1542 = vpop.f32.mrf.mxu0
    %v1543 = vadd.f32 %v1350, %v1542
    %1544 = vmatprep.mubr.bf16.mxu0 %v476
    %1545 = vmatmul.mubr.bf16.gmra.mxu0 %v475
    %v1546 = vpop.f32.mrf.mxu0
    %v1547 = vadd.f32 %v1354, %v1546
    %v1548 = vpop.f32.mrf.mxu0
    %v1549 = vadd.f32 %v1356, %v1548
    %v1550 = vpop.f32.mrf.mxu0
    %v1551 = vadd.f32 %v1358, %v1550
    %v1552 = vpop.f32.mrf.mxu0
    %v1553 = vadd.f32 %v1360, %v1552
    %1554 = vmatprep.mubr.bf16.mxu0 %v480
    %1555 = vmatmul.mubr.bf16.gmra.mxu0 %v479
    %v1556 = vpop.f32.mrf.mxu0
    %v1557 = vadd.f32 %v1364, %v1556
    %v1558 = vpop.f32.mrf.mxu0
    %v1559 = vadd.f32 %v1366, %v1558
    %v1560 = vpop.f32.mrf.mxu0
    %v1561 = vadd.f32 %v1368, %v1560
    %v1562 = vpop.f32.mrf.mxu0
    %v1563 = vadd.f32 %v1370, %v1562
    %1564 = vmatprep.mubr.bf16.mxu0 %v484
    %1565 = vmatmul.mubr.bf16.gmra.mxu0 %v483
    %v1566 = vpop.f32.mrf.mxu0
    %v1567 = vadd.f32 %v1374, %v1566
    %v1568 = vpop.f32.mrf.mxu0
    %v1569 = vadd.f32 %v1376, %v1568
    %v1570 = vpop.f32.mrf.mxu0
    %v1571 = vadd.f32 %v1378, %v1570
    %v1572 = vpop.f32.mrf.mxu0
    %v1573 = vadd.f32 %v1380, %v1572
    %1574 = vdwg.mxu0
    %1575 = vmatprep.subr.bf16.mxu0 %v964
    %1576 = vmatpush1.bf16.msra.mxu0 %v963
    %1577 = vmatprep.subr.bf16.mxu0 %v960
    %1578 = vmatpush1.bf16.msra.mxu0 %v959
    %1579 = vmatprep.subr.bf16.mxu0 %v956
    %1580 = vmatpush1.bf16.msra.mxu0 %v955
    %1581 = vmatprep.subr.bf16.mxu0 %v952
    %1582 = vmatpush1.bf16.msra.mxu0 %v951
    %1583 = vmatprep.subr.bf16.mxu0 %v948
    %1584 = vmatpush1.bf16.msra.mxu0 %v947
    %1585 = vmatprep.subr.bf16.mxu0 %v944
    %1586 = vmatpush1.bf16.msra.mxu0 %v943
    %1587 = vmatprep.subr.bf16.mxu0 %v940
    %1588 = vmatpush1.bf16.msra.mxu0 %v939
    %1589 = vmatprep.subr.bf16.mxu0 %v936
    %1590 = vmatpush1.bf16.msra.mxu0 %v935
    %1591 = vmatprep.subr.bf16.mxu0 %v996
    %1592 = vmatpush2.bf16.msra.mxu0 %v995
    %1593 = vmatprep.subr.bf16.mxu0 %v992
    %1594 = vmatpush2.bf16.msra.mxu0 %v991
    %1595 = vmatprep.subr.bf16.mxu0 %v988
    %1596 = vmatpush2.bf16.msra.mxu0 %v987
    %1597 = vmatprep.subr.bf16.mxu0 %v984
    %1598 = vmatpush2.bf16.msra.mxu0 %v983
    %1599 = vmatprep.subr.bf16.mxu0 %v980
    %1600 = vmatpush2.bf16.msra.mxu0 %v979
    %1601 = vmatprep.subr.bf16.mxu0 %v976
    %1602 = vmatpush2.bf16.msra.mxu0 %v975
    %1603 = vmatprep.subr.bf16.mxu0 %v972
    %1604 = vmatpush2.bf16.msra.mxu0 %v971
    %1605 = vmatprep.subr.bf16.mxu0 %v968
    %1606 = vmatpush2.bf16.msra.mxu0 %v967
    %1607 = vmatprep.mubr.bf16.mxu0 %v422
    %1608 = vmatmul.mubr.bf16.gmra.mxu0 %v421
    %v1609 = vpop.f32.mrf.mxu0
    %v1610 = vadd.f32 %v220, %v1609
    %v1611 = vpop.f32.mrf.mxu0
    %v1612 = vadd.f32 %v224, %v1611
    %v1613 = vpop.f32.mrf.mxu0
    %v1614 = vadd.f32 %v220, %v1613
    %v1615 = vpop.f32.mrf.mxu0
    %v1616 = vadd.f32 %v224, %v1615
    %1617 = vmatprep.mubr.bf16.mxu0 %v426
    %1618 = vmatmul.mubr.bf16.gmra.mxu0 %v425
    %v1619 = vpop.f32.mrf.mxu0
    %v1620 = vadd.f32 %v220, %v1619
    %v1621 = vpop.f32.mrf.mxu0
    %v1622 = vadd.f32 %v224, %v1621
    %v1623 = vpop.f32.mrf.mxu0
    %v1624 = vadd.f32 %v220, %v1623
    %v1625 = vpop.f32.mrf.mxu0
    %v1626 = vadd.f32 %v224, %v1625
    %1627 = vmatprep.mubr.bf16.mxu0 %v430
    %1628 = vmatmul.mubr.bf16.gmra.mxu0 %v429
    %v1629 = vpop.f32.mrf.mxu0
    %v1630 = vadd.f32 %v220, %v1629
    %v1631 = vpop.f32.mrf.mxu0
    %v1632 = vadd.f32 %v224, %v1631
    %v1633 = vpop.f32.mrf.mxu0
    %v1634 = vadd.f32 %v220, %v1633
    %v1635 = vpop.f32.mrf.mxu0
    %v1636 = vadd.f32 %v224, %v1635
    %1637 = vmatprep.mubr.bf16.mxu0 %v434
    %1638 = vmatmul.mubr.bf16.gmra.mxu0 %v433
    %v1639 = vpop.f32.mrf.mxu0
    %v1640 = vadd.f32 %v220, %v1639
    %v1641 = vpop.f32.mrf.mxu0
    %v1642 = vadd.f32 %v224, %v1641
    %v1643 = vpop.f32.mrf.mxu0
    %v1644 = vadd.f32 %v220, %v1643
    %v1645 = vpop.f32.mrf.mxu0
    %v1646 = vadd.f32 %v224, %v1645
    %1647 = vmatprep.mubr.bf16.mxu0 %v438
    %1648 = vmatmul.mubr.bf16.gmra.mxu0 %v437
    %v1649 = vpop.f32.mrf.mxu0
    %v1650 = vadd.f32 %v220, %v1649
    %v1651 = vpop.f32.mrf.mxu0
    %v1652 = vadd.f32 %v224, %v1651
    %v1653 = vpop.f32.mrf.mxu0
    %v1654 = vadd.f32 %v220, %v1653
    %v1655 = vpop.f32.mrf.mxu0
    %v1656 = vadd.f32 %v224, %v1655
    %1657 = vmatprep.mubr.bf16.mxu0 %v442
    %1658 = vmatmul.mubr.bf16.gmra.mxu0 %v441
    %v1659 = vpop.f32.mrf.mxu0
    %v1660 = vadd.f32 %v220, %v1659
    %v1661 = vpop.f32.mrf.mxu0
    %v1662 = vadd.f32 %v224, %v1661
    %v1663 = vpop.f32.mrf.mxu0
    %v1664 = vadd.f32 %v220, %v1663
    %v1665 = vpop.f32.mrf.mxu0
    %v1666 = vadd.f32 %v224, %v1665
    %1667 = vmatprep.mubr.bf16.mxu0 %v446
    %1668 = vmatmul.mubr.bf16.gmra.mxu0 %v445
    %v1669 = vpop.f32.mrf.mxu0
    %v1670 = vadd.f32 %v220, %v1669
    %v1671 = vpop.f32.mrf.mxu0
    %v1672 = vadd.f32 %v224, %v1671
    %v1673 = vpop.f32.mrf.mxu0
    %v1674 = vadd.f32 %v220, %v1673
    %v1675 = vpop.f32.mrf.mxu0
    %v1676 = vadd.f32 %v224, %v1675
    %1677 = vmatprep.mubr.bf16.mxu0 %v450
    %1678 = vmatmul.mubr.bf16.gmra.mxu0 %v449
    %v1679 = vpop.f32.mrf.mxu0
    %v1680 = vadd.f32 %v220, %v1679
    %v1681 = vpop.f32.mrf.mxu0
    %v1682 = vadd.f32 %v224, %v1681
    %v1683 = vpop.f32.mrf.mxu0
    %v1684 = vadd.f32 %v220, %v1683
    %v1685 = vpop.f32.mrf.mxu0
    %v1686 = vadd.f32 %v224, %v1685
    %1687 = vmatprep.mubr.bf16.mxu0 %v454
    %1688 = vmatmul.mubr.bf16.gmra.mxu0 %v453
    %v1689 = vpop.f32.mrf.mxu0
    %v1690 = vadd.f32 %v220, %v1689
    %v1691 = vpop.f32.mrf.mxu0
    %v1692 = vadd.f32 %v224, %v1691
    %v1693 = vpop.f32.mrf.mxu0
    %v1694 = vadd.f32 %v220, %v1693
    %v1695 = vpop.f32.mrf.mxu0
    %v1696 = vadd.f32 %v224, %v1695
    %1697 = vmatprep.mubr.bf16.mxu0 %v458
    %1698 = vmatmul.mubr.bf16.gmra.mxu0 %v457
    %v1699 = vpop.f32.mrf.mxu0
    %v1700 = vadd.f32 %v220, %v1699
    %v1701 = vpop.f32.mrf.mxu0
    %v1702 = vadd.f32 %v224, %v1701
    %v1703 = vpop.f32.mrf.mxu0
    %v1704 = vadd.f32 %v220, %v1703
    %v1705 = vpop.f32.mrf.mxu0
    %v1706 = vadd.f32 %v224, %v1705
    %1707 = vmatprep.mubr.bf16.mxu0 %v462
    %1708 = vmatmul.mubr.bf16.gmra.mxu0 %v461
    %v1709 = vpop.f32.mrf.mxu0
    %v1710 = vadd.f32 %v220, %v1709
    %v1711 = vpop.f32.mrf.mxu0
    %v1712 = vadd.f32 %v224, %v1711
    %v1713 = vpop.f32.mrf.mxu0
    %v1714 = vadd.f32 %v220, %v1713
    %v1715 = vpop.f32.mrf.mxu0
    %v1716 = vadd.f32 %v224, %v1715
    %1717 = vmatprep.mubr.bf16.mxu0 %v466
    %1718 = vmatmul.mubr.bf16.gmra.mxu0 %v465
    %v1719 = vpop.f32.mrf.mxu0
    %v1720 = vadd.f32 %v220, %v1719
    %v1721 = vpop.f32.mrf.mxu0
    %v1722 = vadd.f32 %v224, %v1721
    %v1723 = vpop.f32.mrf.mxu0
    %v1724 = vadd.f32 %v220, %v1723
    %v1725 = vpop.f32.mrf.mxu0
    %v1726 = vadd.f32 %v224, %v1725
    %1727 = vmatprep.mubr.bf16.mxu0 %v470
    %1728 = vmatmul.mubr.bf16.gmra.mxu0 %v469
    %v1729 = vpop.f32.mrf.mxu0
    %v1730 = vadd.f32 %v220, %v1729
    %v1731 = vpop.f32.mrf.mxu0
    %v1732 = vadd.f32 %v224, %v1731
    %v1733 = vpop.f32.mrf.mxu0
    %v1734 = vadd.f32 %v220, %v1733
    %v1735 = vpop.f32.mrf.mxu0
    %v1736 = vadd.f32 %v224, %v1735
    %1737 = vmatprep.mubr.bf16.mxu0 %v474
    %1738 = vmatmul.mubr.bf16.gmra.mxu0 %v473
    %v1739 = vpop.f32.mrf.mxu0
    %v1740 = vadd.f32 %v220, %v1739
    %v1741 = vpop.f32.mrf.mxu0
    %v1742 = vadd.f32 %v224, %v1741
    %v1743 = vpop.f32.mrf.mxu0
    %v1744 = vadd.f32 %v220, %v1743
    %v1745 = vpop.f32.mrf.mxu0
    %v1746 = vadd.f32 %v224, %v1745
    %1747 = vmatprep.mubr.bf16.mxu0 %v478
    %1748 = vmatmul.mubr.bf16.gmra.mxu0 %v477
    %v1749 = vpop.f32.mrf.mxu0
    %v1750 = vadd.f32 %v220, %v1749
    %v1751 = vpop.f32.mrf.mxu0
    %v1752 = vadd.f32 %v224, %v1751
    %v1753 = vpop.f32.mrf.mxu0
    %v1754 = vadd.f32 %v220, %v1753
    %v1755 = vpop.f32.mrf.mxu0
    %v1756 = vadd.f32 %v224, %v1755
    %1757 = vmatprep.mubr.bf16.mxu0 %v482
    %1758 = vmatmul.mubr.bf16.gmra.mxu0 %v481
    %v1759 = vpop.f32.mrf.mxu0
    %v1760 = vadd.f32 %v220, %v1759
    %v1761 = vpop.f32.mrf.mxu0
    %v1762 = vadd.f32 %v224, %v1761
    %v1763 = vpop.f32.mrf.mxu0
    %v1764 = vadd.f32 %v220, %v1763
    %v1765 = vpop.f32.mrf.mxu0
    %v1766 = vadd.f32 %v224, %v1765
    %1767 = vdwg.mxu0
    %1768 = vmatprep.subr.bf16.mxu0 %v1028
    %1769 = vmatpush1.bf16.msra.mxu0 %v1027
    %1770 = vmatprep.subr.bf16.mxu0 %v1024
    %1771 = vmatpush1.bf16.msra.mxu0 %v1023
    %1772 = vmatprep.subr.bf16.mxu0 %v1020
    %1773 = vmatpush1.bf16.msra.mxu0 %v1019
    %1774 = vmatprep.subr.bf16.mxu0 %v1016
    %1775 = vmatpush1.bf16.msra.mxu0 %v1015
    %1776 = vmatprep.subr.bf16.mxu0 %v1012
    %1777 = vmatpush1.bf16.msra.mxu0 %v1011
    %1778 = vmatprep.subr.bf16.mxu0 %v1008
    %1779 = vmatpush1.bf16.msra.mxu0 %v1007
    %1780 = vmatprep.subr.bf16.mxu0 %v1004
    %1781 = vmatpush1.bf16.msra.mxu0 %v1003
    %1782 = vmatprep.subr.bf16.mxu0 %v1000
    %1783 = vmatpush1.bf16.msra.mxu0 %v999
    %1784 = vmatprep.subr.bf16.mxu0 %v1060
    %1785 = vmatpush2.bf16.msra.mxu0 %v1059
    %1786 = vmatprep.subr.bf16.mxu0 %v1056
    %1787 = vmatpush2.bf16.msra.mxu0 %v1055
    %1788 = vmatprep.subr.bf16.mxu0 %v1052
    %1789 = vmatpush2.bf16.msra.mxu0 %v1051
    %1790 = vmatprep.subr.bf16.mxu0 %v1048
    %1791 = vmatpush2.bf16.msra.mxu0 %v1047
    %1792 = vmatprep.subr.bf16.mxu0 %v1044
    %1793 = vmatpush2.bf16.msra.mxu0 %v1043
    %1794 = vmatprep.subr.bf16.mxu0 %v1040
    %1795 = vmatpush2.bf16.msra.mxu0 %v1039
    %1796 = vmatprep.subr.bf16.mxu0 %v1036
    %1797 = vmatpush2.bf16.msra.mxu0 %v1035
    %1798 = vmatprep.subr.bf16.mxu0 %v1032
    %1799 = vmatpush2.bf16.msra.mxu0 %v1031
    %1800 = vmatprep.mubr.bf16.mxu0 %v424
    %1801 = vmatmul.mubr.bf16.gmra.mxu0 %v423
    %v1802 = vpop.f32.mrf.mxu0
    %v1803 = vadd.f32 %v1610, %v1802
    %v1804 = vpop.f32.mrf.mxu0
    %v1805 = vadd.f32 %v1612, %v1804
    %v1806 = vpop.f32.mrf.mxu0
    %v1807 = vadd.f32 %v1614, %v1806
    %v1808 = vpop.f32.mrf.mxu0
    %v1809 = vadd.f32 %v1616, %v1808
    %1810 = vmatprep.mubr.bf16.mxu0 %v428
    %1811 = vmatmul.mubr.bf16.gmra.mxu0 %v427
    %v1812 = vpop.f32.mrf.mxu0
    %v1813 = vadd.f32 %v1620, %v1812
    %v1814 = vpop.f32.mrf.mxu0
    %v1815 = vadd.f32 %v1622, %v1814
    %v1816 = vpop.f32.mrf.mxu0
    %v1817 = vadd.f32 %v1624, %v1816
    %v1818 = vpop.f32.mrf.mxu0
    %v1819 = vadd.f32 %v1626, %v1818
    %1820 = vmatprep.mubr.bf16.mxu0 %v432
    %1821 = vmatmul.mubr.bf16.gmra.mxu0 %v431
    %v1822 = vpop.f32.mrf.mxu0
    %v1823 = vadd.f32 %v1630, %v1822
    %v1824 = vpop.f32.mrf.mxu0
    %v1825 = vadd.f32 %v1632, %v1824
    %v1826 = vpop.f32.mrf.mxu0
    %v1827 = vadd.f32 %v1634, %v1826
    %v1828 = vpop.f32.mrf.mxu0
    %v1829 = vadd.f32 %v1636, %v1828
    %1830 = vmatprep.mubr.bf16.mxu0 %v436
    %1831 = vmatmul.mubr.bf16.gmra.mxu0 %v435
    %v1832 = vpop.f32.mrf.mxu0
    %v1833 = vadd.f32 %v1640, %v1832
    %v1834 = vpop.f32.mrf.mxu0
    %v1835 = vadd.f32 %v1642, %v1834
    %v1836 = vpop.f32.mrf.mxu0
    %v1837 = vadd.f32 %v1644, %v1836
    %v1838 = vpop.f32.mrf.mxu0
    %v1839 = vadd.f32 %v1646, %v1838
    %1840 = vmatprep.mubr.bf16.mxu0 %v440
    %1841 = vmatmul.mubr.bf16.gmra.mxu0 %v439
    %v1842 = vpop.f32.mrf.mxu0
    %v1843 = vadd.f32 %v1650, %v1842
    %v1844 = vpop.f32.mrf.mxu0
    %v1845 = vadd.f32 %v1652, %v1844
    %v1846 = vpop.f32.mrf.mxu0
    %v1847 = vadd.f32 %v1654, %v1846
    %v1848 = vpop.f32.mrf.mxu0
    %v1849 = vadd.f32 %v1656, %v1848
    %1850 = vmatprep.mubr.bf16.mxu0 %v444
    %1851 = vmatmul.mubr.bf16.gmra.mxu0 %v443
    %v1852 = vpop.f32.mrf.mxu0
    %v1853 = vadd.f32 %v1660, %v1852
    %v1854 = vpop.f32.mrf.mxu0
    %v1855 = vadd.f32 %v1662, %v1854
    %v1856 = vpop.f32.mrf.mxu0
    %v1857 = vadd.f32 %v1664, %v1856
    %v1858 = vpop.f32.mrf.mxu0
    %v1859 = vadd.f32 %v1666, %v1858
    %1860 = vmatprep.mubr.bf16.mxu0 %v448
    %1861 = vmatmul.mubr.bf16.gmra.mxu0 %v447
    %v1862 = vpop.f32.mrf.mxu0
    %v1863 = vadd.f32 %v1670, %v1862
    %v1864 = vpop.f32.mrf.mxu0
    %v1865 = vadd.f32 %v1672, %v1864
    %v1866 = vpop.f32.mrf.mxu0
    %v1867 = vadd.f32 %v1674, %v1866
    %v1868 = vpop.f32.mrf.mxu0
    %v1869 = vadd.f32 %v1676, %v1868
    %1870 = vmatprep.mubr.bf16.mxu0 %v452
    %1871 = vmatmul.mubr.bf16.gmra.mxu0 %v451
    %v1872 = vpop.f32.mrf.mxu0
    %v1873 = vadd.f32 %v1680, %v1872
    %v1874 = vpop.f32.mrf.mxu0
    %v1875 = vadd.f32 %v1682, %v1874
    %v1876 = vpop.f32.mrf.mxu0
    %v1877 = vadd.f32 %v1684, %v1876
    %v1878 = vpop.f32.mrf.mxu0
    %v1879 = vadd.f32 %v1686, %v1878
    %1880 = vmatprep.mubr.bf16.mxu0 %v456
    %1881 = vmatmul.mubr.bf16.gmra.mxu0 %v455
    %v1882 = vpop.f32.mrf.mxu0
    %v1883 = vadd.f32 %v1690, %v1882
    %v1884 = vpop.f32.mrf.mxu0
    %v1885 = vadd.f32 %v1692, %v1884
    %v1886 = vpop.f32.mrf.mxu0
    %v1887 = vadd.f32 %v1694, %v1886
    %v1888 = vpop.f32.mrf.mxu0
    %v1889 = vadd.f32 %v1696, %v1888
    %1890 = vmatprep.mubr.bf16.mxu0 %v460
    %1891 = vmatmul.mubr.bf16.gmra.mxu0 %v459
    %v1892 = vpop.f32.mrf.mxu0
    %v1893 = vadd.f32 %v1700, %v1892
    %v1894 = vpop.f32.mrf.mxu0
    %v1895 = vadd.f32 %v1702, %v1894
    %v1896 = vpop.f32.mrf.mxu0
    %v1897 = vadd.f32 %v1704, %v1896
    %v1898 = vpop.f32.mrf.mxu0
    %v1899 = vadd.f32 %v1706, %v1898
    %1900 = vmatprep.mubr.bf16.mxu0 %v464
    %1901 = vmatmul.mubr.bf16.gmra.mxu0 %v463
    %v1902 = vpop.f32.mrf.mxu0
    %v1903 = vadd.f32 %v1710, %v1902
    %v1904 = vpop.f32.mrf.mxu0
    %v1905 = vadd.f32 %v1712, %v1904
    %v1906 = vpop.f32.mrf.mxu0
    %v1907 = vadd.f32 %v1714, %v1906
    %v1908 = vpop.f32.mrf.mxu0
    %v1909 = vadd.f32 %v1716, %v1908
    %1910 = vmatprep.mubr.bf16.mxu0 %v468
    %1911 = vmatmul.mubr.bf16.gmra.mxu0 %v467
    %v1912 = vpop.f32.mrf.mxu0
    %v1913 = vadd.f32 %v1720, %v1912
    %v1914 = vpop.f32.mrf.mxu0
    %v1915 = vadd.f32 %v1722, %v1914
    %v1916 = vpop.f32.mrf.mxu0
    %v1917 = vadd.f32 %v1724, %v1916
    %v1918 = vpop.f32.mrf.mxu0
    %v1919 = vadd.f32 %v1726, %v1918
    %1920 = vmatprep.mubr.bf16.mxu0 %v472
    %1921 = vmatmul.mubr.bf16.gmra.mxu0 %v471
    %v1922 = vpop.f32.mrf.mxu0
    %v1923 = vadd.f32 %v1730, %v1922
    %v1924 = vpop.f32.mrf.mxu0
    %v1925 = vadd.f32 %v1732, %v1924
    %v1926 = vpop.f32.mrf.mxu0
    %v1927 = vadd.f32 %v1734, %v1926
    %v1928 = vpop.f32.mrf.mxu0
    %v1929 = vadd.f32 %v1736, %v1928
    %1930 = vmatprep.mubr.bf16.mxu0 %v476
    %1931 = vmatmul.mubr.bf16.gmra.mxu0 %v475
    %v1932 = vpop.f32.mrf.mxu0
    %v1933 = vadd.f32 %v1740, %v1932
    %v1934 = vpop.f32.mrf.mxu0
    %v1935 = vadd.f32 %v1742, %v1934
    %v1936 = vpop.f32.mrf.mxu0
    %v1937 = vadd.f32 %v1744, %v1936
    %v1938 = vpop.f32.mrf.mxu0
    %v1939 = vadd.f32 %v1746, %v1938
    %1940 = vmatprep.mubr.bf16.mxu0 %v480
    %1941 = vmatmul.mubr.bf16.gmra.mxu0 %v479
    %v1942 = vpop.f32.mrf.mxu0
    %v1943 = vadd.f32 %v1750, %v1942
    %v1944 = vpop.f32.mrf.mxu0
    %v1945 = vadd.f32 %v1752, %v1944
    %v1946 = vpop.f32.mrf.mxu0
    %v1947 = vadd.f32 %v1754, %v1946
    %v1948 = vpop.f32.mrf.mxu0
    %v1949 = vadd.f32 %v1756, %v1948
    %1950 = vmatprep.mubr.bf16.mxu0 %v484
    %1951 = vmatmul.mubr.bf16.gmra.mxu0 %v483
    %v1952 = vpop.f32.mrf.mxu0
    %v1953 = vadd.f32 %v1760, %v1952
    %v1954 = vpop.f32.mrf.mxu0
    %v1955 = vadd.f32 %v1762, %v1954
    %v1956 = vpop.f32.mrf.mxu0
    %v1957 = vadd.f32 %v1764, %v1956
    %v1958 = vpop.f32.mrf.mxu0
    %v1959 = vadd.f32 %v1766, %v1958
    %1960 = vdwg.mxu0
    %1961 = vst [vmem:[#allocation2] sm:$0xff] %v1417
    %1962 = vst [vmem:[#allocation2 + $0x8] sm:$0xff] %v1419
    %1963 = vst [vmem:[#allocation2 + $0x10] sm:$0xff] %v1803
    %1964 = vst [vmem:[#allocation2 + $0x18] sm:$0xff] %v1805
    %1965 = vst [vmem:[#allocation2 + $0x20] sm:$0xff] %v1421
    %1966 = vst [vmem:[#allocation2 + $0x28] sm:$0xff] %v1423
    %1967 = vst [vmem:[#allocation2 + $0x30] sm:$0xff] %v1807
    %1968 = vst [vmem:[#allocation2 + $0x38] sm:$0xff] %v1809
    %1969 = vst [vmem:[#allocation2 + $0x40] sm:$0xff] %v1427
    %1970 = vst [vmem:[#allocation2 + $0x48] sm:$0xff] %v1429
    %1971 = vst [vmem:[#allocation2 + $0x50] sm:$0xff] %v1813
    %1972 = vst [vmem:[#allocation2 + $0x58] sm:$0xff] %v1815
    %1973 = vst [vmem:[#allocation2 + $0x60] sm:$0xff] %v1431
    %1974 = vst [vmem:[#allocation2 + $0x68] sm:$0xff] %v1433
    %1975 = vst [vmem:[#allocation2 + $0x70] sm:$0xff] %v1817
    %1976 = vst [vmem:[#allocation2 + $0x78] sm:$0xff] %v1819
    %1977 = vst [vmem:[#allocation2 + $0x80] sm:$0xff] %v1437
    %1978 = vst [vmem:[#allocation2 + $0x88] sm:$0xff] %v1439
    %1979 = vst [vmem:[#allocation2 + $0x90] sm:$0xff] %v1823
    %1980 = vst [vmem:[#allocation2 + $0x98] sm:$0xff] %v1825
    %1981 = vst [vmem:[#allocation2 + $0xa0] sm:$0xff] %v1441
    %1982 = vst [vmem:[#allocation2 + $0xa8] sm:$0xff] %v1443
    %1983 = vst [vmem:[#allocation2 + $0xb0] sm:$0xff] %v1827
    %1984 = vst [vmem:[#allocation2 + $0xb8] sm:$0xff] %v1829
    %1985 = vst [vmem:[#allocation2 + $0xc0] sm:$0xff] %v1447
    %1986 = vst [vmem:[#allocation2 + $0xc8] sm:$0xff] %v1449
    %1987 = vst [vmem:[#allocation2 + $0xd0] sm:$0xff] %v1833
    %1988 = vst [vmem:[#allocation2 + $0xd8] sm:$0xff] %v1835
    %1989 = vst [vmem:[#allocation2 + $0xe0] sm:$0xff] %v1451
    %1990 = vst [vmem:[#allocation2 + $0xe8] sm:$0xff] %v1453
    %1991 = vst [vmem:[#allocation2 + $0xf0] sm:$0xff] %v1837
    %1992 = vst [vmem:[#allocation2 + $0xf8] sm:$0xff] %v1839
    %1993 = vst [vmem:[#allocation2 + $0x100] sm:$0xff] %v1457
    %1994 = vst [vmem:[#allocation2 + $0x108] sm:$0xff] %v1459
    %1995 = vst [vmem:[#allocation2 + $0x110] sm:$0xff] %v1843
    %1996 = vst [vmem:[#allocation2 + $0x118] sm:$0xff] %v1845
    %1997 = vst [vmem:[#allocation2 + $0x120] sm:$0xff] %v1461
    %1998 = vst [vmem:[#allocation2 + $0x128] sm:$0xff] %v1463
    %1999 = vst [vmem:[#allocation2 + $0x130] sm:$0xff] %v1847
    %2000 = vst [vmem:[#allocation2 + $0x138] sm:$0xff] %v1849
    %2001 = vst [vmem:[#allocation2 + $0x140] sm:$0xff] %v1467
    %2002 = vst [vmem:[#allocation2 + $0x148] sm:$0xff] %v1469
    %2003 = vst [vmem:[#allocation2 + $0x150] sm:$0xff] %v1853
    %2004 = vst [vmem:[#allocation2 + $0x158] sm:$0xff] %v1855
    %2005 = vst [vmem:[#allocation2 + $0x160] sm:$0xff] %v1471
    %2006 = vst [vmem:[#allocation2 + $0x168] sm:$0xff] %v1473
    %2007 = vst [vmem:[#allocation2 + $0x170] sm:$0xff] %v1857
    %2008 = vst [vmem:[#allocation2 + $0x178] sm:$0xff] %v1859
    %2009 = vst [vmem:[#allocation2 + $0x180] sm:$0xff] %v1477
    %2010 = vst [vmem:[#allocation2 + $0x188] sm:$0xff] %v1479
    %2011 = vst [vmem:[#allocation2 + $0x190] sm:$0xff] %v1863
    %2012 = vst [vmem:[#allocation2 + $0x198] sm:$0xff] %v1865
    %2013 = vst [vmem:[#allocation2 + $0x1a0] sm:$0xff] %v1481
    %2014 = vst [vmem:[#allocation2 + $0x1a8] sm:$0xff] %v1483
    %2015 = vst [vmem:[#allocation2 + $0x1b0] sm:$0xff] %v1867
    %2016 = vst [vmem:[#allocation2 + $0x1b8] sm:$0xff] %v1869
    %2017 = vst [vmem:[#allocation2 + $0x1c0] sm:$0xff] %v1487
    %2018 = vst [vmem:[#allocation2 + $0x1c8] sm:$0xff] %v1489
    %2019 = vst [vmem:[#allocation2 + $0x1d0] sm:$0xff] %v1873
    %2020 = vst [vmem:[#allocation2 + $0x1d8] sm:$0xff] %v1875
    %2021 = vst [vmem:[#allocation2 + $0x1e0] sm:$0xff] %v1491
    %2022 = vst [vmem:[#allocation2 + $0x1e8] sm:$0xff] %v1493
    %2023 = vst [vmem:[#allocation2 + $0x1f0] sm:$0xff] %v1877
    %2024 = vst [vmem:[#allocation2 + $0x1f8] sm:$0xff] %v1879
    %2025 = vst [vmem:[#allocation2 + $0x200] sm:$0xff] %v1497
    %2026 = vst [vmem:[#allocation2 + $0x208] sm:$0xff] %v1499
    %2027 = vst [vmem:[#allocation2 + $0x210] sm:$0xff] %v1883
    %2028 = vst [vmem:[#allocation2 + $0x218] sm:$0xff] %v1885
    %2029 = vst [vmem:[#allocation2 + $0x220] sm:$0xff] %v1501
    %2030 = vst [vmem:[#allocation2 + $0x228] sm:$0xff] %v1503
    %2031 = vst [vmem:[#allocation2 + $0x230] sm:$0xff] %v1887
    %2032 = vst [vmem:[#allocation2 + $0x238] sm:$0xff] %v1889
    %2033 = vst [vmem:[#allocation2 + $0x240] sm:$0xff] %v1507
    %2034 = vst [vmem:[#allocation2 + $0x248] sm:$0xff] %v1509
    %2035 = vst [vmem:[#allocation2 + $0x250] sm:$0xff] %v1893
    %2036 = vst [vmem:[#allocation2 + $0x258] sm:$0xff] %v1895
    %2037 = vst [vmem:[#allocation2 + $0x260] sm:$0xff] %v1511
    %2038 = vst [vmem:[#allocation2 + $0x268] sm:$0xff] %v1513
    %2039 = vst [vmem:[#allocation2 + $0x270] sm:$0xff] %v1897
    %2040 = vst [vmem:[#allocation2 + $0x278] sm:$0xff] %v1899
    %2041 = vst [vmem:[#allocation2 + $0x280] sm:$0xff] %v1517
    %2042 = vst [vmem:[#allocation2 + $0x288] sm:$0xff] %v1519
    %2043 = vst [vmem:[#allocation2 + $0x290] sm:$0xff] %v1903
    %2044 = vst [vmem:[#allocation2 + $0x298] sm:$0xff] %v1905
    %2045 = vst [vmem:[#allocation2 + $0x2a0] sm:$0xff] %v1521
    %2046 = vst [vmem:[#allocation2 + $0x2a8] sm:$0xff] %v1523
    %2047 = vst [vmem:[#allocation2 + $0x2b0] sm:$0xff] %v1907
    %2048 = vst [vmem:[#allocation2 + $0x2b8] sm:$0xff] %v1909
    %2049 = vst [vmem:[#allocation2 + $0x2c0] sm:$0xff] %v1527
    %2050 = vst [vmem:[#allocation2 + $0x2c8] sm:$0xff] %v1529
    %2051 = vst [vmem:[#allocation2 + $0x2d0] sm:$0xff] %v1913
    %2052 = vst [vmem:[#allocation2 + $0x2d8] sm:$0xff] %v1915
    %2053 = vst [vmem:[#allocation2 + $0x2e0] sm:$0xff] %v1531
    %2054 = vst [vmem:[#allocation2 + $0x2e8] sm:$0xff] %v1533
    %2055 = vst [vmem:[#allocation2 + $0x2f0] sm:$0xff] %v1917
    %2056 = vst [vmem:[#allocation2 + $0x2f8] sm:$0xff] %v1919
    %2057 = vst [vmem:[#allocation2 + $0x300] sm:$0xff] %v1537
    %2058 = vst [vmem:[#allocation2 + $0x308] sm:$0xff] %v1539
    %2059 = vst [vmem:[#allocation2 + $0x310] sm:$0xff] %v1923
    %2060 = vst [vmem:[#allocation2 + $0x318] sm:$0xff] %v1925
    %2061 = vst [vmem:[#allocation2 + $0x320] sm:$0xff] %v1541
    %2062 = vst [vmem:[#allocation2 + $0x328] sm:$0xff] %v1543
    %2063 = vst [vmem:[#allocation2 + $0x330] sm:$0xff] %v1927
    %2064 = vst [vmem:[#allocation2 + $0x338] sm:$0xff] %v1929
    %2065 = vst [vmem:[#allocation2 + $0x340] sm:$0xff] %v1547
    %2066 = vst [vmem:[#allocation2 + $0x348] sm:$0xff] %v1549
    %2067 = vst [vmem:[#allocation2 + $0x350] sm:$0xff] %v1933
    %2068 = vst [vmem:[#allocation2 + $0x358] sm:$0xff] %v1935
    %2069 = vst [vmem:[#allocation2 + $0x360] sm:$0xff] %v1551
    %2070 = vst [vmem:[#allocation2 + $0x368] sm:$0xff] %v1553
    %2071 = vst [vmem:[#allocation2 + $0x370] sm:$0xff] %v1937
    %2072 = vst [vmem:[#allocation2 + $0x378] sm:$0xff] %v1939
    %2073 = vst [vmem:[#allocation2 + $0x380] sm:$0xff] %v1557
    %2074 = vst [vmem:[#allocation2 + $0x388] sm:$0xff] %v1559
    %2075 = vst [vmem:[#allocation2 + $0x390] sm:$0xff] %v1943
    %2076 = vst [vmem:[#allocation2 + $0x398] sm:$0xff] %v1945
    %2077 = vst [vmem:[#allocation2 + $0x3a0] sm:$0xff] %v1561
    %2078 = vst [vmem:[#allocation2 + $0x3a8] sm:$0xff] %v1563
    %2079 = vst [vmem:[#allocation2 + $0x3b0] sm:$0xff] %v1947
    %2080 = vst [vmem:[#allocation2 + $0x3b8] sm:$0xff] %v1949
    %2081 = vst [vmem:[#allocation2 + $0x3c0] sm:$0xff] %v1567
    %2082 = vst [vmem:[#allocation2 + $0x3c8] sm:$0xff] %v1569
    %2083 = vst [vmem:[#allocation2 + $0x3d0] sm:$0xff] %v1953
    %2084 = vst [vmem:[#allocation2 + $0x3d8] sm:$0xff] %v1955
    %2085 = vst [vmem:[#allocation2 + $0x3e0] sm:$0xff] %v1571
    %2086 = vst [vmem:[#allocation2 + $0x3e8] sm:$0xff] %v1573
    %2087 = vst [vmem:[#allocation2 + $0x3f0] sm:$0xff] %v1957
    %2088 = vst [vmem:[#allocation2 + $0x3f8] sm:$0xff] %v1959
    // Predicated region
    $region14: #{gqa_forward.5} parent=1 // pred_check
      _
    $region15: #{gqa_forward.5} parent=1 // pred_check_branch
      %2090 = sbr.rel (0) target = $region17
    $region16: #{gqa_forward.5} parent=1 // pred_region
      %s2092 = ssub.s32 16384, 16384
      %2093 = vsyncadd [#allocation3], %s2092
      %s2094 = sshll.u32 [#allocation2], 4
      %s2095 = int_to_ptr.vmem [resolvable:$true] %s2094
      %2100 = dma.vmem_to_hbm [thread:$0]  %s2095, 16384, %s3, [#allocation3], 512, 512, 32
    $region17: #{gqa_forward.5} parent=1 // pred_fallthru
      _
    // Predicated region
    $region18: #{gqa_forward.5} parent=1 // pred_check
      _
    $region19: #{gqa_forward.5} parent=1 // pred_check_branch
      %2102 = sbr.rel (0) target = $region21
    $region20: #{gqa_forward.5} parent=1 // pred_region
      %2103 = dma.done [#allocation3], 16384
    $region21: #{gqa_forward.5} parent=1 // pred_fallthru
      _
    %2104 = vsyncpa [#allocation3], 1

</llo_original>
